<compile_context>
chip_gen: v5e
topology: v5e:2x2
jax: 0.10.0
libtpu: 0.0.40
codegen_flags: <defaults>
</compile_context>

<pallas_src>
import math

import jax
import jax.numpy as jnp
from jax import lax
from jax.experimental import pallas as pl
from jax.experimental.pallas import tpu as pltpu

D_MODEL = 32
N_HEADS = 4
D_HEAD = D_MODEL // N_HEADS
D_FF = 64
N_LAYERS = 2
VOCAB = 16
EPS = 1e-6


# ----------------------------- fused Pallas kernel -----------------------------

def _fused_encdec_kernel(*refs):
    (x_src_ref, x_tgt_ref, src_mask_ref, tgt_mask_ref,
     # encoder (stacked over layers)
     e_ln1_g, e_ln1_b, e_wqkv, e_bqkv, e_wo, e_bo,
     e_ln2_g, e_ln2_b, e_w1, e_b1, e_w2, e_b2, e_ng, e_nb,
     # decoder (stacked over layers)
     d_ln1_g, d_ln1_b, d_swqkv, d_sbqkv, d_swo, d_sbo,
     d_ln2_g, d_ln2_b, d_cwqkv, d_cbqkv, d_cwo, d_cbo,
     d_ln3_g, d_ln3_b, d_w1, d_b1, d_w2, d_b2, d_ng, d_nb,
     o_ref) = refs

    def layer_norm(x, g, b):
        # Annotated-Transformer LayerNorm: g * (x - mean) / (std_unbiased + eps) + b
        mean = jnp.mean(x, axis=-1, keepdims=True)
        diff = x - mean
        var = jnp.sum(diff * diff, axis=-1, keepdims=True) * (1.0 / (x.shape[-1] - 1))
        std = jnp.sqrt(var)
        return g * diff / (std + EPS) + b

    def mha(x_q, x_kv, wqkv, bqkv, wo, bo, mask):
        # x_q: (Sq, D), x_kv: (Sk, D), wqkv: (D, 3D), bqkv: (1, 3D),
        # wo: (D, D), bo: (1, D), mask: (1 or Sq, Sk) float 0/1
        if x_q is x_kv:
            # self-attention: single fused QKV matmul on the shared LHS
            qkv = jnp.dot(x_q, wqkv, preferred_element_type=jnp.float32) + bqkv
            q = qkv[:, :D_MODEL]
            k = qkv[:, D_MODEL:2 * D_MODEL]
            v = qkv[:, 2 * D_MODEL:]
        else:
            # cross-attention: q from decoder stream, fused KV from encoder memory
            q = (jnp.dot(x_q, wqkv[:, :D_MODEL],
                         preferred_element_type=jnp.float32) + bqkv[:, :D_MODEL])
            kv = (jnp.dot(x_kv, wqkv[:, D_MODEL:],
                          preferred_element_type=jnp.float32) + bqkv[:, D_MODEL:])
            k = kv[:, :D_MODEL]
            v = kv[:, D_MODEL:]

        scale = 1.0 / math.sqrt(D_HEAD)
        heads = []
        for h in range(N_HEADS):          # unrolled at trace time (no grid overhead)
            sl = slice(h * D_HEAD, (h + 1) * D_HEAD)
            qh, kh, vh = q[:, sl], k[:, sl], v[:, sl]
            # contract last dims of q and k (no explicit transpose)
            s = lax.dot_general(qh, kh, (((1,), (1,)), ((), ())),
                                preferred_element_type=jnp.float32) * scale
            s = jnp.where(mask == 0.0, -1e9, s)          # masked_fill(mask == 0, -1e9)
            s = s - jnp.max(s, axis=-1, keepdims=True)
            p = jnp.exp(s)
            p = p * pl.reciprocal(jnp.sum(p, axis=-1, keepdims=True), approx=True)
            heads.append(jnp.dot(p, vh, preferred_element_type=jnp.float32))
        o = jnp.concatenate(heads, axis=-1)              # (Sq, D)
        return jnp.dot(o, wo, preferred_element_type=jnp.float32) + bo

    def ffn(x, w1, b1, w2, b2):
        h = jnp.dot(x, w1, preferred_element_type=jnp.float32) + b1
        h = jnp.maximum(h, 0.0)
        return jnp.dot(h, w2, preferred_element_type=jnp.float32) + b2

    src_mask = src_mask_ref[0]            # (1, S_src)
    tgt_mask = tgt_mask_ref[0]            # (S_tgt, S_tgt)

    # ---------------- encoder ----------------
    x = x_src_ref[0]                      # (S_src, D)
    for l in range(N_LAYERS):
        n1 = layer_norm(x, e_ln1_g[l], e_ln1_b[l])
        x = x + mha(n1, n1, e_wqkv[l], e_bqkv[l], e_wo[l], e_bo[l], src_mask)
        n2 = layer_norm(x, e_ln2_g[l], e_ln2_b[l])
        x = x + ffn(n2, e_w1[l], e_b1[l], e_w2[l], e_b2[l])
    memory = layer_norm(x, e_ng[...], e_nb[...])          # VMEM-resident memory

    # ---------------- decoder ----------------
    y = x_tgt_ref[0]                      # (S_tgt, D)
    for l in range(N_LAYERS):
        n1 = layer_norm(y, d_ln1_g[l], d_ln1_b[l])
        y = y + mha(n1, n1, d_swqkv[l], d_sbqkv[l], d_swo[l], d_sbo[l], tgt_mask)
        n2 = layer_norm(y, d_ln2_g[l], d_ln2_b[l])
        y = y + mha(n2, memory, d_cwqkv[l], d_cbqkv[l], d_cwo[l], d_cbo[l], src_mask)
        n3 = layer_norm(y, d_ln3_g[l], d_ln3_b[l])
        y = y + ffn(n3, d_w1[l], d_b1[l], d_w2[l], d_b2[l])
    out = layer_norm(y, d_ng[...], d_nb[...])

    o_ref[0] = out.astype(o_ref.dtype)


_ENC_KEYS = ("ln1_g", "ln1_b", "wqkv", "bqkv", "wo", "bo",
             "ln2_g", "ln2_b", "w1", "b1", "w2", "b2", "norm_g", "norm_b")
_DEC_KEYS = ("ln1_g", "ln1_b", "s_wqkv", "s_bqkv", "s_wo", "s_bo",
             "ln2_g", "ln2_b", "c_wqkv", "c_bqkv", "c_wo", "c_bo",
             "ln3_g", "ln3_b", "w1", "b1", "w2", "b2", "norm_g", "norm_b")


def _full_spec(shape):
    # whole array resident across the batch grid (block index constant)
    zeros = (0,) * len(shape)
    return pl.BlockSpec(tuple(shape), lambda b, _z=zeros: _z)


def _batch_spec(shape):
    # one batch element per grid step; remaining dims full (last two == array dims)
    rest = (0,) * (len(shape) - 1)
    return pl.BlockSpec((1,) + tuple(shape[1:]), lambda b, _r=rest: (b,) + _r)


def fused_encoder_decoder(x_src, x_tgt, src_mask, tgt_mask, enc, dec):
    B, S_tgt, _ = x_tgt.shape
    act_args = (x_src, x_tgt, src_mask, tgt_mask)
    w_args = tuple(enc[k] for k in _ENC_KEYS) + tuple(dec[k] for k in _DEC_KEYS)
    in_specs = ([_batch_spec(a.shape) for a in act_args]
                + [_full_spec(w.shape) for w in w_args])
    return pl.pallas_call(
        _fused_encdec_kernel,
        out_shape=jax.ShapeDtypeStruct((B, S_tgt, D_MODEL), x_tgt.dtype),
        grid=(B,),
        in_specs=in_specs,
        out_specs=_batch_spec((B, S_tgt, D_MODEL)),
        compiler_params=pltpu.CompilerParams(
            dimension_semantics=("parallel",)),   # v7x: shard batch over 2 TCs
    )(*act_args, *w_args)


# ------------------------------ jitted glue ------------------------------

def positional_encoding(seq_len, d_model):
    position = jnp.arange(seq_len, dtype=jnp.float32)[:, None]
    div_term = jnp.exp(jnp.arange(0, d_model, 2, dtype=jnp.float32)
                       * (-math.log(10000.0) / d_model))
    pe = jnp.zeros((seq_len, d_model), jnp.float32)
    pe = pe.at[:, 0::2].set(jnp.sin(position * div_term))
    pe = pe.at[:, 1::2].set(jnp.cos(position * div_term))
    return pe


def embed(table, ids):
    x = jnp.take(table, ids, axis=0) * math.sqrt(D_MODEL)
    return x + positional_encoding(ids.shape[1], D_MODEL)[None, :, :]


@jax.jit
def encoder_decoder_forward(params, src, tgt, src_mask, tgt_mask):
    # Exactly the module's forward: decode(encode(src, src_mask), src_mask, tgt, tgt_mask)
    # NOTE: `generator` is stored on the module but NOT applied in forward.
    x_src = embed(params["src_emb"], src)
    x_tgt = embed(params["tgt_emb"], tgt)
    return fused_encoder_decoder(
        x_src, x_tgt,
        src_mask.astype(jnp.float32), tgt_mask.astype(jnp.float32),
        params["enc"], params["dec"])


# ------------------------------ parameter init ------------------------------

def _dense(key, fan_in, fan_out):
    kw, kb = jax.random.split(key)
    w = jax.random.normal(kw, (fan_in, fan_out), jnp.float32) / math.sqrt(fan_in)
    b = jax.random.normal(kb, (1, fan_out), jnp.float32) * 0.01
    return w, b


def _stack_dense(key, n, fan_in, fan_out):
    ws, bs = [], []
    for k in jax.random.split(key, n):
        w, b = _dense(k, fan_in, fan_out)
        ws.append(w)
        bs.append(b)
    return jnp.stack(ws), jnp.stack(bs)   # (n, fan_in, fan_out), (n, 1, fan_out)


def init_params(key):
    keys = jax.random.split(key, 6)
    L = N_LAYERS

    def ones_ln():
        return jnp.ones((L, 1, D_MODEL), jnp.float32)

    def zeros_ln():
        return jnp.zeros((L, 1, D_MODEL), jnp.float32)

    ek = jax.random.split(keys[2], 4)
    enc = dict(
        ln1_g=ones_ln(), ln1_b=zeros_ln(), ln2_g=ones_ln(), ln2_b=zeros_ln(),
        norm_g=jnp.ones((1, D_MODEL), jnp.float32),
        norm_b=jnp.zeros((1, D_MODEL), jnp.float32),
    )
    enc["wqkv"], enc["bqkv"] = _stack_dense(ek[0], L, D_MODEL, 3 * D_MODEL)  # [Wq|Wk|Wv]
    enc["wo"], enc["bo"] = _stack_dense(ek[1], L, D_MODEL, D_MODEL)
    enc["w1"], enc["b1"] = _stack_dense(ek[2], L, D_MODEL, D_FF)
    enc["w2"], enc["b2"] = _stack_dense(ek[3], L, D_FF, D_MODEL)

    dk = jax.random.split(keys[3], 6)
    dec = dict(
        ln1_g=ones_ln(), ln1_b=zeros_ln(), ln2_g=ones_ln(), ln2_b=zeros_ln(),
        ln3_g=ones_ln(), ln3_b=zeros_ln(),
        norm_g=jnp.ones((1, D_MODEL), jnp.float32),
        norm_b=jnp.zeros((1, D_MODEL), jnp.float32),
    )
    dec["s_wqkv"], dec["s_bqkv"] = _stack_dense(dk[0], L, D_MODEL, 3 * D_MODEL)
    dec["s_wo"], dec["s_bo"] = _stack_dense(dk[1], L, D_MODEL, D_MODEL)
    dec["c_wqkv"], dec["c_bqkv"] = _stack_dense(dk[2], L, D_MODEL, 3 * D_MODEL)
    dec["c_wo"], dec["c_bo"] = _stack_dense(dk[3], L, D_MODEL, D_MODEL)
    dec["w1"], dec["b1"] = _stack_dense(dk[4], L, D_MODEL, D_FF)
    dec["w2"], dec["b2"] = _stack_dense(dk[5], L, D_FF, D_MODEL)

    # Generator (d_model -> vocab, log_softmax) exists on the module but is unused in forward.
    gw, gb = _dense(keys[4], D_MODEL, VOCAB)

    return dict(
        src_emb=jax.random.normal(keys[0], (VOCAB, D_MODEL), jnp.float32) * 0.1,
        tgt_emb=jax.random.normal(keys[1], (VOCAB, D_MODEL), jnp.float32) * 0.1,
        enc=enc, dec=dec,
        generator=dict(w=gw, b=gb),
    )


# ----------------------------------- main -----------------------------------

if __name__ == "__main__":
    key = jax.random.PRNGKey(0)
    kp, ks, kt = jax.random.split(key, 3)

    params = init_params(kp)

    B, S_SRC, S_TGT = 2, 8, 8
    src = jax.random.randint(ks, (B, S_SRC), 1, VOCAB, dtype=jnp.int32)
    tgt = jax.random.randint(kt, (B, S_TGT), 1, VOCAB, dtype=jnp.int32)

    # src_mask: (B, 1, S_src) pad mask; tgt_mask: (B, S_tgt, S_tgt) pad & causal.
    pad = 0
    src_mask = (src != pad)[:, None, :].astype(jnp.float32)
    causal = jnp.tril(jnp.ones((S_TGT, S_TGT), jnp.float32))
    tgt_pad = (tgt != pad)[:, None, :].astype(jnp.float32)
    tgt_mask = tgt_pad * causal[None, :, :]

    out = encoder_decoder_forward(params, src, tgt, src_mask, tgt_mask)
    out = jax.block_until_ready(out)

    assert out.shape == (B, S_TGT, D_MODEL), out.shape
    assert bool(jnp.all(jnp.isfinite(out)))
    print("KERNEL_OK")
</pallas_src>

<mosaic_0001>
module attributes {stable_mosaic.version = 11 : i64} {
  func.func @_fused_encdec_kernel(%arg0: i32, %arg1: memref<1x8x32xf32, #tpu.memory_space<vmem>>, %arg2: memref<1x8x32xf32, #tpu.memory_space<vmem>>, %arg3: memref<1x1x8xf32, #tpu.memory_space<vmem>>, %arg4: memref<1x8x8xf32, #tpu.memory_space<vmem>>, %arg5: memref<2x1x32xf32, #tpu.memory_space<vmem>>, %arg6: memref<2x1x32xf32, #tpu.memory_space<vmem>>, %arg7: memref<2x32x96xf32, #tpu.memory_space<vmem>>, %arg8: memref<2x1x96xf32, #tpu.memory_space<vmem>>, %arg9: memref<2x32x32xf32, #tpu.memory_space<vmem>>, %arg10: memref<2x1x32xf32, #tpu.memory_space<vmem>>, %arg11: memref<2x1x32xf32, #tpu.memory_space<vmem>>, %arg12: memref<2x1x32xf32, #tpu.memory_space<vmem>>, %arg13: memref<2x32x64xf32, #tpu.memory_space<vmem>>, %arg14: memref<2x1x64xf32, #tpu.memory_space<vmem>>, %arg15: memref<2x64x32xf32, #tpu.memory_space<vmem>>, %arg16: memref<2x1x32xf32, #tpu.memory_space<vmem>>, %arg17: memref<1x32xf32, #tpu.memory_space<vmem>>, %arg18: memref<1x32xf32, #tpu.memory_space<vmem>>, %arg19: memref<2x1x32xf32, #tpu.memory_space<vmem>>, %arg20: memref<2x1x32xf32, #tpu.memory_space<vmem>>, %arg21: memref<2x32x96xf32, #tpu.memory_space<vmem>>, %arg22: memref<2x1x96xf32, #tpu.memory_space<vmem>>, %arg23: memref<2x32x32xf32, #tpu.memory_space<vmem>>, %arg24: memref<2x1x32xf32, #tpu.memory_space<vmem>>, %arg25: memref<2x1x32xf32, #tpu.memory_space<vmem>>, %arg26: memref<2x1x32xf32, #tpu.memory_space<vmem>>, %arg27: memref<2x32x96xf32, #tpu.memory_space<vmem>>, %arg28: memref<2x1x96xf32, #tpu.memory_space<vmem>>, %arg29: memref<2x32x32xf32, #tpu.memory_space<vmem>>, %arg30: memref<2x1x32xf32, #tpu.memory_space<vmem>>, %arg31: memref<2x1x32xf32, #tpu.memory_space<vmem>>, %arg32: memref<2x1x32xf32, #tpu.memory_space<vmem>>, %arg33: memref<2x32x64xf32, #tpu.memory_space<vmem>>, %arg34: memref<2x1x64xf32, #tpu.memory_space<vmem>>, %arg35: memref<2x64x32xf32, #tpu.memory_space<vmem>>, %arg36: memref<2x1x32xf32, #tpu.memory_space<vmem>>, %arg37: memref<1x32xf32, #tpu.memory_space<vmem>>, %arg38: memref<1x32xf32, #tpu.memory_space<vmem>>, %arg39: memref<1x8x32xf32, #tpu.memory_space<vmem>>) attributes {dimension_semantics = [#tpu.dimension_semantics<parallel>], iteration_bounds = array<i64: 2>, scalar_prefetch = 0 : i64, scratch_operands = 0 : i64, tpu.core_type = #tpu.core_type<tc>, window_params = [{transform_indices = @transform_0, window_bounds = array<i64: 1, 8, 32>}, {transform_indices = @transform_1, window_bounds = array<i64: 1, 8, 32>}, {transform_indices = @transform_2, window_bounds = array<i64: 1, 1, 8>}, {transform_indices = @transform_3, window_bounds = array<i64: 1, 8, 8>}, {pipeline_mode = #tpu.pipeline_mode<synchronous>, transform_indices = @transform_4, window_bounds = array<i64: 2, 1, 32>}, {pipeline_mode = #tpu.pipeline_mode<synchronous>, transform_indices = @transform_5, window_bounds = array<i64: 2, 1, 32>}, {pipeline_mode = #tpu.pipeline_mode<synchronous>, transform_indices = @transform_6, window_bounds = array<i64: 2, 32, 96>}, {pipeline_mode = #tpu.pipeline_mode<synchronous>, transform_indices = @transform_7, window_bounds = array<i64: 2, 1, 96>}, {pipeline_mode = #tpu.pipeline_mode<synchronous>, transform_indices = @transform_8, window_bounds = array<i64: 2, 32, 32>}, {pipeline_mode = #tpu.pipeline_mode<synchronous>, transform_indices = @transform_9, window_bounds = array<i64: 2, 1, 32>}, {pipeline_mode = #tpu.pipeline_mode<synchronous>, transform_indices = @transform_10, window_bounds = array<i64: 2, 1, 32>}, {pipeline_mode = #tpu.pipeline_mode<synchronous>, transform_indices = @transform_11, window_bounds = array<i64: 2, 1, 32>}, {pipeline_mode = #tpu.pipeline_mode<synchronous>, transform_indices = @transform_12, window_bounds = array<i64: 2, 32, 64>}, {pipeline_mode = #tpu.pipeline_mode<synchronous>, transform_indices = @transform_13, window_bounds = array<i64: 2, 1, 64>}, {pipeline_mode = #tpu.pipeline_mode<synchronous>, transform_indices = @transform_14, window_bounds = array<i64: 2, 64, 32>}, {pipeline_mode = #tpu.pipeline_mode<synchronous>, transform_indices = @transform_15, window_bounds = array<i64: 2, 1, 32>}, {pipeline_mode = #tpu.pipeline_mode<synchronous>, transform_indices = @transform_16, window_bounds = array<i64: 1, 32>}, {pipeline_mode = #tpu.pipeline_mode<synchronous>, transform_indices = @transform_17, window_bounds = array<i64: 1, 32>}, {pipeline_mode = #tpu.pipeline_mode<synchronous>, transform_indices = @transform_18, window_bounds = array<i64: 2, 1, 32>}, {pipeline_mode = #tpu.pipeline_mode<synchronous>, transform_indices = @transform_19, window_bounds = array<i64: 2, 1, 32>}, {pipeline_mode = #tpu.pipeline_mode<synchronous>, transform_indices = @transform_20, window_bounds = array<i64: 2, 32, 96>}, {pipeline_mode = #tpu.pipeline_mode<synchronous>, transform_indices = @transform_21, window_bounds = array<i64: 2, 1, 96>}, {pipeline_mode = #tpu.pipeline_mode<synchronous>, transform_indices = @transform_22, window_bounds = array<i64: 2, 32, 32>}, {pipeline_mode = #tpu.pipeline_mode<synchronous>, transform_indices = @transform_23, window_bounds = array<i64: 2, 1, 32>}, {pipeline_mode = #tpu.pipeline_mode<synchronous>, transform_indices = @transform_24, window_bounds = array<i64: 2, 1, 32>}, {pipeline_mode = #tpu.pipeline_mode<synchronous>, transform_indices = @transform_25, window_bounds = array<i64: 2, 1, 32>}, {pipeline_mode = #tpu.pipeline_mode<synchronous>, transform_indices = @transform_26, window_bounds = array<i64: 2, 32, 96>}, {pipeline_mode = #tpu.pipeline_mode<synchronous>, transform_indices = @transform_27, window_bounds = array<i64: 2, 1, 96>}, {pipeline_mode = #tpu.pipeline_mode<synchronous>, transform_indices = @transform_28, window_bounds = array<i64: 2, 32, 32>}, {pipeline_mode = #tpu.pipeline_mode<synchronous>, transform_indices = @transform_29, window_bounds = array<i64: 2, 1, 32>}, {pipeline_mode = #tpu.pipeline_mode<synchronous>, transform_indices = @transform_30, window_bounds = array<i64: 2, 1, 32>}, {pipeline_mode = #tpu.pipeline_mode<synchronous>, transform_indices = @transform_31, window_bounds = array<i64: 2, 1, 32>}, {pipeline_mode = #tpu.pipeline_mode<synchronous>, transform_indices = @transform_32, window_bounds = array<i64: 2, 32, 64>}, {pipeline_mode = #tpu.pipeline_mode<synchronous>, transform_indices = @transform_33, window_bounds = array<i64: 2, 1, 64>}, {pipeline_mode = #tpu.pipeline_mode<synchronous>, transform_indices = @transform_34, window_bounds = array<i64: 2, 64, 32>}, {pipeline_mode = #tpu.pipeline_mode<synchronous>, transform_indices = @transform_35, window_bounds = array<i64: 2, 1, 32>}, {pipeline_mode = #tpu.pipeline_mode<synchronous>, transform_indices = @transform_36, window_bounds = array<i64: 1, 32>}, {pipeline_mode = #tpu.pipeline_mode<synchronous>, transform_indices = @transform_37, window_bounds = array<i64: 1, 32>}, {transform_indices = @transform_38, window_bounds = array<i64: 1, 8, 32>}]} {
    %c0 = arith.constant 0 : index
    %c0_0 = arith.constant 0 : index
    %c0_1 = arith.constant 0 : index
    %0 = vector.load %arg3[%c0, %c0_0, %c0_1] : memref<1x1x8xf32, #tpu.memory_space<vmem>>, vector<1x1x8xf32>
    %1 = vector.shape_cast %0 : vector<1x1x8xf32> to vector<1x8xf32>
    %c0_2 = arith.constant 0 : index
    %c0_3 = arith.constant 0 : index
    %c0_4 = arith.constant 0 : index
    %2 = vector.load %arg4[%c0_2, %c0_3, %c0_4] : memref<1x8x8xf32, #tpu.memory_space<vmem>>, vector<1x8x8xf32>
    %3 = vector.shape_cast %2 : vector<1x8x8xf32> to vector<8x8xf32>
    %c0_5 = arith.constant 0 : index
    %c0_6 = arith.constant 0 : index
    %c0_7 = arith.constant 0 : index
    %4 = vector.load %arg1[%c0_5, %c0_6, %c0_7] : memref<1x8x32xf32, #tpu.memory_space<vmem>>, vector<1x8x32xf32>
    %5 = vector.shape_cast %4 : vector<1x8x32xf32> to vector<8x32xf32>
    %c0_8 = arith.constant 0 : index
    %c0_9 = arith.constant 0 : index
    %c0_10 = arith.constant 0 : index
    %6 = vector.load %arg5[%c0_8, %c0_9, %c0_10] : memref<2x1x32xf32, #tpu.memory_space<vmem>>, vector<1x1x32xf32>
    %7 = vector.shape_cast %6 : vector<1x1x32xf32> to vector<1x32xf32>
    %c0_11 = arith.constant 0 : index
    %c0_12 = arith.constant 0 : index
    %c0_13 = arith.constant 0 : index
    %8 = vector.load %arg6[%c0_11, %c0_12, %c0_13] : memref<2x1x32xf32, #tpu.memory_space<vmem>>, vector<1x1x32xf32>
    %9 = vector.shape_cast %8 : vector<1x1x32xf32> to vector<1x32xf32>
    %cst = arith.constant dense<0.000000e+00> : vector<8xf32>
    %10 = vector.multi_reduction <add>, %5, %cst [1] : vector<8x32xf32> to vector<8xf32>
    %11 = vector.shape_cast %10 : vector<8xf32> to vector<8x1xf32>
    %cst_14 = arith.constant 3.200000e+01 : f32
    %12 = vector.broadcast %cst_14 : f32 to vector<8x1xf32>
    %13 = arith.divf %11, %12 : vector<8x1xf32>
    %14 = vector.broadcast %13 : vector<8x1xf32> to vector<8x32xf32>
    %15 = arith.subf %5, %14 : vector<8x32xf32>
    %16 = arith.mulf %15, %15 : vector<8x32xf32>
    %cst_15 = arith.constant dense<0.000000e+00> : vector<8xf32>
    %17 = vector.multi_reduction <add>, %16, %cst_15 [1] : vector<8x32xf32> to vector<8xf32>
    %18 = vector.shape_cast %17 : vector<8xf32> to vector<8x1xf32>
    %cst_16 = arith.constant 0.0322580636 : f32
    %19 = vector.broadcast %cst_16 : f32 to vector<8x1xf32>
    %20 = arith.mulf %18, %19 : vector<8x1xf32>
    %21 = math.sqrt %20 : vector<8x1xf32>
    %22 = vector.broadcast %7 : vector<1x32xf32> to vector<8x32xf32>
    %23 = arith.mulf %22, %15 : vector<8x32xf32>
    %cst_17 = arith.constant 9.99999997E-7 : f32
    %24 = vector.broadcast %cst_17 : f32 to vector<8x1xf32>
    %25 = arith.addf %21, %24 : vector<8x1xf32>
    %26 = vector.broadcast %25 : vector<8x1xf32> to vector<8x32xf32>
    %27 = arith.divf %23, %26 : vector<8x32xf32>
    %28 = vector.broadcast %9 : vector<1x32xf32> to vector<8x32xf32>
    %29 = arith.addf %27, %28 : vector<8x32xf32>
    %c0_18 = arith.constant 0 : index
    %c0_19 = arith.constant 0 : index
    %c0_20 = arith.constant 0 : index
    %30 = vector.load %arg7[%c0_18, %c0_19, %c0_20] : memref<2x32x96xf32, #tpu.memory_space<vmem>>, vector<1x32x96xf32>
    %31 = vector.shape_cast %30 : vector<1x32x96xf32> to vector<32x96xf32>
    %c0_21 = arith.constant 0 : index
    %c0_22 = arith.constant 0 : index
    %c0_23 = arith.constant 0 : index
    %32 = vector.load %arg8[%c0_21, %c0_22, %c0_23] : memref<2x1x96xf32, #tpu.memory_space<vmem>>, vector<1x1x96xf32>
    %33 = vector.shape_cast %32 : vector<1x1x96xf32> to vector<1x96xf32>
    %c0_24 = arith.constant 0 : index
    %c0_25 = arith.constant 0 : index
    %c0_26 = arith.constant 0 : index
    %34 = vector.load %arg9[%c0_24, %c0_25, %c0_26] : memref<2x32x32xf32, #tpu.memory_space<vmem>>, vector<1x32x32xf32>
    %35 = vector.shape_cast %34 : vector<1x32x32xf32> to vector<32x32xf32>
    %c0_27 = arith.constant 0 : index
    %c0_28 = arith.constant 0 : index
    %c0_29 = arith.constant 0 : index
    %36 = vector.load %arg10[%c0_27, %c0_28, %c0_29] : memref<2x1x32xf32, #tpu.memory_space<vmem>>, vector<1x1x32xf32>
    %37 = vector.shape_cast %36 : vector<1x1x32xf32> to vector<1x32xf32>
    %cst_30 = arith.constant dense<0.000000e+00> : vector<8x96xf32>
    %38 = tpu.matmul %29, %31, %cst_30 {dimension_numbers = #tpu.dot_dimension_numbers<[1], [0], [0], [1], [0, 0, 1, 1], [], []>} : vector<8x32xf32>, vector<32x96xf32>, vector<8x96xf32> -> vector<8x96xf32>
    %39 = vector.broadcast %33 : vector<1x96xf32> to vector<8x96xf32>
    %40 = arith.addf %38, %39 : vector<8x96xf32>
    %41 = vector.extract_strided_slice %40 {offsets = [0, 0], sizes = [8, 32], strides = [1, 1]} : vector<8x96xf32> to vector<8x32xf32>
    %42 = vector.extract_strided_slice %40 {offsets = [0, 32], sizes = [8, 32], strides = [1, 1]} : vector<8x96xf32> to vector<8x32xf32>
    %43 = vector.extract_strided_slice %40 {offsets = [0, 64], sizes = [8, 32], strides = [1, 1]} : vector<8x96xf32> to vector<8x32xf32>
    %44 = vector.extract_strided_slice %41 {offsets = [0, 0], sizes = [8, 8], strides = [1, 1]} : vector<8x32xf32> to vector<8x8xf32>
    %45 = vector.extract_strided_slice %42 {offsets = [0, 0], sizes = [8, 8], strides = [1, 1]} : vector<8x32xf32> to vector<8x8xf32>
    %46 = vector.extract_strided_slice %43 {offsets = [0, 0], sizes = [8, 8], strides = [1, 1]} : vector<8x32xf32> to vector<8x8xf32>
    %cst_31 = arith.constant dense<0.000000e+00> : vector<8x8xf32>
    %47 = tpu.matmul %44, %45, %cst_31 {dimension_numbers = #tpu.dot_dimension_numbers<[1], [1], [0], [0], [0, 0, 1, 0], [], []>} : vector<8x8xf32>, vector<8x8xf32>, vector<8x8xf32> -> vector<8x8xf32>
    %cst_32 = arith.constant 0.353553385 : f32
    %48 = vector.broadcast %cst_32 : f32 to vector<8x8xf32>
    %49 = arith.mulf %47, %48 : vector<8x8xf32>
    %cst_33 = arith.constant 0.000000e+00 : f32
    %50 = vector.broadcast %cst_33 : f32 to vector<1x8xf32>
    %51 = arith.cmpf oeq, %1, %50 : vector<1x8xf32>
    %cst_34 = arith.constant -1.000000e+09 : f32
    %52 = vector.shape_cast %51 : vector<1x8xi1> to vector<1x8xi1>
    %53 = vector.broadcast %52 : vector<1x8xi1> to vector<8x8xi1>
    %54 = vector.broadcast %cst_34 : f32 to vector<8x8xf32>
    %55 = arith.select %53, %54, %49 : vector<8x8xi1>, vector<8x8xf32>
    %cst_35 = arith.constant dense<0xFF800000> : vector<8xf32>
    %56 = vector.multi_reduction <maximumf>, %55, %cst_35 [1] : vector<8x8xf32> to vector<8xf32>
    %57 = vector.shape_cast %56 : vector<8xf32> to vector<8x1xf32>
    %58 = vector.broadcast %57 : vector<8x1xf32> to vector<8x8xf32>
    %59 = arith.subf %55, %58 : vector<8x8xf32>
    %60 = math.exp %59 : vector<8x8xf32>
    %cst_36 = arith.constant dense<0.000000e+00> : vector<8xf32>
    %61 = vector.multi_reduction <add>, %60, %cst_36 [1] : vector<8x8xf32> to vector<8xf32>
    %62 = vector.shape_cast %61 : vector<8xf32> to vector<8x1xf32>
    %63 = tpu.reciprocal %62 {approx = true} : vector<8x1xf32> -> vector<8x1xf32>
    %64 = vector.broadcast %63 : vector<8x1xf32> to vector<8x8xf32>
    %65 = arith.mulf %60, %64 : vector<8x8xf32>
    %cst_37 = arith.constant dense<0.000000e+00> : vector<8x8xf32>
    %66 = tpu.matmul %65, %46, %cst_37 {dimension_numbers = #tpu.dot_dimension_numbers<[1], [0], [0], [1], [0, 0, 1, 1], [], []>} : vector<8x8xf32>, vector<8x8xf32>, vector<8x8xf32> -> vector<8x8xf32>
    %67 = vector.extract_strided_slice %41 {offsets = [0, 8], sizes = [8, 8], strides = [1, 1]} : vector<8x32xf32> to vector<8x8xf32>
    %68 = vector.extract_strided_slice %42 {offsets = [0, 8], sizes = [8, 8], strides = [1, 1]} : vector<8x32xf32> to vector<8x8xf32>
    %69 = vector.extract_strided_slice %43 {offsets = [0, 8], sizes = [8, 8], strides = [1, 1]} : vector<8x32xf32> to vector<8x8xf32>
    %cst_38 = arith.constant dense<0.000000e+00> : vector<8x8xf32>
    %70 = tpu.matmul %67, %68, %cst_38 {dimension_numbers = #tpu.dot_dimension_numbers<[1], [1], [0], [0], [0, 0, 1, 0], [], []>} : vector<8x8xf32>, vector<8x8xf32>, vector<8x8xf32> -> vector<8x8xf32>
    %cst_39 = arith.constant 0.353553385 : f32
    %71 = vector.broadcast %cst_39 : f32 to vector<8x8xf32>
    %72 = arith.mulf %70, %71 : vector<8x8xf32>
    %cst_40 = arith.constant 0.000000e+00 : f32
    %73 = vector.broadcast %cst_40 : f32 to vector<1x8xf32>
    %74 = arith.cmpf oeq, %1, %73 : vector<1x8xf32>
    %cst_41 = arith.constant -1.000000e+09 : f32
    %75 = vector.shape_cast %74 : vector<1x8xi1> to vector<1x8xi1>
    %76 = vector.broadcast %75 : vector<1x8xi1> to vector<8x8xi1>
    %77 = vector.broadcast %cst_41 : f32 to vector<8x8xf32>
    %78 = arith.select %76, %77, %72 : vector<8x8xi1>, vector<8x8xf32>
    %cst_42 = arith.constant dense<0xFF800000> : vector<8xf32>
    %79 = vector.multi_reduction <maximumf>, %78, %cst_42 [1] : vector<8x8xf32> to vector<8xf32>
    %80 = vector.shape_cast %79 : vector<8xf32> to vector<8x1xf32>
    %81 = vector.broadcast %80 : vector<8x1xf32> to vector<8x8xf32>
    %82 = arith.subf %78, %81 : vector<8x8xf32>
    %83 = math.exp %82 : vector<8x8xf32>
    %cst_43 = arith.constant dense<0.000000e+00> : vector<8xf32>
    %84 = vector.multi_reduction <add>, %83, %cst_43 [1] : vector<8x8xf32> to vector<8xf32>
    %85 = vector.shape_cast %84 : vector<8xf32> to vector<8x1xf32>
    %86 = tpu.reciprocal %85 {approx = true} : vector<8x1xf32> -> vector<8x1xf32>
    %87 = vector.broadcast %86 : vector<8x1xf32> to vector<8x8xf32>
    %88 = arith.mulf %83, %87 : vector<8x8xf32>
    %cst_44 = arith.constant dense<0.000000e+00> : vector<8x8xf32>
    %89 = tpu.matmul %88, %69, %cst_44 {dimension_numbers = #tpu.dot_dimension_numbers<[1], [0], [0], [1], [0, 0, 1, 1], [], []>} : vector<8x8xf32>, vector<8x8xf32>, vector<8x8xf32> -> vector<8x8xf32>
    %90 = vector.extract_strided_slice %41 {offsets = [0, 16], sizes = [8, 8], strides = [1, 1]} : vector<8x32xf32> to vector<8x8xf32>
    %91 = vector.extract_strided_slice %42 {offsets = [0, 16], sizes = [8, 8], strides = [1, 1]} : vector<8x32xf32> to vector<8x8xf32>
    %92 = vector.extract_strided_slice %43 {offsets = [0, 16], sizes = [8, 8], strides = [1, 1]} : vector<8x32xf32> to vector<8x8xf32>
    %cst_45 = arith.constant dense<0.000000e+00> : vector<8x8xf32>
    %93 = tpu.matmul %90, %91, %cst_45 {dimension_numbers = #tpu.dot_dimension_numbers<[1], [1], [0], [0], [0, 0, 1, 0], [], []>} : vector<8x8xf32>, vector<8x8xf32>, vector<8x8xf32> -> vector<8x8xf32>
    %cst_46 = arith.constant 0.353553385 : f32
    %94 = vector.broadcast %cst_46 : f32 to vector<8x8xf32>
    %95 = arith.mulf %93, %94 : vector<8x8xf32>
    %cst_47 = arith.constant 0.000000e+00 : f32
    %96 = vector.broadcast %cst_47 : f32 to vector<1x8xf32>
    %97 = arith.cmpf oeq, %1, %96 : vector<1x8xf32>
    %cst_48 = arith.constant -1.000000e+09 : f32
    %98 = vector.shape_cast %97 : vector<1x8xi1> to vector<1x8xi1>
    %99 = vector.broadcast %98 : vector<1x8xi1> to vector<8x8xi1>
    %100 = vector.broadcast %cst_48 : f32 to vector<8x8xf32>
    %101 = arith.select %99, %100, %95 : vector<8x8xi1>, vector<8x8xf32>
    %cst_49 = arith.constant dense<0xFF800000> : vector<8xf32>
    %102 = vector.multi_reduction <maximumf>, %101, %cst_49 [1] : vector<8x8xf32> to vector<8xf32>
    %103 = vector.shape_cast %102 : vector<8xf32> to vector<8x1xf32>
    %104 = vector.broadcast %103 : vector<8x1xf32> to vector<8x8xf32>
    %105 = arith.subf %101, %104 : vector<8x8xf32>
    %106 = math.exp %105 : vector<8x8xf32>
    %cst_50 = arith.constant dense<0.000000e+00> : vector<8xf32>
    %107 = vector.multi_reduction <add>, %106, %cst_50 [1] : vector<8x8xf32> to vector<8xf32>
    %108 = vector.shape_cast %107 : vector<8xf32> to vector<8x1xf32>
    %109 = tpu.reciprocal %108 {approx = true} : vector<8x1xf32> -> vector<8x1xf32>
    %110 = vector.broadcast %109 : vector<8x1xf32> to vector<8x8xf32>
    %111 = arith.mulf %106, %110 : vector<8x8xf32>
    %cst_51 = arith.constant dense<0.000000e+00> : vector<8x8xf32>
    %112 = tpu.matmul %111, %92, %cst_51 {dimension_numbers = #tpu.dot_dimension_numbers<[1], [0], [0], [1], [0, 0, 1, 1], [], []>} : vector<8x8xf32>, vector<8x8xf32>, vector<8x8xf32> -> vector<8x8xf32>
    %113 = vector.extract_strided_slice %41 {offsets = [0, 24], sizes = [8, 8], strides = [1, 1]} : vector<8x32xf32> to vector<8x8xf32>
    %114 = vector.extract_strided_slice %42 {offsets = [0, 24], sizes = [8, 8], strides = [1, 1]} : vector<8x32xf32> to vector<8x8xf32>
    %115 = vector.extract_strided_slice %43 {offsets = [0, 24], sizes = [8, 8], strides = [1, 1]} : vector<8x32xf32> to vector<8x8xf32>
    %cst_52 = arith.constant dense<0.000000e+00> : vector<8x8xf32>
    %116 = tpu.matmul %113, %114, %cst_52 {dimension_numbers = #tpu.dot_dimension_numbers<[1], [1], [0], [0], [0, 0, 1, 0], [], []>} : vector<8x8xf32>, vector<8x8xf32>, vector<8x8xf32> -> vector<8x8xf32>
    %cst_53 = arith.constant 0.353553385 : f32
    %117 = vector.broadcast %cst_53 : f32 to vector<8x8xf32>
    %118 = arith.mulf %116, %117 : vector<8x8xf32>
    %cst_54 = arith.constant 0.000000e+00 : f32
    %119 = vector.broadcast %cst_54 : f32 to vector<1x8xf32>
    %120 = arith.cmpf oeq, %1, %119 : vector<1x8xf32>
    %cst_55 = arith.constant -1.000000e+09 : f32
    %121 = vector.shape_cast %120 : vector<1x8xi1> to vector<1x8xi1>
    %122 = vector.broadcast %121 : vector<1x8xi1> to vector<8x8xi1>
    %123 = vector.broadcast %cst_55 : f32 to vector<8x8xf32>
    %124 = arith.select %122, %123, %118 : vector<8x8xi1>, vector<8x8xf32>
    %cst_56 = arith.constant dense<0xFF800000> : vector<8xf32>
    %125 = vector.multi_reduction <maximumf>, %124, %cst_56 [1] : vector<8x8xf32> to vector<8xf32>
    %126 = vector.shape_cast %125 : vector<8xf32> to vector<8x1xf32>
    %127 = vector.broadcast %126 : vector<8x1xf32> to vector<8x8xf32>
    %128 = arith.subf %124, %127 : vector<8x8xf32>
    %129 = math.exp %128 : vector<8x8xf32>
    %cst_57 = arith.constant dense<0.000000e+00> : vector<8xf32>
    %130 = vector.multi_reduction <add>, %129, %cst_57 [1] : vector<8x8xf32> to vector<8xf32>
    %131 = vector.shape_cast %130 : vector<8xf32> to vector<8x1xf32>
    %132 = tpu.reciprocal %131 {approx = true} : vector<8x1xf32> -> vector<8x1xf32>
    %133 = vector.broadcast %132 : vector<8x1xf32> to vector<8x8xf32>
    %134 = arith.mulf %129, %133 : vector<8x8xf32>
    %cst_58 = arith.constant dense<0.000000e+00> : vector<8x8xf32>
    %135 = tpu.matmul %134, %115, %cst_58 {dimension_numbers = #tpu.dot_dimension_numbers<[1], [0], [0], [1], [0, 0, 1, 1], [], []>} : vector<8x8xf32>, vector<8x8xf32>, vector<8x8xf32> -> vector<8x8xf32>
    %136 = tpu.concatenate %66, %89, %112, %135 in 1 : vector<8x8xf32>, vector<8x8xf32>, vector<8x8xf32>, vector<8x8xf32> -> vector<8x32xf32>
    %cst_59 = arith.constant dense<0.000000e+00> : vector<8x32xf32>
    %137 = tpu.matmul %136, %35, %cst_59 {dimension_numbers = #tpu.dot_dimension_numbers<[1], [0], [0], [1], [0, 0, 1, 1], [], []>} : vector<8x32xf32>, vector<32x32xf32>, vector<8x32xf32> -> vector<8x32xf32>
    %138 = vector.broadcast %37 : vector<1x32xf32> to vector<8x32xf32>
    %139 = arith.addf %137, %138 : vector<8x32xf32>
    %140 = arith.addf %5, %139 : vector<8x32xf32>
    %c0_60 = arith.constant 0 : index
    %c0_61 = arith.constant 0 : index
    %c0_62 = arith.constant 0 : index
    %141 = vector.load %arg11[%c0_60, %c0_61, %c0_62] : memref<2x1x32xf32, #tpu.memory_space<vmem>>, vector<1x1x32xf32>
    %142 = vector.shape_cast %141 : vector<1x1x32xf32> to vector<1x32xf32>
    %c0_63 = arith.constant 0 : index
    %c0_64 = arith.constant 0 : index
    %c0_65 = arith.constant 0 : index
    %143 = vector.load %arg12[%c0_63, %c0_64, %c0_65] : memref<2x1x32xf32, #tpu.memory_space<vmem>>, vector<1x1x32xf32>
    %144 = vector.shape_cast %143 : vector<1x1x32xf32> to vector<1x32xf32>
    %cst_66 = arith.constant dense<0.000000e+00> : vector<8xf32>
    %145 = vector.multi_reduction <add>, %140, %cst_66 [1] : vector<8x32xf32> to vector<8xf32>
    %146 = vector.shape_cast %145 : vector<8xf32> to vector<8x1xf32>
    %cst_67 = arith.constant 3.200000e+01 : f32
    %147 = vector.broadcast %cst_67 : f32 to vector<8x1xf32>
    %148 = arith.divf %146, %147 : vector<8x1xf32>
    %149 = vector.broadcast %148 : vector<8x1xf32> to vector<8x32xf32>
    %150 = arith.subf %140, %149 : vector<8x32xf32>
    %151 = arith.mulf %150, %150 : vector<8x32xf32>
    %cst_68 = arith.constant dense<0.000000e+00> : vector<8xf32>
    %152 = vector.multi_reduction <add>, %151, %cst_68 [1] : vector<8x32xf32> to vector<8xf32>
    %153 = vector.shape_cast %152 : vector<8xf32> to vector<8x1xf32>
    %cst_69 = arith.constant 0.0322580636 : f32
    %154 = vector.broadcast %cst_69 : f32 to vector<8x1xf32>
    %155 = arith.mulf %153, %154 : vector<8x1xf32>
    %156 = math.sqrt %155 : vector<8x1xf32>
    %157 = vector.broadcast %142 : vector<1x32xf32> to vector<8x32xf32>
    %158 = arith.mulf %157, %150 : vector<8x32xf32>
    %cst_70 = arith.constant 9.99999997E-7 : f32
    %159 = vector.broadcast %cst_70 : f32 to vector<8x1xf32>
    %160 = arith.addf %156, %159 : vector<8x1xf32>
    %161 = vector.broadcast %160 : vector<8x1xf32> to vector<8x32xf32>
    %162 = arith.divf %158, %161 : vector<8x32xf32>
    %163 = vector.broadcast %144 : vector<1x32xf32> to vector<8x32xf32>
    %164 = arith.addf %162, %163 : vector<8x32xf32>
    %c0_71 = arith.constant 0 : index
    %c0_72 = arith.constant 0 : index
    %c0_73 = arith.constant 0 : index
    %165 = vector.load %arg13[%c0_71, %c0_72, %c0_73] : memref<2x32x64xf32, #tpu.memory_space<vmem>>, vector<1x32x64xf32>
    %166 = vector.shape_cast %165 : vector<1x32x64xf32> to vector<32x64xf32>
    %c0_74 = arith.constant 0 : index
    %c0_75 = arith.constant 0 : index
    %c0_76 = arith.constant 0 : index
    %167 = vector.load %arg14[%c0_74, %c0_75, %c0_76] : memref<2x1x64xf32, #tpu.memory_space<vmem>>, vector<1x1x64xf32>
    %168 = vector.shape_cast %167 : vector<1x1x64xf32> to vector<1x64xf32>
    %c0_77 = arith.constant 0 : index
    %c0_78 = arith.constant 0 : index
    %c0_79 = arith.constant 0 : index
    %169 = vector.load %arg15[%c0_77, %c0_78, %c0_79] : memref<2x64x32xf32, #tpu.memory_space<vmem>>, vector<1x64x32xf32>
    %170 = vector.shape_cast %169 : vector<1x64x32xf32> to vector<64x32xf32>
    %c0_80 = arith.constant 0 : index
    %c0_81 = arith.constant 0 : index
    %c0_82 = arith.constant 0 : index
    %171 = vector.load %arg16[%c0_80, %c0_81, %c0_82] : memref<2x1x32xf32, #tpu.memory_space<vmem>>, vector<1x1x32xf32>
    %172 = vector.shape_cast %171 : vector<1x1x32xf32> to vector<1x32xf32>
    %cst_83 = arith.constant dense<0.000000e+00> : vector<8x64xf32>
    %173 = tpu.matmul %164, %166, %cst_83 {dimension_numbers = #tpu.dot_dimension_numbers<[1], [0], [0], [1], [0, 0, 1, 1], [], []>} : vector<8x32xf32>, vector<32x64xf32>, vector<8x64xf32> -> vector<8x64xf32>
    %174 = vector.broadcast %168 : vector<1x64xf32> to vector<8x64xf32>
    %175 = arith.addf %173, %174 : vector<8x64xf32>
    %cst_84 = arith.constant 0.000000e+00 : f32
    %176 = vector.broadcast %cst_84 : f32 to vector<8x64xf32>
    %177 = arith.maximumf %175, %176 : vector<8x64xf32>
    %cst_85 = arith.constant dense<0.000000e+00> : vector<8x32xf32>
    %178 = tpu.matmul %177, %170, %cst_85 {dimension_numbers = #tpu.dot_dimension_numbers<[1], [0], [0], [1], [0, 0, 1, 1], [], []>} : vector<8x64xf32>, vector<64x32xf32>, vector<8x32xf32> -> vector<8x32xf32>
    %179 = vector.broadcast %172 : vector<1x32xf32> to vector<8x32xf32>
    %180 = arith.addf %178, %179 : vector<8x32xf32>
    %181 = arith.addf %140, %180 : vector<8x32xf32>
    %c1 = arith.constant 1 : index
    %c0_86 = arith.constant 0 : index
    %c0_87 = arith.constant 0 : index
    %182 = vector.load %arg5[%c1, %c0_86, %c0_87] : memref<2x1x32xf32, #tpu.memory_space<vmem>>, vector<1x1x32xf32>
    %183 = vector.shape_cast %182 : vector<1x1x32xf32> to vector<1x32xf32>
    %c1_88 = arith.constant 1 : index
    %c0_89 = arith.constant 0 : index
    %c0_90 = arith.constant 0 : index
    %184 = vector.load %arg6[%c1_88, %c0_89, %c0_90] : memref<2x1x32xf32, #tpu.memory_space<vmem>>, vector<1x1x32xf32>
    %185 = vector.shape_cast %184 : vector<1x1x32xf32> to vector<1x32xf32>
    %cst_91 = arith.constant dense<0.000000e+00> : vector<8xf32>
    %186 = vector.multi_reduction <add>, %181, %cst_91 [1] : vector<8x32xf32> to vector<8xf32>
    %187 = vector.shape_cast %186 : vector<8xf32> to vector<8x1xf32>
    %cst_92 = arith.constant 3.200000e+01 : f32
    %188 = vector.broadcast %cst_92 : f32 to vector<8x1xf32>
    %189 = arith.divf %187, %188 : vector<8x1xf32>
    %190 = vector.broadcast %189 : vector<8x1xf32> to vector<8x32xf32>
    %191 = arith.subf %181, %190 : vector<8x32xf32>
    %192 = arith.mulf %191, %191 : vector<8x32xf32>
    %cst_93 = arith.constant dense<0.000000e+00> : vector<8xf32>
    %193 = vector.multi_reduction <add>, %192, %cst_93 [1] : vector<8x32xf32> to vector<8xf32>
    %194 = vector.shape_cast %193 : vector<8xf32> to vector<8x1xf32>
    %cst_94 = arith.constant 0.0322580636 : f32
    %195 = vector.broadcast %cst_94 : f32 to vector<8x1xf32>
    %196 = arith.mulf %194, %195 : vector<8x1xf32>
    %197 = math.sqrt %196 : vector<8x1xf32>
    %198 = vector.broadcast %183 : vector<1x32xf32> to vector<8x32xf32>
    %199 = arith.mulf %198, %191 : vector<8x32xf32>
    %cst_95 = arith.constant 9.99999997E-7 : f32
    %200 = vector.broadcast %cst_95 : f32 to vector<8x1xf32>
    %201 = arith.addf %197, %200 : vector<8x1xf32>
    %202 = vector.broadcast %201 : vector<8x1xf32> to vector<8x32xf32>
    %203 = arith.divf %199, %202 : vector<8x32xf32>
    %204 = vector.broadcast %185 : vector<1x32xf32> to vector<8x32xf32>
    %205 = arith.addf %203, %204 : vector<8x32xf32>
    %c1_96 = arith.constant 1 : index
    %c0_97 = arith.constant 0 : index
    %c0_98 = arith.constant 0 : index
    %206 = vector.load %arg7[%c1_96, %c0_97, %c0_98] : memref<2x32x96xf32, #tpu.memory_space<vmem>>, vector<1x32x96xf32>
    %207 = vector.shape_cast %206 : vector<1x32x96xf32> to vector<32x96xf32>
    %c1_99 = arith.constant 1 : index
    %c0_100 = arith.constant 0 : index
    %c0_101 = arith.constant 0 : index
    %208 = vector.load %arg8[%c1_99, %c0_100, %c0_101] : memref<2x1x96xf32, #tpu.memory_space<vmem>>, vector<1x1x96xf32>
    %209 = vector.shape_cast %208 : vector<1x1x96xf32> to vector<1x96xf32>
    %c1_102 = arith.constant 1 : index
    %c0_103 = arith.constant 0 : index
    %c0_104 = arith.constant 0 : index
    %210 = vector.load %arg9[%c1_102, %c0_103, %c0_104] : memref<2x32x32xf32, #tpu.memory_space<vmem>>, vector<1x32x32xf32>
    %211 = vector.shape_cast %210 : vector<1x32x32xf32> to vector<32x32xf32>
    %c1_105 = arith.constant 1 : index
    %c0_106 = arith.constant 0 : index
    %c0_107 = arith.constant 0 : index
    %212 = vector.load %arg10[%c1_105, %c0_106, %c0_107] : memref<2x1x32xf32, #tpu.memory_space<vmem>>, vector<1x1x32xf32>
    %213 = vector.shape_cast %212 : vector<1x1x32xf32> to vector<1x32xf32>
    %cst_108 = arith.constant dense<0.000000e+00> : vector<8x96xf32>
    %214 = tpu.matmul %205, %207, %cst_108 {dimension_numbers = #tpu.dot_dimension_numbers<[1], [0], [0], [1], [0, 0, 1, 1], [], []>} : vector<8x32xf32>, vector<32x96xf32>, vector<8x96xf32> -> vector<8x96xf32>
    %215 = vector.broadcast %209 : vector<1x96xf32> to vector<8x96xf32>
    %216 = arith.addf %214, %215 : vector<8x96xf32>
    %217 = vector.extract_strided_slice %216 {offsets = [0, 0], sizes = [8, 32], strides = [1, 1]} : vector<8x96xf32> to vector<8x32xf32>
    %218 = vector.extract_strided_slice %216 {offsets = [0, 32], sizes = [8, 32], strides = [1, 1]} : vector<8x96xf32> to vector<8x32xf32>
    %219 = vector.extract_strided_slice %216 {offsets = [0, 64], sizes = [8, 32], strides = [1, 1]} : vector<8x96xf32> to vector<8x32xf32>
    %220 = vector.extract_strided_slice %217 {offsets = [0, 0], sizes = [8, 8], strides = [1, 1]} : vector<8x32xf32> to vector<8x8xf32>
    %221 = vector.extract_strided_slice %218 {offsets = [0, 0], sizes = [8, 8], strides = [1, 1]} : vector<8x32xf32> to vector<8x8xf32>
    %222 = vector.extract_strided_slice %219 {offsets = [0, 0], sizes = [8, 8], strides = [1, 1]} : vector<8x32xf32> to vector<8x8xf32>
    %cst_109 = arith.constant dense<0.000000e+00> : vector<8x8xf32>
    %223 = tpu.matmul %220, %221, %cst_109 {dimension_numbers = #tpu.dot_dimension_numbers<[1], [1], [0], [0], [0, 0, 1, 0], [], []>} : vector<8x8xf32>, vector<8x8xf32>, vector<8x8xf32> -> vector<8x8xf32>
    %cst_110 = arith.constant 0.353553385 : f32
    %224 = vector.broadcast %cst_110 : f32 to vector<8x8xf32>
    %225 = arith.mulf %223, %224 : vector<8x8xf32>
    %cst_111 = arith.constant 0.000000e+00 : f32
    %226 = vector.broadcast %cst_111 : f32 to vector<1x8xf32>
    %227 = arith.cmpf oeq, %1, %226 : vector<1x8xf32>
    %cst_112 = arith.constant -1.000000e+09 : f32
    %228 = vector.shape_cast %227 : vector<1x8xi1> to vector<1x8xi1>
    %229 = vector.broadcast %228 : vector<1x8xi1> to vector<8x8xi1>
    %230 = vector.broadcast %cst_112 : f32 to vector<8x8xf32>
    %231 = arith.select %229, %230, %225 : vector<8x8xi1>, vector<8x8xf32>
    %cst_113 = arith.constant dense<0xFF800000> : vector<8xf32>
    %232 = vector.multi_reduction <maximumf>, %231, %cst_113 [1] : vector<8x8xf32> to vector<8xf32>
    %233 = vector.shape_cast %232 : vector<8xf32> to vector<8x1xf32>
    %234 = vector.broadcast %233 : vector<8x1xf32> to vector<8x8xf32>
    %235 = arith.subf %231, %234 : vector<8x8xf32>
    %236 = math.exp %235 : vector<8x8xf32>
    %cst_114 = arith.constant dense<0.000000e+00> : vector<8xf32>
    %237 = vector.multi_reduction <add>, %236, %cst_114 [1] : vector<8x8xf32> to vector<8xf32>
    %238 = vector.shape_cast %237 : vector<8xf32> to vector<8x1xf32>
    %239 = tpu.reciprocal %238 {approx = true} : vector<8x1xf32> -> vector<8x1xf32>
    %240 = vector.broadcast %239 : vector<8x1xf32> to vector<8x8xf32>
    %241 = arith.mulf %236, %240 : vector<8x8xf32>
    %cst_115 = arith.constant dense<0.000000e+00> : vector<8x8xf32>
    %242 = tpu.matmul %241, %222, %cst_115 {dimension_numbers = #tpu.dot_dimension_numbers<[1], [0], [0], [1], [0, 0, 1, 1], [], []>} : vector<8x8xf32>, vector<8x8xf32>, vector<8x8xf32> -> vector<8x8xf32>
    %243 = vector.extract_strided_slice %217 {offsets = [0, 8], sizes = [8, 8], strides = [1, 1]} : vector<8x32xf32> to vector<8x8xf32>
    %244 = vector.extract_strided_slice %218 {offsets = [0, 8], sizes = [8, 8], strides = [1, 1]} : vector<8x32xf32> to vector<8x8xf32>
    %245 = vector.extract_strided_slice %219 {offsets = [0, 8], sizes = [8, 8], strides = [1, 1]} : vector<8x32xf32> to vector<8x8xf32>
    %cst_116 = arith.constant dense<0.000000e+00> : vector<8x8xf32>
    %246 = tpu.matmul %243, %244, %cst_116 {dimension_numbers = #tpu.dot_dimension_numbers<[1], [1], [0], [0], [0, 0, 1, 0], [], []>} : vector<8x8xf32>, vector<8x8xf32>, vector<8x8xf32> -> vector<8x8xf32>
    %cst_117 = arith.constant 0.353553385 : f32
    %247 = vector.broadcast %cst_117 : f32 to vector<8x8xf32>
    %248 = arith.mulf %246, %247 : vector<8x8xf32>
    %cst_118 = arith.constant 0.000000e+00 : f32
    %249 = vector.broadcast %cst_118 : f32 to vector<1x8xf32>
    %250 = arith.cmpf oeq, %1, %249 : vector<1x8xf32>
    %cst_119 = arith.constant -1.000000e+09 : f32
    %251 = vector.shape_cast %250 : vector<1x8xi1> to vector<1x8xi1>
    %252 = vector.broadcast %251 : vector<1x8xi1> to vector<8x8xi1>
    %253 = vector.broadcast %cst_119 : f32 to vector<8x8xf32>
    %254 = arith.select %252, %253, %248 : vector<8x8xi1>, vector<8x8xf32>
    %cst_120 = arith.constant dense<0xFF800000> : vector<8xf32>
    %255 = vector.multi_reduction <maximumf>, %254, %cst_120 [1] : vector<8x8xf32> to vector<8xf32>
    %256 = vector.shape_cast %255 : vector<8xf32> to vector<8x1xf32>
    %257 = vector.broadcast %256 : vector<8x1xf32> to vector<8x8xf32>
    %258 = arith.subf %254, %257 : vector<8x8xf32>
    %259 = math.exp %258 : vector<8x8xf32>
    %cst_121 = arith.constant dense<0.000000e+00> : vector<8xf32>
    %260 = vector.multi_reduction <add>, %259, %cst_121 [1] : vector<8x8xf32> to vector<8xf32>
    %261 = vector.shape_cast %260 : vector<8xf32> to vector<8x1xf32>
    %262 = tpu.reciprocal %261 {approx = true} : vector<8x1xf32> -> vector<8x1xf32>
    %263 = vector.broadcast %262 : vector<8x1xf32> to vector<8x8xf32>
    %264 = arith.mulf %259, %263 : vector<8x8xf32>
    %cst_122 = arith.constant dense<0.000000e+00> : vector<8x8xf32>
    %265 = tpu.matmul %264, %245, %cst_122 {dimension_numbers = #tpu.dot_dimension_numbers<[1], [0], [0], [1], [0, 0, 1, 1], [], []>} : vector<8x8xf32>, vector<8x8xf32>, vector<8x8xf32> -> vector<8x8xf32>
    %266 = vector.extract_strided_slice %217 {offsets = [0, 16], sizes = [8, 8], strides = [1, 1]} : vector<8x32xf32> to vector<8x8xf32>
    %267 = vector.extract_strided_slice %218 {offsets = [0, 16], sizes = [8, 8], strides = [1, 1]} : vector<8x32xf32> to vector<8x8xf32>
    %268 = vector.extract_strided_slice %219 {offsets = [0, 16], sizes = [8, 8], strides = [1, 1]} : vector<8x32xf32> to vector<8x8xf32>
    %cst_123 = arith.constant dense<0.000000e+00> : vector<8x8xf32>
    %269 = tpu.matmul %266, %267, %cst_123 {dimension_numbers = #tpu.dot_dimension_numbers<[1], [1], [0], [0], [0, 0, 1, 0], [], []>} : vector<8x8xf32>, vector<8x8xf32>, vector<8x8xf32> -> vector<8x8xf32>
    %cst_124 = arith.constant 0.353553385 : f32
    %270 = vector.broadcast %cst_124 : f32 to vector<8x8xf32>
    %271 = arith.mulf %269, %270 : vector<8x8xf32>
    %cst_125 = arith.constant 0.000000e+00 : f32
    %272 = vector.broadcast %cst_125 : f32 to vector<1x8xf32>
    %273 = arith.cmpf oeq, %1, %272 : vector<1x8xf32>
    %cst_126 = arith.constant -1.000000e+09 : f32
    %274 = vector.shape_cast %273 : vector<1x8xi1> to vector<1x8xi1>
    %275 = vector.broadcast %274 : vector<1x8xi1> to vector<8x8xi1>
    %276 = vector.broadcast %cst_126 : f32 to vector<8x8xf32>
    %277 = arith.select %275, %276, %271 : vector<8x8xi1>, vector<8x8xf32>
    %cst_127 = arith.constant dense<0xFF800000> : vector<8xf32>
    %278 = vector.multi_reduction <maximumf>, %277, %cst_127 [1] : vector<8x8xf32> to vector<8xf32>
    %279 = vector.shape_cast %278 : vector<8xf32> to vector<8x1xf32>
    %280 = vector.broadcast %279 : vector<8x1xf32> to vector<8x8xf32>
    %281 = arith.subf %277, %280 : vector<8x8xf32>
    %282 = math.exp %281 : vector<8x8xf32>
    %cst_128 = arith.constant dense<0.000000e+00> : vector<8xf32>
    %283 = vector.multi_reduction <add>, %282, %cst_128 [1] : vector<8x8xf32> to vector<8xf32>
    %284 = vector.shape_cast %283 : vector<8xf32> to vector<8x1xf32>
    %285 = tpu.reciprocal %284 {approx = true} : vector<8x1xf32> -> vector<8x1xf32>
    %286 = vector.broadcast %285 : vector<8x1xf32> to vector<8x8xf32>
    %287 = arith.mulf %282, %286 : vector<8x8xf32>
    %cst_129 = arith.constant dense<0.000000e+00> : vector<8x8xf32>
    %288 = tpu.matmul %287, %268, %cst_129 {dimension_numbers = #tpu.dot_dimension_numbers<[1], [0], [0], [1], [0, 0, 1, 1], [], []>} : vector<8x8xf32>, vector<8x8xf32>, vector<8x8xf32> -> vector<8x8xf32>
    %289 = vector.extract_strided_slice %217 {offsets = [0, 24], sizes = [8, 8], strides = [1, 1]} : vector<8x32xf32> to vector<8x8xf32>
    %290 = vector.extract_strided_slice %218 {offsets = [0, 24], sizes = [8, 8], strides = [1, 1]} : vector<8x32xf32> to vector<8x8xf32>
    %291 = vector.extract_strided_slice %219 {offsets = [0, 24], sizes = [8, 8], strides = [1, 1]} : vector<8x32xf32> to vector<8x8xf32>
    %cst_130 = arith.constant dense<0.000000e+00> : vector<8x8xf32>
    %292 = tpu.matmul %289, %290, %cst_130 {dimension_numbers = #tpu.dot_dimension_numbers<[1], [1], [0], [0], [0, 0, 1, 0], [], []>} : vector<8x8xf32>, vector<8x8xf32>, vector<8x8xf32> -> vector<8x8xf32>
    %cst_131 = arith.constant 0.353553385 : f32
    %293 = vector.broadcast %cst_131 : f32 to vector<8x8xf32>
    %294 = arith.mulf %292, %293 : vector<8x8xf32>
    %cst_132 = arith.constant 0.000000e+00 : f32
    %295 = vector.broadcast %cst_132 : f32 to vector<1x8xf32>
    %296 = arith.cmpf oeq, %1, %295 : vector<1x8xf32>
    %cst_133 = arith.constant -1.000000e+09 : f32
    %297 = vector.shape_cast %296 : vector<1x8xi1> to vector<1x8xi1>
    %298 = vector.broadcast %297 : vector<1x8xi1> to vector<8x8xi1>
    %299 = vector.broadcast %cst_133 : f32 to vector<8x8xf32>
    %300 = arith.select %298, %299, %294 : vector<8x8xi1>, vector<8x8xf32>
    %cst_134 = arith.constant dense<0xFF800000> : vector<8xf32>
    %301 = vector.multi_reduction <maximumf>, %300, %cst_134 [1] : vector<8x8xf32> to vector<8xf32>
    %302 = vector.shape_cast %301 : vector<8xf32> to vector<8x1xf32>
    %303 = vector.broadcast %302 : vector<8x1xf32> to vector<8x8xf32>
    %304 = arith.subf %300, %303 : vector<8x8xf32>
    %305 = math.exp %304 : vector<8x8xf32>
    %cst_135 = arith.constant dense<0.000000e+00> : vector<8xf32>
    %306 = vector.multi_reduction <add>, %305, %cst_135 [1] : vector<8x8xf32> to vector<8xf32>
    %307 = vector.shape_cast %306 : vector<8xf32> to vector<8x1xf32>
    %308 = tpu.reciprocal %307 {approx = true} : vector<8x1xf32> -> vector<8x1xf32>
    %309 = vector.broadcast %308 : vector<8x1xf32> to vector<8x8xf32>
    %310 = arith.mulf %305, %309 : vector<8x8xf32>
    %cst_136 = arith.constant dense<0.000000e+00> : vector<8x8xf32>
    %311 = tpu.matmul %310, %291, %cst_136 {dimension_numbers = #tpu.dot_dimension_numbers<[1], [0], [0], [1], [0, 0, 1, 1], [], []>} : vector<8x8xf32>, vector<8x8xf32>, vector<8x8xf32> -> vector<8x8xf32>
    %312 = tpu.concatenate %242, %265, %288, %311 in 1 : vector<8x8xf32>, vector<8x8xf32>, vector<8x8xf32>, vector<8x8xf32> -> vector<8x32xf32>
    %cst_137 = arith.constant dense<0.000000e+00> : vector<8x32xf32>
    %313 = tpu.matmul %312, %211, %cst_137 {dimension_numbers = #tpu.dot_dimension_numbers<[1], [0], [0], [1], [0, 0, 1, 1], [], []>} : vector<8x32xf32>, vector<32x32xf32>, vector<8x32xf32> -> vector<8x32xf32>
    %314 = vector.broadcast %213 : vector<1x32xf32> to vector<8x32xf32>
    %315 = arith.addf %313, %314 : vector<8x32xf32>
    %316 = arith.addf %181, %315 : vector<8x32xf32>
    %c1_138 = arith.constant 1 : index
    %c0_139 = arith.constant 0 : index
    %c0_140 = arith.constant 0 : index
    %317 = vector.load %arg11[%c1_138, %c0_139, %c0_140] : memref<2x1x32xf32, #tpu.memory_space<vmem>>, vector<1x1x32xf32>
    %318 = vector.shape_cast %317 : vector<1x1x32xf32> to vector<1x32xf32>
    %c1_141 = arith.constant 1 : index
    %c0_142 = arith.constant 0 : index
    %c0_143 = arith.constant 0 : index
    %319 = vector.load %arg12[%c1_141, %c0_142, %c0_143] : memref<2x1x32xf32, #tpu.memory_space<vmem>>, vector<1x1x32xf32>
    %320 = vector.shape_cast %319 : vector<1x1x32xf32> to vector<1x32xf32>
    %cst_144 = arith.constant dense<0.000000e+00> : vector<8xf32>
    %321 = vector.multi_reduction <add>, %316, %cst_144 [1] : vector<8x32xf32> to vector<8xf32>
    %322 = vector.shape_cast %321 : vector<8xf32> to vector<8x1xf32>
    %cst_145 = arith.constant 3.200000e+01 : f32
    %323 = vector.broadcast %cst_145 : f32 to vector<8x1xf32>
    %324 = arith.divf %322, %323 : vector<8x1xf32>
    %325 = vector.broadcast %324 : vector<8x1xf32> to vector<8x32xf32>
    %326 = arith.subf %316, %325 : vector<8x32xf32>
    %327 = arith.mulf %326, %326 : vector<8x32xf32>
    %cst_146 = arith.constant dense<0.000000e+00> : vector<8xf32>
    %328 = vector.multi_reduction <add>, %327, %cst_146 [1] : vector<8x32xf32> to vector<8xf32>
    %329 = vector.shape_cast %328 : vector<8xf32> to vector<8x1xf32>
    %cst_147 = arith.constant 0.0322580636 : f32
    %330 = vector.broadcast %cst_147 : f32 to vector<8x1xf32>
    %331 = arith.mulf %329, %330 : vector<8x1xf32>
    %332 = math.sqrt %331 : vector<8x1xf32>
    %333 = vector.broadcast %318 : vector<1x32xf32> to vector<8x32xf32>
    %334 = arith.mulf %333, %326 : vector<8x32xf32>
    %cst_148 = arith.constant 9.99999997E-7 : f32
    %335 = vector.broadcast %cst_148 : f32 to vector<8x1xf32>
    %336 = arith.addf %332, %335 : vector<8x1xf32>
    %337 = vector.broadcast %336 : vector<8x1xf32> to vector<8x32xf32>
    %338 = arith.divf %334, %337 : vector<8x32xf32>
    %339 = vector.broadcast %320 : vector<1x32xf32> to vector<8x32xf32>
    %340 = arith.addf %338, %339 : vector<8x32xf32>
    %c1_149 = arith.constant 1 : index
    %c0_150 = arith.constant 0 : index
    %c0_151 = arith.constant 0 : index
    %341 = vector.load %arg13[%c1_149, %c0_150, %c0_151] : memref<2x32x64xf32, #tpu.memory_space<vmem>>, vector<1x32x64xf32>
    %342 = vector.shape_cast %341 : vector<1x32x64xf32> to vector<32x64xf32>
    %c1_152 = arith.constant 1 : index
    %c0_153 = arith.constant 0 : index
    %c0_154 = arith.constant 0 : index
    %343 = vector.load %arg14[%c1_152, %c0_153, %c0_154] : memref<2x1x64xf32, #tpu.memory_space<vmem>>, vector<1x1x64xf32>
    %344 = vector.shape_cast %343 : vector<1x1x64xf32> to vector<1x64xf32>
    %c1_155 = arith.constant 1 : index
    %c0_156 = arith.constant 0 : index
    %c0_157 = arith.constant 0 : index
    %345 = vector.load %arg15[%c1_155, %c0_156, %c0_157] : memref<2x64x32xf32, #tpu.memory_space<vmem>>, vector<1x64x32xf32>
    %346 = vector.shape_cast %345 : vector<1x64x32xf32> to vector<64x32xf32>
    %c1_158 = arith.constant 1 : index
    %c0_159 = arith.constant 0 : index
    %c0_160 = arith.constant 0 : index
    %347 = vector.load %arg16[%c1_158, %c0_159, %c0_160] : memref<2x1x32xf32, #tpu.memory_space<vmem>>, vector<1x1x32xf32>
    %348 = vector.shape_cast %347 : vector<1x1x32xf32> to vector<1x32xf32>
    %cst_161 = arith.constant dense<0.000000e+00> : vector<8x64xf32>
    %349 = tpu.matmul %340, %342, %cst_161 {dimension_numbers = #tpu.dot_dimension_numbers<[1], [0], [0], [1], [0, 0, 1, 1], [], []>} : vector<8x32xf32>, vector<32x64xf32>, vector<8x64xf32> -> vector<8x64xf32>
    %350 = vector.broadcast %344 : vector<1x64xf32> to vector<8x64xf32>
    %351 = arith.addf %349, %350 : vector<8x64xf32>
    %cst_162 = arith.constant 0.000000e+00 : f32
    %352 = vector.broadcast %cst_162 : f32 to vector<8x64xf32>
    %353 = arith.maximumf %351, %352 : vector<8x64xf32>
    %cst_163 = arith.constant dense<0.000000e+00> : vector<8x32xf32>
    %354 = tpu.matmul %353, %346, %cst_163 {dimension_numbers = #tpu.dot_dimension_numbers<[1], [0], [0], [1], [0, 0, 1, 1], [], []>} : vector<8x64xf32>, vector<64x32xf32>, vector<8x32xf32> -> vector<8x32xf32>
    %355 = vector.broadcast %348 : vector<1x32xf32> to vector<8x32xf32>
    %356 = arith.addf %354, %355 : vector<8x32xf32>
    %357 = arith.addf %316, %356 : vector<8x32xf32>
    %c0_164 = arith.constant 0 : index
    %c0_165 = arith.constant 0 : index
    %358 = vector.load %arg17[%c0_164, %c0_165] : memref<1x32xf32, #tpu.memory_space<vmem>>, vector<1x32xf32>
    %c0_166 = arith.constant 0 : index
    %c0_167 = arith.constant 0 : index
    %359 = vector.load %arg18[%c0_166, %c0_167] : memref<1x32xf32, #tpu.memory_space<vmem>>, vector<1x32xf32>
    %cst_168 = arith.constant dense<0.000000e+00> : vector<8xf32>
    %360 = vector.multi_reduction <add>, %357, %cst_168 [1] : vector<8x32xf32> to vector<8xf32>
    %361 = vector.shape_cast %360 : vector<8xf32> to vector<8x1xf32>
    %cst_169 = arith.constant 3.200000e+01 : f32
    %362 = vector.broadcast %cst_169 : f32 to vector<8x1xf32>
    %363 = arith.divf %361, %362 : vector<8x1xf32>
    %364 = vector.broadcast %363 : vector<8x1xf32> to vector<8x32xf32>
    %365 = arith.subf %357, %364 : vector<8x32xf32>
    %366 = arith.mulf %365, %365 : vector<8x32xf32>
    %cst_170 = arith.constant dense<0.000000e+00> : vector<8xf32>
    %367 = vector.multi_reduction <add>, %366, %cst_170 [1] : vector<8x32xf32> to vector<8xf32>
    %368 = vector.shape_cast %367 : vector<8xf32> to vector<8x1xf32>
    %cst_171 = arith.constant 0.0322580636 : f32
    %369 = vector.broadcast %cst_171 : f32 to vector<8x1xf32>
    %370 = arith.mulf %368, %369 : vector<8x1xf32>
    %371 = math.sqrt %370 : vector<8x1xf32>
    %372 = vector.broadcast %358 : vector<1x32xf32> to vector<8x32xf32>
    %373 = arith.mulf %372, %365 : vector<8x32xf32>
    %cst_172 = arith.constant 9.99999997E-7 : f32
    %374 = vector.broadcast %cst_172 : f32 to vector<8x1xf32>
    %375 = arith.addf %371, %374 : vector<8x1xf32>
    %376 = vector.broadcast %375 : vector<8x1xf32> to vector<8x32xf32>
    %377 = arith.divf %373, %376 : vector<8x32xf32>
    %378 = vector.broadcast %359 : vector<1x32xf32> to vector<8x32xf32>
    %379 = arith.addf %377, %378 : vector<8x32xf32>
    %c0_173 = arith.constant 0 : index
    %c0_174 = arith.constant 0 : index
    %c0_175 = arith.constant 0 : index
    %380 = vector.load %arg2[%c0_173, %c0_174, %c0_175] : memref<1x8x32xf32, #tpu.memory_space<vmem>>, vector<1x8x32xf32>
    %381 = vector.shape_cast %380 : vector<1x8x32xf32> to vector<8x32xf32>
    %c0_176 = arith.constant 0 : index
    %c0_177 = arith.constant 0 : index
    %c0_178 = arith.constant 0 : index
    %382 = vector.load %arg19[%c0_176, %c0_177, %c0_178] : memref<2x1x32xf32, #tpu.memory_space<vmem>>, vector<1x1x32xf32>
    %383 = vector.shape_cast %382 : vector<1x1x32xf32> to vector<1x32xf32>
    %c0_179 = arith.constant 0 : index
    %c0_180 = arith.constant 0 : index
    %c0_181 = arith.constant 0 : index
    %384 = vector.load %arg20[%c0_179, %c0_180, %c0_181] : memref<2x1x32xf32, #tpu.memory_space<vmem>>, vector<1x1x32xf32>
    %385 = vector.shape_cast %384 : vector<1x1x32xf32> to vector<1x32xf32>
    %cst_182 = arith.constant dense<0.000000e+00> : vector<8xf32>
    %386 = vector.multi_reduction <add>, %381, %cst_182 [1] : vector<8x32xf32> to vector<8xf32>
    %387 = vector.shape_cast %386 : vector<8xf32> to vector<8x1xf32>
    %cst_183 = arith.constant 3.200000e+01 : f32
    %388 = vector.broadcast %cst_183 : f32 to vector<8x1xf32>
    %389 = arith.divf %387, %388 : vector<8x1xf32>
    %390 = vector.broadcast %389 : vector<8x1xf32> to vector<8x32xf32>
    %391 = arith.subf %381, %390 : vector<8x32xf32>
    %392 = arith.mulf %391, %391 : vector<8x32xf32>
    %cst_184 = arith.constant dense<0.000000e+00> : vector<8xf32>
    %393 = vector.multi_reduction <add>, %392, %cst_184 [1] : vector<8x32xf32> to vector<8xf32>
    %394 = vector.shape_cast %393 : vector<8xf32> to vector<8x1xf32>
    %cst_185 = arith.constant 0.0322580636 : f32
    %395 = vector.broadcast %cst_185 : f32 to vector<8x1xf32>
    %396 = arith.mulf %394, %395 : vector<8x1xf32>
    %397 = math.sqrt %396 : vector<8x1xf32>
    %398 = vector.broadcast %383 : vector<1x32xf32> to vector<8x32xf32>
    %399 = arith.mulf %398, %391 : vector<8x32xf32>
    %cst_186 = arith.constant 9.99999997E-7 : f32
    %400 = vector.broadcast %cst_186 : f32 to vector<8x1xf32>
    %401 = arith.addf %397, %400 : vector<8x1xf32>
    %402 = vector.broadcast %401 : vector<8x1xf32> to vector<8x32xf32>
    %403 = arith.divf %399, %402 : vector<8x32xf32>
    %404 = vector.broadcast %385 : vector<1x32xf32> to vector<8x32xf32>
    %405 = arith.addf %403, %404 : vector<8x32xf32>
    %c0_187 = arith.constant 0 : index
    %c0_188 = arith.constant 0 : index
    %c0_189 = arith.constant 0 : index
    %406 = vector.load %arg21[%c0_187, %c0_188, %c0_189] : memref<2x32x96xf32, #tpu.memory_space<vmem>>, vector<1x32x96xf32>
    %407 = vector.shape_cast %406 : vector<1x32x96xf32> to vector<32x96xf32>
    %c0_190 = arith.constant 0 : index
    %c0_191 = arith.constant 0 : index
    %c0_192 = arith.constant 0 : index
    %408 = vector.load %arg22[%c0_190, %c0_191, %c0_192] : memref<2x1x96xf32, #tpu.memory_space<vmem>>, vector<1x1x96xf32>
    %409 = vector.shape_cast %408 : vector<1x1x96xf32> to vector<1x96xf32>
    %c0_193 = arith.constant 0 : index
    %c0_194 = arith.constant 0 : index
    %c0_195 = arith.constant 0 : index
    %410 = vector.load %arg23[%c0_193, %c0_194, %c0_195] : memref<2x32x32xf32, #tpu.memory_space<vmem>>, vector<1x32x32xf32>
    %411 = vector.shape_cast %410 : vector<1x32x32xf32> to vector<32x32xf32>
    %c0_196 = arith.constant 0 : index
    %c0_197 = arith.constant 0 : index
    %c0_198 = arith.constant 0 : index
    %412 = vector.load %arg24[%c0_196, %c0_197, %c0_198] : memref<2x1x32xf32, #tpu.memory_space<vmem>>, vector<1x1x32xf32>
    %413 = vector.shape_cast %412 : vector<1x1x32xf32> to vector<1x32xf32>
    %cst_199 = arith.constant dense<0.000000e+00> : vector<8x96xf32>
    %414 = tpu.matmul %405, %407, %cst_199 {dimension_numbers = #tpu.dot_dimension_numbers<[1], [0], [0], [1], [0, 0, 1, 1], [], []>} : vector<8x32xf32>, vector<32x96xf32>, vector<8x96xf32> -> vector<8x96xf32>
    %415 = vector.broadcast %409 : vector<1x96xf32> to vector<8x96xf32>
    %416 = arith.addf %414, %415 : vector<8x96xf32>
    %417 = vector.extract_strided_slice %416 {offsets = [0, 0], sizes = [8, 32], strides = [1, 1]} : vector<8x96xf32> to vector<8x32xf32>
    %418 = vector.extract_strided_slice %416 {offsets = [0, 32], sizes = [8, 32], strides = [1, 1]} : vector<8x96xf32> to vector<8x32xf32>
    %419 = vector.extract_strided_slice %416 {offsets = [0, 64], sizes = [8, 32], strides = [1, 1]} : vector<8x96xf32> to vector<8x32xf32>
    %420 = vector.extract_strided_slice %417 {offsets = [0, 0], sizes = [8, 8], strides = [1, 1]} : vector<8x32xf32> to vector<8x8xf32>
    %421 = vector.extract_strided_slice %418 {offsets = [0, 0], sizes = [8, 8], strides = [1, 1]} : vector<8x32xf32> to vector<8x8xf32>
    %422 = vector.extract_strided_slice %419 {offsets = [0, 0], sizes = [8, 8], strides = [1, 1]} : vector<8x32xf32> to vector<8x8xf32>
    %cst_200 = arith.constant dense<0.000000e+00> : vector<8x8xf32>
    %423 = tpu.matmul %420, %421, %cst_200 {dimension_numbers = #tpu.dot_dimension_numbers<[1], [1], [0], [0], [0, 0, 1, 0], [], []>} : vector<8x8xf32>, vector<8x8xf32>, vector<8x8xf32> -> vector<8x8xf32>
    %cst_201 = arith.constant 0.353553385 : f32
    %424 = vector.broadcast %cst_201 : f32 to vector<8x8xf32>
    %425 = arith.mulf %423, %424 : vector<8x8xf32>
    %cst_202 = arith.constant 0.000000e+00 : f32
    %426 = vector.broadcast %cst_202 : f32 to vector<8x8xf32>
    %427 = arith.cmpf oeq, %3, %426 : vector<8x8xf32>
    %cst_203 = arith.constant -1.000000e+09 : f32
    %428 = vector.broadcast %cst_203 : f32 to vector<8x8xf32>
    %429 = arith.select %427, %428, %425 : vector<8x8xi1>, vector<8x8xf32>
    %cst_204 = arith.constant dense<0xFF800000> : vector<8xf32>
    %430 = vector.multi_reduction <maximumf>, %429, %cst_204 [1] : vector<8x8xf32> to vector<8xf32>
    %431 = vector.shape_cast %430 : vector<8xf32> to vector<8x1xf32>
    %432 = vector.broadcast %431 : vector<8x1xf32> to vector<8x8xf32>
    %433 = arith.subf %429, %432 : vector<8x8xf32>
    %434 = math.exp %433 : vector<8x8xf32>
    %cst_205 = arith.constant dense<0.000000e+00> : vector<8xf32>
    %435 = vector.multi_reduction <add>, %434, %cst_205 [1] : vector<8x8xf32> to vector<8xf32>
    %436 = vector.shape_cast %435 : vector<8xf32> to vector<8x1xf32>
    %437 = tpu.reciprocal %436 {approx = true} : vector<8x1xf32> -> vector<8x1xf32>
    %438 = vector.broadcast %437 : vector<8x1xf32> to vector<8x8xf32>
    %439 = arith.mulf %434, %438 : vector<8x8xf32>
    %cst_206 = arith.constant dense<0.000000e+00> : vector<8x8xf32>
    %440 = tpu.matmul %439, %422, %cst_206 {dimension_numbers = #tpu.dot_dimension_numbers<[1], [0], [0], [1], [0, 0, 1, 1], [], []>} : vector<8x8xf32>, vector<8x8xf32>, vector<8x8xf32> -> vector<8x8xf32>
    %441 = vector.extract_strided_slice %417 {offsets = [0, 8], sizes = [8, 8], strides = [1, 1]} : vector<8x32xf32> to vector<8x8xf32>
    %442 = vector.extract_strided_slice %418 {offsets = [0, 8], sizes = [8, 8], strides = [1, 1]} : vector<8x32xf32> to vector<8x8xf32>
    %443 = vector.extract_strided_slice %419 {offsets = [0, 8], sizes = [8, 8], strides = [1, 1]} : vector<8x32xf32> to vector<8x8xf32>
    %cst_207 = arith.constant dense<0.000000e+00> : vector<8x8xf32>
    %444 = tpu.matmul %441, %442, %cst_207 {dimension_numbers = #tpu.dot_dimension_numbers<[1], [1], [0], [0], [0, 0, 1, 0], [], []>} : vector<8x8xf32>, vector<8x8xf32>, vector<8x8xf32> -> vector<8x8xf32>
    %cst_208 = arith.constant 0.353553385 : f32
    %445 = vector.broadcast %cst_208 : f32 to vector<8x8xf32>
    %446 = arith.mulf %444, %445 : vector<8x8xf32>
    %cst_209 = arith.constant 0.000000e+00 : f32
    %447 = vector.broadcast %cst_209 : f32 to vector<8x8xf32>
    %448 = arith.cmpf oeq, %3, %447 : vector<8x8xf32>
    %cst_210 = arith.constant -1.000000e+09 : f32
    %449 = vector.broadcast %cst_210 : f32 to vector<8x8xf32>
    %450 = arith.select %448, %449, %446 : vector<8x8xi1>, vector<8x8xf32>
    %cst_211 = arith.constant dense<0xFF800000> : vector<8xf32>
    %451 = vector.multi_reduction <maximumf>, %450, %cst_211 [1] : vector<8x8xf32> to vector<8xf32>
    %452 = vector.shape_cast %451 : vector<8xf32> to vector<8x1xf32>
    %453 = vector.broadcast %452 : vector<8x1xf32> to vector<8x8xf32>
    %454 = arith.subf %450, %453 : vector<8x8xf32>
    %455 = math.exp %454 : vector<8x8xf32>
    %cst_212 = arith.constant dense<0.000000e+00> : vector<8xf32>
    %456 = vector.multi_reduction <add>, %455, %cst_212 [1] : vector<8x8xf32> to vector<8xf32>
    %457 = vector.shape_cast %456 : vector<8xf32> to vector<8x1xf32>
    %458 = tpu.reciprocal %457 {approx = true} : vector<8x1xf32> -> vector<8x1xf32>
    %459 = vector.broadcast %458 : vector<8x1xf32> to vector<8x8xf32>
    %460 = arith.mulf %455, %459 : vector<8x8xf32>
    %cst_213 = arith.constant dense<0.000000e+00> : vector<8x8xf32>
    %461 = tpu.matmul %460, %443, %cst_213 {dimension_numbers = #tpu.dot_dimension_numbers<[1], [0], [0], [1], [0, 0, 1, 1], [], []>} : vector<8x8xf32>, vector<8x8xf32>, vector<8x8xf32> -> vector<8x8xf32>
    %462 = vector.extract_strided_slice %417 {offsets = [0, 16], sizes = [8, 8], strides = [1, 1]} : vector<8x32xf32> to vector<8x8xf32>
    %463 = vector.extract_strided_slice %418 {offsets = [0, 16], sizes = [8, 8], strides = [1, 1]} : vector<8x32xf32> to vector<8x8xf32>
    %464 = vector.extract_strided_slice %419 {offsets = [0, 16], sizes = [8, 8], strides = [1, 1]} : vector<8x32xf32> to vector<8x8xf32>
    %cst_214 = arith.constant dense<0.000000e+00> : vector<8x8xf32>
    %465 = tpu.matmul %462, %463, %cst_214 {dimension_numbers = #tpu.dot_dimension_numbers<[1], [1], [0], [0], [0, 0, 1, 0], [], []>} : vector<8x8xf32>, vector<8x8xf32>, vector<8x8xf32> -> vector<8x8xf32>
    %cst_215 = arith.constant 0.353553385 : f32
    %466 = vector.broadcast %cst_215 : f32 to vector<8x8xf32>
    %467 = arith.mulf %465, %466 : vector<8x8xf32>
    %cst_216 = arith.constant 0.000000e+00 : f32
    %468 = vector.broadcast %cst_216 : f32 to vector<8x8xf32>
    %469 = arith.cmpf oeq, %3, %468 : vector<8x8xf32>
    %cst_217 = arith.constant -1.000000e+09 : f32
    %470 = vector.broadcast %cst_217 : f32 to vector<8x8xf32>
    %471 = arith.select %469, %470, %467 : vector<8x8xi1>, vector<8x8xf32>
    %cst_218 = arith.constant dense<0xFF800000> : vector<8xf32>
    %472 = vector.multi_reduction <maximumf>, %471, %cst_218 [1] : vector<8x8xf32> to vector<8xf32>
    %473 = vector.shape_cast %472 : vector<8xf32> to vector<8x1xf32>
    %474 = vector.broadcast %473 : vector<8x1xf32> to vector<8x8xf32>
    %475 = arith.subf %471, %474 : vector<8x8xf32>
    %476 = math.exp %475 : vector<8x8xf32>
    %cst_219 = arith.constant dense<0.000000e+00> : vector<8xf32>
    %477 = vector.multi_reduction <add>, %476, %cst_219 [1] : vector<8x8xf32> to vector<8xf32>
    %478 = vector.shape_cast %477 : vector<8xf32> to vector<8x1xf32>
    %479 = tpu.reciprocal %478 {approx = true} : vector<8x1xf32> -> vector<8x1xf32>
    %480 = vector.broadcast %479 : vector<8x1xf32> to vector<8x8xf32>
    %481 = arith.mulf %476, %480 : vector<8x8xf32>
    %cst_220 = arith.constant dense<0.000000e+00> : vector<8x8xf32>
    %482 = tpu.matmul %481, %464, %cst_220 {dimension_numbers = #tpu.dot_dimension_numbers<[1], [0], [0], [1], [0, 0, 1, 1], [], []>} : vector<8x8xf32>, vector<8x8xf32>, vector<8x8xf32> -> vector<8x8xf32>
    %483 = vector.extract_strided_slice %417 {offsets = [0, 24], sizes = [8, 8], strides = [1, 1]} : vector<8x32xf32> to vector<8x8xf32>
    %484 = vector.extract_strided_slice %418 {offsets = [0, 24], sizes = [8, 8], strides = [1, 1]} : vector<8x32xf32> to vector<8x8xf32>
    %485 = vector.extract_strided_slice %419 {offsets = [0, 24], sizes = [8, 8], strides = [1, 1]} : vector<8x32xf32> to vector<8x8xf32>
    %cst_221 = arith.constant dense<0.000000e+00> : vector<8x8xf32>
    %486 = tpu.matmul %483, %484, %cst_221 {dimension_numbers = #tpu.dot_dimension_numbers<[1], [1], [0], [0], [0, 0, 1, 0], [], []>} : vector<8x8xf32>, vector<8x8xf32>, vector<8x8xf32> -> vector<8x8xf32>
    %cst_222 = arith.constant 0.353553385 : f32
    %487 = vector.broadcast %cst_222 : f32 to vector<8x8xf32>
    %488 = arith.mulf %486, %487 : vector<8x8xf32>
    %cst_223 = arith.constant 0.000000e+00 : f32
    %489 = vector.broadcast %cst_223 : f32 to vector<8x8xf32>
    %490 = arith.cmpf oeq, %3, %489 : vector<8x8xf32>
    %cst_224 = arith.constant -1.000000e+09 : f32
    %491 = vector.broadcast %cst_224 : f32 to vector<8x8xf32>
    %492 = arith.select %490, %491, %488 : vector<8x8xi1>, vector<8x8xf32>
    %cst_225 = arith.constant dense<0xFF800000> : vector<8xf32>
    %493 = vector.multi_reduction <maximumf>, %492, %cst_225 [1] : vector<8x8xf32> to vector<8xf32>
    %494 = vector.shape_cast %493 : vector<8xf32> to vector<8x1xf32>
    %495 = vector.broadcast %494 : vector<8x1xf32> to vector<8x8xf32>
    %496 = arith.subf %492, %495 : vector<8x8xf32>
    %497 = math.exp %496 : vector<8x8xf32>
    %cst_226 = arith.constant dense<0.000000e+00> : vector<8xf32>
    %498 = vector.multi_reduction <add>, %497, %cst_226 [1] : vector<8x8xf32> to vector<8xf32>
    %499 = vector.shape_cast %498 : vector<8xf32> to vector<8x1xf32>
    %500 = tpu.reciprocal %499 {approx = true} : vector<8x1xf32> -> vector<8x1xf32>
    %501 = vector.broadcast %500 : vector<8x1xf32> to vector<8x8xf32>
    %502 = arith.mulf %497, %501 : vector<8x8xf32>
    %cst_227 = arith.constant dense<0.000000e+00> : vector<8x8xf32>
    %503 = tpu.matmul %502, %485, %cst_227 {dimension_numbers = #tpu.dot_dimension_numbers<[1], [0], [0], [1], [0, 0, 1, 1], [], []>} : vector<8x8xf32>, vector<8x8xf32>, vector<8x8xf32> -> vector<8x8xf32>
    %504 = tpu.concatenate %440, %461, %482, %503 in 1 : vector<8x8xf32>, vector<8x8xf32>, vector<8x8xf32>, vector<8x8xf32> -> vector<8x32xf32>
    %cst_228 = arith.constant dense<0.000000e+00> : vector<8x32xf32>
    %505 = tpu.matmul %504, %411, %cst_228 {dimension_numbers = #tpu.dot_dimension_numbers<[1], [0], [0], [1], [0, 0, 1, 1], [], []>} : vector<8x32xf32>, vector<32x32xf32>, vector<8x32xf32> -> vector<8x32xf32>
    %506 = vector.broadcast %413 : vector<1x32xf32> to vector<8x32xf32>
    %507 = arith.addf %505, %506 : vector<8x32xf32>
    %508 = arith.addf %381, %507 : vector<8x32xf32>
    %c0_229 = arith.constant 0 : index
    %c0_230 = arith.constant 0 : index
    %c0_231 = arith.constant 0 : index
    %509 = vector.load %arg25[%c0_229, %c0_230, %c0_231] : memref<2x1x32xf32, #tpu.memory_space<vmem>>, vector<1x1x32xf32>
    %510 = vector.shape_cast %509 : vector<1x1x32xf32> to vector<1x32xf32>
    %c0_232 = arith.constant 0 : index
    %c0_233 = arith.constant 0 : index
    %c0_234 = arith.constant 0 : index
    %511 = vector.load %arg26[%c0_232, %c0_233, %c0_234] : memref<2x1x32xf32, #tpu.memory_space<vmem>>, vector<1x1x32xf32>
    %512 = vector.shape_cast %511 : vector<1x1x32xf32> to vector<1x32xf32>
    %cst_235 = arith.constant dense<0.000000e+00> : vector<8xf32>
    %513 = vector.multi_reduction <add>, %508, %cst_235 [1] : vector<8x32xf32> to vector<8xf32>
    %514 = vector.shape_cast %513 : vector<8xf32> to vector<8x1xf32>
    %cst_236 = arith.constant 3.200000e+01 : f32
    %515 = vector.broadcast %cst_236 : f32 to vector<8x1xf32>
    %516 = arith.divf %514, %515 : vector<8x1xf32>
    %517 = vector.broadcast %516 : vector<8x1xf32> to vector<8x32xf32>
    %518 = arith.subf %508, %517 : vector<8x32xf32>
    %519 = arith.mulf %518, %518 : vector<8x32xf32>
    %cst_237 = arith.constant dense<0.000000e+00> : vector<8xf32>
    %520 = vector.multi_reduction <add>, %519, %cst_237 [1] : vector<8x32xf32> to vector<8xf32>
    %521 = vector.shape_cast %520 : vector<8xf32> to vector<8x1xf32>
    %cst_238 = arith.constant 0.0322580636 : f32
    %522 = vector.broadcast %cst_238 : f32 to vector<8x1xf32>
    %523 = arith.mulf %521, %522 : vector<8x1xf32>
    %524 = math.sqrt %523 : vector<8x1xf32>
    %525 = vector.broadcast %510 : vector<1x32xf32> to vector<8x32xf32>
    %526 = arith.mulf %525, %518 : vector<8x32xf32>
    %cst_239 = arith.constant 9.99999997E-7 : f32
    %527 = vector.broadcast %cst_239 : f32 to vector<8x1xf32>
    %528 = arith.addf %524, %527 : vector<8x1xf32>
    %529 = vector.broadcast %528 : vector<8x1xf32> to vector<8x32xf32>
    %530 = arith.divf %526, %529 : vector<8x32xf32>
    %531 = vector.broadcast %512 : vector<1x32xf32> to vector<8x32xf32>
    %532 = arith.addf %530, %531 : vector<8x32xf32>
    %c0_240 = arith.constant 0 : index
    %c0_241 = arith.constant 0 : index
    %c0_242 = arith.constant 0 : index
    %533 = vector.load %arg27[%c0_240, %c0_241, %c0_242] : memref<2x32x96xf32, #tpu.memory_space<vmem>>, vector<1x32x96xf32>
    %534 = vector.shape_cast %533 : vector<1x32x96xf32> to vector<32x96xf32>
    %c0_243 = arith.constant 0 : index
    %c0_244 = arith.constant 0 : index
    %c0_245 = arith.constant 0 : index
    %535 = vector.load %arg28[%c0_243, %c0_244, %c0_245] : memref<2x1x96xf32, #tpu.memory_space<vmem>>, vector<1x1x96xf32>
    %536 = vector.shape_cast %535 : vector<1x1x96xf32> to vector<1x96xf32>
    %c0_246 = arith.constant 0 : index
    %c0_247 = arith.constant 0 : index
    %c0_248 = arith.constant 0 : index
    %537 = vector.load %arg29[%c0_246, %c0_247, %c0_248] : memref<2x32x32xf32, #tpu.memory_space<vmem>>, vector<1x32x32xf32>
    %538 = vector.shape_cast %537 : vector<1x32x32xf32> to vector<32x32xf32>
    %c0_249 = arith.constant 0 : index
    %c0_250 = arith.constant 0 : index
    %c0_251 = arith.constant 0 : index
    %539 = vector.load %arg30[%c0_249, %c0_250, %c0_251] : memref<2x1x32xf32, #tpu.memory_space<vmem>>, vector<1x1x32xf32>
    %540 = vector.shape_cast %539 : vector<1x1x32xf32> to vector<1x32xf32>
    %541 = vector.extract_strided_slice %534 {offsets = [0, 0], sizes = [32, 32], strides = [1, 1]} : vector<32x96xf32> to vector<32x32xf32>
    %cst_252 = arith.constant dense<0.000000e+00> : vector<8x32xf32>
    %542 = tpu.matmul %532, %541, %cst_252 {dimension_numbers = #tpu.dot_dimension_numbers<[1], [0], [0], [1], [0, 0, 1, 1], [], []>} : vector<8x32xf32>, vector<32x32xf32>, vector<8x32xf32> -> vector<8x32xf32>
    %543 = vector.extract_strided_slice %536 {offsets = [0, 0], sizes = [1, 32], strides = [1, 1]} : vector<1x96xf32> to vector<1x32xf32>
    %544 = vector.broadcast %543 : vector<1x32xf32> to vector<8x32xf32>
    %545 = arith.addf %542, %544 : vector<8x32xf32>
    %546 = vector.extract_strided_slice %534 {offsets = [0, 32], sizes = [32, 64], strides = [1, 1]} : vector<32x96xf32> to vector<32x64xf32>
    %cst_253 = arith.constant dense<0.000000e+00> : vector<8x64xf32>
    %547 = tpu.matmul %379, %546, %cst_253 {dimension_numbers = #tpu.dot_dimension_numbers<[1], [0], [0], [1], [0, 0, 1, 1], [], []>} : vector<8x32xf32>, vector<32x64xf32>, vector<8x64xf32> -> vector<8x64xf32>
    %548 = vector.extract_strided_slice %536 {offsets = [0, 32], sizes = [1, 64], strides = [1, 1]} : vector<1x96xf32> to vector<1x64xf32>
    %549 = vector.broadcast %548 : vector<1x64xf32> to vector<8x64xf32>
    %550 = arith.addf %547, %549 : vector<8x64xf32>
    %551 = vector.extract_strided_slice %550 {offsets = [0, 0], sizes = [8, 32], strides = [1, 1]} : vector<8x64xf32> to vector<8x32xf32>
    %552 = vector.extract_strided_slice %550 {offsets = [0, 32], sizes = [8, 32], strides = [1, 1]} : vector<8x64xf32> to vector<8x32xf32>
    %553 = vector.extract_strided_slice %545 {offsets = [0, 0], sizes = [8, 8], strides = [1, 1]} : vector<8x32xf32> to vector<8x8xf32>
    %554 = vector.extract_strided_slice %551 {offsets = [0, 0], sizes = [8, 8], strides = [1, 1]} : vector<8x32xf32> to vector<8x8xf32>
    %555 = vector.extract_strided_slice %552 {offsets = [0, 0], sizes = [8, 8], strides = [1, 1]} : vector<8x32xf32> to vector<8x8xf32>
    %cst_254 = arith.constant dense<0.000000e+00> : vector<8x8xf32>
    %556 = tpu.matmul %553, %554, %cst_254 {dimension_numbers = #tpu.dot_dimension_numbers<[1], [1], [0], [0], [0, 0, 1, 0], [], []>} : vector<8x8xf32>, vector<8x8xf32>, vector<8x8xf32> -> vector<8x8xf32>
    %cst_255 = arith.constant 0.353553385 : f32
    %557 = vector.broadcast %cst_255 : f32 to vector<8x8xf32>
    %558 = arith.mulf %556, %557 : vector<8x8xf32>
    %cst_256 = arith.constant 0.000000e+00 : f32
    %559 = vector.broadcast %cst_256 : f32 to vector<1x8xf32>
    %560 = arith.cmpf oeq, %1, %559 : vector<1x8xf32>
    %cst_257 = arith.constant -1.000000e+09 : f32
    %561 = vector.shape_cast %560 : vector<1x8xi1> to vector<1x8xi1>
    %562 = vector.broadcast %561 : vector<1x8xi1> to vector<8x8xi1>
    %563 = vector.broadcast %cst_257 : f32 to vector<8x8xf32>
    %564 = arith.select %562, %563, %558 : vector<8x8xi1>, vector<8x8xf32>
    %cst_258 = arith.constant dense<0xFF800000> : vector<8xf32>
    %565 = vector.multi_reduction <maximumf>, %564, %cst_258 [1] : vector<8x8xf32> to vector<8xf32>
    %566 = vector.shape_cast %565 : vector<8xf32> to vector<8x1xf32>
    %567 = vector.broadcast %566 : vector<8x1xf32> to vector<8x8xf32>
    %568 = arith.subf %564, %567 : vector<8x8xf32>
    %569 = math.exp %568 : vector<8x8xf32>
    %cst_259 = arith.constant dense<0.000000e+00> : vector<8xf32>
    %570 = vector.multi_reduction <add>, %569, %cst_259 [1] : vector<8x8xf32> to vector<8xf32>
    %571 = vector.shape_cast %570 : vector<8xf32> to vector<8x1xf32>
    %572 = tpu.reciprocal %571 {approx = true} : vector<8x1xf32> -> vector<8x1xf32>
    %573 = vector.broadcast %572 : vector<8x1xf32> to vector<8x8xf32>
    %574 = arith.mulf %569, %573 : vector<8x8xf32>
    %cst_260 = arith.constant dense<0.000000e+00> : vector<8x8xf32>
    %575 = tpu.matmul %574, %555, %cst_260 {dimension_numbers = #tpu.dot_dimension_numbers<[1], [0], [0], [1], [0, 0, 1, 1], [], []>} : vector<8x8xf32>, vector<8x8xf32>, vector<8x8xf32> -> vector<8x8xf32>
    %576 = vector.extract_strided_slice %545 {offsets = [0, 8], sizes = [8, 8], strides = [1, 1]} : vector<8x32xf32> to vector<8x8xf32>
    %577 = vector.extract_strided_slice %551 {offsets = [0, 8], sizes = [8, 8], strides = [1, 1]} : vector<8x32xf32> to vector<8x8xf32>
    %578 = vector.extract_strided_slice %552 {offsets = [0, 8], sizes = [8, 8], strides = [1, 1]} : vector<8x32xf32> to vector<8x8xf32>
    %cst_261 = arith.constant dense<0.000000e+00> : vector<8x8xf32>
    %579 = tpu.matmul %576, %577, %cst_261 {dimension_numbers = #tpu.dot_dimension_numbers<[1], [1], [0], [0], [0, 0, 1, 0], [], []>} : vector<8x8xf32>, vector<8x8xf32>, vector<8x8xf32> -> vector<8x8xf32>
    %cst_262 = arith.constant 0.353553385 : f32
    %580 = vector.broadcast %cst_262 : f32 to vector<8x8xf32>
    %581 = arith.mulf %579, %580 : vector<8x8xf32>
    %cst_263 = arith.constant 0.000000e+00 : f32
    %582 = vector.broadcast %cst_263 : f32 to vector<1x8xf32>
    %583 = arith.cmpf oeq, %1, %582 : vector<1x8xf32>
    %cst_264 = arith.constant -1.000000e+09 : f32
    %584 = vector.shape_cast %583 : vector<1x8xi1> to vector<1x8xi1>
    %585 = vector.broadcast %584 : vector<1x8xi1> to vector<8x8xi1>
    %586 = vector.broadcast %cst_264 : f32 to vector<8x8xf32>
    %587 = arith.select %585, %586, %581 : vector<8x8xi1>, vector<8x8xf32>
    %cst_265 = arith.constant dense<0xFF800000> : vector<8xf32>
    %588 = vector.multi_reduction <maximumf>, %587, %cst_265 [1] : vector<8x8xf32> to vector<8xf32>
    %589 = vector.shape_cast %588 : vector<8xf32> to vector<8x1xf32>
    %590 = vector.broadcast %589 : vector<8x1xf32> to vector<8x8xf32>
    %591 = arith.subf %587, %590 : vector<8x8xf32>
    %592 = math.exp %591 : vector<8x8xf32>
    %cst_266 = arith.constant dense<0.000000e+00> : vector<8xf32>
    %593 = vector.multi_reduction <add>, %592, %cst_266 [1] : vector<8x8xf32> to vector<8xf32>
    %594 = vector.shape_cast %593 : vector<8xf32> to vector<8x1xf32>
    %595 = tpu.reciprocal %594 {approx = true} : vector<8x1xf32> -> vector<8x1xf32>
    %596 = vector.broadcast %595 : vector<8x1xf32> to vector<8x8xf32>
    %597 = arith.mulf %592, %596 : vector<8x8xf32>
    %cst_267 = arith.constant dense<0.000000e+00> : vector<8x8xf32>
    %598 = tpu.matmul %597, %578, %cst_267 {dimension_numbers = #tpu.dot_dimension_numbers<[1], [0], [0], [1], [0, 0, 1, 1], [], []>} : vector<8x8xf32>, vector<8x8xf32>, vector<8x8xf32> -> vector<8x8xf32>
    %599 = vector.extract_strided_slice %545 {offsets = [0, 16], sizes = [8, 8], strides = [1, 1]} : vector<8x32xf32> to vector<8x8xf32>
    %600 = vector.extract_strided_slice %551 {offsets = [0, 16], sizes = [8, 8], strides = [1, 1]} : vector<8x32xf32> to vector<8x8xf32>
    %601 = vector.extract_strided_slice %552 {offsets = [0, 16], sizes = [8, 8], strides = [1, 1]} : vector<8x32xf32> to vector<8x8xf32>
    %cst_268 = arith.constant dense<0.000000e+00> : vector<8x8xf32>
    %602 = tpu.matmul %599, %600, %cst_268 {dimension_numbers = #tpu.dot_dimension_numbers<[1], [1], [0], [0], [0, 0, 1, 0], [], []>} : vector<8x8xf32>, vector<8x8xf32>, vector<8x8xf32> -> vector<8x8xf32>
    %cst_269 = arith.constant 0.353553385 : f32
    %603 = vector.broadcast %cst_269 : f32 to vector<8x8xf32>
    %604 = arith.mulf %602, %603 : vector<8x8xf32>
    %cst_270 = arith.constant 0.000000e+00 : f32
    %605 = vector.broadcast %cst_270 : f32 to vector<1x8xf32>
    %606 = arith.cmpf oeq, %1, %605 : vector<1x8xf32>
    %cst_271 = arith.constant -1.000000e+09 : f32
    %607 = vector.shape_cast %606 : vector<1x8xi1> to vector<1x8xi1>
    %608 = vector.broadcast %607 : vector<1x8xi1> to vector<8x8xi1>
    %609 = vector.broadcast %cst_271 : f32 to vector<8x8xf32>
    %610 = arith.select %608, %609, %604 : vector<8x8xi1>, vector<8x8xf32>
    %cst_272 = arith.constant dense<0xFF800000> : vector<8xf32>
    %611 = vector.multi_reduction <maximumf>, %610, %cst_272 [1] : vector<8x8xf32> to vector<8xf32>
    %612 = vector.shape_cast %611 : vector<8xf32> to vector<8x1xf32>
    %613 = vector.broadcast %612 : vector<8x1xf32> to vector<8x8xf32>
    %614 = arith.subf %610, %613 : vector<8x8xf32>
    %615 = math.exp %614 : vector<8x8xf32>
    %cst_273 = arith.constant dense<0.000000e+00> : vector<8xf32>
    %616 = vector.multi_reduction <add>, %615, %cst_273 [1] : vector<8x8xf32> to vector<8xf32>
    %617 = vector.shape_cast %616 : vector<8xf32> to vector<8x1xf32>
    %618 = tpu.reciprocal %617 {approx = true} : vector<8x1xf32> -> vector<8x1xf32>
    %619 = vector.broadcast %618 : vector<8x1xf32> to vector<8x8xf32>
    %620 = arith.mulf %615, %619 : vector<8x8xf32>
    %cst_274 = arith.constant dense<0.000000e+00> : vector<8x8xf32>
    %621 = tpu.matmul %620, %601, %cst_274 {dimension_numbers = #tpu.dot_dimension_numbers<[1], [0], [0], [1], [0, 0, 1, 1], [], []>} : vector<8x8xf32>, vector<8x8xf32>, vector<8x8xf32> -> vector<8x8xf32>
    %622 = vector.extract_strided_slice %545 {offsets = [0, 24], sizes = [8, 8], strides = [1, 1]} : vector<8x32xf32> to vector<8x8xf32>
    %623 = vector.extract_strided_slice %551 {offsets = [0, 24], sizes = [8, 8], strides = [1, 1]} : vector<8x32xf32> to vector<8x8xf32>
    %624 = vector.extract_strided_slice %552 {offsets = [0, 24], sizes = [8, 8], strides = [1, 1]} : vector<8x32xf32> to vector<8x8xf32>
    %cst_275 = arith.constant dense<0.000000e+00> : vector<8x8xf32>
    %625 = tpu.matmul %622, %623, %cst_275 {dimension_numbers = #tpu.dot_dimension_numbers<[1], [1], [0], [0], [0, 0, 1, 0], [], []>} : vector<8x8xf32>, vector<8x8xf32>, vector<8x8xf32> -> vector<8x8xf32>
    %cst_276 = arith.constant 0.353553385 : f32
    %626 = vector.broadcast %cst_276 : f32 to vector<8x8xf32>
    %627 = arith.mulf %625, %626 : vector<8x8xf32>
    %cst_277 = arith.constant 0.000000e+00 : f32
    %628 = vector.broadcast %cst_277 : f32 to vector<1x8xf32>
    %629 = arith.cmpf oeq, %1, %628 : vector<1x8xf32>
    %cst_278 = arith.constant -1.000000e+09 : f32
    %630 = vector.shape_cast %629 : vector<1x8xi1> to vector<1x8xi1>
    %631 = vector.broadcast %630 : vector<1x8xi1> to vector<8x8xi1>
    %632 = vector.broadcast %cst_278 : f32 to vector<8x8xf32>
    %633 = arith.select %631, %632, %627 : vector<8x8xi1>, vector<8x8xf32>
    %cst_279 = arith.constant dense<0xFF800000> : vector<8xf32>
    %634 = vector.multi_reduction <maximumf>, %633, %cst_279 [1] : vector<8x8xf32> to vector<8xf32>
    %635 = vector.shape_cast %634 : vector<8xf32> to vector<8x1xf32>
    %636 = vector.broadcast %635 : vector<8x1xf32> to vector<8x8xf32>
    %637 = arith.subf %633, %636 : vector<8x8xf32>
    %638 = math.exp %637 : vector<8x8xf32>
    %cst_280 = arith.constant dense<0.000000e+00> : vector<8xf32>
    %639 = vector.multi_reduction <add>, %638, %cst_280 [1] : vector<8x8xf32> to vector<8xf32>
    %640 = vector.shape_cast %639 : vector<8xf32> to vector<8x1xf32>
    %641 = tpu.reciprocal %640 {approx = true} : vector<8x1xf32> -> vector<8x1xf32>
    %642 = vector.broadcast %641 : vector<8x1xf32> to vector<8x8xf32>
    %643 = arith.mulf %638, %642 : vector<8x8xf32>
    %cst_281 = arith.constant dense<0.000000e+00> : vector<8x8xf32>
    %644 = tpu.matmul %643, %624, %cst_281 {dimension_numbers = #tpu.dot_dimension_numbers<[1], [0], [0], [1], [0, 0, 1, 1], [], []>} : vector<8x8xf32>, vector<8x8xf32>, vector<8x8xf32> -> vector<8x8xf32>
    %645 = tpu.concatenate %575, %598, %621, %644 in 1 : vector<8x8xf32>, vector<8x8xf32>, vector<8x8xf32>, vector<8x8xf32> -> vector<8x32xf32>
    %cst_282 = arith.constant dense<0.000000e+00> : vector<8x32xf32>
    %646 = tpu.matmul %645, %538, %cst_282 {dimension_numbers = #tpu.dot_dimension_numbers<[1], [0], [0], [1], [0, 0, 1, 1], [], []>} : vector<8x32xf32>, vector<32x32xf32>, vector<8x32xf32> -> vector<8x32xf32>
    %647 = vector.broadcast %540 : vector<1x32xf32> to vector<8x32xf32>
    %648 = arith.addf %646, %647 : vector<8x32xf32>
    %649 = arith.addf %508, %648 : vector<8x32xf32>
    %c0_283 = arith.constant 0 : index
    %c0_284 = arith.constant 0 : index
    %c0_285 = arith.constant 0 : index
    %650 = vector.load %arg31[%c0_283, %c0_284, %c0_285] : memref<2x1x32xf32, #tpu.memory_space<vmem>>, vector<1x1x32xf32>
    %651 = vector.shape_cast %650 : vector<1x1x32xf32> to vector<1x32xf32>
    %c0_286 = arith.constant 0 : index
    %c0_287 = arith.constant 0 : index
    %c0_288 = arith.constant 0 : index
    %652 = vector.load %arg32[%c0_286, %c0_287, %c0_288] : memref<2x1x32xf32, #tpu.memory_space<vmem>>, vector<1x1x32xf32>
    %653 = vector.shape_cast %652 : vector<1x1x32xf32> to vector<1x32xf32>
    %cst_289 = arith.constant dense<0.000000e+00> : vector<8xf32>
    %654 = vector.multi_reduction <add>, %649, %cst_289 [1] : vector<8x32xf32> to vector<8xf32>
    %655 = vector.shape_cast %654 : vector<8xf32> to vector<8x1xf32>
    %cst_290 = arith.constant 3.200000e+01 : f32
    %656 = vector.broadcast %cst_290 : f32 to vector<8x1xf32>
    %657 = arith.divf %655, %656 : vector<8x1xf32>
    %658 = vector.broadcast %657 : vector<8x1xf32> to vector<8x32xf32>
    %659 = arith.subf %649, %658 : vector<8x32xf32>
    %660 = arith.mulf %659, %659 : vector<8x32xf32>
    %cst_291 = arith.constant dense<0.000000e+00> : vector<8xf32>
    %661 = vector.multi_reduction <add>, %660, %cst_291 [1] : vector<8x32xf32> to vector<8xf32>
    %662 = vector.shape_cast %661 : vector<8xf32> to vector<8x1xf32>
    %cst_292 = arith.constant 0.0322580636 : f32
    %663 = vector.broadcast %cst_292 : f32 to vector<8x1xf32>
    %664 = arith.mulf %662, %663 : vector<8x1xf32>
    %665 = math.sqrt %664 : vector<8x1xf32>
    %666 = vector.broadcast %651 : vector<1x32xf32> to vector<8x32xf32>
    %667 = arith.mulf %666, %659 : vector<8x32xf32>
    %cst_293 = arith.constant 9.99999997E-7 : f32
    %668 = vector.broadcast %cst_293 : f32 to vector<8x1xf32>
    %669 = arith.addf %665, %668 : vector<8x1xf32>
    %670 = vector.broadcast %669 : vector<8x1xf32> to vector<8x32xf32>
    %671 = arith.divf %667, %670 : vector<8x32xf32>
    %672 = vector.broadcast %653 : vector<1x32xf32> to vector<8x32xf32>
    %673 = arith.addf %671, %672 : vector<8x32xf32>
    %c0_294 = arith.constant 0 : index
    %c0_295 = arith.constant 0 : index
    %c0_296 = arith.constant 0 : index
    %674 = vector.load %arg33[%c0_294, %c0_295, %c0_296] : memref<2x32x64xf32, #tpu.memory_space<vmem>>, vector<1x32x64xf32>
    %675 = vector.shape_cast %674 : vector<1x32x64xf32> to vector<32x64xf32>
    %c0_297 = arith.constant 0 : index
    %c0_298 = arith.constant 0 : index
    %c0_299 = arith.constant 0 : index
    %676 = vector.load %arg34[%c0_297, %c0_298, %c0_299] : memref<2x1x64xf32, #tpu.memory_space<vmem>>, vector<1x1x64xf32>
    %677 = vector.shape_cast %676 : vector<1x1x64xf32> to vector<1x64xf32>
    %c0_300 = arith.constant 0 : index
    %c0_301 = arith.constant 0 : index
    %c0_302 = arith.constant 0 : index
    %678 = vector.load %arg35[%c0_300, %c0_301, %c0_302] : memref<2x64x32xf32, #tpu.memory_space<vmem>>, vector<1x64x32xf32>
    %679 = vector.shape_cast %678 : vector<1x64x32xf32> to vector<64x32xf32>
    %c0_303 = arith.constant 0 : index
    %c0_304 = arith.constant 0 : index
    %c0_305 = arith.constant 0 : index
    %680 = vector.load %arg36[%c0_303, %c0_304, %c0_305] : memref<2x1x32xf32, #tpu.memory_space<vmem>>, vector<1x1x32xf32>
    %681 = vector.shape_cast %680 : vector<1x1x32xf32> to vector<1x32xf32>
    %cst_306 = arith.constant dense<0.000000e+00> : vector<8x64xf32>
    %682 = tpu.matmul %673, %675, %cst_306 {dimension_numbers = #tpu.dot_dimension_numbers<[1], [0], [0], [1], [0, 0, 1, 1], [], []>} : vector<8x32xf32>, vector<32x64xf32>, vector<8x64xf32> -> vector<8x64xf32>
    %683 = vector.broadcast %677 : vector<1x64xf32> to vector<8x64xf32>
    %684 = arith.addf %682, %683 : vector<8x64xf32>
    %cst_307 = arith.constant 0.000000e+00 : f32
    %685 = vector.broadcast %cst_307 : f32 to vector<8x64xf32>
    %686 = arith.maximumf %684, %685 : vector<8x64xf32>
    %cst_308 = arith.constant dense<0.000000e+00> : vector<8x32xf32>
    %687 = tpu.matmul %686, %679, %cst_308 {dimension_numbers = #tpu.dot_dimension_numbers<[1], [0], [0], [1], [0, 0, 1, 1], [], []>} : vector<8x64xf32>, vector<64x32xf32>, vector<8x32xf32> -> vector<8x32xf32>
    %688 = vector.broadcast %681 : vector<1x32xf32> to vector<8x32xf32>
    %689 = arith.addf %687, %688 : vector<8x32xf32>
    %690 = arith.addf %649, %689 : vector<8x32xf32>
    %c1_309 = arith.constant 1 : index
    %c0_310 = arith.constant 0 : index
    %c0_311 = arith.constant 0 : index
    %691 = vector.load %arg19[%c1_309, %c0_310, %c0_311] : memref<2x1x32xf32, #tpu.memory_space<vmem>>, vector<1x1x32xf32>
    %692 = vector.shape_cast %691 : vector<1x1x32xf32> to vector<1x32xf32>
    %c1_312 = arith.constant 1 : index
    %c0_313 = arith.constant 0 : index
    %c0_314 = arith.constant 0 : index
    %693 = vector.load %arg20[%c1_312, %c0_313, %c0_314] : memref<2x1x32xf32, #tpu.memory_space<vmem>>, vector<1x1x32xf32>
    %694 = vector.shape_cast %693 : vector<1x1x32xf32> to vector<1x32xf32>
    %cst_315 = arith.constant dense<0.000000e+00> : vector<8xf32>
    %695 = vector.multi_reduction <add>, %690, %cst_315 [1] : vector<8x32xf32> to vector<8xf32>
    %696 = vector.shape_cast %695 : vector<8xf32> to vector<8x1xf32>
    %cst_316 = arith.constant 3.200000e+01 : f32
    %697 = vector.broadcast %cst_316 : f32 to vector<8x1xf32>
    %698 = arith.divf %696, %697 : vector<8x1xf32>
    %699 = vector.broadcast %698 : vector<8x1xf32> to vector<8x32xf32>
    %700 = arith.subf %690, %699 : vector<8x32xf32>
    %701 = arith.mulf %700, %700 : vector<8x32xf32>
    %cst_317 = arith.constant dense<0.000000e+00> : vector<8xf32>
    %702 = vector.multi_reduction <add>, %701, %cst_317 [1] : vector<8x32xf32> to vector<8xf32>
    %703 = vector.shape_cast %702 : vector<8xf32> to vector<8x1xf32>
    %cst_318 = arith.constant 0.0322580636 : f32
    %704 = vector.broadcast %cst_318 : f32 to vector<8x1xf32>
    %705 = arith.mulf %703, %704 : vector<8x1xf32>
    %706 = math.sqrt %705 : vector<8x1xf32>
    %707 = vector.broadcast %692 : vector<1x32xf32> to vector<8x32xf32>
    %708 = arith.mulf %707, %700 : vector<8x32xf32>
    %cst_319 = arith.constant 9.99999997E-7 : f32
    %709 = vector.broadcast %cst_319 : f32 to vector<8x1xf32>
    %710 = arith.addf %706, %709 : vector<8x1xf32>
    %711 = vector.broadcast %710 : vector<8x1xf32> to vector<8x32xf32>
    %712 = arith.divf %708, %711 : vector<8x32xf32>
    %713 = vector.broadcast %694 : vector<1x32xf32> to vector<8x32xf32>
    %714 = arith.addf %712, %713 : vector<8x32xf32>
    %c1_320 = arith.constant 1 : index
    %c0_321 = arith.constant 0 : index
    %c0_322 = arith.constant 0 : index
    %715 = vector.load %arg21[%c1_320, %c0_321, %c0_322] : memref<2x32x96xf32, #tpu.memory_space<vmem>>, vector<1x32x96xf32>
    %716 = vector.shape_cast %715 : vector<1x32x96xf32> to vector<32x96xf32>
    %c1_323 = arith.constant 1 : index
    %c0_324 = arith.constant 0 : index
    %c0_325 = arith.constant 0 : index
    %717 = vector.load %arg22[%c1_323, %c0_324, %c0_325] : memref<2x1x96xf32, #tpu.memory_space<vmem>>, vector<1x1x96xf32>
    %718 = vector.shape_cast %717 : vector<1x1x96xf32> to vector<1x96xf32>
    %c1_326 = arith.constant 1 : index
    %c0_327 = arith.constant 0 : index
    %c0_328 = arith.constant 0 : index
    %719 = vector.load %arg23[%c1_326, %c0_327, %c0_328] : memref<2x32x32xf32, #tpu.memory_space<vmem>>, vector<1x32x32xf32>
    %720 = vector.shape_cast %719 : vector<1x32x32xf32> to vector<32x32xf32>
    %c1_329 = arith.constant 1 : index
    %c0_330 = arith.constant 0 : index
    %c0_331 = arith.constant 0 : index
    %721 = vector.load %arg24[%c1_329, %c0_330, %c0_331] : memref<2x1x32xf32, #tpu.memory_space<vmem>>, vector<1x1x32xf32>
    %722 = vector.shape_cast %721 : vector<1x1x32xf32> to vector<1x32xf32>
    %cst_332 = arith.constant dense<0.000000e+00> : vector<8x96xf32>
    %723 = tpu.matmul %714, %716, %cst_332 {dimension_numbers = #tpu.dot_dimension_numbers<[1], [0], [0], [1], [0, 0, 1, 1], [], []>} : vector<8x32xf32>, vector<32x96xf32>, vector<8x96xf32> -> vector<8x96xf32>
    %724 = vector.broadcast %718 : vector<1x96xf32> to vector<8x96xf32>
    %725 = arith.addf %723, %724 : vector<8x96xf32>
    %726 = vector.extract_strided_slice %725 {offsets = [0, 0], sizes = [8, 32], strides = [1, 1]} : vector<8x96xf32> to vector<8x32xf32>
    %727 = vector.extract_strided_slice %725 {offsets = [0, 32], sizes = [8, 32], strides = [1, 1]} : vector<8x96xf32> to vector<8x32xf32>
    %728 = vector.extract_strided_slice %725 {offsets = [0, 64], sizes = [8, 32], strides = [1, 1]} : vector<8x96xf32> to vector<8x32xf32>
    %729 = vector.extract_strided_slice %726 {offsets = [0, 0], sizes = [8, 8], strides = [1, 1]} : vector<8x32xf32> to vector<8x8xf32>
    %730 = vector.extract_strided_slice %727 {offsets = [0, 0], sizes = [8, 8], strides = [1, 1]} : vector<8x32xf32> to vector<8x8xf32>
    %731 = vector.extract_strided_slice %728 {offsets = [0, 0], sizes = [8, 8], strides = [1, 1]} : vector<8x32xf32> to vector<8x8xf32>
    %cst_333 = arith.constant dense<0.000000e+00> : vector<8x8xf32>
    %732 = tpu.matmul %729, %730, %cst_333 {dimension_numbers = #tpu.dot_dimension_numbers<[1], [1], [0], [0], [0, 0, 1, 0], [], []>} : vector<8x8xf32>, vector<8x8xf32>, vector<8x8xf32> -> vector<8x8xf32>
    %cst_334 = arith.constant 0.353553385 : f32
    %733 = vector.broadcast %cst_334 : f32 to vector<8x8xf32>
    %734 = arith.mulf %732, %733 : vector<8x8xf32>
    %cst_335 = arith.constant 0.000000e+00 : f32
    %735 = vector.broadcast %cst_335 : f32 to vector<8x8xf32>
    %736 = arith.cmpf oeq, %3, %735 : vector<8x8xf32>
    %cst_336 = arith.constant -1.000000e+09 : f32
    %737 = vector.broadcast %cst_336 : f32 to vector<8x8xf32>
    %738 = arith.select %736, %737, %734 : vector<8x8xi1>, vector<8x8xf32>
    %cst_337 = arith.constant dense<0xFF800000> : vector<8xf32>
    %739 = vector.multi_reduction <maximumf>, %738, %cst_337 [1] : vector<8x8xf32> to vector<8xf32>
    %740 = vector.shape_cast %739 : vector<8xf32> to vector<8x1xf32>
    %741 = vector.broadcast %740 : vector<8x1xf32> to vector<8x8xf32>
    %742 = arith.subf %738, %741 : vector<8x8xf32>
    %743 = math.exp %742 : vector<8x8xf32>
    %cst_338 = arith.constant dense<0.000000e+00> : vector<8xf32>
    %744 = vector.multi_reduction <add>, %743, %cst_338 [1] : vector<8x8xf32> to vector<8xf32>
    %745 = vector.shape_cast %744 : vector<8xf32> to vector<8x1xf32>
    %746 = tpu.reciprocal %745 {approx = true} : vector<8x1xf32> -> vector<8x1xf32>
    %747 = vector.broadcast %746 : vector<8x1xf32> to vector<8x8xf32>
    %748 = arith.mulf %743, %747 : vector<8x8xf32>
    %cst_339 = arith.constant dense<0.000000e+00> : vector<8x8xf32>
    %749 = tpu.matmul %748, %731, %cst_339 {dimension_numbers = #tpu.dot_dimension_numbers<[1], [0], [0], [1], [0, 0, 1, 1], [], []>} : vector<8x8xf32>, vector<8x8xf32>, vector<8x8xf32> -> vector<8x8xf32>
    %750 = vector.extract_strided_slice %726 {offsets = [0, 8], sizes = [8, 8], strides = [1, 1]} : vector<8x32xf32> to vector<8x8xf32>
    %751 = vector.extract_strided_slice %727 {offsets = [0, 8], sizes = [8, 8], strides = [1, 1]} : vector<8x32xf32> to vector<8x8xf32>
    %752 = vector.extract_strided_slice %728 {offsets = [0, 8], sizes = [8, 8], strides = [1, 1]} : vector<8x32xf32> to vector<8x8xf32>
    %cst_340 = arith.constant dense<0.000000e+00> : vector<8x8xf32>
    %753 = tpu.matmul %750, %751, %cst_340 {dimension_numbers = #tpu.dot_dimension_numbers<[1], [1], [0], [0], [0, 0, 1, 0], [], []>} : vector<8x8xf32>, vector<8x8xf32>, vector<8x8xf32> -> vector<8x8xf32>
    %cst_341 = arith.constant 0.353553385 : f32
    %754 = vector.broadcast %cst_341 : f32 to vector<8x8xf32>
    %755 = arith.mulf %753, %754 : vector<8x8xf32>
    %cst_342 = arith.constant 0.000000e+00 : f32
    %756 = vector.broadcast %cst_342 : f32 to vector<8x8xf32>
    %757 = arith.cmpf oeq, %3, %756 : vector<8x8xf32>
    %cst_343 = arith.constant -1.000000e+09 : f32
    %758 = vector.broadcast %cst_343 : f32 to vector<8x8xf32>
    %759 = arith.select %757, %758, %755 : vector<8x8xi1>, vector<8x8xf32>
    %cst_344 = arith.constant dense<0xFF800000> : vector<8xf32>
    %760 = vector.multi_reduction <maximumf>, %759, %cst_344 [1] : vector<8x8xf32> to vector<8xf32>
    %761 = vector.shape_cast %760 : vector<8xf32> to vector<8x1xf32>
    %762 = vector.broadcast %761 : vector<8x1xf32> to vector<8x8xf32>
    %763 = arith.subf %759, %762 : vector<8x8xf32>
    %764 = math.exp %763 : vector<8x8xf32>
    %cst_345 = arith.constant dense<0.000000e+00> : vector<8xf32>
    %765 = vector.multi_reduction <add>, %764, %cst_345 [1] : vector<8x8xf32> to vector<8xf32>
    %766 = vector.shape_cast %765 : vector<8xf32> to vector<8x1xf32>
    %767 = tpu.reciprocal %766 {approx = true} : vector<8x1xf32> -> vector<8x1xf32>
    %768 = vector.broadcast %767 : vector<8x1xf32> to vector<8x8xf32>
    %769 = arith.mulf %764, %768 : vector<8x8xf32>
    %cst_346 = arith.constant dense<0.000000e+00> : vector<8x8xf32>
    %770 = tpu.matmul %769, %752, %cst_346 {dimension_numbers = #tpu.dot_dimension_numbers<[1], [0], [0], [1], [0, 0, 1, 1], [], []>} : vector<8x8xf32>, vector<8x8xf32>, vector<8x8xf32> -> vector<8x8xf32>
    %771 = vector.extract_strided_slice %726 {offsets = [0, 16], sizes = [8, 8], strides = [1, 1]} : vector<8x32xf32> to vector<8x8xf32>
    %772 = vector.extract_strided_slice %727 {offsets = [0, 16], sizes = [8, 8], strides = [1, 1]} : vector<8x32xf32> to vector<8x8xf32>
    %773 = vector.extract_strided_slice %728 {offsets = [0, 16], sizes = [8, 8], strides = [1, 1]} : vector<8x32xf32> to vector<8x8xf32>
    %cst_347 = arith.constant dense<0.000000e+00> : vector<8x8xf32>
    %774 = tpu.matmul %771, %772, %cst_347 {dimension_numbers = #tpu.dot_dimension_numbers<[1], [1], [0], [0], [0, 0, 1, 0], [], []>} : vector<8x8xf32>, vector<8x8xf32>, vector<8x8xf32> -> vector<8x8xf32>
    %cst_348 = arith.constant 0.353553385 : f32
    %775 = vector.broadcast %cst_348 : f32 to vector<8x8xf32>
    %776 = arith.mulf %774, %775 : vector<8x8xf32>
    %cst_349 = arith.constant 0.000000e+00 : f32
    %777 = vector.broadcast %cst_349 : f32 to vector<8x8xf32>
    %778 = arith.cmpf oeq, %3, %777 : vector<8x8xf32>
    %cst_350 = arith.constant -1.000000e+09 : f32
    %779 = vector.broadcast %cst_350 : f32 to vector<8x8xf32>
    %780 = arith.select %778, %779, %776 : vector<8x8xi1>, vector<8x8xf32>
    %cst_351 = arith.constant dense<0xFF800000> : vector<8xf32>
    %781 = vector.multi_reduction <maximumf>, %780, %cst_351 [1] : vector<8x8xf32> to vector<8xf32>
    %782 = vector.shape_cast %781 : vector<8xf32> to vector<8x1xf32>
    %783 = vector.broadcast %782 : vector<8x1xf32> to vector<8x8xf32>
    %784 = arith.subf %780, %783 : vector<8x8xf32>
    %785 = math.exp %784 : vector<8x8xf32>
    %cst_352 = arith.constant dense<0.000000e+00> : vector<8xf32>
    %786 = vector.multi_reduction <add>, %785, %cst_352 [1] : vector<8x8xf32> to vector<8xf32>
    %787 = vector.shape_cast %786 : vector<8xf32> to vector<8x1xf32>
    %788 = tpu.reciprocal %787 {approx = true} : vector<8x1xf32> -> vector<8x1xf32>
    %789 = vector.broadcast %788 : vector<8x1xf32> to vector<8x8xf32>
    %790 = arith.mulf %785, %789 : vector<8x8xf32>
    %cst_353 = arith.constant dense<0.000000e+00> : vector<8x8xf32>
    %791 = tpu.matmul %790, %773, %cst_353 {dimension_numbers = #tpu.dot_dimension_numbers<[1], [0], [0], [1], [0, 0, 1, 1], [], []>} : vector<8x8xf32>, vector<8x8xf32>, vector<8x8xf32> -> vector<8x8xf32>
    %792 = vector.extract_strided_slice %726 {offsets = [0, 24], sizes = [8, 8], strides = [1, 1]} : vector<8x32xf32> to vector<8x8xf32>
    %793 = vector.extract_strided_slice %727 {offsets = [0, 24], sizes = [8, 8], strides = [1, 1]} : vector<8x32xf32> to vector<8x8xf32>
    %794 = vector.extract_strided_slice %728 {offsets = [0, 24], sizes = [8, 8], strides = [1, 1]} : vector<8x32xf32> to vector<8x8xf32>
    %cst_354 = arith.constant dense<0.000000e+00> : vector<8x8xf32>
    %795 = tpu.matmul %792, %793, %cst_354 {dimension_numbers = #tpu.dot_dimension_numbers<[1], [1], [0], [0], [0, 0, 1, 0], [], []>} : vector<8x8xf32>, vector<8x8xf32>, vector<8x8xf32> -> vector<8x8xf32>
    %cst_355 = arith.constant 0.353553385 : f32
    %796 = vector.broadcast %cst_355 : f32 to vector<8x8xf32>
    %797 = arith.mulf %795, %796 : vector<8x8xf32>
    %cst_356 = arith.constant 0.000000e+00 : f32
    %798 = vector.broadcast %cst_356 : f32 to vector<8x8xf32>
    %799 = arith.cmpf oeq, %3, %798 : vector<8x8xf32>
    %cst_357 = arith.constant -1.000000e+09 : f32
    %800 = vector.broadcast %cst_357 : f32 to vector<8x8xf32>
    %801 = arith.select %799, %800, %797 : vector<8x8xi1>, vector<8x8xf32>
    %cst_358 = arith.constant dense<0xFF800000> : vector<8xf32>
    %802 = vector.multi_reduction <maximumf>, %801, %cst_358 [1] : vector<8x8xf32> to vector<8xf32>
    %803 = vector.shape_cast %802 : vector<8xf32> to vector<8x1xf32>
    %804 = vector.broadcast %803 : vector<8x1xf32> to vector<8x8xf32>
    %805 = arith.subf %801, %804 : vector<8x8xf32>
    %806 = math.exp %805 : vector<8x8xf32>
    %cst_359 = arith.constant dense<0.000000e+00> : vector<8xf32>
    %807 = vector.multi_reduction <add>, %806, %cst_359 [1] : vector<8x8xf32> to vector<8xf32>
    %808 = vector.shape_cast %807 : vector<8xf32> to vector<8x1xf32>
    %809 = tpu.reciprocal %808 {approx = true} : vector<8x1xf32> -> vector<8x1xf32>
    %810 = vector.broadcast %809 : vector<8x1xf32> to vector<8x8xf32>
    %811 = arith.mulf %806, %810 : vector<8x8xf32>
    %cst_360 = arith.constant dense<0.000000e+00> : vector<8x8xf32>
    %812 = tpu.matmul %811, %794, %cst_360 {dimension_numbers = #tpu.dot_dimension_numbers<[1], [0], [0], [1], [0, 0, 1, 1], [], []>} : vector<8x8xf32>, vector<8x8xf32>, vector<8x8xf32> -> vector<8x8xf32>
    %813 = tpu.concatenate %749, %770, %791, %812 in 1 : vector<8x8xf32>, vector<8x8xf32>, vector<8x8xf32>, vector<8x8xf32> -> vector<8x32xf32>
    %cst_361 = arith.constant dense<0.000000e+00> : vector<8x32xf32>
    %814 = tpu.matmul %813, %720, %cst_361 {dimension_numbers = #tpu.dot_dimension_numbers<[1], [0], [0], [1], [0, 0, 1, 1], [], []>} : vector<8x32xf32>, vector<32x32xf32>, vector<8x32xf32> -> vector<8x32xf32>
    %815 = vector.broadcast %722 : vector<1x32xf32> to vector<8x32xf32>
    %816 = arith.addf %814, %815 : vector<8x32xf32>
    %817 = arith.addf %690, %816 : vector<8x32xf32>
    %c1_362 = arith.constant 1 : index
    %c0_363 = arith.constant 0 : index
    %c0_364 = arith.constant 0 : index
    %818 = vector.load %arg25[%c1_362, %c0_363, %c0_364] : memref<2x1x32xf32, #tpu.memory_space<vmem>>, vector<1x1x32xf32>
    %819 = vector.shape_cast %818 : vector<1x1x32xf32> to vector<1x32xf32>
    %c1_365 = arith.constant 1 : index
    %c0_366 = arith.constant 0 : index
    %c0_367 = arith.constant 0 : index
    %820 = vector.load %arg26[%c1_365, %c0_366, %c0_367] : memref<2x1x32xf32, #tpu.memory_space<vmem>>, vector<1x1x32xf32>
    %821 = vector.shape_cast %820 : vector<1x1x32xf32> to vector<1x32xf32>
    %cst_368 = arith.constant dense<0.000000e+00> : vector<8xf32>
    %822 = vector.multi_reduction <add>, %817, %cst_368 [1] : vector<8x32xf32> to vector<8xf32>
    %823 = vector.shape_cast %822 : vector<8xf32> to vector<8x1xf32>
    %cst_369 = arith.constant 3.200000e+01 : f32
    %824 = vector.broadcast %cst_369 : f32 to vector<8x1xf32>
    %825 = arith.divf %823, %824 : vector<8x1xf32>
    %826 = vector.broadcast %825 : vector<8x1xf32> to vector<8x32xf32>
    %827 = arith.subf %817, %826 : vector<8x32xf32>
    %828 = arith.mulf %827, %827 : vector<8x32xf32>
    %cst_370 = arith.constant dense<0.000000e+00> : vector<8xf32>
    %829 = vector.multi_reduction <add>, %828, %cst_370 [1] : vector<8x32xf32> to vector<8xf32>
    %830 = vector.shape_cast %829 : vector<8xf32> to vector<8x1xf32>
    %cst_371 = arith.constant 0.0322580636 : f32
    %831 = vector.broadcast %cst_371 : f32 to vector<8x1xf32>
    %832 = arith.mulf %830, %831 : vector<8x1xf32>
    %833 = math.sqrt %832 : vector<8x1xf32>
    %834 = vector.broadcast %819 : vector<1x32xf32> to vector<8x32xf32>
    %835 = arith.mulf %834, %827 : vector<8x32xf32>
    %cst_372 = arith.constant 9.99999997E-7 : f32
    %836 = vector.broadcast %cst_372 : f32 to vector<8x1xf32>
    %837 = arith.addf %833, %836 : vector<8x1xf32>
    %838 = vector.broadcast %837 : vector<8x1xf32> to vector<8x32xf32>
    %839 = arith.divf %835, %838 : vector<8x32xf32>
    %840 = vector.broadcast %821 : vector<1x32xf32> to vector<8x32xf32>
    %841 = arith.addf %839, %840 : vector<8x32xf32>
    %c1_373 = arith.constant 1 : index
    %c0_374 = arith.constant 0 : index
    %c0_375 = arith.constant 0 : index
    %842 = vector.load %arg27[%c1_373, %c0_374, %c0_375] : memref<2x32x96xf32, #tpu.memory_space<vmem>>, vector<1x32x96xf32>
    %843 = vector.shape_cast %842 : vector<1x32x96xf32> to vector<32x96xf32>
    %c1_376 = arith.constant 1 : index
    %c0_377 = arith.constant 0 : index
    %c0_378 = arith.constant 0 : index
    %844 = vector.load %arg28[%c1_376, %c0_377, %c0_378] : memref<2x1x96xf32, #tpu.memory_space<vmem>>, vector<1x1x96xf32>
    %845 = vector.shape_cast %844 : vector<1x1x96xf32> to vector<1x96xf32>
    %c1_379 = arith.constant 1 : index
    %c0_380 = arith.constant 0 : index
    %c0_381 = arith.constant 0 : index
    %846 = vector.load %arg29[%c1_379, %c0_380, %c0_381] : memref<2x32x32xf32, #tpu.memory_space<vmem>>, vector<1x32x32xf32>
    %847 = vector.shape_cast %846 : vector<1x32x32xf32> to vector<32x32xf32>
    %c1_382 = arith.constant 1 : index
    %c0_383 = arith.constant 0 : index
    %c0_384 = arith.constant 0 : index
    %848 = vector.load %arg30[%c1_382, %c0_383, %c0_384] : memref<2x1x32xf32, #tpu.memory_space<vmem>>, vector<1x1x32xf32>
    %849 = vector.shape_cast %848 : vector<1x1x32xf32> to vector<1x32xf32>
    %850 = vector.extract_strided_slice %843 {offsets = [0, 0], sizes = [32, 32], strides = [1, 1]} : vector<32x96xf32> to vector<32x32xf32>
    %cst_385 = arith.constant dense<0.000000e+00> : vector<8x32xf32>
    %851 = tpu.matmul %841, %850, %cst_385 {dimension_numbers = #tpu.dot_dimension_numbers<[1], [0], [0], [1], [0, 0, 1, 1], [], []>} : vector<8x32xf32>, vector<32x32xf32>, vector<8x32xf32> -> vector<8x32xf32>
    %852 = vector.extract_strided_slice %845 {offsets = [0, 0], sizes = [1, 32], strides = [1, 1]} : vector<1x96xf32> to vector<1x32xf32>
    %853 = vector.broadcast %852 : vector<1x32xf32> to vector<8x32xf32>
    %854 = arith.addf %851, %853 : vector<8x32xf32>
    %855 = vector.extract_strided_slice %843 {offsets = [0, 32], sizes = [32, 64], strides = [1, 1]} : vector<32x96xf32> to vector<32x64xf32>
    %cst_386 = arith.constant dense<0.000000e+00> : vector<8x64xf32>
    %856 = tpu.matmul %379, %855, %cst_386 {dimension_numbers = #tpu.dot_dimension_numbers<[1], [0], [0], [1], [0, 0, 1, 1], [], []>} : vector<8x32xf32>, vector<32x64xf32>, vector<8x64xf32> -> vector<8x64xf32>
    %857 = vector.extract_strided_slice %845 {offsets = [0, 32], sizes = [1, 64], strides = [1, 1]} : vector<1x96xf32> to vector<1x64xf32>
    %858 = vector.broadcast %857 : vector<1x64xf32> to vector<8x64xf32>
    %859 = arith.addf %856, %858 : vector<8x64xf32>
    %860 = vector.extract_strided_slice %859 {offsets = [0, 0], sizes = [8, 32], strides = [1, 1]} : vector<8x64xf32> to vector<8x32xf32>
    %861 = vector.extract_strided_slice %859 {offsets = [0, 32], sizes = [8, 32], strides = [1, 1]} : vector<8x64xf32> to vector<8x32xf32>
    %862 = vector.extract_strided_slice %854 {offsets = [0, 0], sizes = [8, 8], strides = [1, 1]} : vector<8x32xf32> to vector<8x8xf32>
    %863 = vector.extract_strided_slice %860 {offsets = [0, 0], sizes = [8, 8], strides = [1, 1]} : vector<8x32xf32> to vector<8x8xf32>
    %864 = vector.extract_strided_slice %861 {offsets = [0, 0], sizes = [8, 8], strides = [1, 1]} : vector<8x32xf32> to vector<8x8xf32>
    %cst_387 = arith.constant dense<0.000000e+00> : vector<8x8xf32>
    %865 = tpu.matmul %862, %863, %cst_387 {dimension_numbers = #tpu.dot_dimension_numbers<[1], [1], [0], [0], [0, 0, 1, 0], [], []>} : vector<8x8xf32>, vector<8x8xf32>, vector<8x8xf32> -> vector<8x8xf32>
    %cst_388 = arith.constant 0.353553385 : f32
    %866 = vector.broadcast %cst_388 : f32 to vector<8x8xf32>
    %867 = arith.mulf %865, %866 : vector<8x8xf32>
    %cst_389 = arith.constant 0.000000e+00 : f32
    %868 = vector.broadcast %cst_389 : f32 to vector<1x8xf32>
    %869 = arith.cmpf oeq, %1, %868 : vector<1x8xf32>
    %cst_390 = arith.constant -1.000000e+09 : f32
    %870 = vector.shape_cast %869 : vector<1x8xi1> to vector<1x8xi1>
    %871 = vector.broadcast %870 : vector<1x8xi1> to vector<8x8xi1>
    %872 = vector.broadcast %cst_390 : f32 to vector<8x8xf32>
    %873 = arith.select %871, %872, %867 : vector<8x8xi1>, vector<8x8xf32>
    %cst_391 = arith.constant dense<0xFF800000> : vector<8xf32>
    %874 = vector.multi_reduction <maximumf>, %873, %cst_391 [1] : vector<8x8xf32> to vector<8xf32>
    %875 = vector.shape_cast %874 : vector<8xf32> to vector<8x1xf32>
    %876 = vector.broadcast %875 : vector<8x1xf32> to vector<8x8xf32>
    %877 = arith.subf %873, %876 : vector<8x8xf32>
    %878 = math.exp %877 : vector<8x8xf32>
    %cst_392 = arith.constant dense<0.000000e+00> : vector<8xf32>
    %879 = vector.multi_reduction <add>, %878, %cst_392 [1] : vector<8x8xf32> to vector<8xf32>
    %880 = vector.shape_cast %879 : vector<8xf32> to vector<8x1xf32>
    %881 = tpu.reciprocal %880 {approx = true} : vector<8x1xf32> -> vector<8x1xf32>
    %882 = vector.broadcast %881 : vector<8x1xf32> to vector<8x8xf32>
    %883 = arith.mulf %878, %882 : vector<8x8xf32>
    %cst_393 = arith.constant dense<0.000000e+00> : vector<8x8xf32>
    %884 = tpu.matmul %883, %864, %cst_393 {dimension_numbers = #tpu.dot_dimension_numbers<[1], [0], [0], [1], [0, 0, 1, 1], [], []>} : vector<8x8xf32>, vector<8x8xf32>, vector<8x8xf32> -> vector<8x8xf32>
    %885 = vector.extract_strided_slice %854 {offsets = [0, 8], sizes = [8, 8], strides = [1, 1]} : vector<8x32xf32> to vector<8x8xf32>
    %886 = vector.extract_strided_slice %860 {offsets = [0, 8], sizes = [8, 8], strides = [1, 1]} : vector<8x32xf32> to vector<8x8xf32>
    %887 = vector.extract_strided_slice %861 {offsets = [0, 8], sizes = [8, 8], strides = [1, 1]} : vector<8x32xf32> to vector<8x8xf32>
    %cst_394 = arith.constant dense<0.000000e+00> : vector<8x8xf32>
    %888 = tpu.matmul %885, %886, %cst_394 {dimension_numbers = #tpu.dot_dimension_numbers<[1], [1], [0], [0], [0, 0, 1, 0], [], []>} : vector<8x8xf32>, vector<8x8xf32>, vector<8x8xf32> -> vector<8x8xf32>
    %cst_395 = arith.constant 0.353553385 : f32
    %889 = vector.broadcast %cst_395 : f32 to vector<8x8xf32>
    %890 = arith.mulf %888, %889 : vector<8x8xf32>
    %cst_396 = arith.constant 0.000000e+00 : f32
    %891 = vector.broadcast %cst_396 : f32 to vector<1x8xf32>
    %892 = arith.cmpf oeq, %1, %891 : vector<1x8xf32>
    %cst_397 = arith.constant -1.000000e+09 : f32
    %893 = vector.shape_cast %892 : vector<1x8xi1> to vector<1x8xi1>
    %894 = vector.broadcast %893 : vector<1x8xi1> to vector<8x8xi1>
    %895 = vector.broadcast %cst_397 : f32 to vector<8x8xf32>
    %896 = arith.select %894, %895, %890 : vector<8x8xi1>, vector<8x8xf32>
    %cst_398 = arith.constant dense<0xFF800000> : vector<8xf32>
    %897 = vector.multi_reduction <maximumf>, %896, %cst_398 [1] : vector<8x8xf32> to vector<8xf32>
    %898 = vector.shape_cast %897 : vector<8xf32> to vector<8x1xf32>
    %899 = vector.broadcast %898 : vector<8x1xf32> to vector<8x8xf32>
    %900 = arith.subf %896, %899 : vector<8x8xf32>
    %901 = math.exp %900 : vector<8x8xf32>
    %cst_399 = arith.constant dense<0.000000e+00> : vector<8xf32>
    %902 = vector.multi_reduction <add>, %901, %cst_399 [1] : vector<8x8xf32> to vector<8xf32>
    %903 = vector.shape_cast %902 : vector<8xf32> to vector<8x1xf32>
    %904 = tpu.reciprocal %903 {approx = true} : vector<8x1xf32> -> vector<8x1xf32>
    %905 = vector.broadcast %904 : vector<8x1xf32> to vector<8x8xf32>
    %906 = arith.mulf %901, %905 : vector<8x8xf32>
    %cst_400 = arith.constant dense<0.000000e+00> : vector<8x8xf32>
    %907 = tpu.matmul %906, %887, %cst_400 {dimension_numbers = #tpu.dot_dimension_numbers<[1], [0], [0], [1], [0, 0, 1, 1], [], []>} : vector<8x8xf32>, vector<8x8xf32>, vector<8x8xf32> -> vector<8x8xf32>
    %908 = vector.extract_strided_slice %854 {offsets = [0, 16], sizes = [8, 8], strides = [1, 1]} : vector<8x32xf32> to vector<8x8xf32>
    %909 = vector.extract_strided_slice %860 {offsets = [0, 16], sizes = [8, 8], strides = [1, 1]} : vector<8x32xf32> to vector<8x8xf32>
    %910 = vector.extract_strided_slice %861 {offsets = [0, 16], sizes = [8, 8], strides = [1, 1]} : vector<8x32xf32> to vector<8x8xf32>
    %cst_401 = arith.constant dense<0.000000e+00> : vector<8x8xf32>
    %911 = tpu.matmul %908, %909, %cst_401 {dimension_numbers = #tpu.dot_dimension_numbers<[1], [1], [0], [0], [0, 0, 1, 0], [], []>} : vector<8x8xf32>, vector<8x8xf32>, vector<8x8xf32> -> vector<8x8xf32>
    %cst_402 = arith.constant 0.353553385 : f32
    %912 = vector.broadcast %cst_402 : f32 to vector<8x8xf32>
    %913 = arith.mulf %911, %912 : vector<8x8xf32>
    %cst_403 = arith.constant 0.000000e+00 : f32
    %914 = vector.broadcast %cst_403 : f32 to vector<1x8xf32>
    %915 = arith.cmpf oeq, %1, %914 : vector<1x8xf32>
    %cst_404 = arith.constant -1.000000e+09 : f32
    %916 = vector.shape_cast %915 : vector<1x8xi1> to vector<1x8xi1>
    %917 = vector.broadcast %916 : vector<1x8xi1> to vector<8x8xi1>
    %918 = vector.broadcast %cst_404 : f32 to vector<8x8xf32>
    %919 = arith.select %917, %918, %913 : vector<8x8xi1>, vector<8x8xf32>
    %cst_405 = arith.constant dense<0xFF800000> : vector<8xf32>
    %920 = vector.multi_reduction <maximumf>, %919, %cst_405 [1] : vector<8x8xf32> to vector<8xf32>
    %921 = vector.shape_cast %920 : vector<8xf32> to vector<8x1xf32>
    %922 = vector.broadcast %921 : vector<8x1xf32> to vector<8x8xf32>
    %923 = arith.subf %919, %922 : vector<8x8xf32>
    %924 = math.exp %923 : vector<8x8xf32>
    %cst_406 = arith.constant dense<0.000000e+00> : vector<8xf32>
    %925 = vector.multi_reduction <add>, %924, %cst_406 [1] : vector<8x8xf32> to vector<8xf32>
    %926 = vector.shape_cast %925 : vector<8xf32> to vector<8x1xf32>
    %927 = tpu.reciprocal %926 {approx = true} : vector<8x1xf32> -> vector<8x1xf32>
    %928 = vector.broadcast %927 : vector<8x1xf32> to vector<8x8xf32>
    %929 = arith.mulf %924, %928 : vector<8x8xf32>
    %cst_407 = arith.constant dense<0.000000e+00> : vector<8x8xf32>
    %930 = tpu.matmul %929, %910, %cst_407 {dimension_numbers = #tpu.dot_dimension_numbers<[1], [0], [0], [1], [0, 0, 1, 1], [], []>} : vector<8x8xf32>, vector<8x8xf32>, vector<8x8xf32> -> vector<8x8xf32>
    %931 = vector.extract_strided_slice %854 {offsets = [0, 24], sizes = [8, 8], strides = [1, 1]} : vector<8x32xf32> to vector<8x8xf32>
    %932 = vector.extract_strided_slice %860 {offsets = [0, 24], sizes = [8, 8], strides = [1, 1]} : vector<8x32xf32> to vector<8x8xf32>
    %933 = vector.extract_strided_slice %861 {offsets = [0, 24], sizes = [8, 8], strides = [1, 1]} : vector<8x32xf32> to vector<8x8xf32>
    %cst_408 = arith.constant dense<0.000000e+00> : vector<8x8xf32>
    %934 = tpu.matmul %931, %932, %cst_408 {dimension_numbers = #tpu.dot_dimension_numbers<[1], [1], [0], [0], [0, 0, 1, 0], [], []>} : vector<8x8xf32>, vector<8x8xf32>, vector<8x8xf32> -> vector<8x8xf32>
    %cst_409 = arith.constant 0.353553385 : f32
    %935 = vector.broadcast %cst_409 : f32 to vector<8x8xf32>
    %936 = arith.mulf %934, %935 : vector<8x8xf32>
    %cst_410 = arith.constant 0.000000e+00 : f32
    %937 = vector.broadcast %cst_410 : f32 to vector<1x8xf32>
    %938 = arith.cmpf oeq, %1, %937 : vector<1x8xf32>
    %cst_411 = arith.constant -1.000000e+09 : f32
    %939 = vector.shape_cast %938 : vector<1x8xi1> to vector<1x8xi1>
    %940 = vector.broadcast %939 : vector<1x8xi1> to vector<8x8xi1>
    %941 = vector.broadcast %cst_411 : f32 to vector<8x8xf32>
    %942 = arith.select %940, %941, %936 : vector<8x8xi1>, vector<8x8xf32>
    %cst_412 = arith.constant dense<0xFF800000> : vector<8xf32>
    %943 = vector.multi_reduction <maximumf>, %942, %cst_412 [1] : vector<8x8xf32> to vector<8xf32>
    %944 = vector.shape_cast %943 : vector<8xf32> to vector<8x1xf32>
    %945 = vector.broadcast %944 : vector<8x1xf32> to vector<8x8xf32>
    %946 = arith.subf %942, %945 : vector<8x8xf32>
    %947 = math.exp %946 : vector<8x8xf32>
    %cst_413 = arith.constant dense<0.000000e+00> : vector<8xf32>
    %948 = vector.multi_reduction <add>, %947, %cst_413 [1] : vector<8x8xf32> to vector<8xf32>
    %949 = vector.shape_cast %948 : vector<8xf32> to vector<8x1xf32>
    %950 = tpu.reciprocal %949 {approx = true} : vector<8x1xf32> -> vector<8x1xf32>
    %951 = vector.broadcast %950 : vector<8x1xf32> to vector<8x8xf32>
    %952 = arith.mulf %947, %951 : vector<8x8xf32>
    %cst_414 = arith.constant dense<0.000000e+00> : vector<8x8xf32>
    %953 = tpu.matmul %952, %933, %cst_414 {dimension_numbers = #tpu.dot_dimension_numbers<[1], [0], [0], [1], [0, 0, 1, 1], [], []>} : vector<8x8xf32>, vector<8x8xf32>, vector<8x8xf32> -> vector<8x8xf32>
    %954 = tpu.concatenate %884, %907, %930, %953 in 1 : vector<8x8xf32>, vector<8x8xf32>, vector<8x8xf32>, vector<8x8xf32> -> vector<8x32xf32>
    %cst_415 = arith.constant dense<0.000000e+00> : vector<8x32xf32>
    %955 = tpu.matmul %954, %847, %cst_415 {dimension_numbers = #tpu.dot_dimension_numbers<[1], [0], [0], [1], [0, 0, 1, 1], [], []>} : vector<8x32xf32>, vector<32x32xf32>, vector<8x32xf32> -> vector<8x32xf32>
    %956 = vector.broadcast %849 : vector<1x32xf32> to vector<8x32xf32>
    %957 = arith.addf %955, %956 : vector<8x32xf32>
    %958 = arith.addf %817, %957 : vector<8x32xf32>
    %c1_416 = arith.constant 1 : index
    %c0_417 = arith.constant 0 : index
    %c0_418 = arith.constant 0 : index
    %959 = vector.load %arg31[%c1_416, %c0_417, %c0_418] : memref<2x1x32xf32, #tpu.memory_space<vmem>>, vector<1x1x32xf32>
    %960 = vector.shape_cast %959 : vector<1x1x32xf32> to vector<1x32xf32>
    %c1_419 = arith.constant 1 : index
    %c0_420 = arith.constant 0 : index
    %c0_421 = arith.constant 0 : index
    %961 = vector.load %arg32[%c1_419, %c0_420, %c0_421] : memref<2x1x32xf32, #tpu.memory_space<vmem>>, vector<1x1x32xf32>
    %962 = vector.shape_cast %961 : vector<1x1x32xf32> to vector<1x32xf32>
    %cst_422 = arith.constant dense<0.000000e+00> : vector<8xf32>
    %963 = vector.multi_reduction <add>, %958, %cst_422 [1] : vector<8x32xf32> to vector<8xf32>
    %964 = vector.shape_cast %963 : vector<8xf32> to vector<8x1xf32>
    %cst_423 = arith.constant 3.200000e+01 : f32
    %965 = vector.broadcast %cst_423 : f32 to vector<8x1xf32>
    %966 = arith.divf %964, %965 : vector<8x1xf32>
    %967 = vector.broadcast %966 : vector<8x1xf32> to vector<8x32xf32>
    %968 = arith.subf %958, %967 : vector<8x32xf32>
    %969 = arith.mulf %968, %968 : vector<8x32xf32>
    %cst_424 = arith.constant dense<0.000000e+00> : vector<8xf32>
    %970 = vector.multi_reduction <add>, %969, %cst_424 [1] : vector<8x32xf32> to vector<8xf32>
    %971 = vector.shape_cast %970 : vector<8xf32> to vector<8x1xf32>
    %cst_425 = arith.constant 0.0322580636 : f32
    %972 = vector.broadcast %cst_425 : f32 to vector<8x1xf32>
    %973 = arith.mulf %971, %972 : vector<8x1xf32>
    %974 = math.sqrt %973 : vector<8x1xf32>
    %975 = vector.broadcast %960 : vector<1x32xf32> to vector<8x32xf32>
    %976 = arith.mulf %975, %968 : vector<8x32xf32>
    %cst_426 = arith.constant 9.99999997E-7 : f32
    %977 = vector.broadcast %cst_426 : f32 to vector<8x1xf32>
    %978 = arith.addf %974, %977 : vector<8x1xf32>
    %979 = vector.broadcast %978 : vector<8x1xf32> to vector<8x32xf32>
    %980 = arith.divf %976, %979 : vector<8x32xf32>
    %981 = vector.broadcast %962 : vector<1x32xf32> to vector<8x32xf32>
    %982 = arith.addf %980, %981 : vector<8x32xf32>
    %c1_427 = arith.constant 1 : index
    %c0_428 = arith.constant 0 : index
    %c0_429 = arith.constant 0 : index
    %983 = vector.load %arg33[%c1_427, %c0_428, %c0_429] : memref<2x32x64xf32, #tpu.memory_space<vmem>>, vector<1x32x64xf32>
    %984 = vector.shape_cast %983 : vector<1x32x64xf32> to vector<32x64xf32>
    %c1_430 = arith.constant 1 : index
    %c0_431 = arith.constant 0 : index
    %c0_432 = arith.constant 0 : index
    %985 = vector.load %arg34[%c1_430, %c0_431, %c0_432] : memref<2x1x64xf32, #tpu.memory_space<vmem>>, vector<1x1x64xf32>
    %986 = vector.shape_cast %985 : vector<1x1x64xf32> to vector<1x64xf32>
    %c1_433 = arith.constant 1 : index
    %c0_434 = arith.constant 0 : index
    %c0_435 = arith.constant 0 : index
    %987 = vector.load %arg35[%c1_433, %c0_434, %c0_435] : memref<2x64x32xf32, #tpu.memory_space<vmem>>, vector<1x64x32xf32>
    %988 = vector.shape_cast %987 : vector<1x64x32xf32> to vector<64x32xf32>
    %c1_436 = arith.constant 1 : index
    %c0_437 = arith.constant 0 : index
    %c0_438 = arith.constant 0 : index
    %989 = vector.load %arg36[%c1_436, %c0_437, %c0_438] : memref<2x1x32xf32, #tpu.memory_space<vmem>>, vector<1x1x32xf32>
    %990 = vector.shape_cast %989 : vector<1x1x32xf32> to vector<1x32xf32>
    %cst_439 = arith.constant dense<0.000000e+00> : vector<8x64xf32>
    %991 = tpu.matmul %982, %984, %cst_439 {dimension_numbers = #tpu.dot_dimension_numbers<[1], [0], [0], [1], [0, 0, 1, 1], [], []>} : vector<8x32xf32>, vector<32x64xf32>, vector<8x64xf32> -> vector<8x64xf32>
    %992 = vector.broadcast %986 : vector<1x64xf32> to vector<8x64xf32>
    %993 = arith.addf %991, %992 : vector<8x64xf32>
    %cst_440 = arith.constant 0.000000e+00 : f32
    %994 = vector.broadcast %cst_440 : f32 to vector<8x64xf32>
    %995 = arith.maximumf %993, %994 : vector<8x64xf32>
    %cst_441 = arith.constant dense<0.000000e+00> : vector<8x32xf32>
    %996 = tpu.matmul %995, %988, %cst_441 {dimension_numbers = #tpu.dot_dimension_numbers<[1], [0], [0], [1], [0, 0, 1, 1], [], []>} : vector<8x64xf32>, vector<64x32xf32>, vector<8x32xf32> -> vector<8x32xf32>
    %997 = vector.broadcast %990 : vector<1x32xf32> to vector<8x32xf32>
    %998 = arith.addf %996, %997 : vector<8x32xf32>
    %999 = arith.addf %958, %998 : vector<8x32xf32>
    %c0_442 = arith.constant 0 : index
    %c0_443 = arith.constant 0 : index
    %1000 = vector.load %arg37[%c0_442, %c0_443] : memref<1x32xf32, #tpu.memory_space<vmem>>, vector<1x32xf32>
    %c0_444 = arith.constant 0 : index
    %c0_445 = arith.constant 0 : index
    %1001 = vector.load %arg38[%c0_444, %c0_445] : memref<1x32xf32, #tpu.memory_space<vmem>>, vector<1x32xf32>
    %cst_446 = arith.constant dense<0.000000e+00> : vector<8xf32>
    %1002 = vector.multi_reduction <add>, %999, %cst_446 [1] : vector<8x32xf32> to vector<8xf32>
    %1003 = vector.shape_cast %1002 : vector<8xf32> to vector<8x1xf32>
    %cst_447 = arith.constant 3.200000e+01 : f32
    %1004 = vector.broadcast %cst_447 : f32 to vector<8x1xf32>
    %1005 = arith.divf %1003, %1004 : vector<8x1xf32>
    %1006 = vector.broadcast %1005 : vector<8x1xf32> to vector<8x32xf32>
    %1007 = arith.subf %999, %1006 : vector<8x32xf32>
    %1008 = arith.mulf %1007, %1007 : vector<8x32xf32>
    %cst_448 = arith.constant dense<0.000000e+00> : vector<8xf32>
    %1009 = vector.multi_reduction <add>, %1008, %cst_448 [1] : vector<8x32xf32> to vector<8xf32>
    %1010 = vector.shape_cast %1009 : vector<8xf32> to vector<8x1xf32>
    %cst_449 = arith.constant 0.0322580636 : f32
    %1011 = vector.broadcast %cst_449 : f32 to vector<8x1xf32>
    %1012 = arith.mulf %1010, %1011 : vector<8x1xf32>
    %1013 = math.sqrt %1012 : vector<8x1xf32>
    %1014 = vector.broadcast %1000 : vector<1x32xf32> to vector<8x32xf32>
    %1015 = arith.mulf %1014, %1007 : vector<8x32xf32>
    %cst_450 = arith.constant 9.99999997E-7 : f32
    %1016 = vector.broadcast %cst_450 : f32 to vector<8x1xf32>
    %1017 = arith.addf %1013, %1016 : vector<8x1xf32>
    %1018 = vector.broadcast %1017 : vector<8x1xf32> to vector<8x32xf32>
    %1019 = arith.divf %1015, %1018 : vector<8x32xf32>
    %1020 = vector.broadcast %1001 : vector<1x32xf32> to vector<8x32xf32>
    %1021 = arith.addf %1019, %1020 : vector<8x32xf32>
    %c0_451 = arith.constant 0 : index
    %c0_452 = arith.constant 0 : index
    %c0_453 = arith.constant 0 : index
    %1022 = vector.load %arg39[%c0_451, %c0_452, %c0_453] : memref<1x8x32xf32, #tpu.memory_space<vmem>>, vector<1x8x32xf32>
    %1023 = vector.shape_cast %1022 : vector<1x8x32xf32> to vector<8x32xf32>
    %1024 = vector.shape_cast %1021 : vector<8x32xf32> to vector<1x8x32xf32>
    tpu.vector_store %arg39[%c0_451, %c0_452, %c0_453], %1024 {strides = array<i32>} : memref<1x8x32xf32, #tpu.memory_space<vmem>>, vector<1x8x32xf32>,
    return
  }
  func.func @transform_0(%arg0: i32) -> (i32, i32, i32) {
    %c0_i32 = arith.constant 0 : i32
    %c0_i32_0 = arith.constant 0 : i32
    %c0_i32_1 = arith.constant 0 : i32
    return %arg0, %c0_i32, %c0_i32_0 : i32, i32, i32
  }
  func.func @transform_1(%arg0: i32) -> (i32, i32, i32) {
    %c0_i32 = arith.constant 0 : i32
    %c0_i32_0 = arith.constant 0 : i32
    %c0_i32_1 = arith.constant 0 : i32
    return %arg0, %c0_i32, %c0_i32_0 : i32, i32, i32
  }
  func.func @transform_2(%arg0: i32) -> (i32, i32, i32) {
    %c0_i32 = arith.constant 0 : i32
    %c0_i32_0 = arith.constant 0 : i32
    %c0_i32_1 = arith.constant 0 : i32
    return %arg0, %c0_i32, %c0_i32_0 : i32, i32, i32
  }
  func.func @transform_3(%arg0: i32) -> (i32, i32, i32) {
    %c0_i32 = arith.constant 0 : i32
    %c0_i32_0 = arith.constant 0 : i32
    %c0_i32_1 = arith.constant 0 : i32
    return %arg0, %c0_i32, %c0_i32_0 : i32, i32, i32
  }
  func.func @transform_4(%arg0: i32) -> (i32, i32, i32) {
    %c0_i32 = arith.constant 0 : i32
    %c0_i32_0 = arith.constant 0 : i32
    %c0_i32_1 = arith.constant 0 : i32
    %c0_i32_2 = arith.constant 0 : i32
    return %c0_i32, %c0_i32_0, %c0_i32_1 : i32, i32, i32
  }
  func.func @transform_5(%arg0: i32) -> (i32, i32, i32) {
    %c0_i32 = arith.constant 0 : i32
    %c0_i32_0 = arith.constant 0 : i32
    %c0_i32_1 = arith.constant 0 : i32
    %c0_i32_2 = arith.constant 0 : i32
    return %c0_i32, %c0_i32_0, %c0_i32_1 : i32, i32, i32
  }
  func.func @transform_6(%arg0: i32) -> (i32, i32, i32) {
    %c0_i32 = arith.constant 0 : i32
    %c0_i32_0 = arith.constant 0 : i32
    %c0_i32_1 = arith.constant 0 : i32
    %c0_i32_2 = arith.constant 0 : i32
    return %c0_i32, %c0_i32_0, %c0_i32_1 : i32, i32, i32
  }
  func.func @transform_7(%arg0: i32) -> (i32, i32, i32) {
    %c0_i32 = arith.constant 0 : i32
    %c0_i32_0 = arith.constant 0 : i32
    %c0_i32_1 = arith.constant 0 : i32
    %c0_i32_2 = arith.constant 0 : i32
    return %c0_i32, %c0_i32_0, %c0_i32_1 : i32, i32, i32
  }
  func.func @transform_8(%arg0: i32) -> (i32, i32, i32) {
    %c0_i32 = arith.constant 0 : i32
    %c0_i32_0 = arith.constant 0 : i32
    %c0_i32_1 = arith.constant 0 : i32
    %c0_i32_2 = arith.constant 0 : i32
    return %c0_i32, %c0_i32_0, %c0_i32_1 : i32, i32, i32
  }
  func.func @transform_9(%arg0: i32) -> (i32, i32, i32) {
    %c0_i32 = arith.constant 0 : i32
    %c0_i32_0 = arith.constant 0 : i32
    %c0_i32_1 = arith.constant 0 : i32
    %c0_i32_2 = arith.constant 0 : i32
    return %c0_i32, %c0_i32_0, %c0_i32_1 : i32, i32, i32
  }
  func.func @transform_10(%arg0: i32) -> (i32, i32, i32) {
    %c0_i32 = arith.constant 0 : i32
    %c0_i32_0 = arith.constant 0 : i32
    %c0_i32_1 = arith.constant 0 : i32
    %c0_i32_2 = arith.constant 0 : i32
    return %c0_i32, %c0_i32_0, %c0_i32_1 : i32, i32, i32
  }
  func.func @transform_11(%arg0: i32) -> (i32, i32, i32) {
    %c0_i32 = arith.constant 0 : i32
    %c0_i32_0 = arith.constant 0 : i32
    %c0_i32_1 = arith.constant 0 : i32
    %c0_i32_2 = arith.constant 0 : i32
    return %c0_i32, %c0_i32_0, %c0_i32_1 : i32, i32, i32
  }
  func.func @transform_12(%arg0: i32) -> (i32, i32, i32) {
    %c0_i32 = arith.constant 0 : i32
    %c0_i32_0 = arith.constant 0 : i32
    %c0_i32_1 = arith.constant 0 : i32
    %c0_i32_2 = arith.constant 0 : i32
    return %c0_i32, %c0_i32_0, %c0_i32_1 : i32, i32, i32
  }
  func.func @transform_13(%arg0: i32) -> (i32, i32, i32) {
    %c0_i32 = arith.constant 0 : i32
    %c0_i32_0 = arith.constant 0 : i32
    %c0_i32_1 = arith.constant 0 : i32
    %c0_i32_2 = arith.constant 0 : i32
    return %c0_i32, %c0_i32_0, %c0_i32_1 : i32, i32, i32
  }
  func.func @transform_14(%arg0: i32) -> (i32, i32, i32) {
    %c0_i32 = arith.constant 0 : i32
    %c0_i32_0 = arith.constant 0 : i32
    %c0_i32_1 = arith.constant 0 : i32
    %c0_i32_2 = arith.constant 0 : i32
    return %c0_i32, %c0_i32_0, %c0_i32_1 : i32, i32, i32
  }
  func.func @transform_15(%arg0: i32) -> (i32, i32, i32) {
    %c0_i32 = arith.constant 0 : i32
    %c0_i32_0 = arith.constant 0 : i32
    %c0_i32_1 = arith.constant 0 : i32
    %c0_i32_2 = arith.constant 0 : i32
    return %c0_i32, %c0_i32_0, %c0_i32_1 : i32, i32, i32
  }
  func.func @transform_16(%arg0: i32) -> (i32, i32) {
    %c0_i32 = arith.constant 0 : i32
    %c0_i32_0 = arith.constant 0 : i32
    %c0_i32_1 = arith.constant 0 : i32
    return %c0_i32, %c0_i32_0 : i32, i32
  }
  func.func @transform_17(%arg0: i32) -> (i32, i32) {
    %c0_i32 = arith.constant 0 : i32
    %c0_i32_0 = arith.constant 0 : i32
    %c0_i32_1 = arith.constant 0 : i32
    return %c0_i32, %c0_i32_0 : i32, i32
  }
  func.func @transform_18(%arg0: i32) -> (i32, i32, i32) {
    %c0_i32 = arith.constant 0 : i32
    %c0_i32_0 = arith.constant 0 : i32
    %c0_i32_1 = arith.constant 0 : i32
    %c0_i32_2 = arith.constant 0 : i32
    return %c0_i32, %c0_i32_0, %c0_i32_1 : i32, i32, i32
  }
  func.func @transform_19(%arg0: i32) -> (i32, i32, i32) {
    %c0_i32 = arith.constant 0 : i32
    %c0_i32_0 = arith.constant 0 : i32
    %c0_i32_1 = arith.constant 0 : i32
    %c0_i32_2 = arith.constant 0 : i32
    return %c0_i32, %c0_i32_0, %c0_i32_1 : i32, i32, i32
  }
  func.func @transform_20(%arg0: i32) -> (i32, i32, i32) {
    %c0_i32 = arith.constant 0 : i32
    %c0_i32_0 = arith.constant 0 : i32
    %c0_i32_1 = arith.constant 0 : i32
    %c0_i32_2 = arith.constant 0 : i32
    return %c0_i32, %c0_i32_0, %c0_i32_1 : i32, i32, i32
  }
  func.func @transform_21(%arg0: i32) -> (i32, i32, i32) {
    %c0_i32 = arith.constant 0 : i32
    %c0_i32_0 = arith.constant 0 : i32
    %c0_i32_1 = arith.constant 0 : i32
    %c0_i32_2 = arith.constant 0 : i32
    return %c0_i32, %c0_i32_0, %c0_i32_1 : i32, i32, i32
  }
  func.func @transform_22(%arg0: i32) -> (i32, i32, i32) {
    %c0_i32 = arith.constant 0 : i32
    %c0_i32_0 = arith.constant 0 : i32
    %c0_i32_1 = arith.constant 0 : i32
    %c0_i32_2 = arith.constant 0 : i32
    return %c0_i32, %c0_i32_0, %c0_i32_1 : i32, i32, i32
  }
  func.func @transform_23(%arg0: i32) -> (i32, i32, i32) {
    %c0_i32 = arith.constant 0 : i32
    %c0_i32_0 = arith.constant 0 : i32
    %c0_i32_1 = arith.constant 0 : i32
    %c0_i32_2 = arith.constant 0 : i32
    return %c0_i32, %c0_i32_0, %c0_i32_1 : i32, i32, i32
  }
  func.func @transform_24(%arg0: i32) -> (i32, i32, i32) {
    %c0_i32 = arith.constant 0 : i32
    %c0_i32_0 = arith.constant 0 : i32
    %c0_i32_1 = arith.constant 0 : i32
    %c0_i32_2 = arith.constant 0 : i32
    return %c0_i32, %c0_i32_0, %c0_i32_1 : i32, i32, i32
  }
  func.func @transform_25(%arg0: i32) -> (i32, i32, i32) {
    %c0_i32 = arith.constant 0 : i32
    %c0_i32_0 = arith.constant 0 : i32
    %c0_i32_1 = arith.constant 0 : i32
    %c0_i32_2 = arith.constant 0 : i32
    return %c0_i32, %c0_i32_0, %c0_i32_1 : i32, i32, i32
  }
  func.func @transform_26(%arg0: i32) -> (i32, i32, i32) {
    %c0_i32 = arith.constant 0 : i32
    %c0_i32_0 = arith.constant 0 : i32
    %c0_i32_1 = arith.constant 0 : i32
    %c0_i32_2 = arith.constant 0 : i32
    return %c0_i32, %c0_i32_0, %c0_i32_1 : i32, i32, i32
  }
  func.func @transform_27(%arg0: i32) -> (i32, i32, i32) {
    %c0_i32 = arith.constant 0 : i32
    %c0_i32_0 = arith.constant 0 : i32
    %c0_i32_1 = arith.constant 0 : i32
    %c0_i32_2 = arith.constant 0 : i32
    return %c0_i32, %c0_i32_0, %c0_i32_1 : i32, i32, i32
  }
  func.func @transform_28(%arg0: i32) -> (i32, i32, i32) {
    %c0_i32 = arith.constant 0 : i32
    %c0_i32_0 = arith.constant 0 : i32
    %c0_i32_1 = arith.constant 0 : i32
    %c0_i32_2 = arith.constant 0 : i32
    return %c0_i32, %c0_i32_0, %c0_i32_1 : i32, i32, i32
  }
  func.func @transform_29(%arg0: i32) -> (i32, i32, i32) {
    %c0_i32 = arith.constant 0 : i32
    %c0_i32_0 = arith.constant 0 : i32
    %c0_i32_1 = arith.constant 0 : i32
    %c0_i32_2 = arith.constant 0 : i32
    return %c0_i32, %c0_i32_0, %c0_i32_1 : i32, i32, i32
  }
  func.func @transform_30(%arg0: i32) -> (i32, i32, i32) {
    %c0_i32 = arith.constant 0 : i32
    %c0_i32_0 = arith.constant 0 : i32
    %c0_i32_1 = arith.constant 0 : i32
    %c0_i32_2 = arith.constant 0 : i32
    return %c0_i32, %c0_i32_0, %c0_i32_1 : i32, i32, i32
  }
  func.func @transform_31(%arg0: i32) -> (i32, i32, i32) {
    %c0_i32 = arith.constant 0 : i32
    %c0_i32_0 = arith.constant 0 : i32
    %c0_i32_1 = arith.constant 0 : i32
    %c0_i32_2 = arith.constant 0 : i32
    return %c0_i32, %c0_i32_0, %c0_i32_1 : i32, i32, i32
  }
  func.func @transform_32(%arg0: i32) -> (i32, i32, i32) {
    %c0_i32 = arith.constant 0 : i32
    %c0_i32_0 = arith.constant 0 : i32
    %c0_i32_1 = arith.constant 0 : i32
    %c0_i32_2 = arith.constant 0 : i32
    return %c0_i32, %c0_i32_0, %c0_i32_1 : i32, i32, i32
  }
  func.func @transform_33(%arg0: i32) -> (i32, i32, i32) {
    %c0_i32 = arith.constant 0 : i32
    %c0_i32_0 = arith.constant 0 : i32
    %c0_i32_1 = arith.constant 0 : i32
    %c0_i32_2 = arith.constant 0 : i32
    return %c0_i32, %c0_i32_0, %c0_i32_1 : i32, i32, i32
  }
  func.func @transform_34(%arg0: i32) -> (i32, i32, i32) {
    %c0_i32 = arith.constant 0 : i32
    %c0_i32_0 = arith.constant 0 : i32
    %c0_i32_1 = arith.constant 0 : i32
    %c0_i32_2 = arith.constant 0 : i32
    return %c0_i32, %c0_i32_0, %c0_i32_1 : i32, i32, i32
  }
  func.func @transform_35(%arg0: i32) -> (i32, i32, i32) {
    %c0_i32 = arith.constant 0 : i32
    %c0_i32_0 = arith.constant 0 : i32
    %c0_i32_1 = arith.constant 0 : i32
    %c0_i32_2 = arith.constant 0 : i32
    return %c0_i32, %c0_i32_0, %c0_i32_1 : i32, i32, i32
  }
  func.func @transform_36(%arg0: i32) -> (i32, i32) {
    %c0_i32 = arith.constant 0 : i32
    %c0_i32_0 = arith.constant 0 : i32
    %c0_i32_1 = arith.constant 0 : i32
    return %c0_i32, %c0_i32_0 : i32, i32
  }
  func.func @transform_37(%arg0: i32) -> (i32, i32) {
    %c0_i32 = arith.constant 0 : i32
    %c0_i32_0 = arith.constant 0 : i32
    %c0_i32_1 = arith.constant 0 : i32
    return %c0_i32, %c0_i32_0 : i32, i32
  }
  func.func @transform_38(%arg0: i32) -> (i32, i32, i32) {
    %c0_i32 = arith.constant 0 : i32
    %c0_i32_0 = arith.constant 0 : i32
    %c0_i32_1 = arith.constant 0 : i32
    return %arg0, %c0_i32, %c0_i32_0 : i32, i32, i32
  }
}

</mosaic_0001>

<llo_original>
// kernel: encoder_decoder_forward.1
$region0: #{encoder_decoder_forward.1}
  #allocation0 [shape = 'u32[]', space=smem, size = 0x4, offset = 0x4, fixed_abs, tag = 'smem constant byte address 0x4 - core index']
  #allocation1 [shape = 'u32[72,128]{1,0:T(1,128)}', space=vmem, size = 0x9000, scoped, tag = 'internal scratch']
  %s0 = inlined_call_operand.smem [shape: u32[39], index: -1, kind: input, shape index: {}]
  %s1 = sld [smem:[%s0]]
  %s2 = scalar_lea.smem %s0, 1
  %s3 = sld [smem:[%s2]]
  %s4 = scalar_lea.smem %s0, 2
  %s5 = sld [smem:[%s4]]
  %s6 = scalar_lea.smem %s0, 3
  %s7 = sld [smem:[%s6]]
  %s8 = scalar_lea.smem %s0, 4
  %s9 = sld [smem:[%s8]]
  %s10 = scalar_lea.smem %s0, 5
  %s11 = sld [smem:[%s10]]
  %s12 = scalar_lea.smem %s0, 6
  %s13 = sld [smem:[%s12]]
  %s14 = scalar_lea.smem %s0, 7
  %s15 = sld [smem:[%s14]]
  %s16 = scalar_lea.smem %s0, 8
  %s17 = sld [smem:[%s16]]
  %s18 = scalar_lea.smem %s0, 9
  %s19 = sld [smem:[%s18]]
  %s20 = scalar_lea.smem %s0, 10
  %s21 = sld [smem:[%s20]]
  %s22 = scalar_lea.smem %s0, 11
  %s23 = sld [smem:[%s22]]
  %s24 = scalar_lea.smem %s0, 12
  %s25 = sld [smem:[%s24]]
  %s26 = scalar_lea.smem %s0, 13
  %s27 = sld [smem:[%s26]]
  %s28 = scalar_lea.smem %s0, 14
  %s29 = sld [smem:[%s28]]
  %s30 = scalar_lea.smem %s0, 15
  %s31 = sld [smem:[%s30]]
  %s32 = scalar_lea.smem %s0, 16
  %s33 = sld [smem:[%s32]]
  %s34 = scalar_lea.smem %s0, 17
  %s35 = sld [smem:[%s34]]
  %s36 = scalar_lea.smem %s0, 18
  %s37 = sld [smem:[%s36]]
  %s38 = scalar_lea.smem %s0, 19
  %s39 = sld [smem:[%s38]]
  %s40 = scalar_lea.smem %s0, 20
  %s41 = sld [smem:[%s40]]
  %s42 = scalar_lea.smem %s0, 21
  %s43 = sld [smem:[%s42]]
  %s44 = scalar_lea.smem %s0, 22
  %s45 = sld [smem:[%s44]]
  %s46 = scalar_lea.smem %s0, 23
  %s47 = sld [smem:[%s46]]
  %s48 = scalar_lea.smem %s0, 24
  %s49 = sld [smem:[%s48]]
  %s50 = scalar_lea.smem %s0, 25
  %s51 = sld [smem:[%s50]]
  %s52 = scalar_lea.smem %s0, 26
  %s53 = sld [smem:[%s52]]
  %s54 = scalar_lea.smem %s0, 27
  %s55 = sld [smem:[%s54]]
  %s56 = scalar_lea.smem %s0, 28
  %s57 = sld [smem:[%s56]]
  %s58 = scalar_lea.smem %s0, 29
  %s59 = sld [smem:[%s58]]
  %s60 = scalar_lea.smem %s0, 30
  %s61 = sld [smem:[%s60]]
  %s62 = scalar_lea.smem %s0, 31
  %s63 = sld [smem:[%s62]]
  %s64 = scalar_lea.smem %s0, 32
  %s65 = sld [smem:[%s64]]
  %s66 = scalar_lea.smem %s0, 33
  %s67 = sld [smem:[%s66]]
  %s68 = scalar_lea.smem %s0, 34
  %s69 = sld [smem:[%s68]]
  %s70 = scalar_lea.smem %s0, 35
  %s71 = sld [smem:[%s70]]
  %s72 = scalar_lea.smem %s0, 36
  %s73 = sld [smem:[%s72]]
  %s74 = scalar_lea.smem %s0, 37
  %s75 = sld [smem:[%s74]]
  %s76 = scalar_lea.smem %s0, 38
  %s77 = sld [smem:[%s76]]
  %s78 = sld [smem:[#allocation0]]
  $region185: #{encoder_decoder_forward.1} parent=0
    _
  %s80 = ssub.s32 1, %s78
  %s81 = scalar_select 0, %s80, %s78
  $region1: #{encoder_decoder_forward.1} parent=0
    #allocation2 [shape = 'u8[8192]{0}', space=vmem, size = 0x2000, scoped, tag = 'output window, operand 0']
    #allocation3 [shape = 's32[2]{0}', space=sflag, size = 0x8, scoped, tag = 'scoped memory for encoder_decoder_forward.1']
    %82 = vsyncpa [#allocation3], 0
    %s83 = scalar_lea.sflag [#allocation3], 1
    %84 = vsyncpa %s83, 0
    loop: start=0, step=1, limit=4
    $region2: #{encoder_decoder_forward.1} parent=1 // loop_pre_header
      _
    $region3: #{encoder_decoder_forward.1} parent=1 // loop_header
      %s86 = sphi 0, %s90
      %p87 = scmp.ge.s32.totalorder %s86, 4
      %s96 = sphi 0, %s98
      %s99 = sphi 0, %s96
      %s100 = sphi 0, %s99
      %s116 = sphi 0, %s100
      %s122 = sphi 0, %s124
      %s125 = sphi 0, %s122
      %s126 = sphi 0, %s125
      %s142 = sphi 0, %s126
      %s148 = sphi 0, %s150
      %s151 = sphi 0, %s148
      %s152 = sphi 0, %s151
      %s168 = sphi 0, %s152
      %s174 = sphi 0, %s176
      %s177 = sphi 0, %s174
      %s178 = sphi 0, %s177
      %s194 = sphi 0, %s178
      %s198 = sphi 0, %s198
      %s200 = sphi 0, %s198
      %s201 = sphi 0, %s200
      %s215 = sphi 0, %s201
      %s219 = sphi 0, %s219
      %s221 = sphi 0, %s219
      %s222 = sphi 0, %s221
      %s236 = sphi 0, %s222
      %s240 = sphi 0, %s240
      %s242 = sphi 0, %s240
      %s243 = sphi 0, %s242
      %s257 = sphi 0, %s243
      %s261 = sphi 0, %s261
      %s263 = sphi 0, %s261
      %s264 = sphi 0, %s263
      %s278 = sphi 0, %s264
      %s282 = sphi 0, %s282
      %s284 = sphi 0, %s282
      %s285 = sphi 0, %s284
      %s299 = sphi 0, %s285
      %s303 = sphi 0, %s303
      %s305 = sphi 0, %s303
      %s306 = sphi 0, %s305
      %s320 = sphi 0, %s306
      %s324 = sphi 0, %s324
      %s326 = sphi 0, %s324
      %s327 = sphi 0, %s326
      %s341 = sphi 0, %s327
      %s345 = sphi 0, %s345
      %s347 = sphi 0, %s345
      %s348 = sphi 0, %s347
      %s362 = sphi 0, %s348
      %s366 = sphi 0, %s366
      %s368 = sphi 0, %s366
      %s369 = sphi 0, %s368
      %s383 = sphi 0, %s369
      %s387 = sphi 0, %s387
      %s389 = sphi 0, %s387
      %s390 = sphi 0, %s389
      %s404 = sphi 0, %s390
      %s408 = sphi 0, %s408
      %s410 = sphi 0, %s408
      %s411 = sphi 0, %s410
      %s425 = sphi 0, %s411
      %s429 = sphi 0, %s429
      %s431 = sphi 0, %s429
      %s432 = sphi 0, %s431
      %s446 = sphi 0, %s432
      %s450 = sphi 0, %s450
      %s452 = sphi 0, %s450
      %s453 = sphi 0, %s452
      %s467 = sphi 0, %s453
      %s471 = sphi 0, %s471
      %s473 = sphi 0, %s471
      %s474 = sphi 0, %s473
      %s488 = sphi 0, %s474
      %s492 = sphi 0, %s492
      %s494 = sphi 0, %s492
      %s495 = sphi 0, %s494
      %s509 = sphi 0, %s495
      %s513 = sphi 0, %s513
      %s515 = sphi 0, %s513
      %s516 = sphi 0, %s515
      %s530 = sphi 0, %s516
      %s534 = sphi 0, %s534
      %s536 = sphi 0, %s534
      %s537 = sphi 0, %s536
      %s551 = sphi 0, %s537
      %s555 = sphi 0, %s555
      %s557 = sphi 0, %s555
      %s558 = sphi 0, %s557
      %s572 = sphi 0, %s558
      %s576 = sphi 0, %s576
      %s578 = sphi 0, %s576
      %s579 = sphi 0, %s578
      %s593 = sphi 0, %s579
      %s597 = sphi 0, %s597
      %s599 = sphi 0, %s597
      %s600 = sphi 0, %s599
      %s614 = sphi 0, %s600
      %s618 = sphi 0, %s618
      %s620 = sphi 0, %s618
      %s621 = sphi 0, %s620
      %s635 = sphi 0, %s621
      %s639 = sphi 0, %s639
      %s641 = sphi 0, %s639
      %s642 = sphi 0, %s641
      %s656 = sphi 0, %s642
      %s660 = sphi 0, %s660
      %s662 = sphi 0, %s660
      %s663 = sphi 0, %s662
      %s677 = sphi 0, %s663
      %s681 = sphi 0, %s681
      %s683 = sphi 0, %s681
      %s684 = sphi 0, %s683
      %s698 = sphi 0, %s684
      %s702 = sphi 0, %s702
      %s704 = sphi 0, %s702
      %s705 = sphi 0, %s704
      %s719 = sphi 0, %s705
      %s723 = sphi 0, %s723
      %s725 = sphi 0, %s723
      %s726 = sphi 0, %s725
      %s740 = sphi 0, %s726
      %s744 = sphi 0, %s744
      %s746 = sphi 0, %s744
      %s747 = sphi 0, %s746
      %s761 = sphi 0, %s747
      %s765 = sphi 0, %s765
      %s767 = sphi 0, %s765
      %s768 = sphi 0, %s767
      %s782 = sphi 0, %s768
      %s786 = sphi 0, %s786
      %s788 = sphi 0, %s786
      %s789 = sphi 0, %s788
      %s803 = sphi 0, %s789
      %s807 = sphi 0, %s807
      %s809 = sphi 0, %s807
      %s810 = sphi 0, %s809
      %s824 = sphi 0, %s810
      %s828 = sphi 0, %s828
      %s830 = sphi 0, %s828
      %s831 = sphi 0, %s830
      %s845 = sphi 0, %s831
      %s849 = sphi 0, %s849
      %s851 = sphi 0, %s849
      %s852 = sphi 0, %s851
      %s866 = sphi 0, %s852
      %s870 = sphi 0, %s870
      %s872 = sphi 0, %s870
      %s873 = sphi 0, %s872
      %s887 = sphi 0, %s873
      %s891 = sphi 0, %s891
      %s893 = sphi 0, %s891
      %s894 = sphi 0, %s893
      %s908 = sphi 0, %s894
      %s914 = sphi 0, %s916
      %s917 = sphi 0, %s914
      %s918 = sphi 0, %s917
      %s934 = sphi 0, %s918
    $region4: #{encoder_decoder_forward.1} parent=1 // loop_header_branch
      %89 = sbr.rel (%p87) target = $region8
    $region5: #{encoder_decoder_forward.1} parent=1 // loop_body
      %s91 = ssub.s32 %s86, 1
      %s92 = ssub.s32 %s86, 2
      %s93 = sadd.s32 %s86, 1
      %s94 = ssub.s32 %s86, %s93
      %p95 = scmp.eq.s32.totalorder %s94, 0
      %s97 = sadd.s32 %s96, 1
      %s98 = scalar_select %p95, %s96, %s97
      %p101 = pneg %p95
      %p102 = scmp.eq.s32.totalorder %s86, 1
      %p103 = por %p101, %p102
      %p104 = scmp.ne.s32.totalorder %s96, %s99
      %p105 = scmp.eq.s32.totalorder %s86, 0
      %p106 = por %p104, %p105
      %p107 = scmp.ne.s32.totalorder %s96, %s99
      %p108 = scmp.eq.s32.totalorder %s91, 1
      %p109 = por %p107, %p108
      %p110 = scmp.ne.s32.totalorder %s99, %s100
      %p111 = scmp.eq.s32.totalorder %s91, 0
      %p112 = por %p110, %p111
      %p113 = scmp.ne.s32.totalorder %s99, %s100
      %p114 = scmp.eq.s32.totalorder %s92, 1
      %p115 = por %p113, %p114
      %p117 = scmp.ne.s32.totalorder %s100, %s116
      %p118 = scmp.eq.s32.totalorder %s92, 0
      %p119 = por %p117, %p118
      %s120 = ssub.s32 %s86, %s93
      %p121 = scmp.eq.s32.totalorder %s120, 0
      %s123 = sadd.s32 %s122, 1
      %s124 = scalar_select %p121, %s122, %s123
      %p127 = pneg %p121
      %p128 = scmp.eq.s32.totalorder %s86, 1
      %p129 = por %p127, %p128
      %p130 = scmp.ne.s32.totalorder %s122, %s125
      %p131 = scmp.eq.s32.totalorder %s86, 0
      %p132 = por %p130, %p131
      %p133 = scmp.ne.s32.totalorder %s122, %s125
      %p134 = scmp.eq.s32.totalorder %s91, 1
      %p135 = por %p133, %p134
      %p136 = scmp.ne.s32.totalorder %s125, %s126
      %p137 = scmp.eq.s32.totalorder %s91, 0
      %p138 = por %p136, %p137
      %p139 = scmp.ne.s32.totalorder %s125, %s126
      %p140 = scmp.eq.s32.totalorder %s92, 1
      %p141 = por %p139, %p140
      %p143 = scmp.ne.s32.totalorder %s126, %s142
      %p144 = scmp.eq.s32.totalorder %s92, 0
      %p145 = por %p143, %p144
      %s146 = ssub.s32 %s86, %s93
      %p147 = scmp.eq.s32.totalorder %s146, 0
      %s149 = sadd.s32 %s148, 1
      %s150 = scalar_select %p147, %s148, %s149
      %p153 = pneg %p147
      %p154 = scmp.eq.s32.totalorder %s86, 1
      %p155 = por %p153, %p154
      %p156 = scmp.ne.s32.totalorder %s148, %s151
      %p157 = scmp.eq.s32.totalorder %s86, 0
      %p158 = por %p156, %p157
      %p159 = scmp.ne.s32.totalorder %s148, %s151
      %p160 = scmp.eq.s32.totalorder %s91, 1
      %p161 = por %p159, %p160
      %p162 = scmp.ne.s32.totalorder %s151, %s152
      %p163 = scmp.eq.s32.totalorder %s91, 0
      %p164 = por %p162, %p163
      %p165 = scmp.ne.s32.totalorder %s151, %s152
      %p166 = scmp.eq.s32.totalorder %s92, 1
      %p167 = por %p165, %p166
      %p169 = scmp.ne.s32.totalorder %s152, %s168
      %p170 = scmp.eq.s32.totalorder %s92, 0
      %p171 = por %p169, %p170
      %s172 = ssub.s32 %s86, %s93
      %p173 = scmp.eq.s32.totalorder %s172, 0
      %s175 = sadd.s32 %s174, 1
      %s176 = scalar_select %p173, %s174, %s175
      %p179 = pneg %p173
      %p180 = scmp.eq.s32.totalorder %s86, 1
      %p181 = por %p179, %p180
      %p182 = scmp.ne.s32.totalorder %s174, %s177
      %p183 = scmp.eq.s32.totalorder %s86, 0
      %p184 = por %p182, %p183
      %p185 = scmp.ne.s32.totalorder %s174, %s177
      %p186 = scmp.eq.s32.totalorder %s91, 1
      %p187 = por %p185, %p186
      %p188 = scmp.ne.s32.totalorder %s177, %s178
      %p189 = scmp.eq.s32.totalorder %s91, 0
      %p190 = por %p188, %p189
      %p191 = scmp.ne.s32.totalorder %s177, %s178
      %p192 = scmp.eq.s32.totalorder %s92, 1
      %p193 = por %p191, %p192
      %p195 = scmp.ne.s32.totalorder %s178, %s194
      %p196 = scmp.eq.s32.totalorder %s92, 0
      %p197 = por %p195, %p196
      %s199 = sadd.s32 %s198, 1
      %p202 = scmp.eq.s32.totalorder %s86, 1
      %p203 = scmp.ne.s32.totalorder %s198, %s200
      %p204 = scmp.eq.s32.totalorder %s86, 0
      %p205 = por %p203, %p204
      %p206 = scmp.ne.s32.totalorder %s198, %s200
      %p207 = scmp.eq.s32.totalorder %s91, 1
      %p208 = por %p206, %p207
      %p209 = scmp.ne.s32.totalorder %s200, %s201
      %p210 = scmp.eq.s32.totalorder %s91, 0
      %p211 = por %p209, %p210
      %p212 = scmp.ne.s32.totalorder %s200, %s201
      %p213 = scmp.eq.s32.totalorder %s92, 1
      %p214 = por %p212, %p213
      %p216 = scmp.ne.s32.totalorder %s201, %s215
      %p217 = scmp.eq.s32.totalorder %s92, 0
      %p218 = por %p216, %p217
      %s220 = sadd.s32 %s219, 1
      %p223 = scmp.eq.s32.totalorder %s86, 1
      %p224 = scmp.ne.s32.totalorder %s219, %s221
      %p225 = scmp.eq.s32.totalorder %s86, 0
      %p226 = por %p224, %p225
      %p227 = scmp.ne.s32.totalorder %s219, %s221
      %p228 = scmp.eq.s32.totalorder %s91, 1
      %p229 = por %p227, %p228
      %p230 = scmp.ne.s32.totalorder %s221, %s222
      %p231 = scmp.eq.s32.totalorder %s91, 0
      %p232 = por %p230, %p231
      %p233 = scmp.ne.s32.totalorder %s221, %s222
      %p234 = scmp.eq.s32.totalorder %s92, 1
      %p235 = por %p233, %p234
      %p237 = scmp.ne.s32.totalorder %s222, %s236
      %p238 = scmp.eq.s32.totalorder %s92, 0
      %p239 = por %p237, %p238
      %s241 = sadd.s32 %s240, 1
      %p244 = scmp.eq.s32.totalorder %s86, 1
      %p245 = scmp.ne.s32.totalorder %s240, %s242
      %p246 = scmp.eq.s32.totalorder %s86, 0
      %p247 = por %p245, %p246
      %p248 = scmp.ne.s32.totalorder %s240, %s242
      %p249 = scmp.eq.s32.totalorder %s91, 1
      %p250 = por %p248, %p249
      %p251 = scmp.ne.s32.totalorder %s242, %s243
      %p252 = scmp.eq.s32.totalorder %s91, 0
      %p253 = por %p251, %p252
      %p254 = scmp.ne.s32.totalorder %s242, %s243
      %p255 = scmp.eq.s32.totalorder %s92, 1
      %p256 = por %p254, %p255
      %p258 = scmp.ne.s32.totalorder %s243, %s257
      %p259 = scmp.eq.s32.totalorder %s92, 0
      %p260 = por %p258, %p259
      %s262 = sadd.s32 %s261, 1
      %p265 = scmp.eq.s32.totalorder %s86, 1
      %p266 = scmp.ne.s32.totalorder %s261, %s263
      %p267 = scmp.eq.s32.totalorder %s86, 0
      %p268 = por %p266, %p267
      %p269 = scmp.ne.s32.totalorder %s261, %s263
      %p270 = scmp.eq.s32.totalorder %s91, 1
      %p271 = por %p269, %p270
      %p272 = scmp.ne.s32.totalorder %s263, %s264
      %p273 = scmp.eq.s32.totalorder %s91, 0
      %p274 = por %p272, %p273
      %p275 = scmp.ne.s32.totalorder %s263, %s264
      %p276 = scmp.eq.s32.totalorder %s92, 1
      %p277 = por %p275, %p276
      %p279 = scmp.ne.s32.totalorder %s264, %s278
      %p280 = scmp.eq.s32.totalorder %s92, 0
      %p281 = por %p279, %p280
      %s283 = sadd.s32 %s282, 1
      %p286 = scmp.eq.s32.totalorder %s86, 1
      %p287 = scmp.ne.s32.totalorder %s282, %s284
      %p288 = scmp.eq.s32.totalorder %s86, 0
      %p289 = por %p287, %p288
      %p290 = scmp.ne.s32.totalorder %s282, %s284
      %p291 = scmp.eq.s32.totalorder %s91, 1
      %p292 = por %p290, %p291
      %p293 = scmp.ne.s32.totalorder %s284, %s285
      %p294 = scmp.eq.s32.totalorder %s91, 0
      %p295 = por %p293, %p294
      %p296 = scmp.ne.s32.totalorder %s284, %s285
      %p297 = scmp.eq.s32.totalorder %s92, 1
      %p298 = por %p296, %p297
      %p300 = scmp.ne.s32.totalorder %s285, %s299
      %p301 = scmp.eq.s32.totalorder %s92, 0
      %p302 = por %p300, %p301
      %s304 = sadd.s32 %s303, 1
      %p307 = scmp.eq.s32.totalorder %s86, 1
      %p308 = scmp.ne.s32.totalorder %s303, %s305
      %p309 = scmp.eq.s32.totalorder %s86, 0
      %p310 = por %p308, %p309
      %p311 = scmp.ne.s32.totalorder %s303, %s305
      %p312 = scmp.eq.s32.totalorder %s91, 1
      %p313 = por %p311, %p312
      %p314 = scmp.ne.s32.totalorder %s305, %s306
      %p315 = scmp.eq.s32.totalorder %s91, 0
      %p316 = por %p314, %p315
      %p317 = scmp.ne.s32.totalorder %s305, %s306
      %p318 = scmp.eq.s32.totalorder %s92, 1
      %p319 = por %p317, %p318
      %p321 = scmp.ne.s32.totalorder %s306, %s320
      %p322 = scmp.eq.s32.totalorder %s92, 0
      %p323 = por %p321, %p322
      %s325 = sadd.s32 %s324, 1
      %p328 = scmp.eq.s32.totalorder %s86, 1
      %p329 = scmp.ne.s32.totalorder %s324, %s326
      %p330 = scmp.eq.s32.totalorder %s86, 0
      %p331 = por %p329, %p330
      %p332 = scmp.ne.s32.totalorder %s324, %s326
      %p333 = scmp.eq.s32.totalorder %s91, 1
      %p334 = por %p332, %p333
      %p335 = scmp.ne.s32.totalorder %s326, %s327
      %p336 = scmp.eq.s32.totalorder %s91, 0
      %p337 = por %p335, %p336
      %p338 = scmp.ne.s32.totalorder %s326, %s327
      %p339 = scmp.eq.s32.totalorder %s92, 1
      %p340 = por %p338, %p339
      %p342 = scmp.ne.s32.totalorder %s327, %s341
      %p343 = scmp.eq.s32.totalorder %s92, 0
      %p344 = por %p342, %p343
      %s346 = sadd.s32 %s345, 1
      %p349 = scmp.eq.s32.totalorder %s86, 1
      %p350 = scmp.ne.s32.totalorder %s345, %s347
      %p351 = scmp.eq.s32.totalorder %s86, 0
      %p352 = por %p350, %p351
      %p353 = scmp.ne.s32.totalorder %s345, %s347
      %p354 = scmp.eq.s32.totalorder %s91, 1
      %p355 = por %p353, %p354
      %p356 = scmp.ne.s32.totalorder %s347, %s348
      %p357 = scmp.eq.s32.totalorder %s91, 0
      %p358 = por %p356, %p357
      %p359 = scmp.ne.s32.totalorder %s347, %s348
      %p360 = scmp.eq.s32.totalorder %s92, 1
      %p361 = por %p359, %p360
      %p363 = scmp.ne.s32.totalorder %s348, %s362
      %p364 = scmp.eq.s32.totalorder %s92, 0
      %p365 = por %p363, %p364
      %s367 = sadd.s32 %s366, 1
      %p370 = scmp.eq.s32.totalorder %s86, 1
      %p371 = scmp.ne.s32.totalorder %s366, %s368
      %p372 = scmp.eq.s32.totalorder %s86, 0
      %p373 = por %p371, %p372
      %p374 = scmp.ne.s32.totalorder %s366, %s368
      %p375 = scmp.eq.s32.totalorder %s91, 1
      %p376 = por %p374, %p375
      %p377 = scmp.ne.s32.totalorder %s368, %s369
      %p378 = scmp.eq.s32.totalorder %s91, 0
      %p379 = por %p377, %p378
      %p380 = scmp.ne.s32.totalorder %s368, %s369
      %p381 = scmp.eq.s32.totalorder %s92, 1
      %p382 = por %p380, %p381
      %p384 = scmp.ne.s32.totalorder %s369, %s383
      %p385 = scmp.eq.s32.totalorder %s92, 0
      %p386 = por %p384, %p385
      %s388 = sadd.s32 %s387, 1
      %p391 = scmp.eq.s32.totalorder %s86, 1
      %p392 = scmp.ne.s32.totalorder %s387, %s389
      %p393 = scmp.eq.s32.totalorder %s86, 0
      %p394 = por %p392, %p393
      %p395 = scmp.ne.s32.totalorder %s387, %s389
      %p396 = scmp.eq.s32.totalorder %s91, 1
      %p397 = por %p395, %p396
      %p398 = scmp.ne.s32.totalorder %s389, %s390
      %p399 = scmp.eq.s32.totalorder %s91, 0
      %p400 = por %p398, %p399
      %p401 = scmp.ne.s32.totalorder %s389, %s390
      %p402 = scmp.eq.s32.totalorder %s92, 1
      %p403 = por %p401, %p402
      %p405 = scmp.ne.s32.totalorder %s390, %s404
      %p406 = scmp.eq.s32.totalorder %s92, 0
      %p407 = por %p405, %p406
      %s409 = sadd.s32 %s408, 1
      %p412 = scmp.eq.s32.totalorder %s86, 1
      %p413 = scmp.ne.s32.totalorder %s408, %s410
      %p414 = scmp.eq.s32.totalorder %s86, 0
      %p415 = por %p413, %p414
      %p416 = scmp.ne.s32.totalorder %s408, %s410
      %p417 = scmp.eq.s32.totalorder %s91, 1
      %p418 = por %p416, %p417
      %p419 = scmp.ne.s32.totalorder %s410, %s411
      %p420 = scmp.eq.s32.totalorder %s91, 0
      %p421 = por %p419, %p420
      %p422 = scmp.ne.s32.totalorder %s410, %s411
      %p423 = scmp.eq.s32.totalorder %s92, 1
      %p424 = por %p422, %p423
      %p426 = scmp.ne.s32.totalorder %s411, %s425
      %p427 = scmp.eq.s32.totalorder %s92, 0
      %p428 = por %p426, %p427
      %s430 = sadd.s32 %s429, 1
      %p433 = scmp.eq.s32.totalorder %s86, 1
      %p434 = scmp.ne.s32.totalorder %s429, %s431
      %p435 = scmp.eq.s32.totalorder %s86, 0
      %p436 = por %p434, %p435
      %p437 = scmp.ne.s32.totalorder %s429, %s431
      %p438 = scmp.eq.s32.totalorder %s91, 1
      %p439 = por %p437, %p438
      %p440 = scmp.ne.s32.totalorder %s431, %s432
      %p441 = scmp.eq.s32.totalorder %s91, 0
      %p442 = por %p440, %p441
      %p443 = scmp.ne.s32.totalorder %s431, %s432
      %p444 = scmp.eq.s32.totalorder %s92, 1
      %p445 = por %p443, %p444
      %p447 = scmp.ne.s32.totalorder %s432, %s446
      %p448 = scmp.eq.s32.totalorder %s92, 0
      %p449 = por %p447, %p448
      %s451 = sadd.s32 %s450, 1
      %p454 = scmp.eq.s32.totalorder %s86, 1
      %p455 = scmp.ne.s32.totalorder %s450, %s452
      %p456 = scmp.eq.s32.totalorder %s86, 0
      %p457 = por %p455, %p456
      %p458 = scmp.ne.s32.totalorder %s450, %s452
      %p459 = scmp.eq.s32.totalorder %s91, 1
      %p460 = por %p458, %p459
      %p461 = scmp.ne.s32.totalorder %s452, %s453
      %p462 = scmp.eq.s32.totalorder %s91, 0
      %p463 = por %p461, %p462
      %p464 = scmp.ne.s32.totalorder %s452, %s453
      %p465 = scmp.eq.s32.totalorder %s92, 1
      %p466 = por %p464, %p465
      %p468 = scmp.ne.s32.totalorder %s453, %s467
      %p469 = scmp.eq.s32.totalorder %s92, 0
      %p470 = por %p468, %p469
      %s472 = sadd.s32 %s471, 1
      %p475 = scmp.eq.s32.totalorder %s86, 1
      %p476 = scmp.ne.s32.totalorder %s471, %s473
      %p477 = scmp.eq.s32.totalorder %s86, 0
      %p478 = por %p476, %p477
      %p479 = scmp.ne.s32.totalorder %s471, %s473
      %p480 = scmp.eq.s32.totalorder %s91, 1
      %p481 = por %p479, %p480
      %p482 = scmp.ne.s32.totalorder %s473, %s474
      %p483 = scmp.eq.s32.totalorder %s91, 0
      %p484 = por %p482, %p483
      %p485 = scmp.ne.s32.totalorder %s473, %s474
      %p486 = scmp.eq.s32.totalorder %s92, 1
      %p487 = por %p485, %p486
      %p489 = scmp.ne.s32.totalorder %s474, %s488
      %p490 = scmp.eq.s32.totalorder %s92, 0
      %p491 = por %p489, %p490
      %s493 = sadd.s32 %s492, 1
      %p496 = scmp.eq.s32.totalorder %s86, 1
      %p497 = scmp.ne.s32.totalorder %s492, %s494
      %p498 = scmp.eq.s32.totalorder %s86, 0
      %p499 = por %p497, %p498
      %p500 = scmp.ne.s32.totalorder %s492, %s494
      %p501 = scmp.eq.s32.totalorder %s91, 1
      %p502 = por %p500, %p501
      %p503 = scmp.ne.s32.totalorder %s494, %s495
      %p504 = scmp.eq.s32.totalorder %s91, 0
      %p505 = por %p503, %p504
      %p506 = scmp.ne.s32.totalorder %s494, %s495
      %p507 = scmp.eq.s32.totalorder %s92, 1
      %p508 = por %p506, %p507
      %p510 = scmp.ne.s32.totalorder %s495, %s509
      %p511 = scmp.eq.s32.totalorder %s92, 0
      %p512 = por %p510, %p511
      %s514 = sadd.s32 %s513, 1
      %p517 = scmp.eq.s32.totalorder %s86, 1
      %p518 = scmp.ne.s32.totalorder %s513, %s515
      %p519 = scmp.eq.s32.totalorder %s86, 0
      %p520 = por %p518, %p519
      %p521 = scmp.ne.s32.totalorder %s513, %s515
      %p522 = scmp.eq.s32.totalorder %s91, 1
      %p523 = por %p521, %p522
      %p524 = scmp.ne.s32.totalorder %s515, %s516
      %p525 = scmp.eq.s32.totalorder %s91, 0
      %p526 = por %p524, %p525
      %p527 = scmp.ne.s32.totalorder %s515, %s516
      %p528 = scmp.eq.s32.totalorder %s92, 1
      %p529 = por %p527, %p528
      %p531 = scmp.ne.s32.totalorder %s516, %s530
      %p532 = scmp.eq.s32.totalorder %s92, 0
      %p533 = por %p531, %p532
      %s535 = sadd.s32 %s534, 1
      %p538 = scmp.eq.s32.totalorder %s86, 1
      %p539 = scmp.ne.s32.totalorder %s534, %s536
      %p540 = scmp.eq.s32.totalorder %s86, 0
      %p541 = por %p539, %p540
      %p542 = scmp.ne.s32.totalorder %s534, %s536
      %p543 = scmp.eq.s32.totalorder %s91, 1
      %p544 = por %p542, %p543
      %p545 = scmp.ne.s32.totalorder %s536, %s537
      %p546 = scmp.eq.s32.totalorder %s91, 0
      %p547 = por %p545, %p546
      %p548 = scmp.ne.s32.totalorder %s536, %s537
      %p549 = scmp.eq.s32.totalorder %s92, 1
      %p550 = por %p548, %p549
      %p552 = scmp.ne.s32.totalorder %s537, %s551
      %p553 = scmp.eq.s32.totalorder %s92, 0
      %p554 = por %p552, %p553
      %s556 = sadd.s32 %s555, 1
      %p559 = scmp.eq.s32.totalorder %s86, 1
      %p560 = scmp.ne.s32.totalorder %s555, %s557
      %p561 = scmp.eq.s32.totalorder %s86, 0
      %p562 = por %p560, %p561
      %p563 = scmp.ne.s32.totalorder %s555, %s557
      %p564 = scmp.eq.s32.totalorder %s91, 1
      %p565 = por %p563, %p564
      %p566 = scmp.ne.s32.totalorder %s557, %s558
      %p567 = scmp.eq.s32.totalorder %s91, 0
      %p568 = por %p566, %p567
      %p569 = scmp.ne.s32.totalorder %s557, %s558
      %p570 = scmp.eq.s32.totalorder %s92, 1
      %p571 = por %p569, %p570
      %p573 = scmp.ne.s32.totalorder %s558, %s572
      %p574 = scmp.eq.s32.totalorder %s92, 0
      %p575 = por %p573, %p574
      %s577 = sadd.s32 %s576, 1
      %p580 = scmp.eq.s32.totalorder %s86, 1
      %p581 = scmp.ne.s32.totalorder %s576, %s578
      %p582 = scmp.eq.s32.totalorder %s86, 0
      %p583 = por %p581, %p582
      %p584 = scmp.ne.s32.totalorder %s576, %s578
      %p585 = scmp.eq.s32.totalorder %s91, 1
      %p586 = por %p584, %p585
      %p587 = scmp.ne.s32.totalorder %s578, %s579
      %p588 = scmp.eq.s32.totalorder %s91, 0
      %p589 = por %p587, %p588
      %p590 = scmp.ne.s32.totalorder %s578, %s579
      %p591 = scmp.eq.s32.totalorder %s92, 1
      %p592 = por %p590, %p591
      %p594 = scmp.ne.s32.totalorder %s579, %s593
      %p595 = scmp.eq.s32.totalorder %s92, 0
      %p596 = por %p594, %p595
      %s598 = sadd.s32 %s597, 1
      %p601 = scmp.eq.s32.totalorder %s86, 1
      %p602 = scmp.ne.s32.totalorder %s597, %s599
      %p603 = scmp.eq.s32.totalorder %s86, 0
      %p604 = por %p602, %p603
      %p605 = scmp.ne.s32.totalorder %s597, %s599
      %p606 = scmp.eq.s32.totalorder %s91, 1
      %p607 = por %p605, %p606
      %p608 = scmp.ne.s32.totalorder %s599, %s600
      %p609 = scmp.eq.s32.totalorder %s91, 0
      %p610 = por %p608, %p609
      %p611 = scmp.ne.s32.totalorder %s599, %s600
      %p612 = scmp.eq.s32.totalorder %s92, 1
      %p613 = por %p611, %p612
      %p615 = scmp.ne.s32.totalorder %s600, %s614
      %p616 = scmp.eq.s32.totalorder %s92, 0
      %p617 = por %p615, %p616
      %s619 = sadd.s32 %s618, 1
      %p622 = scmp.eq.s32.totalorder %s86, 1
      %p623 = scmp.ne.s32.totalorder %s618, %s620
      %p624 = scmp.eq.s32.totalorder %s86, 0
      %p625 = por %p623, %p624
      %p626 = scmp.ne.s32.totalorder %s618, %s620
      %p627 = scmp.eq.s32.totalorder %s91, 1
      %p628 = por %p626, %p627
      %p629 = scmp.ne.s32.totalorder %s620, %s621
      %p630 = scmp.eq.s32.totalorder %s91, 0
      %p631 = por %p629, %p630
      %p632 = scmp.ne.s32.totalorder %s620, %s621
      %p633 = scmp.eq.s32.totalorder %s92, 1
      %p634 = por %p632, %p633
      %p636 = scmp.ne.s32.totalorder %s621, %s635
      %p637 = scmp.eq.s32.totalorder %s92, 0
      %p638 = por %p636, %p637
      %s640 = sadd.s32 %s639, 1
      %p643 = scmp.eq.s32.totalorder %s86, 1
      %p644 = scmp.ne.s32.totalorder %s639, %s641
      %p645 = scmp.eq.s32.totalorder %s86, 0
      %p646 = por %p644, %p645
      %p647 = scmp.ne.s32.totalorder %s639, %s641
      %p648 = scmp.eq.s32.totalorder %s91, 1
      %p649 = por %p647, %p648
      %p650 = scmp.ne.s32.totalorder %s641, %s642
      %p651 = scmp.eq.s32.totalorder %s91, 0
      %p652 = por %p650, %p651
      %p653 = scmp.ne.s32.totalorder %s641, %s642
      %p654 = scmp.eq.s32.totalorder %s92, 1
      %p655 = por %p653, %p654
      %p657 = scmp.ne.s32.totalorder %s642, %s656
      %p658 = scmp.eq.s32.totalorder %s92, 0
      %p659 = por %p657, %p658
      %s661 = sadd.s32 %s660, 1
      %p664 = scmp.eq.s32.totalorder %s86, 1
      %p665 = scmp.ne.s32.totalorder %s660, %s662
      %p666 = scmp.eq.s32.totalorder %s86, 0
      %p667 = por %p665, %p666
      %p668 = scmp.ne.s32.totalorder %s660, %s662
      %p669 = scmp.eq.s32.totalorder %s91, 1
      %p670 = por %p668, %p669
      %p671 = scmp.ne.s32.totalorder %s662, %s663
      %p672 = scmp.eq.s32.totalorder %s91, 0
      %p673 = por %p671, %p672
      %p674 = scmp.ne.s32.totalorder %s662, %s663
      %p675 = scmp.eq.s32.totalorder %s92, 1
      %p676 = por %p674, %p675
      %p678 = scmp.ne.s32.totalorder %s663, %s677
      %p679 = scmp.eq.s32.totalorder %s92, 0
      %p680 = por %p678, %p679
      %s682 = sadd.s32 %s681, 1
      %p685 = scmp.eq.s32.totalorder %s86, 1
      %p686 = scmp.ne.s32.totalorder %s681, %s683
      %p687 = scmp.eq.s32.totalorder %s86, 0
      %p688 = por %p686, %p687
      %p689 = scmp.ne.s32.totalorder %s681, %s683
      %p690 = scmp.eq.s32.totalorder %s91, 1
      %p691 = por %p689, %p690
      %p692 = scmp.ne.s32.totalorder %s683, %s684
      %p693 = scmp.eq.s32.totalorder %s91, 0
      %p694 = por %p692, %p693
      %p695 = scmp.ne.s32.totalorder %s683, %s684
      %p696 = scmp.eq.s32.totalorder %s92, 1
      %p697 = por %p695, %p696
      %p699 = scmp.ne.s32.totalorder %s684, %s698
      %p700 = scmp.eq.s32.totalorder %s92, 0
      %p701 = por %p699, %p700
      %s703 = sadd.s32 %s702, 1
      %p706 = scmp.eq.s32.totalorder %s86, 1
      %p707 = scmp.ne.s32.totalorder %s702, %s704
      %p708 = scmp.eq.s32.totalorder %s86, 0
      %p709 = por %p707, %p708
      %p710 = scmp.ne.s32.totalorder %s702, %s704
      %p711 = scmp.eq.s32.totalorder %s91, 1
      %p712 = por %p710, %p711
      %p713 = scmp.ne.s32.totalorder %s704, %s705
      %p714 = scmp.eq.s32.totalorder %s91, 0
      %p715 = por %p713, %p714
      %p716 = scmp.ne.s32.totalorder %s704, %s705
      %p717 = scmp.eq.s32.totalorder %s92, 1
      %p718 = por %p716, %p717
      %p720 = scmp.ne.s32.totalorder %s705, %s719
      %p721 = scmp.eq.s32.totalorder %s92, 0
      %p722 = por %p720, %p721
      %s724 = sadd.s32 %s723, 1
      %p727 = scmp.eq.s32.totalorder %s86, 1
      %p728 = scmp.ne.s32.totalorder %s723, %s725
      %p729 = scmp.eq.s32.totalorder %s86, 0
      %p730 = por %p728, %p729
      %p731 = scmp.ne.s32.totalorder %s723, %s725
      %p732 = scmp.eq.s32.totalorder %s91, 1
      %p733 = por %p731, %p732
      %p734 = scmp.ne.s32.totalorder %s725, %s726
      %p735 = scmp.eq.s32.totalorder %s91, 0
      %p736 = por %p734, %p735
      %p737 = scmp.ne.s32.totalorder %s725, %s726
      %p738 = scmp.eq.s32.totalorder %s92, 1
      %p739 = por %p737, %p738
      %p741 = scmp.ne.s32.totalorder %s726, %s740
      %p742 = scmp.eq.s32.totalorder %s92, 0
      %p743 = por %p741, %p742
      %s745 = sadd.s32 %s744, 1
      %p748 = scmp.eq.s32.totalorder %s86, 1
      %p749 = scmp.ne.s32.totalorder %s744, %s746
      %p750 = scmp.eq.s32.totalorder %s86, 0
      %p751 = por %p749, %p750
      %p752 = scmp.ne.s32.totalorder %s744, %s746
      %p753 = scmp.eq.s32.totalorder %s91, 1
      %p754 = por %p752, %p753
      %p755 = scmp.ne.s32.totalorder %s746, %s747
      %p756 = scmp.eq.s32.totalorder %s91, 0
      %p757 = por %p755, %p756
      %p758 = scmp.ne.s32.totalorder %s746, %s747
      %p759 = scmp.eq.s32.totalorder %s92, 1
      %p760 = por %p758, %p759
      %p762 = scmp.ne.s32.totalorder %s747, %s761
      %p763 = scmp.eq.s32.totalorder %s92, 0
      %p764 = por %p762, %p763
      %s766 = sadd.s32 %s765, 1
      %p769 = scmp.eq.s32.totalorder %s86, 1
      %p770 = scmp.ne.s32.totalorder %s765, %s767
      %p771 = scmp.eq.s32.totalorder %s86, 0
      %p772 = por %p770, %p771
      %p773 = scmp.ne.s32.totalorder %s765, %s767
      %p774 = scmp.eq.s32.totalorder %s91, 1
      %p775 = por %p773, %p774
      %p776 = scmp.ne.s32.totalorder %s767, %s768
      %p777 = scmp.eq.s32.totalorder %s91, 0
      %p778 = por %p776, %p777
      %p779 = scmp.ne.s32.totalorder %s767, %s768
      %p780 = scmp.eq.s32.totalorder %s92, 1
      %p781 = por %p779, %p780
      %p783 = scmp.ne.s32.totalorder %s768, %s782
      %p784 = scmp.eq.s32.totalorder %s92, 0
      %p785 = por %p783, %p784
      %s787 = sadd.s32 %s786, 1
      %p790 = scmp.eq.s32.totalorder %s86, 1
      %p791 = scmp.ne.s32.totalorder %s786, %s788
      %p792 = scmp.eq.s32.totalorder %s86, 0
      %p793 = por %p791, %p792
      %p794 = scmp.ne.s32.totalorder %s786, %s788
      %p795 = scmp.eq.s32.totalorder %s91, 1
      %p796 = por %p794, %p795
      %p797 = scmp.ne.s32.totalorder %s788, %s789
      %p798 = scmp.eq.s32.totalorder %s91, 0
      %p799 = por %p797, %p798
      %p800 = scmp.ne.s32.totalorder %s788, %s789
      %p801 = scmp.eq.s32.totalorder %s92, 1
      %p802 = por %p800, %p801
      %p804 = scmp.ne.s32.totalorder %s789, %s803
      %p805 = scmp.eq.s32.totalorder %s92, 0
      %p806 = por %p804, %p805
      %s808 = sadd.s32 %s807, 1
      %p811 = scmp.eq.s32.totalorder %s86, 1
      %p812 = scmp.ne.s32.totalorder %s807, %s809
      %p813 = scmp.eq.s32.totalorder %s86, 0
      %p814 = por %p812, %p813
      %p815 = scmp.ne.s32.totalorder %s807, %s809
      %p816 = scmp.eq.s32.totalorder %s91, 1
      %p817 = por %p815, %p816
      %p818 = scmp.ne.s32.totalorder %s809, %s810
      %p819 = scmp.eq.s32.totalorder %s91, 0
      %p820 = por %p818, %p819
      %p821 = scmp.ne.s32.totalorder %s809, %s810
      %p822 = scmp.eq.s32.totalorder %s92, 1
      %p823 = por %p821, %p822
      %p825 = scmp.ne.s32.totalorder %s810, %s824
      %p826 = scmp.eq.s32.totalorder %s92, 0
      %p827 = por %p825, %p826
      %s829 = sadd.s32 %s828, 1
      %p832 = scmp.eq.s32.totalorder %s86, 1
      %p833 = scmp.ne.s32.totalorder %s828, %s830
      %p834 = scmp.eq.s32.totalorder %s86, 0
      %p835 = por %p833, %p834
      %p836 = scmp.ne.s32.totalorder %s828, %s830
      %p837 = scmp.eq.s32.totalorder %s91, 1
      %p838 = por %p836, %p837
      %p839 = scmp.ne.s32.totalorder %s830, %s831
      %p840 = scmp.eq.s32.totalorder %s91, 0
      %p841 = por %p839, %p840
      %p842 = scmp.ne.s32.totalorder %s830, %s831
      %p843 = scmp.eq.s32.totalorder %s92, 1
      %p844 = por %p842, %p843
      %p846 = scmp.ne.s32.totalorder %s831, %s845
      %p847 = scmp.eq.s32.totalorder %s92, 0
      %p848 = por %p846, %p847
      %s850 = sadd.s32 %s849, 1
      %p853 = scmp.eq.s32.totalorder %s86, 1
      %p854 = scmp.ne.s32.totalorder %s849, %s851
      %p855 = scmp.eq.s32.totalorder %s86, 0
      %p856 = por %p854, %p855
      %p857 = scmp.ne.s32.totalorder %s849, %s851
      %p858 = scmp.eq.s32.totalorder %s91, 1
      %p859 = por %p857, %p858
      %p860 = scmp.ne.s32.totalorder %s851, %s852
      %p861 = scmp.eq.s32.totalorder %s91, 0
      %p862 = por %p860, %p861
      %p863 = scmp.ne.s32.totalorder %s851, %s852
      %p864 = scmp.eq.s32.totalorder %s92, 1
      %p865 = por %p863, %p864
      %p867 = scmp.ne.s32.totalorder %s852, %s866
      %p868 = scmp.eq.s32.totalorder %s92, 0
      %p869 = por %p867, %p868
      %s871 = sadd.s32 %s870, 1
      %p874 = scmp.eq.s32.totalorder %s86, 1
      %p875 = scmp.ne.s32.totalorder %s870, %s872
      %p876 = scmp.eq.s32.totalorder %s86, 0
      %p877 = por %p875, %p876
      %p878 = scmp.ne.s32.totalorder %s870, %s872
      %p879 = scmp.eq.s32.totalorder %s91, 1
      %p880 = por %p878, %p879
      %p881 = scmp.ne.s32.totalorder %s872, %s873
      %p882 = scmp.eq.s32.totalorder %s91, 0
      %p883 = por %p881, %p882
      %p884 = scmp.ne.s32.totalorder %s872, %s873
      %p885 = scmp.eq.s32.totalorder %s92, 1
      %p886 = por %p884, %p885
      %p888 = scmp.ne.s32.totalorder %s873, %s887
      %p889 = scmp.eq.s32.totalorder %s92, 0
      %p890 = por %p888, %p889
      %s892 = sadd.s32 %s891, 1
      %p895 = scmp.eq.s32.totalorder %s86, 1
      %p896 = scmp.ne.s32.totalorder %s891, %s893
      %p897 = scmp.eq.s32.totalorder %s86, 0
      %p898 = por %p896, %p897
      %p899 = scmp.ne.s32.totalorder %s891, %s893
      %p900 = scmp.eq.s32.totalorder %s91, 1
      %p901 = por %p899, %p900
      %p902 = scmp.ne.s32.totalorder %s893, %s894
      %p903 = scmp.eq.s32.totalorder %s91, 0
      %p904 = por %p902, %p903
      %p905 = scmp.ne.s32.totalorder %s893, %s894
      %p906 = scmp.eq.s32.totalorder %s92, 1
      %p907 = por %p905, %p906
      %p909 = scmp.ne.s32.totalorder %s894, %s908
      %p910 = scmp.eq.s32.totalorder %s92, 0
      %p911 = por %p909, %p910
      %s912 = ssub.s32 %s86, %s93
      %p913 = scmp.eq.s32.totalorder %s912, 0
      %s915 = sadd.s32 %s914, 1
      %s916 = scalar_select %p913, %s914, %s915
      %p919 = pneg %p913
      %p920 = scmp.eq.s32.totalorder %s86, 1
      %p921 = por %p919, %p920
      %p922 = scmp.ne.s32.totalorder %s914, %s917
      %p923 = scmp.eq.s32.totalorder %s86, 0
      %p924 = por %p922, %p923
      %p925 = scmp.ne.s32.totalorder %s914, %s917
      %p926 = scmp.eq.s32.totalorder %s91, 1
      %p927 = por %p925, %p926
      %p928 = scmp.ne.s32.totalorder %s917, %s918
      %p929 = scmp.eq.s32.totalorder %s91, 0
      %p930 = por %p928, %p929
      %p931 = scmp.ne.s32.totalorder %s917, %s918
      %p932 = scmp.eq.s32.totalorder %s92, 1
      %p933 = por %p931, %p932
      %p935 = scmp.ne.s32.totalorder %s918, %s934
      %p936 = scmp.eq.s32.totalorder %s92, 0
      %p937 = por %p935, %p936
      %p938 = scmp.le.s32.totalorder 1, %s86
      %p939 = scmp.lt.s32.totalorder %s86, 3
      %p940 = pnand %p938, %p939
      %p941 = pneg %p940
      // Predicated region
      $region9: #{encoder_decoder_forward.1} parent=5 // pred_check
        _
      $region10: #{encoder_decoder_forward.1} parent=5 // pred_check_branch
        %943 = sbr.rel (%p940) target = $region12
      $region11: #{encoder_decoder_forward.1} parent=5 // pred_region
        %s944 = ssub.s32 %s86, 1
        // Predicated region
        $region13: #{encoder_decoder_forward.1} parent=11 // pred_check
          %p945 = pneg %p211
        $region14: #{encoder_decoder_forward.1} parent=11 // pred_check_branch
          %947 = sbr.rel (%p945) target = $region16
        $region15: #{encoder_decoder_forward.1} parent=11 // pred_region
          _
        $region16: #{encoder_decoder_forward.1} parent=11 // pred_fallthru
          _
        // Predicated region
        $region17: #{encoder_decoder_forward.1} parent=11 // pred_check
          %p948 = pneg %p232
        $region18: #{encoder_decoder_forward.1} parent=11 // pred_check_branch
          %950 = sbr.rel (%p948) target = $region20
        $region19: #{encoder_decoder_forward.1} parent=11 // pred_region
          _
        $region20: #{encoder_decoder_forward.1} parent=11 // pred_fallthru
          _
        // Predicated region
        $region21: #{encoder_decoder_forward.1} parent=11 // pred_check
          %p951 = pneg %p253
        $region22: #{encoder_decoder_forward.1} parent=11 // pred_check_branch
          %953 = sbr.rel (%p951) target = $region24
        $region23: #{encoder_decoder_forward.1} parent=11 // pred_region
          _
        $region24: #{encoder_decoder_forward.1} parent=11 // pred_fallthru
          _
        // Predicated region
        $region25: #{encoder_decoder_forward.1} parent=11 // pred_check
          %p954 = pneg %p274
        $region26: #{encoder_decoder_forward.1} parent=11 // pred_check_branch
          %956 = sbr.rel (%p954) target = $region28
        $region27: #{encoder_decoder_forward.1} parent=11 // pred_region
          _
        $region28: #{encoder_decoder_forward.1} parent=11 // pred_fallthru
          _
        // Predicated region
        $region29: #{encoder_decoder_forward.1} parent=11 // pred_check
          %p957 = pneg %p295
        $region30: #{encoder_decoder_forward.1} parent=11 // pred_check_branch
          %959 = sbr.rel (%p957) target = $region32
        $region31: #{encoder_decoder_forward.1} parent=11 // pred_region
          _
        $region32: #{encoder_decoder_forward.1} parent=11 // pred_fallthru
          _
        // Predicated region
        $region33: #{encoder_decoder_forward.1} parent=11 // pred_check
          %p960 = pneg %p316
        $region34: #{encoder_decoder_forward.1} parent=11 // pred_check_branch
          %962 = sbr.rel (%p960) target = $region36
        $region35: #{encoder_decoder_forward.1} parent=11 // pred_region
          _
        $region36: #{encoder_decoder_forward.1} parent=11 // pred_fallthru
          _
        // Predicated region
        $region37: #{encoder_decoder_forward.1} parent=11 // pred_check
          %p963 = pneg %p337
        $region38: #{encoder_decoder_forward.1} parent=11 // pred_check_branch
          %965 = sbr.rel (%p963) target = $region40
        $region39: #{encoder_decoder_forward.1} parent=11 // pred_region
          _
        $region40: #{encoder_decoder_forward.1} parent=11 // pred_fallthru
          _
        // Predicated region
        $region41: #{encoder_decoder_forward.1} parent=11 // pred_check
          %p966 = pneg %p358
        $region42: #{encoder_decoder_forward.1} parent=11 // pred_check_branch
          %968 = sbr.rel (%p966) target = $region44
        $region43: #{encoder_decoder_forward.1} parent=11 // pred_region
          _
        $region44: #{encoder_decoder_forward.1} parent=11 // pred_fallthru
          _
        // Predicated region
        $region45: #{encoder_decoder_forward.1} parent=11 // pred_check
          %p969 = pneg %p379
        $region46: #{encoder_decoder_forward.1} parent=11 // pred_check_branch
          %971 = sbr.rel (%p969) target = $region48
        $region47: #{encoder_decoder_forward.1} parent=11 // pred_region
          _
        $region48: #{encoder_decoder_forward.1} parent=11 // pred_fallthru
          _
        // Predicated region
        $region49: #{encoder_decoder_forward.1} parent=11 // pred_check
          %p972 = pneg %p400
        $region50: #{encoder_decoder_forward.1} parent=11 // pred_check_branch
          %974 = sbr.rel (%p972) target = $region52
        $region51: #{encoder_decoder_forward.1} parent=11 // pred_region
          _
        $region52: #{encoder_decoder_forward.1} parent=11 // pred_fallthru
          _
        // Predicated region
        $region53: #{encoder_decoder_forward.1} parent=11 // pred_check
          %p975 = pneg %p421
        $region54: #{encoder_decoder_forward.1} parent=11 // pred_check_branch
          %977 = sbr.rel (%p975) target = $region56
        $region55: #{encoder_decoder_forward.1} parent=11 // pred_region
          _
        $region56: #{encoder_decoder_forward.1} parent=11 // pred_fallthru
          _
        // Predicated region
        $region57: #{encoder_decoder_forward.1} parent=11 // pred_check
          %p978 = pneg %p442
        $region58: #{encoder_decoder_forward.1} parent=11 // pred_check_branch
          %980 = sbr.rel (%p978) target = $region60
        $region59: #{encoder_decoder_forward.1} parent=11 // pred_region
          _
        $region60: #{encoder_decoder_forward.1} parent=11 // pred_fallthru
          _
        // Predicated region
        $region61: #{encoder_decoder_forward.1} parent=11 // pred_check
          %p981 = pneg %p463
        $region62: #{encoder_decoder_forward.1} parent=11 // pred_check_branch
          %983 = sbr.rel (%p981) target = $region64
        $region63: #{encoder_decoder_forward.1} parent=11 // pred_region
          _
        $region64: #{encoder_decoder_forward.1} parent=11 // pred_fallthru
          _
        // Predicated region
        $region65: #{encoder_decoder_forward.1} parent=11 // pred_check
          %p984 = pneg %p484
        $region66: #{encoder_decoder_forward.1} parent=11 // pred_check_branch
          %986 = sbr.rel (%p984) target = $region68
        $region67: #{encoder_decoder_forward.1} parent=11 // pred_region
          _
        $region68: #{encoder_decoder_forward.1} parent=11 // pred_fallthru
          _
        // Predicated region
        $region69: #{encoder_decoder_forward.1} parent=11 // pred_check
          %p987 = pneg %p505
        $region70: #{encoder_decoder_forward.1} parent=11 // pred_check_branch
          %989 = sbr.rel (%p987) target = $region72
        $region71: #{encoder_decoder_forward.1} parent=11 // pred_region
          _
        $region72: #{encoder_decoder_forward.1} parent=11 // pred_fallthru
          _
        // Predicated region
        $region73: #{encoder_decoder_forward.1} parent=11 // pred_check
          %p990 = pneg %p526
        $region74: #{encoder_decoder_forward.1} parent=11 // pred_check_branch
          %992 = sbr.rel (%p990) target = $region76
        $region75: #{encoder_decoder_forward.1} parent=11 // pred_region
          _
        $region76: #{encoder_decoder_forward.1} parent=11 // pred_fallthru
          _
        // Predicated region
        $region77: #{encoder_decoder_forward.1} parent=11 // pred_check
          %p993 = pneg %p547
        $region78: #{encoder_decoder_forward.1} parent=11 // pred_check_branch
          %995 = sbr.rel (%p993) target = $region80
        $region79: #{encoder_decoder_forward.1} parent=11 // pred_region
          _
        $region80: #{encoder_decoder_forward.1} parent=11 // pred_fallthru
          _
        // Predicated region
        $region81: #{encoder_decoder_forward.1} parent=11 // pred_check
          %p996 = pneg %p568
        $region82: #{encoder_decoder_forward.1} parent=11 // pred_check_branch
          %998 = sbr.rel (%p996) target = $region84
        $region83: #{encoder_decoder_forward.1} parent=11 // pred_region
          _
        $region84: #{encoder_decoder_forward.1} parent=11 // pred_fallthru
          _
        // Predicated region
        $region85: #{encoder_decoder_forward.1} parent=11 // pred_check
          %p999 = pneg %p589
        $region86: #{encoder_decoder_forward.1} parent=11 // pred_check_branch
          %1001 = sbr.rel (%p999) target = $region88
        $region87: #{encoder_decoder_forward.1} parent=11 // pred_region
          _
        $region88: #{encoder_decoder_forward.1} parent=11 // pred_fallthru
          _
        // Predicated region
        $region89: #{encoder_decoder_forward.1} parent=11 // pred_check
          %p1002 = pneg %p610
        $region90: #{encoder_decoder_forward.1} parent=11 // pred_check_branch
          %1004 = sbr.rel (%p1002) target = $region92
        $region91: #{encoder_decoder_forward.1} parent=11 // pred_region
          _
        $region92: #{encoder_decoder_forward.1} parent=11 // pred_fallthru
          _
        // Predicated region
        $region93: #{encoder_decoder_forward.1} parent=11 // pred_check
          %p1005 = pneg %p631
        $region94: #{encoder_decoder_forward.1} parent=11 // pred_check_branch
          %1007 = sbr.rel (%p1005) target = $region96
        $region95: #{encoder_decoder_forward.1} parent=11 // pred_region
          _
        $region96: #{encoder_decoder_forward.1} parent=11 // pred_fallthru
          _
        // Predicated region
        $region97: #{encoder_decoder_forward.1} parent=11 // pred_check
          %p1008 = pneg %p652
        $region98: #{encoder_decoder_forward.1} parent=11 // pred_check_branch
          %1010 = sbr.rel (%p1008) target = $region100
        $region99: #{encoder_decoder_forward.1} parent=11 // pred_region
          _
        $region100: #{encoder_decoder_forward.1} parent=11 // pred_fallthru
          _
        // Predicated region
        $region101: #{encoder_decoder_forward.1} parent=11 // pred_check
          %p1011 = pneg %p673
        $region102: #{encoder_decoder_forward.1} parent=11 // pred_check_branch
          %1013 = sbr.rel (%p1011) target = $region104
        $region103: #{encoder_decoder_forward.1} parent=11 // pred_region
          _
        $region104: #{encoder_decoder_forward.1} parent=11 // pred_fallthru
          _
        // Predicated region
        $region105: #{encoder_decoder_forward.1} parent=11 // pred_check
          %p1014 = pneg %p694
        $region106: #{encoder_decoder_forward.1} parent=11 // pred_check_branch
          %1016 = sbr.rel (%p1014) target = $region108
        $region107: #{encoder_decoder_forward.1} parent=11 // pred_region
          _
        $region108: #{encoder_decoder_forward.1} parent=11 // pred_fallthru
          _
        // Predicated region
        $region109: #{encoder_decoder_forward.1} parent=11 // pred_check
          %p1017 = pneg %p715
        $region110: #{encoder_decoder_forward.1} parent=11 // pred_check_branch
          %1019 = sbr.rel (%p1017) target = $region112
        $region111: #{encoder_decoder_forward.1} parent=11 // pred_region
          _
        $region112: #{encoder_decoder_forward.1} parent=11 // pred_fallthru
          _
        // Predicated region
        $region113: #{encoder_decoder_forward.1} parent=11 // pred_check
          %p1020 = pneg %p736
        $region114: #{encoder_decoder_forward.1} parent=11 // pred_check_branch
          %1022 = sbr.rel (%p1020) target = $region116
        $region115: #{encoder_decoder_forward.1} parent=11 // pred_region
          _
        $region116: #{encoder_decoder_forward.1} parent=11 // pred_fallthru
          _
        // Predicated region
        $region117: #{encoder_decoder_forward.1} parent=11 // pred_check
          %p1023 = pneg %p757
        $region118: #{encoder_decoder_forward.1} parent=11 // pred_check_branch
          %1025 = sbr.rel (%p1023) target = $region120
        $region119: #{encoder_decoder_forward.1} parent=11 // pred_region
          _
        $region120: #{encoder_decoder_forward.1} parent=11 // pred_fallthru
          _
        // Predicated region
        $region121: #{encoder_decoder_forward.1} parent=11 // pred_check
          %p1026 = pneg %p778
        $region122: #{encoder_decoder_forward.1} parent=11 // pred_check_branch
          %1028 = sbr.rel (%p1026) target = $region124
        $region123: #{encoder_decoder_forward.1} parent=11 // pred_region
          _
        $region124: #{encoder_decoder_forward.1} parent=11 // pred_fallthru
          _
        // Predicated region
        $region125: #{encoder_decoder_forward.1} parent=11 // pred_check
          %p1029 = pneg %p799
        $region126: #{encoder_decoder_forward.1} parent=11 // pred_check_branch
          %1031 = sbr.rel (%p1029) target = $region128
        $region127: #{encoder_decoder_forward.1} parent=11 // pred_region
          _
        $region128: #{encoder_decoder_forward.1} parent=11 // pred_fallthru
          _
        // Predicated region
        $region129: #{encoder_decoder_forward.1} parent=11 // pred_check
          %p1032 = pneg %p820
        $region130: #{encoder_decoder_forward.1} parent=11 // pred_check_branch
          %1034 = sbr.rel (%p1032) target = $region132
        $region131: #{encoder_decoder_forward.1} parent=11 // pred_region
          _
        $region132: #{encoder_decoder_forward.1} parent=11 // pred_fallthru
          _
        // Predicated region
        $region133: #{encoder_decoder_forward.1} parent=11 // pred_check
          %p1035 = pneg %p841
        $region134: #{encoder_decoder_forward.1} parent=11 // pred_check_branch
          %1037 = sbr.rel (%p1035) target = $region136
        $region135: #{encoder_decoder_forward.1} parent=11 // pred_region
          _
        $region136: #{encoder_decoder_forward.1} parent=11 // pred_fallthru
          _
        // Predicated region
        $region137: #{encoder_decoder_forward.1} parent=11 // pred_check
          %p1038 = pneg %p862
        $region138: #{encoder_decoder_forward.1} parent=11 // pred_check_branch
          %1040 = sbr.rel (%p1038) target = $region140
        $region139: #{encoder_decoder_forward.1} parent=11 // pred_region
          _
        $region140: #{encoder_decoder_forward.1} parent=11 // pred_fallthru
          _
        // Predicated region
        $region141: #{encoder_decoder_forward.1} parent=11 // pred_check
          %p1041 = pneg %p883
        $region142: #{encoder_decoder_forward.1} parent=11 // pred_check_branch
          %1043 = sbr.rel (%p1041) target = $region144
        $region143: #{encoder_decoder_forward.1} parent=11 // pred_region
          _
        $region144: #{encoder_decoder_forward.1} parent=11 // pred_fallthru
          _
        // Predicated region
        $region145: #{encoder_decoder_forward.1} parent=11 // pred_check
          %p1044 = pneg %p904
        $region146: #{encoder_decoder_forward.1} parent=11 // pred_check_branch
          %1046 = sbr.rel (%p1044) target = $region148
        $region147: #{encoder_decoder_forward.1} parent=11 // pred_region
          _
        $region148: #{encoder_decoder_forward.1} parent=11 // pred_fallthru
          _
      $region12: #{encoder_decoder_forward.1} parent=5 // pred_fallthru
        _
      %p1047 = scmp.lt.s32.totalorder %s86, 2
      // Predicated region
      $region149: #{encoder_decoder_forward.1} parent=5 // pred_check
        %p1048 = pneg %p1047
      $region150: #{encoder_decoder_forward.1} parent=5 // pred_check_branch
        %1050 = sbr.rel (%p1048) target = $region152
      $region151: #{encoder_decoder_forward.1} parent=5 // pred_region
        // Predicated region
        $region153: #{encoder_decoder_forward.1} parent=151 // pred_check
          %p1051 = pneg %p106
        $region154: #{encoder_decoder_forward.1} parent=151 // pred_check_branch
          %1053 = sbr.rel (%p1051) target = $region156
        $region155: #{encoder_decoder_forward.1} parent=151 // pred_region
          %p1054 = scmp.lt.s32.totalorder %s86, 1
          %s1055 = scalar_select %p1054, %s86, 1
          %s1056 = smul.addr %s1055, 8
          %s1057 = scalar_lea.vmem %s1, %s1056
        $region156: #{encoder_decoder_forward.1} parent=151 // pred_fallthru
          _
        // Predicated region
        $region157: #{encoder_decoder_forward.1} parent=151 // pred_check
          %p1058 = pneg %p132
        $region158: #{encoder_decoder_forward.1} parent=151 // pred_check_branch
          %1060 = sbr.rel (%p1058) target = $region160
        $region159: #{encoder_decoder_forward.1} parent=151 // pred_region
          %p1061 = scmp.lt.s32.totalorder %s86, 1
          %s1062 = scalar_select %p1061, %s86, 1
          %s1063 = smul.addr %s1062, 8
          %s1064 = scalar_lea.vmem %s3, %s1063
        $region160: #{encoder_decoder_forward.1} parent=151 // pred_fallthru
          _
        // Predicated region
        $region161: #{encoder_decoder_forward.1} parent=151 // pred_check
          %p1065 = pneg %p158
        $region162: #{encoder_decoder_forward.1} parent=151 // pred_check_branch
          %1067 = sbr.rel (%p1065) target = $region164
        $region163: #{encoder_decoder_forward.1} parent=151 // pred_region
          %p1068 = scmp.lt.s32.totalorder %s86, 1
          %s1069 = scalar_select %p1068, %s86, 1
          %s1070 = scalar_lea.vmem %s5, %s1069
        $region164: #{encoder_decoder_forward.1} parent=151 // pred_fallthru
          _
        // Predicated region
        $region165: #{encoder_decoder_forward.1} parent=151 // pred_check
          %p1071 = pneg %p184
        $region166: #{encoder_decoder_forward.1} parent=151 // pred_check_branch
          %1073 = sbr.rel (%p1071) target = $region168
        $region167: #{encoder_decoder_forward.1} parent=151 // pred_region
          %p1074 = scmp.lt.s32.totalorder %s86, 1
          %s1075 = scalar_select %p1074, %s86, 1
          %s1076 = smul.addr %s1075, 8
          %s1077 = scalar_lea.vmem %s7, %s1076
        $region168: #{encoder_decoder_forward.1} parent=151 // pred_fallthru
          _
      $region152: #{encoder_decoder_forward.1} parent=5 // pred_fallthru
        _
      %p1078 = scmp.le.s32.totalorder 1, %s86
      %p1079 = scmp.lt.s32.totalorder %s86, 3
      %p1080 = pnand %p1078, %p1079
      %p1081 = pneg %p1080
      // Predicated region
      $region169: #{encoder_decoder_forward.1} parent=5 // pred_check
        _
      $region170: #{encoder_decoder_forward.1} parent=5 // pred_check_branch
        %1083 = sbr.rel (%p1080) target = $region172
      $region171: #{encoder_decoder_forward.1} parent=5 // pred_region
        %s1084 = ssub.s32 %s86, 1
        %p1085 = scmp.lt.s32.totalorder %s91, 1
        %s1086 = scalar_select %p1085, %s91, 1
        %s1087 = smul.addr %s1086, 8
        %s1088 = scalar_lea.vmem %s1, %s1087
        %p1089 = pneg %p112
        %p1090 = pneg %p109
        %p1091 = scmp.lt.s32.totalorder %s91, 1
        %s1092 = scalar_select %p1091, %s91, 1
        %s1093 = smul.addr %s1092, 8
        %s1094 = scalar_lea.vmem %s3, %s1093
        %p1095 = pneg %p138
        %p1096 = pneg %p135
        %p1097 = scmp.lt.s32.totalorder %s91, 1
        %s1098 = scalar_select %p1097, %s91, 1
        %s1099 = scalar_lea.vmem %s5, %s1098
        %p1100 = pneg %p164
        %p1101 = pneg %p161
        %p1102 = scmp.lt.s32.totalorder %s91, 1
        %s1103 = scalar_select %p1102, %s91, 1
        %s1104 = smul.addr %s1103, 8
        %s1105 = scalar_lea.vmem %s7, %s1104
        %p1106 = pneg %p190
        %p1107 = pneg %p187
        %p1108 = pneg %p211
        %p1109 = pneg %p208
        %p1110 = pneg %p232
        %p1111 = pneg %p229
        %p1112 = pneg %p253
        %p1113 = pneg %p250
        %p1114 = pneg %p274
        %p1115 = pneg %p271
        %p1116 = pneg %p295
        %p1117 = pneg %p292
        %p1118 = pneg %p316
        %p1119 = pneg %p313
        %p1120 = pneg %p337
        %p1121 = pneg %p334
        %p1122 = pneg %p358
        %p1123 = pneg %p355
        %p1124 = pneg %p379
        %p1125 = pneg %p376
        %p1126 = pneg %p400
        %p1127 = pneg %p397
        %p1128 = pneg %p421
        %p1129 = pneg %p418
        %p1130 = pneg %p442
        %p1131 = pneg %p439
        %p1132 = pneg %p463
        %p1133 = pneg %p460
        %p1134 = pneg %p484
        %p1135 = pneg %p481
        %p1136 = pneg %p505
        %p1137 = pneg %p502
        %p1138 = pneg %p526
        %p1139 = pneg %p523
        %p1140 = pneg %p547
        %p1141 = pneg %p544
        %p1142 = pneg %p568
        %p1143 = pneg %p565
        %p1144 = pneg %p589
        %p1145 = pneg %p586
        %p1146 = pneg %p610
        %p1147 = pneg %p607
        %p1148 = pneg %p631
        %p1149 = pneg %p628
        %p1150 = pneg %p652
        %p1151 = pneg %p649
        %p1152 = pneg %p673
        %p1153 = pneg %p670
        %p1154 = pneg %p694
        %p1155 = pneg %p691
        %p1156 = pneg %p715
        %p1157 = pneg %p712
        %p1158 = pneg %p736
        %p1159 = pneg %p733
        %p1160 = pneg %p757
        %p1161 = pneg %p754
        %p1162 = pneg %p778
        %p1163 = pneg %p775
        %p1164 = pneg %p799
        %p1165 = pneg %p796
        %p1166 = pneg %p820
        %p1167 = pneg %p817
        %p1168 = pneg %p841
        %p1169 = pneg %p838
        %p1170 = pneg %p862
        %p1171 = pneg %p859
        %p1172 = pneg %p883
        %p1173 = pneg %p880
        %p1174 = pneg %p904
        %p1175 = pneg %p901
        %p1176 = pneg %p930
        %p1177 = pneg %p927
        %s1178 = sand.u32 %s917, 1
        %s1179 = scalar_lea.sflag [#allocation3], %s1178
        %s1180 = sand.u32 %s917, 1
        %s1181 = smul.addr %s1180, 8
        %s1182 = scalar_lea.vmem [#allocation2], %s1181
        %p1183 = scmp.lt.s32.totalorder %s91, 1
        %s1184 = scalar_select %p1183, %s91, 1
        %s1185 = smul.addr %s1184, 8
        %s1186 = scalar_lea.vmem %s1, %s1185
        %p1187 = scmp.lt.s32.totalorder %s91, 1
        %s1188 = scalar_select %p1187, %s91, 1
        %s1189 = smul.addr %s1188, 8
        %s1190 = scalar_lea.vmem %s3, %s1189
        %p1191 = scmp.lt.s32.totalorder %s91, 1
        %s1192 = scalar_select %p1191, %s91, 1
        %s1193 = scalar_lea.vmem %s5, %s1192
        %p1194 = scmp.lt.s32.totalorder %s91, 1
        %s1195 = scalar_select %p1194, %s91, 1
        %s1196 = smul.addr %s1195, 8
        %s1197 = scalar_lea.vmem %s7, %s1196
        %v1198 = vld [vmem:[%s1193] sm:$0x1]
        %v1199 = vld [vmem:[%s1197] sm:$0xff]
        %v1200 = vld [vmem:[%s1186] sm:$0xff]
        %v1201 = vld [vmem:[%s9] sm:$0x1]
        %v1202 = vld [vmem:[%s11] sm:$0x1]
        %vm1203 = vcmask 261120
        %v1204 = vsel %vm1203, %v1200, 0.0
        %1205 = vadd.xlane.f32.xlu0 %v1204
        %v1206 = vpop.xlane.xlu0 %1205
        %v1207 = vrcp.pop 32.0
        %v1208 = vmul.f32 32.0, %v1207
        %v1209 = vsub.f32 1.0, %v1208
        %v1210 = vmul.f32 %v1207, %v1209
        %v1211 = vadd.f32 %v1207, %v1210
        %vm1212 = vweird.f32 %v1207
        %v1213 = vsel %vm1212, %v1207, %v1211
        %v1214 = vmul.f32 %v1206, %v1213
        %v1215 = vsub.f32 %v1200, %v1214
        %v1216 = vmul.f32 %v1215, %v1215
        %v1217 = vsel %vm1203, %v1216, 0.0
        %1218 = vadd.xlane.f32.xlu0 %v1217
        %v1219 = vpop.xlane.xlu0 %1218
        %v1220 = vmul.f32 %v1219, 0.032258064
        %v1221 = vrsqrt.pop %v1220
        %v1222 = vmul.f32 %v1221, %v1220
        %v1223 = vmul.f32 %v1222, %v1221
        %v1224 = vmul.f32 0.5, %v1223
        %v1225 = vsub.f32 1.5, %v1224
        %v1226 = vmul.f32 %v1221, %v1225
        %v1227 = vmul.f32 %v1220, %v1226
        %vm1228 = vcmp.eq.f32.partialorder %v1220, inf
        %v1229 = vsel %vm1228, %v1220, %v1227
        %vm1230 = vcmp.eq.f32.partialorder %v1220, 0.0
        %v1231 = vand.u32 %v1220, 2147483648
        %v1232 = vsel %vm1230, %v1231, %v1229
        %v1234 = vperm.slane %v1201, 0
        %v1236 = vmul.f32 %v1234, %v1215
        %v1237 = vadd.f32 %v1232, 1e-06
        %v1238 = vrcp.pop %v1237
        %v1239 = vmul.f32 %v1237, %v1238
        %v1240 = vsub.f32 1.0, %v1239
        %v1241 = vmul.f32 %v1238, %v1240
        %v1242 = vadd.f32 %v1238, %v1241
        %vm1243 = vweird.f32 %v1237
        %vm1244 = vweird.f32 %v1238
        %vm1245 = vmor %vm1243, %vm1244
        %v1246 = vsel %vm1245, %v1238, %v1242
        %v1247 = vand.u32 2147483647, %v1237
        %vm1248 = vcmp.eq.f32.partialorder %v1247, 8.507059e+37
        %v1249 = vand.u32 %v1237, 2147483648
        %v1250 = vor.u32 1.1754944e-38, %v1249
        %v1251 = vsel %vm1248, %v1250, %v1246
        %v1252 = vmul.f32 %v1236, %v1251
        %v1254 = vperm.slane %v1202, 0
        %v1256 = vadd.f32 %v1252, %v1254
        %v1257 = vld [vmem:[%s13] sm:$0xff]
        %v1258 = vld [vmem:[%s13 + $0x8] sm:$0xff]
        %v1259 = vld [vmem:[%s13 + $0x10] sm:$0xff]
        %v1260 = vld [vmem:[%s13 + $0x18] sm:$0xff]
        %v1261 = vld [vmem:[%s15] sm:$0x1]
        %v1262 = vld [vmem:[%s17] sm:$0xff]
        %v1263 = vld [vmem:[%s17 + $0x8] sm:$0xff]
        %v1264 = vld [vmem:[%s17 + $0x10] sm:$0xff]
        %v1265 = vld [vmem:[%s17 + $0x18] sm:$0xff]
        %v1266 = vld [vmem:[%s19] sm:$0x1]
        %v1268 = vperm.slane %v1261, 0
        %v1271 = vsel %vm1203, %v1256, 0
        %1273 = vmatpush.msra.mxu0 0.0
        %1274 = vmatpush.msra.mxu0 0.0
        %1275 = vmatpush.msra.mxu0 0.0
        %1276 = vmatpush.msra.mxu0 0.0
        %1277 = vmatpush.msra.mxu0 0.0
        %1278 = vmatpush.msra.mxu0 0.0
        %1279 = vmatpush.msra.mxu0 0.0
        %1280 = vmatpush.msra.mxu0 0.0
        %1281 = vmatpush.msra.mxu0 0.0
        %1282 = vmatpush.msra.mxu0 0.0
        %1283 = vmatpush.msra.mxu0 0.0
        %1284 = vmatpush.msra.mxu0 0.0
        %1285 = vmatpush.msra.mxu0 %v1260
        %1286 = vmatpush.msra.mxu0 %v1259
        %1287 = vmatpush.msra.mxu0 %v1258
        %1288 = vmatpush.msra.mxu0 %v1257
        %1289 = vmatmul.f32.gmra.mxu0 %v1271
        %v1290 = vpop.f32.mrf.mxu0
        %v1291 = vadd.f32 %v1268, %v1290
        %1292 = vdwg.mxu0
        %1294 = vrot.lane.b32.xlu0 %v1291, 96
        %v1295 = vpop.permute.xlu0 %1294
        %vm1296 = vcmask 64512
        %v1297 = vsel %vm1296, %v1291, 0
        %v1299 = vsel %vm1296, %v1295, 0
        %1301 = vmatpush.xpose.msra.mxu0 0.0
        %1302 = vmatpush.xpose.msra.mxu0 0.0
        %1303 = vmatpush.xpose.msra.mxu0 0.0
        %1304 = vmatpush.xpose.msra.mxu0 0.0
        %1305 = vmatpush.xpose.msra.mxu0 0.0
        %1306 = vmatpush.xpose.msra.mxu0 0.0
        %1307 = vmatpush.xpose.msra.mxu0 0.0
        %1308 = vmatpush.xpose.msra.mxu0 0.0
        %1309 = vmatpush.xpose.msra.mxu0 0.0
        %1310 = vmatpush.xpose.msra.mxu0 0.0
        %1311 = vmatpush.xpose.msra.mxu0 0.0
        %1312 = vmatpush.xpose.msra.mxu0 0.0
        %1313 = vmatpush.xpose.msra.mxu0 0.0
        %1314 = vmatpush.xpose.msra.mxu0 0.0
        %1315 = vmatpush.xpose.msra.mxu0 0.0
        %1316 = vmatpush.xpose.msra.mxu0 %v1299
        %1317 = vmatmul.f32.gmra.mxu0 %v1297
        %v1318 = vpop.f32.mrf.mxu0
        %v1319 = vadd.f32 0.0, %v1318
        %1320 = vdwg.mxu0
        %v1321 = vmul.f32 %v1319, 0.35355338
        %vm1322 = vcmp.eq.f32.partialorder %v1198, 0.0
        %v1323 = vsel %vm1322, 1, 0
        %v1324 = vperm.slane %v1323, 0
        %vm1325 = vcmp.eq.s32.totalorder %v1324, 1
        %v1326 = vsel %vm1325, -1e+09, %v1321
        %v1327 = vsel %vm1296, %v1326, -inf
        %1328 = vmax.xlane.f32.xlu0 %v1327
        %v1329 = vpop.xlane.xlu0 %1328
        %v1330 = vsub.f32 %v1326, %v1329
        %v1331 = vmul.f32 %v1330, 1.442695
        %v1332 = vpow.pop %v1331
        %v1333 = vsel %vm1296, %v1332, 0.0
        %1334 = vadd.xlane.f32.xlu0 %v1333
        %v1335 = vpop.xlane.xlu0 %1334
        %v1336 = vrcp.pop %v1335
        %v1337 = vmul.f32 %v1332, %v1336
        %1338 = vrot.lane.b32.xlu0 %v1291, 64
        %v1339 = vpop.permute.xlu0 %1338
        %v1342 = vsel %vm1296, %v1337, 0
        %1344 = vmatpush.msra.mxu0 0.0
        %1345 = vmatpush.msra.mxu0 0.0
        %1346 = vmatpush.msra.mxu0 0.0
        %1347 = vmatpush.msra.mxu0 0.0
        %1348 = vmatpush.msra.mxu0 0.0
        %1349 = vmatpush.msra.mxu0 0.0
        %1350 = vmatpush.msra.mxu0 0.0
        %1351 = vmatpush.msra.mxu0 0.0
        %1352 = vmatpush.msra.mxu0 0.0
        %1353 = vmatpush.msra.mxu0 0.0
        %1354 = vmatpush.msra.mxu0 0.0
        %1355 = vmatpush.msra.mxu0 0.0
        %1356 = vmatpush.msra.mxu0 0.0
        %1357 = vmatpush.msra.mxu0 0.0
        %1358 = vmatpush.msra.mxu0 0.0
        %1359 = vmatpush.msra.mxu0 %v1339
        %1360 = vmatmul.f32.gmra.mxu0 %v1342
        %v1361 = vpop.f32.mrf.mxu0
        %v1362 = vadd.f32 0.0, %v1361
        %1363 = vdwg.mxu0
        %1364 = vrot.lane.b32.xlu0 %v1291, 120
        %v1365 = vpop.permute.xlu0 %1364
        %1366 = vrot.lane.b32.xlu0 %v1291, 88
        %v1367 = vpop.permute.xlu0 %1366
        %v1368 = vsel %vm1296, %v1365, 0
        %v1370 = vsel %vm1296, %v1367, 0
        %1372 = vmatpush.xpose.msra.mxu0 0.0
        %1373 = vmatpush.xpose.msra.mxu0 0.0
        %1374 = vmatpush.xpose.msra.mxu0 0.0
        %1375 = vmatpush.xpose.msra.mxu0 0.0
        %1376 = vmatpush.xpose.msra.mxu0 0.0
        %1377 = vmatpush.xpose.msra.mxu0 0.0
        %1378 = vmatpush.xpose.msra.mxu0 0.0
        %1379 = vmatpush.xpose.msra.mxu0 0.0
        %1380 = vmatpush.xpose.msra.mxu0 0.0
        %1381 = vmatpush.xpose.msra.mxu0 0.0
        %1382 = vmatpush.xpose.msra.mxu0 0.0
        %1383 = vmatpush.xpose.msra.mxu0 0.0
        %1384 = vmatpush.xpose.msra.mxu0 0.0
        %1385 = vmatpush.xpose.msra.mxu0 0.0
        %1386 = vmatpush.xpose.msra.mxu0 0.0
        %1387 = vmatpush.xpose.msra.mxu0 %v1370
        %1388 = vmatmul.f32.gmra.mxu0 %v1368
        %v1389 = vpop.f32.mrf.mxu0
        %v1390 = vadd.f32 0.0, %v1389
        %1391 = vdwg.mxu0
        %v1392 = vmul.f32 %v1390, 0.35355338
        %v1393 = vsel %vm1325, -1e+09, %v1392
        %v1394 = vsel %vm1296, %v1393, -inf
        %1395 = vmax.xlane.f32.xlu0 %v1394
        %v1396 = vpop.xlane.xlu0 %1395
        %v1397 = vsub.f32 %v1393, %v1396
        %v1398 = vmul.f32 %v1397, 1.442695
        %v1399 = vpow.pop %v1398
        %v1400 = vsel %vm1296, %v1399, 0.0
        %1401 = vadd.xlane.f32.xlu0 %v1400
        %v1402 = vpop.xlane.xlu0 %1401
        %v1403 = vrcp.pop %v1402
        %v1404 = vmul.f32 %v1399, %v1403
        %1405 = vrot.lane.b32.xlu0 %v1291, 56
        %v1406 = vpop.permute.xlu0 %1405
        %v1409 = vsel %vm1296, %v1404, 0
        %1411 = vmatpush.msra.mxu0 0.0
        %1412 = vmatpush.msra.mxu0 0.0
        %1413 = vmatpush.msra.mxu0 0.0
        %1414 = vmatpush.msra.mxu0 0.0
        %1415 = vmatpush.msra.mxu0 0.0
        %1416 = vmatpush.msra.mxu0 0.0
        %1417 = vmatpush.msra.mxu0 0.0
        %1418 = vmatpush.msra.mxu0 0.0
        %1419 = vmatpush.msra.mxu0 0.0
        %1420 = vmatpush.msra.mxu0 0.0
        %1421 = vmatpush.msra.mxu0 0.0
        %1422 = vmatpush.msra.mxu0 0.0
        %1423 = vmatpush.msra.mxu0 0.0
        %1424 = vmatpush.msra.mxu0 0.0
        %1425 = vmatpush.msra.mxu0 0.0
        %1426 = vmatpush.msra.mxu0 %v1406
        %1427 = vmatmul.f32.gmra.mxu0 %v1409
        %v1428 = vpop.f32.mrf.mxu0
        %v1429 = vadd.f32 0.0, %v1428
        %1430 = vdwg.mxu0
        %1431 = vrot.lane.b32.xlu0 %v1291, 112
        %v1432 = vpop.permute.xlu0 %1431
        %1433 = vrot.lane.b32.xlu0 %v1291, 80
        %v1434 = vpop.permute.xlu0 %1433
        %v1435 = vsel %vm1296, %v1432, 0
        %v1437 = vsel %vm1296, %v1434, 0
        %1439 = vmatpush.xpose.msra.mxu0 0.0
        %1440 = vmatpush.xpose.msra.mxu0 0.0
        %1441 = vmatpush.xpose.msra.mxu0 0.0
        %1442 = vmatpush.xpose.msra.mxu0 0.0
        %1443 = vmatpush.xpose.msra.mxu0 0.0
        %1444 = vmatpush.xpose.msra.mxu0 0.0
        %1445 = vmatpush.xpose.msra.mxu0 0.0
        %1446 = vmatpush.xpose.msra.mxu0 0.0
        %1447 = vmatpush.xpose.msra.mxu0 0.0
        %1448 = vmatpush.xpose.msra.mxu0 0.0
        %1449 = vmatpush.xpose.msra.mxu0 0.0
        %1450 = vmatpush.xpose.msra.mxu0 0.0
        %1451 = vmatpush.xpose.msra.mxu0 0.0
        %1452 = vmatpush.xpose.msra.mxu0 0.0
        %1453 = vmatpush.xpose.msra.mxu0 0.0
        %1454 = vmatpush.xpose.msra.mxu0 %v1437
        %1455 = vmatmul.f32.gmra.mxu0 %v1435
        %v1456 = vpop.f32.mrf.mxu0
        %v1457 = vadd.f32 0.0, %v1456
        %1458 = vdwg.mxu0
        %v1459 = vmul.f32 %v1457, 0.35355338
        %v1460 = vsel %vm1325, -1e+09, %v1459
        %v1461 = vsel %vm1296, %v1460, -inf
        %1462 = vmax.xlane.f32.xlu0 %v1461
        %v1463 = vpop.xlane.xlu0 %1462
        %v1464 = vsub.f32 %v1460, %v1463
        %v1465 = vmul.f32 %v1464, 1.442695
        %v1466 = vpow.pop %v1465
        %v1467 = vsel %vm1296, %v1466, 0.0
        %1468 = vadd.xlane.f32.xlu0 %v1467
        %v1469 = vpop.xlane.xlu0 %1468
        %v1470 = vrcp.pop %v1469
        %v1471 = vmul.f32 %v1466, %v1470
        %1472 = vrot.lane.b32.xlu0 %v1291, 48
        %v1473 = vpop.permute.xlu0 %1472
        %v1476 = vsel %vm1296, %v1471, 0
        %1478 = vmatpush.msra.mxu0 0.0
        %1479 = vmatpush.msra.mxu0 0.0
        %1480 = vmatpush.msra.mxu0 0.0
        %1481 = vmatpush.msra.mxu0 0.0
        %1482 = vmatpush.msra.mxu0 0.0
        %1483 = vmatpush.msra.mxu0 0.0
        %1484 = vmatpush.msra.mxu0 0.0
        %1485 = vmatpush.msra.mxu0 0.0
        %1486 = vmatpush.msra.mxu0 0.0
        %1487 = vmatpush.msra.mxu0 0.0
        %1488 = vmatpush.msra.mxu0 0.0
        %1489 = vmatpush.msra.mxu0 0.0
        %1490 = vmatpush.msra.mxu0 0.0
        %1491 = vmatpush.msra.mxu0 0.0
        %1492 = vmatpush.msra.mxu0 0.0
        %1493 = vmatpush.msra.mxu0 %v1473
        %1494 = vmatmul.f32.gmra.mxu0 %v1476
        %v1495 = vpop.f32.mrf.mxu0
        %v1496 = vadd.f32 0.0, %v1495
        %1497 = vdwg.mxu0
        %1498 = vrot.lane.b32.xlu0 %v1291, 104
        %v1499 = vpop.permute.xlu0 %1498
        %1500 = vrot.lane.b32.xlu0 %v1291, 72
        %v1501 = vpop.permute.xlu0 %1500
        %v1502 = vsel %vm1296, %v1499, 0
        %v1504 = vsel %vm1296, %v1501, 0
        %1506 = vmatpush.xpose.msra.mxu0 0.0
        %1507 = vmatpush.xpose.msra.mxu0 0.0
        %1508 = vmatpush.xpose.msra.mxu0 0.0
        %1509 = vmatpush.xpose.msra.mxu0 0.0
        %1510 = vmatpush.xpose.msra.mxu0 0.0
        %1511 = vmatpush.xpose.msra.mxu0 0.0
        %1512 = vmatpush.xpose.msra.mxu0 0.0
        %1513 = vmatpush.xpose.msra.mxu0 0.0
        %1514 = vmatpush.xpose.msra.mxu0 0.0
        %1515 = vmatpush.xpose.msra.mxu0 0.0
        %1516 = vmatpush.xpose.msra.mxu0 0.0
        %1517 = vmatpush.xpose.msra.mxu0 0.0
        %1518 = vmatpush.xpose.msra.mxu0 0.0
        %1519 = vmatpush.xpose.msra.mxu0 0.0
        %1520 = vmatpush.xpose.msra.mxu0 0.0
        %1521 = vmatpush.xpose.msra.mxu0 %v1504
        %1522 = vmatmul.f32.gmra.mxu0 %v1502
        %v1523 = vpop.f32.mrf.mxu0
        %v1524 = vadd.f32 0.0, %v1523
        %1525 = vdwg.mxu0
        %v1526 = vmul.f32 %v1524, 0.35355338
        %v1527 = vsel %vm1325, -1e+09, %v1526
        %v1528 = vsel %vm1296, %v1527, -inf
        %1529 = vmax.xlane.f32.xlu0 %v1528
        %v1530 = vpop.xlane.xlu0 %1529
        %v1531 = vsub.f32 %v1527, %v1530
        %v1532 = vmul.f32 %v1531, 1.442695
        %v1533 = vpow.pop %v1532
        %v1534 = vsel %vm1296, %v1533, 0.0
        %1535 = vadd.xlane.f32.xlu0 %v1534
        %v1536 = vpop.xlane.xlu0 %1535
        %v1537 = vrcp.pop %v1536
        %v1538 = vmul.f32 %v1533, %v1537
        %1539 = vrot.lane.b32.xlu0 %v1291, 40
        %v1540 = vpop.permute.xlu0 %1539
        %v1543 = vsel %vm1296, %v1538, 0
        %1545 = vmatpush.msra.mxu0 0.0
        %1546 = vmatpush.msra.mxu0 0.0
        %1547 = vmatpush.msra.mxu0 0.0
        %1548 = vmatpush.msra.mxu0 0.0
        %1549 = vmatpush.msra.mxu0 0.0
        %1550 = vmatpush.msra.mxu0 0.0
        %1551 = vmatpush.msra.mxu0 0.0
        %1552 = vmatpush.msra.mxu0 0.0
        %1553 = vmatpush.msra.mxu0 0.0
        %1554 = vmatpush.msra.mxu0 0.0
        %1555 = vmatpush.msra.mxu0 0.0
        %1556 = vmatpush.msra.mxu0 0.0
        %1557 = vmatpush.msra.mxu0 0.0
        %1558 = vmatpush.msra.mxu0 0.0
        %1559 = vmatpush.msra.mxu0 0.0
        %1560 = vmatpush.msra.mxu0 %v1540
        %1561 = vmatmul.f32.gmra.mxu0 %v1543
        %v1562 = vpop.f32.mrf.mxu0
        %v1563 = vadd.f32 0.0, %v1562
        %1564 = vdwg.mxu0
        %1566 = vrot.lane.b32.xlu0 %v1429, 8
        %v1567 = vpop.permute.xlu0 %1566
        %1570 = vrot.lane.b32.xlu0 %v1496, 16
        %v1571 = vpop.permute.xlu0 %1570
        %1574 = vrot.lane.b32.xlu0 %v1563, 24
        %v1575 = vpop.permute.xlu0 %1574
        %v1577 = vsel %vm1296, %v1362, %v1567
        %vm1578 = vcmask 130048
        %v1579 = vsel %vm1578, %v1577, %v1571
        %vm1580 = vcmask 195584
        %v1581 = vsel %vm1580, %v1579, %v1575
        %v1583 = vperm.slane %v1266, 0
        %v1586 = vsel %vm1203, %v1581, 0
        %1588 = vmatpush.msra.mxu0 0.0
        %1589 = vmatpush.msra.mxu0 0.0
        %1590 = vmatpush.msra.mxu0 0.0
        %1591 = vmatpush.msra.mxu0 0.0
        %1592 = vmatpush.msra.mxu0 0.0
        %1593 = vmatpush.msra.mxu0 0.0
        %1594 = vmatpush.msra.mxu0 0.0
        %1595 = vmatpush.msra.mxu0 0.0
        %1596 = vmatpush.msra.mxu0 0.0
        %1597 = vmatpush.msra.mxu0 0.0
        %1598 = vmatpush.msra.mxu0 0.0
        %1599 = vmatpush.msra.mxu0 0.0
        %1600 = vmatpush.msra.mxu0 %v1265
        %1601 = vmatpush.msra.mxu0 %v1264
        %1602 = vmatpush.msra.mxu0 %v1263
        %1603 = vmatpush.msra.mxu0 %v1262
        %1604 = vmatmul.f32.gmra.mxu0 %v1586
        %v1605 = vpop.f32.mrf.mxu0
        %v1606 = vadd.f32 %v1583, %v1605
        %1607 = vdwg.mxu0
        %v1608 = vadd.f32 %v1200, %v1606
        %v1609 = vld [vmem:[%s21] sm:$0x1]
        %v1610 = vld [vmem:[%s23] sm:$0x1]
        %v1611 = vsel %vm1203, %v1608, 0.0
        %1612 = vadd.xlane.f32.xlu0 %v1611
        %v1613 = vpop.xlane.xlu0 %1612
        %v1614 = vmul.f32 %v1613, %v1213
        %v1615 = vsub.f32 %v1608, %v1614
        %v1616 = vmul.f32 %v1615, %v1615
        %v1617 = vsel %vm1203, %v1616, 0.0
        %1618 = vadd.xlane.f32.xlu0 %v1617
        %v1619 = vpop.xlane.xlu0 %1618
        %v1620 = vmul.f32 %v1619, 0.032258064
        %v1621 = vrsqrt.pop %v1620
        %v1622 = vmul.f32 %v1621, %v1620
        %v1623 = vmul.f32 %v1622, %v1621
        %v1624 = vmul.f32 0.5, %v1623
        %v1625 = vsub.f32 1.5, %v1624
        %v1626 = vmul.f32 %v1621, %v1625
        %v1627 = vmul.f32 %v1620, %v1626
        %vm1628 = vcmp.eq.f32.partialorder %v1620, inf
        %v1629 = vsel %vm1628, %v1620, %v1627
        %vm1630 = vcmp.eq.f32.partialorder %v1620, 0.0
        %v1631 = vand.u32 %v1620, 2147483648
        %v1632 = vsel %vm1630, %v1631, %v1629
        %v1634 = vperm.slane %v1609, 0
        %v1636 = vmul.f32 %v1634, %v1615
        %v1637 = vadd.f32 %v1632, 1e-06
        %v1638 = vrcp.pop %v1637
        %v1639 = vmul.f32 %v1637, %v1638
        %v1640 = vsub.f32 1.0, %v1639
        %v1641 = vmul.f32 %v1638, %v1640
        %v1642 = vadd.f32 %v1638, %v1641
        %vm1643 = vweird.f32 %v1637
        %vm1644 = vweird.f32 %v1638
        %vm1645 = vmor %vm1643, %vm1644
        %v1646 = vsel %vm1645, %v1638, %v1642
        %v1647 = vand.u32 2147483647, %v1637
        %vm1648 = vcmp.eq.f32.partialorder %v1647, 8.507059e+37
        %v1649 = vand.u32 %v1637, 2147483648
        %v1650 = vor.u32 1.1754944e-38, %v1649
        %v1651 = vsel %vm1648, %v1650, %v1646
        %v1652 = vmul.f32 %v1636, %v1651
        %v1654 = vperm.slane %v1610, 0
        %v1656 = vadd.f32 %v1652, %v1654
        %v1657 = vld [vmem:[%s25] sm:$0xff]
        %v1658 = vld [vmem:[%s25 + $0x8] sm:$0xff]
        %v1659 = vld [vmem:[%s25 + $0x10] sm:$0xff]
        %v1660 = vld [vmem:[%s25 + $0x18] sm:$0xff]
        %v1661 = vld [vmem:[%s27] sm:$0x1]
        %v1662 = vld [vmem:[%s29] sm:$0xff]
        %v1663 = vld [vmem:[%s29 + $0x8] sm:$0xff]
        %v1664 = vld [vmem:[%s29 + $0x10] sm:$0xff]
        %v1665 = vld [vmem:[%s29 + $0x18] sm:$0xff]
        %v1666 = vld [vmem:[%s29 + $0x20] sm:$0xff]
        %v1667 = vld [vmem:[%s29 + $0x28] sm:$0xff]
        %v1668 = vld [vmem:[%s29 + $0x30] sm:$0xff]
        %v1669 = vld [vmem:[%s29 + $0x38] sm:$0xff]
        %v1670 = vld [vmem:[%s31] sm:$0x1]
        %v1672 = vperm.slane %v1661, 0
        %v1675 = vsel %vm1203, %v1656, 0
        %1677 = vmatpush.msra.mxu0 0.0
        %1678 = vmatpush.msra.mxu0 0.0
        %1679 = vmatpush.msra.mxu0 0.0
        %1680 = vmatpush.msra.mxu0 0.0
        %1681 = vmatpush.msra.mxu0 0.0
        %1682 = vmatpush.msra.mxu0 0.0
        %1683 = vmatpush.msra.mxu0 0.0
        %1684 = vmatpush.msra.mxu0 0.0
        %1685 = vmatpush.msra.mxu0 0.0
        %1686 = vmatpush.msra.mxu0 0.0
        %1687 = vmatpush.msra.mxu0 0.0
        %1688 = vmatpush.msra.mxu0 0.0
        %1689 = vmatpush.msra.mxu0 %v1660
        %1690 = vmatpush.msra.mxu0 %v1659
        %1691 = vmatpush.msra.mxu0 %v1658
        %1692 = vmatpush.msra.mxu0 %v1657
        %1693 = vmatmul.f32.gmra.mxu0 %v1675
        %v1694 = vpop.f32.mrf.mxu0
        %v1695 = vadd.f32 %v1672, %v1694
        %1696 = vdwg.mxu0
        %v1697 = vmax.f32 %v1695, 0.0
        %v1699 = vperm.slane %v1670, 0
        %vm1701 = vcmask 523264
        %v1703 = vsel %vm1701, %v1697, 0
        %1705 = vmatpush.msra.mxu0 0.0
        %1706 = vmatpush.msra.mxu0 0.0
        %1707 = vmatpush.msra.mxu0 0.0
        %1708 = vmatpush.msra.mxu0 0.0
        %1709 = vmatpush.msra.mxu0 0.0
        %1710 = vmatpush.msra.mxu0 0.0
        %1711 = vmatpush.msra.mxu0 0.0
        %1712 = vmatpush.msra.mxu0 0.0
        %1713 = vmatpush.msra.mxu0 %v1669
        %1714 = vmatpush.msra.mxu0 %v1668
        %1715 = vmatpush.msra.mxu0 %v1667
        %1716 = vmatpush.msra.mxu0 %v1666
        %1717 = vmatpush.msra.mxu0 %v1665
        %1718 = vmatpush.msra.mxu0 %v1664
        %1719 = vmatpush.msra.mxu0 %v1663
        %1720 = vmatpush.msra.mxu0 %v1662
        %1721 = vmatmul.f32.gmra.mxu0 %v1703
        %v1722 = vpop.f32.mrf.mxu0
        %v1723 = vadd.f32 %v1699, %v1722
        %1724 = vdwg.mxu0
        %v1725 = vadd.f32 %v1608, %v1723
        %s1726 = scalar_lea.vmem %s9, 1
        %v1727 = vld [vmem:[%s1726] sm:$0x1]
        %s1728 = scalar_lea.vmem %s11, 1
        %v1729 = vld [vmem:[%s1728] sm:$0x1]
        %v1730 = vsel %vm1203, %v1725, 0.0
        %1731 = vadd.xlane.f32.xlu0 %v1730
        %v1732 = vpop.xlane.xlu0 %1731
        %v1733 = vmul.f32 %v1732, %v1213
        %v1734 = vsub.f32 %v1725, %v1733
        %v1735 = vmul.f32 %v1734, %v1734
        %v1736 = vsel %vm1203, %v1735, 0.0
        %1737 = vadd.xlane.f32.xlu0 %v1736
        %v1738 = vpop.xlane.xlu0 %1737
        %v1739 = vmul.f32 %v1738, 0.032258064
        %v1740 = vrsqrt.pop %v1739
        %v1741 = vmul.f32 %v1740, %v1739
        %v1742 = vmul.f32 %v1741, %v1740
        %v1743 = vmul.f32 0.5, %v1742
        %v1744 = vsub.f32 1.5, %v1743
        %v1745 = vmul.f32 %v1740, %v1744
        %v1746 = vmul.f32 %v1739, %v1745
        %vm1747 = vcmp.eq.f32.partialorder %v1739, inf
        %v1748 = vsel %vm1747, %v1739, %v1746
        %vm1749 = vcmp.eq.f32.partialorder %v1739, 0.0
        %v1750 = vand.u32 %v1739, 2147483648
        %v1751 = vsel %vm1749, %v1750, %v1748
        %v1753 = vperm.slane %v1727, 0
        %v1755 = vmul.f32 %v1753, %v1734
        %v1756 = vadd.f32 %v1751, 1e-06
        %v1757 = vrcp.pop %v1756
        %v1758 = vmul.f32 %v1756, %v1757
        %v1759 = vsub.f32 1.0, %v1758
        %v1760 = vmul.f32 %v1757, %v1759
        %v1761 = vadd.f32 %v1757, %v1760
        %vm1762 = vweird.f32 %v1756
        %vm1763 = vweird.f32 %v1757
        %vm1764 = vmor %vm1762, %vm1763
        %v1765 = vsel %vm1764, %v1757, %v1761
        %v1766 = vand.u32 2147483647, %v1756
        %vm1767 = vcmp.eq.f32.partialorder %v1766, 8.507059e+37
        %v1768 = vand.u32 %v1756, 2147483648
        %v1769 = vor.u32 1.1754944e-38, %v1768
        %v1770 = vsel %vm1767, %v1769, %v1765
        %v1771 = vmul.f32 %v1755, %v1770
        %v1773 = vperm.slane %v1729, 0
        %v1775 = vadd.f32 %v1771, %v1773
        %s1776 = scalar_lea.vmem %s13, 32
        %v1777 = vld [vmem:[%s1776] sm:$0xff]
        %v1778 = vld [vmem:[%s1776 + $0x8] sm:$0xff]
        %v1779 = vld [vmem:[%s1776 + $0x10] sm:$0xff]
        %v1780 = vld [vmem:[%s1776 + $0x18] sm:$0xff]
        %s1781 = scalar_lea.vmem %s15, 1
        %v1782 = vld [vmem:[%s1781] sm:$0x1]
        %s1783 = scalar_lea.vmem %s17, 32
        %v1784 = vld [vmem:[%s1783] sm:$0xff]
        %v1785 = vld [vmem:[%s1783 + $0x8] sm:$0xff]
        %v1786 = vld [vmem:[%s1783 + $0x10] sm:$0xff]
        %v1787 = vld [vmem:[%s1783 + $0x18] sm:$0xff]
        %s1788 = scalar_lea.vmem %s19, 1
        %v1789 = vld [vmem:[%s1788] sm:$0x1]
        %v1791 = vperm.slane %v1782, 0
        %v1794 = vsel %vm1203, %v1775, 0
        %1796 = vmatpush.msra.mxu0 0.0
        %1797 = vmatpush.msra.mxu0 0.0
        %1798 = vmatpush.msra.mxu0 0.0
        %1799 = vmatpush.msra.mxu0 0.0
        %1800 = vmatpush.msra.mxu0 0.0
        %1801 = vmatpush.msra.mxu0 0.0
        %1802 = vmatpush.msra.mxu0 0.0
        %1803 = vmatpush.msra.mxu0 0.0
        %1804 = vmatpush.msra.mxu0 0.0
        %1805 = vmatpush.msra.mxu0 0.0
        %1806 = vmatpush.msra.mxu0 0.0
        %1807 = vmatpush.msra.mxu0 0.0
        %1808 = vmatpush.msra.mxu0 %v1780
        %1809 = vmatpush.msra.mxu0 %v1779
        %1810 = vmatpush.msra.mxu0 %v1778
        %1811 = vmatpush.msra.mxu0 %v1777
        %1812 = vmatmul.f32.gmra.mxu0 %v1794
        %v1813 = vpop.f32.mrf.mxu0
        %v1814 = vadd.f32 %v1791, %v1813
        %1815 = vdwg.mxu0
        %1817 = vrot.lane.b32.xlu0 %v1814, 96
        %v1818 = vpop.permute.xlu0 %1817
        %v1819 = vsel %vm1296, %v1814, 0
        %v1821 = vsel %vm1296, %v1818, 0
        %1823 = vmatpush.xpose.msra.mxu0 0.0
        %1824 = vmatpush.xpose.msra.mxu0 0.0
        %1825 = vmatpush.xpose.msra.mxu0 0.0
        %1826 = vmatpush.xpose.msra.mxu0 0.0
        %1827 = vmatpush.xpose.msra.mxu0 0.0
        %1828 = vmatpush.xpose.msra.mxu0 0.0
        %1829 = vmatpush.xpose.msra.mxu0 0.0
        %1830 = vmatpush.xpose.msra.mxu0 0.0
        %1831 = vmatpush.xpose.msra.mxu0 0.0
        %1832 = vmatpush.xpose.msra.mxu0 0.0
        %1833 = vmatpush.xpose.msra.mxu0 0.0
        %1834 = vmatpush.xpose.msra.mxu0 0.0
        %1835 = vmatpush.xpose.msra.mxu0 0.0
        %1836 = vmatpush.xpose.msra.mxu0 0.0
        %1837 = vmatpush.xpose.msra.mxu0 0.0
        %1838 = vmatpush.xpose.msra.mxu0 %v1821
        %1839 = vmatmul.f32.gmra.mxu0 %v1819
        %v1840 = vpop.f32.mrf.mxu0
        %v1841 = vadd.f32 0.0, %v1840
        %1842 = vdwg.mxu0
        %v1843 = vmul.f32 %v1841, 0.35355338
        %v1844 = vsel %vm1325, -1e+09, %v1843
        %v1845 = vsel %vm1296, %v1844, -inf
        %1846 = vmax.xlane.f32.xlu0 %v1845
        %v1847 = vpop.xlane.xlu0 %1846
        %v1848 = vsub.f32 %v1844, %v1847
        %v1849 = vmul.f32 %v1848, 1.442695
        %v1850 = vpow.pop %v1849
        %v1851 = vsel %vm1296, %v1850, 0.0
        %1852 = vadd.xlane.f32.xlu0 %v1851
        %v1853 = vpop.xlane.xlu0 %1852
        %v1854 = vrcp.pop %v1853
        %v1855 = vmul.f32 %v1850, %v1854
        %1856 = vrot.lane.b32.xlu0 %v1814, 64
        %v1857 = vpop.permute.xlu0 %1856
        %v1860 = vsel %vm1296, %v1855, 0
        %1862 = vmatpush.msra.mxu0 0.0
        %1863 = vmatpush.msra.mxu0 0.0
        %1864 = vmatpush.msra.mxu0 0.0
        %1865 = vmatpush.msra.mxu0 0.0
        %1866 = vmatpush.msra.mxu0 0.0
        %1867 = vmatpush.msra.mxu0 0.0
        %1868 = vmatpush.msra.mxu0 0.0
        %1869 = vmatpush.msra.mxu0 0.0
        %1870 = vmatpush.msra.mxu0 0.0
        %1871 = vmatpush.msra.mxu0 0.0
        %1872 = vmatpush.msra.mxu0 0.0
        %1873 = vmatpush.msra.mxu0 0.0
        %1874 = vmatpush.msra.mxu0 0.0
        %1875 = vmatpush.msra.mxu0 0.0
        %1876 = vmatpush.msra.mxu0 0.0
        %1877 = vmatpush.msra.mxu0 %v1857
        %1878 = vmatmul.f32.gmra.mxu0 %v1860
        %v1879 = vpop.f32.mrf.mxu0
        %v1880 = vadd.f32 0.0, %v1879
        %1881 = vdwg.mxu0
        %1882 = vrot.lane.b32.xlu0 %v1814, 120
        %v1883 = vpop.permute.xlu0 %1882
        %1884 = vrot.lane.b32.xlu0 %v1814, 88
        %v1885 = vpop.permute.xlu0 %1884
        %v1886 = vsel %vm1296, %v1883, 0
        %v1888 = vsel %vm1296, %v1885, 0
        %1890 = vmatpush.xpose.msra.mxu0 0.0
        %1891 = vmatpush.xpose.msra.mxu0 0.0
        %1892 = vmatpush.xpose.msra.mxu0 0.0
        %1893 = vmatpush.xpose.msra.mxu0 0.0
        %1894 = vmatpush.xpose.msra.mxu0 0.0
        %1895 = vmatpush.xpose.msra.mxu0 0.0
        %1896 = vmatpush.xpose.msra.mxu0 0.0
        %1897 = vmatpush.xpose.msra.mxu0 0.0
        %1898 = vmatpush.xpose.msra.mxu0 0.0
        %1899 = vmatpush.xpose.msra.mxu0 0.0
        %1900 = vmatpush.xpose.msra.mxu0 0.0
        %1901 = vmatpush.xpose.msra.mxu0 0.0
        %1902 = vmatpush.xpose.msra.mxu0 0.0
        %1903 = vmatpush.xpose.msra.mxu0 0.0
        %1904 = vmatpush.xpose.msra.mxu0 0.0
        %1905 = vmatpush.xpose.msra.mxu0 %v1888
        %1906 = vmatmul.f32.gmra.mxu0 %v1886
        %v1907 = vpop.f32.mrf.mxu0
        %v1908 = vadd.f32 0.0, %v1907
        %1909 = vdwg.mxu0
        %v1910 = vmul.f32 %v1908, 0.35355338
        %v1911 = vsel %vm1325, -1e+09, %v1910
        %v1912 = vsel %vm1296, %v1911, -inf
        %1913 = vmax.xlane.f32.xlu0 %v1912
        %v1914 = vpop.xlane.xlu0 %1913
        %v1915 = vsub.f32 %v1911, %v1914
        %v1916 = vmul.f32 %v1915, 1.442695
        %v1917 = vpow.pop %v1916
        %v1918 = vsel %vm1296, %v1917, 0.0
        %1919 = vadd.xlane.f32.xlu0 %v1918
        %v1920 = vpop.xlane.xlu0 %1919
        %v1921 = vrcp.pop %v1920
        %v1922 = vmul.f32 %v1917, %v1921
        %1923 = vrot.lane.b32.xlu0 %v1814, 56
        %v1924 = vpop.permute.xlu0 %1923
        %v1927 = vsel %vm1296, %v1922, 0
        %1929 = vmatpush.msra.mxu0 0.0
        %1930 = vmatpush.msra.mxu0 0.0
        %1931 = vmatpush.msra.mxu0 0.0
        %1932 = vmatpush.msra.mxu0 0.0
        %1933 = vmatpush.msra.mxu0 0.0
        %1934 = vmatpush.msra.mxu0 0.0
        %1935 = vmatpush.msra.mxu0 0.0
        %1936 = vmatpush.msra.mxu0 0.0
        %1937 = vmatpush.msra.mxu0 0.0
        %1938 = vmatpush.msra.mxu0 0.0
        %1939 = vmatpush.msra.mxu0 0.0
        %1940 = vmatpush.msra.mxu0 0.0
        %1941 = vmatpush.msra.mxu0 0.0
        %1942 = vmatpush.msra.mxu0 0.0
        %1943 = vmatpush.msra.mxu0 0.0
        %1944 = vmatpush.msra.mxu0 %v1924
        %1945 = vmatmul.f32.gmra.mxu0 %v1927
        %v1946 = vpop.f32.mrf.mxu0
        %v1947 = vadd.f32 0.0, %v1946
        %1948 = vdwg.mxu0
        %1949 = vrot.lane.b32.xlu0 %v1814, 112
        %v1950 = vpop.permute.xlu0 %1949
        %1951 = vrot.lane.b32.xlu0 %v1814, 80
        %v1952 = vpop.permute.xlu0 %1951
        %v1953 = vsel %vm1296, %v1950, 0
        %v1955 = vsel %vm1296, %v1952, 0
        %1957 = vmatpush.xpose.msra.mxu0 0.0
        %1958 = vmatpush.xpose.msra.mxu0 0.0
        %1959 = vmatpush.xpose.msra.mxu0 0.0
        %1960 = vmatpush.xpose.msra.mxu0 0.0
        %1961 = vmatpush.xpose.msra.mxu0 0.0
        %1962 = vmatpush.xpose.msra.mxu0 0.0
        %1963 = vmatpush.xpose.msra.mxu0 0.0
        %1964 = vmatpush.xpose.msra.mxu0 0.0
        %1965 = vmatpush.xpose.msra.mxu0 0.0
        %1966 = vmatpush.xpose.msra.mxu0 0.0
        %1967 = vmatpush.xpose.msra.mxu0 0.0
        %1968 = vmatpush.xpose.msra.mxu0 0.0
        %1969 = vmatpush.xpose.msra.mxu0 0.0
        %1970 = vmatpush.xpose.msra.mxu0 0.0
        %1971 = vmatpush.xpose.msra.mxu0 0.0
        %1972 = vmatpush.xpose.msra.mxu0 %v1955
        %1973 = vmatmul.f32.gmra.mxu0 %v1953
        %v1974 = vpop.f32.mrf.mxu0
        %v1975 = vadd.f32 0.0, %v1974
        %1976 = vdwg.mxu0
        %v1977 = vmul.f32 %v1975, 0.35355338
        %v1978 = vsel %vm1325, -1e+09, %v1977
        %v1979 = vsel %vm1296, %v1978, -inf
        %1980 = vmax.xlane.f32.xlu0 %v1979
        %v1981 = vpop.xlane.xlu0 %1980
        %v1982 = vsub.f32 %v1978, %v1981
        %v1983 = vmul.f32 %v1982, 1.442695
        %v1984 = vpow.pop %v1983
        %v1985 = vsel %vm1296, %v1984, 0.0
        %1986 = vadd.xlane.f32.xlu0 %v1985
        %v1987 = vpop.xlane.xlu0 %1986
        %v1988 = vrcp.pop %v1987
        %v1989 = vmul.f32 %v1984, %v1988
        %1990 = vrot.lane.b32.xlu0 %v1814, 48
        %v1991 = vpop.permute.xlu0 %1990
        %v1994 = vsel %vm1296, %v1989, 0
        %1996 = vmatpush.msra.mxu0 0.0
        %1997 = vmatpush.msra.mxu0 0.0
        %1998 = vmatpush.msra.mxu0 0.0
        %1999 = vmatpush.msra.mxu0 0.0
        %2000 = vmatpush.msra.mxu0 0.0
        %2001 = vmatpush.msra.mxu0 0.0
        %2002 = vmatpush.msra.mxu0 0.0
        %2003 = vmatpush.msra.mxu0 0.0
        %2004 = vmatpush.msra.mxu0 0.0
        %2005 = vmatpush.msra.mxu0 0.0
        %2006 = vmatpush.msra.mxu0 0.0
        %2007 = vmatpush.msra.mxu0 0.0
        %2008 = vmatpush.msra.mxu0 0.0
        %2009 = vmatpush.msra.mxu0 0.0
        %2010 = vmatpush.msra.mxu0 0.0
        %2011 = vmatpush.msra.mxu0 %v1991
        %2012 = vmatmul.f32.gmra.mxu0 %v1994
        %v2013 = vpop.f32.mrf.mxu0
        %v2014 = vadd.f32 0.0, %v2013
        %2015 = vdwg.mxu0
        %2016 = vrot.lane.b32.xlu0 %v1814, 104
        %v2017 = vpop.permute.xlu0 %2016
        %2018 = vrot.lane.b32.xlu0 %v1814, 72
        %v2019 = vpop.permute.xlu0 %2018
        %v2020 = vsel %vm1296, %v2017, 0
        %v2022 = vsel %vm1296, %v2019, 0
        %2024 = vmatpush.xpose.msra.mxu0 0.0
        %2025 = vmatpush.xpose.msra.mxu0 0.0
        %2026 = vmatpush.xpose.msra.mxu0 0.0
        %2027 = vmatpush.xpose.msra.mxu0 0.0
        %2028 = vmatpush.xpose.msra.mxu0 0.0
        %2029 = vmatpush.xpose.msra.mxu0 0.0
        %2030 = vmatpush.xpose.msra.mxu0 0.0
        %2031 = vmatpush.xpose.msra.mxu0 0.0
        %2032 = vmatpush.xpose.msra.mxu0 0.0
        %2033 = vmatpush.xpose.msra.mxu0 0.0
        %2034 = vmatpush.xpose.msra.mxu0 0.0
        %2035 = vmatpush.xpose.msra.mxu0 0.0
        %2036 = vmatpush.xpose.msra.mxu0 0.0
        %2037 = vmatpush.xpose.msra.mxu0 0.0
        %2038 = vmatpush.xpose.msra.mxu0 0.0
        %2039 = vmatpush.xpose.msra.mxu0 %v2022
        %2040 = vmatmul.f32.gmra.mxu0 %v2020
        %v2041 = vpop.f32.mrf.mxu0
        %v2042 = vadd.f32 0.0, %v2041
        %2043 = vdwg.mxu0
        %v2044 = vmul.f32 %v2042, 0.35355338
        %v2045 = vsel %vm1325, -1e+09, %v2044
        %v2046 = vsel %vm1296, %v2045, -inf
        %2047 = vmax.xlane.f32.xlu0 %v2046
        %v2048 = vpop.xlane.xlu0 %2047
        %v2049 = vsub.f32 %v2045, %v2048
        %v2050 = vmul.f32 %v2049, 1.442695
        %v2051 = vpow.pop %v2050
        %v2052 = vsel %vm1296, %v2051, 0.0
        %2053 = vadd.xlane.f32.xlu0 %v2052
        %v2054 = vpop.xlane.xlu0 %2053
        %v2055 = vrcp.pop %v2054
        %v2056 = vmul.f32 %v2051, %v2055
        %2057 = vrot.lane.b32.xlu0 %v1814, 40
        %v2058 = vpop.permute.xlu0 %2057
        %v2061 = vsel %vm1296, %v2056, 0
        %2063 = vmatpush.msra.mxu0 0.0
        %2064 = vmatpush.msra.mxu0 0.0
        %2065 = vmatpush.msra.mxu0 0.0
        %2066 = vmatpush.msra.mxu0 0.0
        %2067 = vmatpush.msra.mxu0 0.0
        %2068 = vmatpush.msra.mxu0 0.0
        %2069 = vmatpush.msra.mxu0 0.0
        %2070 = vmatpush.msra.mxu0 0.0
        %2071 = vmatpush.msra.mxu0 0.0
        %2072 = vmatpush.msra.mxu0 0.0
        %2073 = vmatpush.msra.mxu0 0.0
        %2074 = vmatpush.msra.mxu0 0.0
        %2075 = vmatpush.msra.mxu0 0.0
        %2076 = vmatpush.msra.mxu0 0.0
        %2077 = vmatpush.msra.mxu0 0.0
        %2078 = vmatpush.msra.mxu0 %v2058
        %2079 = vmatmul.f32.gmra.mxu0 %v2061
        %v2080 = vpop.f32.mrf.mxu0
        %v2081 = vadd.f32 0.0, %v2080
        %2082 = vdwg.mxu0
        %2084 = vrot.lane.b32.xlu0 %v1947, 8
        %v2085 = vpop.permute.xlu0 %2084
        %2088 = vrot.lane.b32.xlu0 %v2014, 16
        %v2089 = vpop.permute.xlu0 %2088
        %2092 = vrot.lane.b32.xlu0 %v2081, 24
        %v2093 = vpop.permute.xlu0 %2092
        %v2095 = vsel %vm1296, %v1880, %v2085
        %v2096 = vsel %vm1578, %v2095, %v2089
        %v2097 = vsel %vm1580, %v2096, %v2093
        %v2099 = vperm.slane %v1789, 0
        %v2102 = vsel %vm1203, %v2097, 0
        %2104 = vmatpush.msra.mxu0 0.0
        %2105 = vmatpush.msra.mxu0 0.0
        %2106 = vmatpush.msra.mxu0 0.0
        %2107 = vmatpush.msra.mxu0 0.0
        %2108 = vmatpush.msra.mxu0 0.0
        %2109 = vmatpush.msra.mxu0 0.0
        %2110 = vmatpush.msra.mxu0 0.0
        %2111 = vmatpush.msra.mxu0 0.0
        %2112 = vmatpush.msra.mxu0 0.0
        %2113 = vmatpush.msra.mxu0 0.0
        %2114 = vmatpush.msra.mxu0 0.0
        %2115 = vmatpush.msra.mxu0 0.0
        %2116 = vmatpush.msra.mxu0 %v1787
        %2117 = vmatpush.msra.mxu0 %v1786
        %2118 = vmatpush.msra.mxu0 %v1785
        %2119 = vmatpush.msra.mxu0 %v1784
        %2120 = vmatmul.f32.gmra.mxu0 %v2102
        %v2121 = vpop.f32.mrf.mxu0
        %v2122 = vadd.f32 %v2099, %v2121
        %2123 = vdwg.mxu0
        %v2124 = vadd.f32 %v1725, %v2122
        %s2125 = scalar_lea.vmem %s21, 1
        %v2126 = vld [vmem:[%s2125] sm:$0x1]
        %s2127 = scalar_lea.vmem %s23, 1
        %v2128 = vld [vmem:[%s2127] sm:$0x1]
        %v2129 = vsel %vm1203, %v2124, 0.0
        %2130 = vadd.xlane.f32.xlu0 %v2129
        %v2131 = vpop.xlane.xlu0 %2130
        %v2132 = vmul.f32 %v2131, %v1213
        %v2133 = vsub.f32 %v2124, %v2132
        %v2134 = vmul.f32 %v2133, %v2133
        %v2135 = vsel %vm1203, %v2134, 0.0
        %2136 = vadd.xlane.f32.xlu0 %v2135
        %v2137 = vpop.xlane.xlu0 %2136
        %v2138 = vmul.f32 %v2137, 0.032258064
        %v2139 = vrsqrt.pop %v2138
        %v2140 = vmul.f32 %v2139, %v2138
        %v2141 = vmul.f32 %v2140, %v2139
        %v2142 = vmul.f32 0.5, %v2141
        %v2143 = vsub.f32 1.5, %v2142
        %v2144 = vmul.f32 %v2139, %v2143
        %v2145 = vmul.f32 %v2138, %v2144
        %vm2146 = vcmp.eq.f32.partialorder %v2138, inf
        %v2147 = vsel %vm2146, %v2138, %v2145
        %vm2148 = vcmp.eq.f32.partialorder %v2138, 0.0
        %v2149 = vand.u32 %v2138, 2147483648
        %v2150 = vsel %vm2148, %v2149, %v2147
        %v2152 = vperm.slane %v2126, 0
        %v2154 = vmul.f32 %v2152, %v2133
        %v2155 = vadd.f32 %v2150, 1e-06
        %v2156 = vrcp.pop %v2155
        %v2157 = vmul.f32 %v2155, %v2156
        %v2158 = vsub.f32 1.0, %v2157
        %v2159 = vmul.f32 %v2156, %v2158
        %v2160 = vadd.f32 %v2156, %v2159
        %vm2161 = vweird.f32 %v2155
        %vm2162 = vweird.f32 %v2156
        %vm2163 = vmor %vm2161, %vm2162
        %v2164 = vsel %vm2163, %v2156, %v2160
        %v2165 = vand.u32 2147483647, %v2155
        %vm2166 = vcmp.eq.f32.partialorder %v2165, 8.507059e+37
        %v2167 = vand.u32 %v2155, 2147483648
        %v2168 = vor.u32 1.1754944e-38, %v2167
        %v2169 = vsel %vm2166, %v2168, %v2164
        %v2170 = vmul.f32 %v2154, %v2169
        %v2172 = vperm.slane %v2128, 0
        %v2174 = vadd.f32 %v2170, %v2172
        %s2175 = scalar_lea.vmem %s25, 32
        %v2176 = vld [vmem:[%s2175] sm:$0xff]
        %v2177 = vld [vmem:[%s2175 + $0x8] sm:$0xff]
        %v2178 = vld [vmem:[%s2175 + $0x10] sm:$0xff]
        %v2179 = vld [vmem:[%s2175 + $0x18] sm:$0xff]
        %s2180 = scalar_lea.vmem %s27, 1
        %v2181 = vld [vmem:[%s2180] sm:$0x1]
        %s2182 = scalar_lea.vmem %s29, 64
        %v2183 = vld [vmem:[%s2182] sm:$0xff]
        %v2184 = vld [vmem:[%s2182 + $0x8] sm:$0xff]
        %v2185 = vld [vmem:[%s2182 + $0x10] sm:$0xff]
        %v2186 = vld [vmem:[%s2182 + $0x18] sm:$0xff]
        %v2187 = vld [vmem:[%s2182 + $0x20] sm:$0xff]
        %v2188 = vld [vmem:[%s2182 + $0x28] sm:$0xff]
        %v2189 = vld [vmem:[%s2182 + $0x30] sm:$0xff]
        %v2190 = vld [vmem:[%s2182 + $0x38] sm:$0xff]
        %s2191 = scalar_lea.vmem %s31, 1
        %v2192 = vld [vmem:[%s2191] sm:$0x1]
        %v2194 = vperm.slane %v2181, 0
        %v2197 = vsel %vm1203, %v2174, 0
        %2199 = vmatpush.msra.mxu0 0.0
        %2200 = vmatpush.msra.mxu0 0.0
        %2201 = vmatpush.msra.mxu0 0.0
        %2202 = vmatpush.msra.mxu0 0.0
        %2203 = vmatpush.msra.mxu0 0.0
        %2204 = vmatpush.msra.mxu0 0.0
        %2205 = vmatpush.msra.mxu0 0.0
        %2206 = vmatpush.msra.mxu0 0.0
        %2207 = vmatpush.msra.mxu0 0.0
        %2208 = vmatpush.msra.mxu0 0.0
        %2209 = vmatpush.msra.mxu0 0.0
        %2210 = vmatpush.msra.mxu0 0.0
        %2211 = vmatpush.msra.mxu0 %v2179
        %2212 = vmatpush.msra.mxu0 %v2178
        %2213 = vmatpush.msra.mxu0 %v2177
        %2214 = vmatpush.msra.mxu0 %v2176
        %2215 = vmatmul.f32.gmra.mxu0 %v2197
        %v2216 = vpop.f32.mrf.mxu0
        %v2217 = vadd.f32 %v2194, %v2216
        %2218 = vdwg.mxu0
        %v2219 = vmax.f32 %v2217, 0.0
        %v2221 = vperm.slane %v2192, 0
        %v2224 = vsel %vm1701, %v2219, 0
        %2226 = vmatpush.msra.mxu0 0.0
        %2227 = vmatpush.msra.mxu0 0.0
        %2228 = vmatpush.msra.mxu0 0.0
        %2229 = vmatpush.msra.mxu0 0.0
        %2230 = vmatpush.msra.mxu0 0.0
        %2231 = vmatpush.msra.mxu0 0.0
        %2232 = vmatpush.msra.mxu0 0.0
        %2233 = vmatpush.msra.mxu0 0.0
        %2234 = vmatpush.msra.mxu0 %v2190
        %2235 = vmatpush.msra.mxu0 %v2189
        %2236 = vmatpush.msra.mxu0 %v2188
        %2237 = vmatpush.msra.mxu0 %v2187
        %2238 = vmatpush.msra.mxu0 %v2186
        %2239 = vmatpush.msra.mxu0 %v2185
        %2240 = vmatpush.msra.mxu0 %v2184
        %2241 = vmatpush.msra.mxu0 %v2183
        %2242 = vmatmul.f32.gmra.mxu0 %v2224
        %v2243 = vpop.f32.mrf.mxu0
        %v2244 = vadd.f32 %v2221, %v2243
        %2245 = vdwg.mxu0
        %v2246 = vadd.f32 %v2124, %v2244
        %v2247 = vld [vmem:[%s33] sm:$0x1]
        %v2248 = vld [vmem:[%s35] sm:$0x1]
        %v2249 = vsel %vm1203, %v2246, 0.0
        %2250 = vadd.xlane.f32.xlu0 %v2249
        %v2251 = vpop.xlane.xlu0 %2250
        %v2252 = vmul.f32 %v2251, %v1213
        %v2253 = vsub.f32 %v2246, %v2252
        %v2254 = vmul.f32 %v2253, %v2253
        %v2255 = vsel %vm1203, %v2254, 0.0
        %2256 = vadd.xlane.f32.xlu0 %v2255
        %v2257 = vpop.xlane.xlu0 %2256
        %v2258 = vmul.f32 %v2257, 0.032258064
        %v2259 = vrsqrt.pop %v2258
        %v2260 = vmul.f32 %v2259, %v2258
        %v2261 = vmul.f32 %v2260, %v2259
        %v2262 = vmul.f32 0.5, %v2261
        %v2263 = vsub.f32 1.5, %v2262
        %v2264 = vmul.f32 %v2259, %v2263
        %v2265 = vmul.f32 %v2258, %v2264
        %vm2266 = vcmp.eq.f32.partialorder %v2258, inf
        %v2267 = vsel %vm2266, %v2258, %v2265
        %vm2268 = vcmp.eq.f32.partialorder %v2258, 0.0
        %v2269 = vand.u32 %v2258, 2147483648
        %v2270 = vsel %vm2268, %v2269, %v2267
        %v2272 = vperm.slane %v2247, 0
        %v2274 = vmul.f32 %v2272, %v2253
        %v2275 = vadd.f32 %v2270, 1e-06
        %v2276 = vrcp.pop %v2275
        %v2277 = vmul.f32 %v2275, %v2276
        %v2278 = vsub.f32 1.0, %v2277
        %v2279 = vmul.f32 %v2276, %v2278
        %v2280 = vadd.f32 %v2276, %v2279
        %vm2281 = vweird.f32 %v2275
        %vm2282 = vweird.f32 %v2276
        %vm2283 = vmor %vm2281, %vm2282
        %v2284 = vsel %vm2283, %v2276, %v2280
        %v2285 = vand.u32 2147483647, %v2275
        %vm2286 = vcmp.eq.f32.partialorder %v2285, 8.507059e+37
        %v2287 = vand.u32 %v2275, 2147483648
        %v2288 = vor.u32 1.1754944e-38, %v2287
        %v2289 = vsel %vm2286, %v2288, %v2284
        %v2290 = vmul.f32 %v2274, %v2289
        %v2292 = vperm.slane %v2248, 0
        %v2294 = vadd.f32 %v2290, %v2292
        %v2295 = vld [vmem:[%s1190] sm:$0xff]
        %v2296 = vld [vmem:[%s37] sm:$0x1]
        %v2297 = vld [vmem:[%s39] sm:$0x1]
        %v2298 = vsel %vm1203, %v2295, 0.0
        %2299 = vadd.xlane.f32.xlu0 %v2298
        %v2300 = vpop.xlane.xlu0 %2299
        %v2301 = vmul.f32 %v2300, %v1213
        %v2302 = vsub.f32 %v2295, %v2301
        %v2303 = vmul.f32 %v2302, %v2302
        %v2304 = vsel %vm1203, %v2303, 0.0
        %2305 = vadd.xlane.f32.xlu0 %v2304
        %v2306 = vpop.xlane.xlu0 %2305
        %v2307 = vmul.f32 %v2306, 0.032258064
        %v2308 = vrsqrt.pop %v2307
        %v2309 = vmul.f32 %v2308, %v2307
        %v2310 = vmul.f32 %v2309, %v2308
        %v2311 = vmul.f32 0.5, %v2310
        %v2312 = vsub.f32 1.5, %v2311
        %v2313 = vmul.f32 %v2308, %v2312
        %v2314 = vmul.f32 %v2307, %v2313
        %vm2315 = vcmp.eq.f32.partialorder %v2307, inf
        %v2316 = vsel %vm2315, %v2307, %v2314
        %vm2317 = vcmp.eq.f32.partialorder %v2307, 0.0
        %v2318 = vand.u32 %v2307, 2147483648
        %v2319 = vsel %vm2317, %v2318, %v2316
        %v2321 = vperm.slane %v2296, 0
        %v2323 = vmul.f32 %v2321, %v2302
        %v2324 = vadd.f32 %v2319, 1e-06
        %v2325 = vrcp.pop %v2324
        %v2326 = vmul.f32 %v2324, %v2325
        %v2327 = vsub.f32 1.0, %v2326
        %v2328 = vmul.f32 %v2325, %v2327
        %v2329 = vadd.f32 %v2325, %v2328
        %vm2330 = vweird.f32 %v2324
        %vm2331 = vweird.f32 %v2325
        %vm2332 = vmor %vm2330, %vm2331
        %v2333 = vsel %vm2332, %v2325, %v2329
        %v2334 = vand.u32 2147483647, %v2324
        %vm2335 = vcmp.eq.f32.partialorder %v2334, 8.507059e+37
        %v2336 = vand.u32 %v2324, 2147483648
        %v2337 = vor.u32 1.1754944e-38, %v2336
        %v2338 = vsel %vm2335, %v2337, %v2333
        %v2339 = vmul.f32 %v2323, %v2338
        %v2341 = vperm.slane %v2297, 0
        %v2343 = vadd.f32 %v2339, %v2341
        %v2344 = vld [vmem:[%s41] sm:$0xff]
        %v2345 = vld [vmem:[%s41 + $0x8] sm:$0xff]
        %v2346 = vld [vmem:[%s41 + $0x10] sm:$0xff]
        %v2347 = vld [vmem:[%s41 + $0x18] sm:$0xff]
        %v2348 = vld [vmem:[%s43] sm:$0x1]
        %v2349 = vld [vmem:[%s45] sm:$0xff]
        %v2350 = vld [vmem:[%s45 + $0x8] sm:$0xff]
        %v2351 = vld [vmem:[%s45 + $0x10] sm:$0xff]
        %v2352 = vld [vmem:[%s45 + $0x18] sm:$0xff]
        %v2353 = vld [vmem:[%s47] sm:$0x1]
        %v2355 = vperm.slane %v2348, 0
        %v2358 = vsel %vm1203, %v2343, 0
        %2360 = vmatpush.msra.mxu0 0.0
        %2361 = vmatpush.msra.mxu0 0.0
        %2362 = vmatpush.msra.mxu0 0.0
        %2363 = vmatpush.msra.mxu0 0.0
        %2364 = vmatpush.msra.mxu0 0.0
        %2365 = vmatpush.msra.mxu0 0.0
        %2366 = vmatpush.msra.mxu0 0.0
        %2367 = vmatpush.msra.mxu0 0.0
        %2368 = vmatpush.msra.mxu0 0.0
        %2369 = vmatpush.msra.mxu0 0.0
        %2370 = vmatpush.msra.mxu0 0.0
        %2371 = vmatpush.msra.mxu0 0.0
        %2372 = vmatpush.msra.mxu0 %v2347
        %2373 = vmatpush.msra.mxu0 %v2346
        %2374 = vmatpush.msra.mxu0 %v2345
        %2375 = vmatpush.msra.mxu0 %v2344
        %2376 = vmatmul.f32.gmra.mxu0 %v2358
        %v2377 = vpop.f32.mrf.mxu0
        %v2378 = vadd.f32 %v2355, %v2377
        %2379 = vdwg.mxu0
        %2381 = vrot.lane.b32.xlu0 %v2378, 96
        %v2382 = vpop.permute.xlu0 %2381
        %v2383 = vsel %vm1296, %v2378, 0
        %v2385 = vsel %vm1296, %v2382, 0
        %2387 = vmatpush.xpose.msra.mxu0 0.0
        %2388 = vmatpush.xpose.msra.mxu0 0.0
        %2389 = vmatpush.xpose.msra.mxu0 0.0
        %2390 = vmatpush.xpose.msra.mxu0 0.0
        %2391 = vmatpush.xpose.msra.mxu0 0.0
        %2392 = vmatpush.xpose.msra.mxu0 0.0
        %2393 = vmatpush.xpose.msra.mxu0 0.0
        %2394 = vmatpush.xpose.msra.mxu0 0.0
        %2395 = vmatpush.xpose.msra.mxu0 0.0
        %2396 = vmatpush.xpose.msra.mxu0 0.0
        %2397 = vmatpush.xpose.msra.mxu0 0.0
        %2398 = vmatpush.xpose.msra.mxu0 0.0
        %2399 = vmatpush.xpose.msra.mxu0 0.0
        %2400 = vmatpush.xpose.msra.mxu0 0.0
        %2401 = vmatpush.xpose.msra.mxu0 0.0
        %2402 = vmatpush.xpose.msra.mxu0 %v2385
        %2403 = vmatmul.f32.gmra.mxu0 %v2383
        %v2404 = vpop.f32.mrf.mxu0
        %v2405 = vadd.f32 0.0, %v2404
        %2406 = vdwg.mxu0
        %v2407 = vmul.f32 %v2405, 0.35355338
        %vm2408 = vcmp.eq.f32.partialorder %v1199, 0.0
        %v2409 = vsel %vm2408, -1e+09, %v2407
        %v2410 = vsel %vm1296, %v2409, -inf
        %2411 = vmax.xlane.f32.xlu0 %v2410
        %v2412 = vpop.xlane.xlu0 %2411
        %v2413 = vsub.f32 %v2409, %v2412
        %v2414 = vmul.f32 %v2413, 1.442695
        %v2415 = vpow.pop %v2414
        %v2416 = vsel %vm1296, %v2415, 0.0
        %2417 = vadd.xlane.f32.xlu0 %v2416
        %v2418 = vpop.xlane.xlu0 %2417
        %v2419 = vrcp.pop %v2418
        %v2420 = vmul.f32 %v2415, %v2419
        %2421 = vrot.lane.b32.xlu0 %v2378, 64
        %v2422 = vpop.permute.xlu0 %2421
        %v2425 = vsel %vm1296, %v2420, 0
        %2427 = vmatpush.msra.mxu0 0.0
        %2428 = vmatpush.msra.mxu0 0.0
        %2429 = vmatpush.msra.mxu0 0.0
        %2430 = vmatpush.msra.mxu0 0.0
        %2431 = vmatpush.msra.mxu0 0.0
        %2432 = vmatpush.msra.mxu0 0.0
        %2433 = vmatpush.msra.mxu0 0.0
        %2434 = vmatpush.msra.mxu0 0.0
        %2435 = vmatpush.msra.mxu0 0.0
        %2436 = vmatpush.msra.mxu0 0.0
        %2437 = vmatpush.msra.mxu0 0.0
        %2438 = vmatpush.msra.mxu0 0.0
        %2439 = vmatpush.msra.mxu0 0.0
        %2440 = vmatpush.msra.mxu0 0.0
        %2441 = vmatpush.msra.mxu0 0.0
        %2442 = vmatpush.msra.mxu0 %v2422
        %2443 = vmatmul.f32.gmra.mxu0 %v2425
        %v2444 = vpop.f32.mrf.mxu0
        %v2445 = vadd.f32 0.0, %v2444
        %2446 = vdwg.mxu0
        %2447 = vrot.lane.b32.xlu0 %v2378, 120
        %v2448 = vpop.permute.xlu0 %2447
        %2449 = vrot.lane.b32.xlu0 %v2378, 88
        %v2450 = vpop.permute.xlu0 %2449
        %v2451 = vsel %vm1296, %v2448, 0
        %v2453 = vsel %vm1296, %v2450, 0
        %2455 = vmatpush.xpose.msra.mxu0 0.0
        %2456 = vmatpush.xpose.msra.mxu0 0.0
        %2457 = vmatpush.xpose.msra.mxu0 0.0
        %2458 = vmatpush.xpose.msra.mxu0 0.0
        %2459 = vmatpush.xpose.msra.mxu0 0.0
        %2460 = vmatpush.xpose.msra.mxu0 0.0
        %2461 = vmatpush.xpose.msra.mxu0 0.0
        %2462 = vmatpush.xpose.msra.mxu0 0.0
        %2463 = vmatpush.xpose.msra.mxu0 0.0
        %2464 = vmatpush.xpose.msra.mxu0 0.0
        %2465 = vmatpush.xpose.msra.mxu0 0.0
        %2466 = vmatpush.xpose.msra.mxu0 0.0
        %2467 = vmatpush.xpose.msra.mxu0 0.0
        %2468 = vmatpush.xpose.msra.mxu0 0.0
        %2469 = vmatpush.xpose.msra.mxu0 0.0
        %2470 = vmatpush.xpose.msra.mxu0 %v2453
        %2471 = vmatmul.f32.gmra.mxu0 %v2451
        %v2472 = vpop.f32.mrf.mxu0
        %v2473 = vadd.f32 0.0, %v2472
        %2474 = vdwg.mxu0
        %v2475 = vmul.f32 %v2473, 0.35355338
        %v2476 = vsel %vm2408, -1e+09, %v2475
        %v2477 = vsel %vm1296, %v2476, -inf
        %2478 = vmax.xlane.f32.xlu0 %v2477
        %v2479 = vpop.xlane.xlu0 %2478
        %v2480 = vsub.f32 %v2476, %v2479
        %v2481 = vmul.f32 %v2480, 1.442695
        %v2482 = vpow.pop %v2481
        %v2483 = vsel %vm1296, %v2482, 0.0
        %2484 = vadd.xlane.f32.xlu0 %v2483
        %v2485 = vpop.xlane.xlu0 %2484
        %v2486 = vrcp.pop %v2485
        %v2487 = vmul.f32 %v2482, %v2486
        %2488 = vrot.lane.b32.xlu0 %v2378, 56
        %v2489 = vpop.permute.xlu0 %2488
        %v2492 = vsel %vm1296, %v2487, 0
        %2494 = vmatpush.msra.mxu0 0.0
        %2495 = vmatpush.msra.mxu0 0.0
        %2496 = vmatpush.msra.mxu0 0.0
        %2497 = vmatpush.msra.mxu0 0.0
        %2498 = vmatpush.msra.mxu0 0.0
        %2499 = vmatpush.msra.mxu0 0.0
        %2500 = vmatpush.msra.mxu0 0.0
        %2501 = vmatpush.msra.mxu0 0.0
        %2502 = vmatpush.msra.mxu0 0.0
        %2503 = vmatpush.msra.mxu0 0.0
        %2504 = vmatpush.msra.mxu0 0.0
        %2505 = vmatpush.msra.mxu0 0.0
        %2506 = vmatpush.msra.mxu0 0.0
        %2507 = vmatpush.msra.mxu0 0.0
        %2508 = vmatpush.msra.mxu0 0.0
        %2509 = vmatpush.msra.mxu0 %v2489
        %2510 = vmatmul.f32.gmra.mxu0 %v2492
        %v2511 = vpop.f32.mrf.mxu0
        %v2512 = vadd.f32 0.0, %v2511
        %2513 = vdwg.mxu0
        %2514 = vrot.lane.b32.xlu0 %v2378, 112
        %v2515 = vpop.permute.xlu0 %2514
        %2516 = vrot.lane.b32.xlu0 %v2378, 80
        %v2517 = vpop.permute.xlu0 %2516
        %v2518 = vsel %vm1296, %v2515, 0
        %v2520 = vsel %vm1296, %v2517, 0
        %2522 = vmatpush.xpose.msra.mxu0 0.0
        %2523 = vmatpush.xpose.msra.mxu0 0.0
        %2524 = vmatpush.xpose.msra.mxu0 0.0
        %2525 = vmatpush.xpose.msra.mxu0 0.0
        %2526 = vmatpush.xpose.msra.mxu0 0.0
        %2527 = vmatpush.xpose.msra.mxu0 0.0
        %2528 = vmatpush.xpose.msra.mxu0 0.0
        %2529 = vmatpush.xpose.msra.mxu0 0.0
        %2530 = vmatpush.xpose.msra.mxu0 0.0
        %2531 = vmatpush.xpose.msra.mxu0 0.0
        %2532 = vmatpush.xpose.msra.mxu0 0.0
        %2533 = vmatpush.xpose.msra.mxu0 0.0
        %2534 = vmatpush.xpose.msra.mxu0 0.0
        %2535 = vmatpush.xpose.msra.mxu0 0.0
        %2536 = vmatpush.xpose.msra.mxu0 0.0
        %2537 = vmatpush.xpose.msra.mxu0 %v2520
        %2538 = vmatmul.f32.gmra.mxu0 %v2518
        %v2539 = vpop.f32.mrf.mxu0
        %v2540 = vadd.f32 0.0, %v2539
        %2541 = vdwg.mxu0
        %v2542 = vmul.f32 %v2540, 0.35355338
        %v2543 = vsel %vm2408, -1e+09, %v2542
        %v2544 = vsel %vm1296, %v2543, -inf
        %2545 = vmax.xlane.f32.xlu0 %v2544
        %v2546 = vpop.xlane.xlu0 %2545
        %v2547 = vsub.f32 %v2543, %v2546
        %v2548 = vmul.f32 %v2547, 1.442695
        %v2549 = vpow.pop %v2548
        %v2550 = vsel %vm1296, %v2549, 0.0
        %2551 = vadd.xlane.f32.xlu0 %v2550
        %v2552 = vpop.xlane.xlu0 %2551
        %v2553 = vrcp.pop %v2552
        %v2554 = vmul.f32 %v2549, %v2553
        %2555 = vrot.lane.b32.xlu0 %v2378, 48
        %v2556 = vpop.permute.xlu0 %2555
        %v2559 = vsel %vm1296, %v2554, 0
        %2561 = vmatpush.msra.mxu0 0.0
        %2562 = vmatpush.msra.mxu0 0.0
        %2563 = vmatpush.msra.mxu0 0.0
        %2564 = vmatpush.msra.mxu0 0.0
        %2565 = vmatpush.msra.mxu0 0.0
        %2566 = vmatpush.msra.mxu0 0.0
        %2567 = vmatpush.msra.mxu0 0.0
        %2568 = vmatpush.msra.mxu0 0.0
        %2569 = vmatpush.msra.mxu0 0.0
        %2570 = vmatpush.msra.mxu0 0.0
        %2571 = vmatpush.msra.mxu0 0.0
        %2572 = vmatpush.msra.mxu0 0.0
        %2573 = vmatpush.msra.mxu0 0.0
        %2574 = vmatpush.msra.mxu0 0.0
        %2575 = vmatpush.msra.mxu0 0.0
        %2576 = vmatpush.msra.mxu0 %v2556
        %2577 = vmatmul.f32.gmra.mxu0 %v2559
        %v2578 = vpop.f32.mrf.mxu0
        %v2579 = vadd.f32 0.0, %v2578
        %2580 = vdwg.mxu0
        %2581 = vrot.lane.b32.xlu0 %v2378, 104
        %v2582 = vpop.permute.xlu0 %2581
        %2583 = vrot.lane.b32.xlu0 %v2378, 72
        %v2584 = vpop.permute.xlu0 %2583
        %v2585 = vsel %vm1296, %v2582, 0
        %v2587 = vsel %vm1296, %v2584, 0
        %2589 = vmatpush.xpose.msra.mxu0 0.0
        %2590 = vmatpush.xpose.msra.mxu0 0.0
        %2591 = vmatpush.xpose.msra.mxu0 0.0
        %2592 = vmatpush.xpose.msra.mxu0 0.0
        %2593 = vmatpush.xpose.msra.mxu0 0.0
        %2594 = vmatpush.xpose.msra.mxu0 0.0
        %2595 = vmatpush.xpose.msra.mxu0 0.0
        %2596 = vmatpush.xpose.msra.mxu0 0.0
        %2597 = vmatpush.xpose.msra.mxu0 0.0
        %2598 = vmatpush.xpose.msra.mxu0 0.0
        %2599 = vmatpush.xpose.msra.mxu0 0.0
        %2600 = vmatpush.xpose.msra.mxu0 0.0
        %2601 = vmatpush.xpose.msra.mxu0 0.0
        %2602 = vmatpush.xpose.msra.mxu0 0.0
        %2603 = vmatpush.xpose.msra.mxu0 0.0
        %2604 = vmatpush.xpose.msra.mxu0 %v2587
        %2605 = vmatmul.f32.gmra.mxu0 %v2585
        %v2606 = vpop.f32.mrf.mxu0
        %v2607 = vadd.f32 0.0, %v2606
        %2608 = vdwg.mxu0
        %v2609 = vmul.f32 %v2607, 0.35355338
        %v2610 = vsel %vm2408, -1e+09, %v2609
        %v2611 = vsel %vm1296, %v2610, -inf
        %2612 = vmax.xlane.f32.xlu0 %v2611
        %v2613 = vpop.xlane.xlu0 %2612
        %v2614 = vsub.f32 %v2610, %v2613
        %v2615 = vmul.f32 %v2614, 1.442695
        %v2616 = vpow.pop %v2615
        %v2617 = vsel %vm1296, %v2616, 0.0
        %2618 = vadd.xlane.f32.xlu0 %v2617
        %v2619 = vpop.xlane.xlu0 %2618
        %v2620 = vrcp.pop %v2619
        %v2621 = vmul.f32 %v2616, %v2620
        %2622 = vrot.lane.b32.xlu0 %v2378, 40
        %v2623 = vpop.permute.xlu0 %2622
        %v2626 = vsel %vm1296, %v2621, 0
        %2628 = vmatpush.msra.mxu0 0.0
        %2629 = vmatpush.msra.mxu0 0.0
        %2630 = vmatpush.msra.mxu0 0.0
        %2631 = vmatpush.msra.mxu0 0.0
        %2632 = vmatpush.msra.mxu0 0.0
        %2633 = vmatpush.msra.mxu0 0.0
        %2634 = vmatpush.msra.mxu0 0.0
        %2635 = vmatpush.msra.mxu0 0.0
        %2636 = vmatpush.msra.mxu0 0.0
        %2637 = vmatpush.msra.mxu0 0.0
        %2638 = vmatpush.msra.mxu0 0.0
        %2639 = vmatpush.msra.mxu0 0.0
        %2640 = vmatpush.msra.mxu0 0.0
        %2641 = vmatpush.msra.mxu0 0.0
        %2642 = vmatpush.msra.mxu0 0.0
        %2643 = vmatpush.msra.mxu0 %v2623
        %2644 = vmatmul.f32.gmra.mxu0 %v2626
        %v2645 = vpop.f32.mrf.mxu0
        %v2646 = vadd.f32 0.0, %v2645
        %2647 = vdwg.mxu0
        %2649 = vrot.lane.b32.xlu0 %v2512, 8
        %v2650 = vpop.permute.xlu0 %2649
        %2653 = vrot.lane.b32.xlu0 %v2579, 16
        %v2654 = vpop.permute.xlu0 %2653
        %2657 = vrot.lane.b32.xlu0 %v2646, 24
        %v2658 = vpop.permute.xlu0 %2657
        %v2660 = vsel %vm1296, %v2445, %v2650
        %v2661 = vsel %vm1578, %v2660, %v2654
        %v2662 = vsel %vm1580, %v2661, %v2658
        %v2664 = vperm.slane %v2353, 0
        %v2667 = vsel %vm1203, %v2662, 0
        %2669 = vmatpush.msra.mxu0 0.0
        %2670 = vmatpush.msra.mxu0 0.0
        %2671 = vmatpush.msra.mxu0 0.0
        %2672 = vmatpush.msra.mxu0 0.0
        %2673 = vmatpush.msra.mxu0 0.0
        %2674 = vmatpush.msra.mxu0 0.0
        %2675 = vmatpush.msra.mxu0 0.0
        %2676 = vmatpush.msra.mxu0 0.0
        %2677 = vmatpush.msra.mxu0 0.0
        %2678 = vmatpush.msra.mxu0 0.0
        %2679 = vmatpush.msra.mxu0 0.0
        %2680 = vmatpush.msra.mxu0 0.0
        %2681 = vmatpush.msra.mxu0 %v2352
        %2682 = vmatpush.msra.mxu0 %v2351
        %2683 = vmatpush.msra.mxu0 %v2350
        %2684 = vmatpush.msra.mxu0 %v2349
        %2685 = vmatmul.f32.gmra.mxu0 %v2667
        %v2686 = vpop.f32.mrf.mxu0
        %v2687 = vadd.f32 %v2664, %v2686
        %2688 = vdwg.mxu0
        %v2689 = vadd.f32 %v2295, %v2687
        %v2690 = vld [vmem:[%s49] sm:$0x1]
        %v2691 = vld [vmem:[%s51] sm:$0x1]
        %v2692 = vsel %vm1203, %v2689, 0.0
        %2693 = vadd.xlane.f32.xlu0 %v2692
        %v2694 = vpop.xlane.xlu0 %2693
        %v2695 = vmul.f32 %v2694, %v1213
        %v2696 = vsub.f32 %v2689, %v2695
        %v2697 = vmul.f32 %v2696, %v2696
        %v2698 = vsel %vm1203, %v2697, 0.0
        %2699 = vadd.xlane.f32.xlu0 %v2698
        %v2700 = vpop.xlane.xlu0 %2699
        %v2701 = vmul.f32 %v2700, 0.032258064
        %v2702 = vrsqrt.pop %v2701
        %v2703 = vmul.f32 %v2702, %v2701
        %v2704 = vmul.f32 %v2703, %v2702
        %v2705 = vmul.f32 0.5, %v2704
        %v2706 = vsub.f32 1.5, %v2705
        %v2707 = vmul.f32 %v2702, %v2706
        %v2708 = vmul.f32 %v2701, %v2707
        %vm2709 = vcmp.eq.f32.partialorder %v2701, inf
        %v2710 = vsel %vm2709, %v2701, %v2708
        %vm2711 = vcmp.eq.f32.partialorder %v2701, 0.0
        %v2712 = vand.u32 %v2701, 2147483648
        %v2713 = vsel %vm2711, %v2712, %v2710
        %v2715 = vperm.slane %v2690, 0
        %v2717 = vmul.f32 %v2715, %v2696
        %v2718 = vadd.f32 %v2713, 1e-06
        %v2719 = vrcp.pop %v2718
        %v2720 = vmul.f32 %v2718, %v2719
        %v2721 = vsub.f32 1.0, %v2720
        %v2722 = vmul.f32 %v2719, %v2721
        %v2723 = vadd.f32 %v2719, %v2722
        %vm2724 = vweird.f32 %v2718
        %vm2725 = vweird.f32 %v2719
        %vm2726 = vmor %vm2724, %vm2725
        %v2727 = vsel %vm2726, %v2719, %v2723
        %v2728 = vand.u32 2147483647, %v2718
        %vm2729 = vcmp.eq.f32.partialorder %v2728, 8.507059e+37
        %v2730 = vand.u32 %v2718, 2147483648
        %v2731 = vor.u32 1.1754944e-38, %v2730
        %v2732 = vsel %vm2729, %v2731, %v2727
        %v2733 = vmul.f32 %v2717, %v2732
        %v2735 = vperm.slane %v2691, 0
        %v2737 = vadd.f32 %v2733, %v2735
        %v2738 = vld [vmem:[%s53] sm:$0xff]
        %v2739 = vld [vmem:[%s53 + $0x8] sm:$0xff]
        %v2740 = vld [vmem:[%s53 + $0x10] sm:$0xff]
        %v2741 = vld [vmem:[%s53 + $0x18] sm:$0xff]
        %v2742 = vld [vmem:[%s55] sm:$0x1]
        %v2743 = vld [vmem:[%s57] sm:$0xff]
        %v2744 = vld [vmem:[%s57 + $0x8] sm:$0xff]
        %v2745 = vld [vmem:[%s57 + $0x10] sm:$0xff]
        %v2746 = vld [vmem:[%s57 + $0x18] sm:$0xff]
        %v2747 = vld [vmem:[%s59] sm:$0x1]
        %v2749 = vperm.slane %v2742, 0
        %v2752 = vsel %vm1203, %v2737, 0
        %2754 = vmatpush.msra.mxu0 0.0
        %2755 = vmatpush.msra.mxu0 0.0
        %2756 = vmatpush.msra.mxu0 0.0
        %2757 = vmatpush.msra.mxu0 0.0
        %2758 = vmatpush.msra.mxu0 0.0
        %2759 = vmatpush.msra.mxu0 0.0
        %2760 = vmatpush.msra.mxu0 0.0
        %2761 = vmatpush.msra.mxu0 0.0
        %2762 = vmatpush.msra.mxu0 0.0
        %2763 = vmatpush.msra.mxu0 0.0
        %2764 = vmatpush.msra.mxu0 0.0
        %2765 = vmatpush.msra.mxu0 0.0
        %2766 = vmatpush.msra.mxu0 %v2741
        %2767 = vmatpush.msra.mxu0 %v2740
        %2768 = vmatpush.msra.mxu0 %v2739
        %2769 = vmatpush.msra.mxu0 %v2738
        %2770 = vmatmul.f32.gmra.mxu0 %v2752
        %v2771 = vpop.f32.mrf.mxu0
        %v2772 = vadd.f32 %v2749, %v2771
        %2773 = vdwg.mxu0
        %2778 = vrot.lane.b32.xlu0 %v2738, 96
        %v2779 = vpop.permute.xlu0 %2778
        %2780 = vrot.lane.b32.xlu0 %v2739, 96
        %v2781 = vpop.permute.xlu0 %2780
        %2782 = vrot.lane.b32.xlu0 %v2740, 96
        %v2783 = vpop.permute.xlu0 %2782
        %2784 = vrot.lane.b32.xlu0 %v2741, 96
        %v2785 = vpop.permute.xlu0 %2784
        %2790 = vrot.lane.b32.xlu0 %v2749, 96
        %v2791 = vpop.permute.xlu0 %2790
        %v2794 = vsel %vm1203, %v2294, 0
        %2796 = vmatpush.msra.mxu0 0.0
        %2797 = vmatpush.msra.mxu0 0.0
        %2798 = vmatpush.msra.mxu0 0.0
        %2799 = vmatpush.msra.mxu0 0.0
        %2800 = vmatpush.msra.mxu0 0.0
        %2801 = vmatpush.msra.mxu0 0.0
        %2802 = vmatpush.msra.mxu0 0.0
        %2803 = vmatpush.msra.mxu0 0.0
        %2804 = vmatpush.msra.mxu0 0.0
        %2805 = vmatpush.msra.mxu0 0.0
        %2806 = vmatpush.msra.mxu0 0.0
        %2807 = vmatpush.msra.mxu0 0.0
        %2808 = vmatpush.msra.mxu0 %v2785
        %2809 = vmatpush.msra.mxu0 %v2783
        %2810 = vmatpush.msra.mxu0 %v2781
        %2811 = vmatpush.msra.mxu0 %v2779
        %2812 = vmatmul.f32.gmra.mxu0 %v2794
        %v2813 = vpop.f32.mrf.mxu0
        %v2814 = vadd.f32 %v2791, %v2813
        %2815 = vdwg.mxu0
        %v2817 = vsel %vm1296, %v2772, 0
        %v2820 = vsel %vm1296, %v2814, 0
        %2822 = vmatpush.xpose.msra.mxu0 0.0
        %2823 = vmatpush.xpose.msra.mxu0 0.0
        %2824 = vmatpush.xpose.msra.mxu0 0.0
        %2825 = vmatpush.xpose.msra.mxu0 0.0
        %2826 = vmatpush.xpose.msra.mxu0 0.0
        %2827 = vmatpush.xpose.msra.mxu0 0.0
        %2828 = vmatpush.xpose.msra.mxu0 0.0
        %2829 = vmatpush.xpose.msra.mxu0 0.0
        %2830 = vmatpush.xpose.msra.mxu0 0.0
        %2831 = vmatpush.xpose.msra.mxu0 0.0
        %2832 = vmatpush.xpose.msra.mxu0 0.0
        %2833 = vmatpush.xpose.msra.mxu0 0.0
        %2834 = vmatpush.xpose.msra.mxu0 0.0
        %2835 = vmatpush.xpose.msra.mxu0 0.0
        %2836 = vmatpush.xpose.msra.mxu0 0.0
        %2837 = vmatpush.xpose.msra.mxu0 %v2820
        %2838 = vmatmul.f32.gmra.mxu0 %v2817
        %v2839 = vpop.f32.mrf.mxu0
        %v2840 = vadd.f32 0.0, %v2839
        %2841 = vdwg.mxu0
        %v2842 = vmul.f32 %v2840, 0.35355338
        %v2843 = vsel %vm1325, -1e+09, %v2842
        %v2844 = vsel %vm1296, %v2843, -inf
        %2845 = vmax.xlane.f32.xlu0 %v2844
        %v2846 = vpop.xlane.xlu0 %2845
        %v2847 = vsub.f32 %v2843, %v2846
        %v2848 = vmul.f32 %v2847, 1.442695
        %v2849 = vpow.pop %v2848
        %v2850 = vsel %vm1296, %v2849, 0.0
        %2851 = vadd.xlane.f32.xlu0 %v2850
        %v2852 = vpop.xlane.xlu0 %2851
        %v2853 = vrcp.pop %v2852
        %v2854 = vmul.f32 %v2849, %v2853
        %2855 = vrot.lane.b32.xlu0 %v2814, 96
        %v2856 = vpop.permute.xlu0 %2855
        %v2859 = vsel %vm1296, %v2854, 0
        %2861 = vmatpush.msra.mxu0 0.0
        %2862 = vmatpush.msra.mxu0 0.0
        %2863 = vmatpush.msra.mxu0 0.0
        %2864 = vmatpush.msra.mxu0 0.0
        %2865 = vmatpush.msra.mxu0 0.0
        %2866 = vmatpush.msra.mxu0 0.0
        %2867 = vmatpush.msra.mxu0 0.0
        %2868 = vmatpush.msra.mxu0 0.0
        %2869 = vmatpush.msra.mxu0 0.0
        %2870 = vmatpush.msra.mxu0 0.0
        %2871 = vmatpush.msra.mxu0 0.0
        %2872 = vmatpush.msra.mxu0 0.0
        %2873 = vmatpush.msra.mxu0 0.0
        %2874 = vmatpush.msra.mxu0 0.0
        %2875 = vmatpush.msra.mxu0 0.0
        %2876 = vmatpush.msra.mxu0 %v2856
        %2877 = vmatmul.f32.gmra.mxu0 %v2859
        %v2878 = vpop.f32.mrf.mxu0
        %v2879 = vadd.f32 0.0, %v2878
        %2880 = vdwg.mxu0
        %2881 = vrot.lane.b32.xlu0 %v2772, 120
        %v2882 = vpop.permute.xlu0 %2881
        %2883 = vrot.lane.b32.xlu0 %v2814, 120
        %v2884 = vpop.permute.xlu0 %2883
        %v2885 = vsel %vm1296, %v2882, 0
        %v2887 = vsel %vm1296, %v2884, 0
        %2889 = vmatpush.xpose.msra.mxu0 0.0
        %2890 = vmatpush.xpose.msra.mxu0 0.0
        %2891 = vmatpush.xpose.msra.mxu0 0.0
        %2892 = vmatpush.xpose.msra.mxu0 0.0
        %2893 = vmatpush.xpose.msra.mxu0 0.0
        %2894 = vmatpush.xpose.msra.mxu0 0.0
        %2895 = vmatpush.xpose.msra.mxu0 0.0
        %2896 = vmatpush.xpose.msra.mxu0 0.0
        %2897 = vmatpush.xpose.msra.mxu0 0.0
        %2898 = vmatpush.xpose.msra.mxu0 0.0
        %2899 = vmatpush.xpose.msra.mxu0 0.0
        %2900 = vmatpush.xpose.msra.mxu0 0.0
        %2901 = vmatpush.xpose.msra.mxu0 0.0
        %2902 = vmatpush.xpose.msra.mxu0 0.0
        %2903 = vmatpush.xpose.msra.mxu0 0.0
        %2904 = vmatpush.xpose.msra.mxu0 %v2887
        %2905 = vmatmul.f32.gmra.mxu0 %v2885
        %v2906 = vpop.f32.mrf.mxu0
        %v2907 = vadd.f32 0.0, %v2906
        %2908 = vdwg.mxu0
        %v2909 = vmul.f32 %v2907, 0.35355338
        %v2910 = vsel %vm1325, -1e+09, %v2909
        %v2911 = vsel %vm1296, %v2910, -inf
        %2912 = vmax.xlane.f32.xlu0 %v2911
        %v2913 = vpop.xlane.xlu0 %2912
        %v2914 = vsub.f32 %v2910, %v2913
        %v2915 = vmul.f32 %v2914, 1.442695
        %v2916 = vpow.pop %v2915
        %v2917 = vsel %vm1296, %v2916, 0.0
        %2918 = vadd.xlane.f32.xlu0 %v2917
        %v2919 = vpop.xlane.xlu0 %2918
        %v2920 = vrcp.pop %v2919
        %v2921 = vmul.f32 %v2916, %v2920
        %2922 = vrot.lane.b32.xlu0 %v2814, 88
        %v2923 = vpop.permute.xlu0 %2922
        %v2926 = vsel %vm1296, %v2921, 0
        %2928 = vmatpush.msra.mxu0 0.0
        %2929 = vmatpush.msra.mxu0 0.0
        %2930 = vmatpush.msra.mxu0 0.0
        %2931 = vmatpush.msra.mxu0 0.0
        %2932 = vmatpush.msra.mxu0 0.0
        %2933 = vmatpush.msra.mxu0 0.0
        %2934 = vmatpush.msra.mxu0 0.0
        %2935 = vmatpush.msra.mxu0 0.0
        %2936 = vmatpush.msra.mxu0 0.0
        %2937 = vmatpush.msra.mxu0 0.0
        %2938 = vmatpush.msra.mxu0 0.0
        %2939 = vmatpush.msra.mxu0 0.0
        %2940 = vmatpush.msra.mxu0 0.0
        %2941 = vmatpush.msra.mxu0 0.0
        %2942 = vmatpush.msra.mxu0 0.0
        %2943 = vmatpush.msra.mxu0 %v2923
        %2944 = vmatmul.f32.gmra.mxu0 %v2926
        %v2945 = vpop.f32.mrf.mxu0
        %v2946 = vadd.f32 0.0, %v2945
        %2947 = vdwg.mxu0
        %2948 = vrot.lane.b32.xlu0 %v2772, 112
        %v2949 = vpop.permute.xlu0 %2948
        %2950 = vrot.lane.b32.xlu0 %v2814, 112
        %v2951 = vpop.permute.xlu0 %2950
        %v2952 = vsel %vm1296, %v2949, 0
        %v2954 = vsel %vm1296, %v2951, 0
        %2956 = vmatpush.xpose.msra.mxu0 0.0
        %2957 = vmatpush.xpose.msra.mxu0 0.0
        %2958 = vmatpush.xpose.msra.mxu0 0.0
        %2959 = vmatpush.xpose.msra.mxu0 0.0
        %2960 = vmatpush.xpose.msra.mxu0 0.0
        %2961 = vmatpush.xpose.msra.mxu0 0.0
        %2962 = vmatpush.xpose.msra.mxu0 0.0
        %2963 = vmatpush.xpose.msra.mxu0 0.0
        %2964 = vmatpush.xpose.msra.mxu0 0.0
        %2965 = vmatpush.xpose.msra.mxu0 0.0
        %2966 = vmatpush.xpose.msra.mxu0 0.0
        %2967 = vmatpush.xpose.msra.mxu0 0.0
        %2968 = vmatpush.xpose.msra.mxu0 0.0
        %2969 = vmatpush.xpose.msra.mxu0 0.0
        %2970 = vmatpush.xpose.msra.mxu0 0.0
        %2971 = vmatpush.xpose.msra.mxu0 %v2954
        %2972 = vmatmul.f32.gmra.mxu0 %v2952
        %v2973 = vpop.f32.mrf.mxu0
        %v2974 = vadd.f32 0.0, %v2973
        %2975 = vdwg.mxu0
        %v2976 = vmul.f32 %v2974, 0.35355338
        %v2977 = vsel %vm1325, -1e+09, %v2976
        %v2978 = vsel %vm1296, %v2977, -inf
        %2979 = vmax.xlane.f32.xlu0 %v2978
        %v2980 = vpop.xlane.xlu0 %2979
        %v2981 = vsub.f32 %v2977, %v2980
        %v2982 = vmul.f32 %v2981, 1.442695
        %v2983 = vpow.pop %v2982
        %v2984 = vsel %vm1296, %v2983, 0.0
        %2985 = vadd.xlane.f32.xlu0 %v2984
        %v2986 = vpop.xlane.xlu0 %2985
        %v2987 = vrcp.pop %v2986
        %v2988 = vmul.f32 %v2983, %v2987
        %2989 = vrot.lane.b32.xlu0 %v2814, 80
        %v2990 = vpop.permute.xlu0 %2989
        %v2993 = vsel %vm1296, %v2988, 0
        %2995 = vmatpush.msra.mxu0 0.0
        %2996 = vmatpush.msra.mxu0 0.0
        %2997 = vmatpush.msra.mxu0 0.0
        %2998 = vmatpush.msra.mxu0 0.0
        %2999 = vmatpush.msra.mxu0 0.0
        %3000 = vmatpush.msra.mxu0 0.0
        %3001 = vmatpush.msra.mxu0 0.0
        %3002 = vmatpush.msra.mxu0 0.0
        %3003 = vmatpush.msra.mxu0 0.0
        %3004 = vmatpush.msra.mxu0 0.0
        %3005 = vmatpush.msra.mxu0 0.0
        %3006 = vmatpush.msra.mxu0 0.0
        %3007 = vmatpush.msra.mxu0 0.0
        %3008 = vmatpush.msra.mxu0 0.0
        %3009 = vmatpush.msra.mxu0 0.0
        %3010 = vmatpush.msra.mxu0 %v2990
        %3011 = vmatmul.f32.gmra.mxu0 %v2993
        %v3012 = vpop.f32.mrf.mxu0
        %v3013 = vadd.f32 0.0, %v3012
        %3014 = vdwg.mxu0
        %3015 = vrot.lane.b32.xlu0 %v2772, 104
        %v3016 = vpop.permute.xlu0 %3015
        %3017 = vrot.lane.b32.xlu0 %v2814, 104
        %v3018 = vpop.permute.xlu0 %3017
        %v3019 = vsel %vm1296, %v3016, 0
        %v3021 = vsel %vm1296, %v3018, 0
        %3023 = vmatpush.xpose.msra.mxu0 0.0
        %3024 = vmatpush.xpose.msra.mxu0 0.0
        %3025 = vmatpush.xpose.msra.mxu0 0.0
        %3026 = vmatpush.xpose.msra.mxu0 0.0
        %3027 = vmatpush.xpose.msra.mxu0 0.0
        %3028 = vmatpush.xpose.msra.mxu0 0.0
        %3029 = vmatpush.xpose.msra.mxu0 0.0
        %3030 = vmatpush.xpose.msra.mxu0 0.0
        %3031 = vmatpush.xpose.msra.mxu0 0.0
        %3032 = vmatpush.xpose.msra.mxu0 0.0
        %3033 = vmatpush.xpose.msra.mxu0 0.0
        %3034 = vmatpush.xpose.msra.mxu0 0.0
        %3035 = vmatpush.xpose.msra.mxu0 0.0
        %3036 = vmatpush.xpose.msra.mxu0 0.0
        %3037 = vmatpush.xpose.msra.mxu0 0.0
        %3038 = vmatpush.xpose.msra.mxu0 %v3021
        %3039 = vmatmul.f32.gmra.mxu0 %v3019
        %v3040 = vpop.f32.mrf.mxu0
        %v3041 = vadd.f32 0.0, %v3040
        %3042 = vdwg.mxu0
        %v3043 = vmul.f32 %v3041, 0.35355338
        %v3044 = vsel %vm1325, -1e+09, %v3043
        %v3045 = vsel %vm1296, %v3044, -inf
        %3046 = vmax.xlane.f32.xlu0 %v3045
        %v3047 = vpop.xlane.xlu0 %3046
        %v3048 = vsub.f32 %v3044, %v3047
        %v3049 = vmul.f32 %v3048, 1.442695
        %v3050 = vpow.pop %v3049
        %v3051 = vsel %vm1296, %v3050, 0.0
        %3052 = vadd.xlane.f32.xlu0 %v3051
        %v3053 = vpop.xlane.xlu0 %3052
        %v3054 = vrcp.pop %v3053
        %v3055 = vmul.f32 %v3050, %v3054
        %3056 = vrot.lane.b32.xlu0 %v2814, 72
        %v3057 = vpop.permute.xlu0 %3056
        %v3060 = vsel %vm1296, %v3055, 0
        %3062 = vmatpush.msra.mxu0 0.0
        %3063 = vmatpush.msra.mxu0 0.0
        %3064 = vmatpush.msra.mxu0 0.0
        %3065 = vmatpush.msra.mxu0 0.0
        %3066 = vmatpush.msra.mxu0 0.0
        %3067 = vmatpush.msra.mxu0 0.0
        %3068 = vmatpush.msra.mxu0 0.0
        %3069 = vmatpush.msra.mxu0 0.0
        %3070 = vmatpush.msra.mxu0 0.0
        %3071 = vmatpush.msra.mxu0 0.0
        %3072 = vmatpush.msra.mxu0 0.0
        %3073 = vmatpush.msra.mxu0 0.0
        %3074 = vmatpush.msra.mxu0 0.0
        %3075 = vmatpush.msra.mxu0 0.0
        %3076 = vmatpush.msra.mxu0 0.0
        %3077 = vmatpush.msra.mxu0 %v3057
        %3078 = vmatmul.f32.gmra.mxu0 %v3060
        %v3079 = vpop.f32.mrf.mxu0
        %v3080 = vadd.f32 0.0, %v3079
        %3081 = vdwg.mxu0
        %3083 = vrot.lane.b32.xlu0 %v2946, 8
        %v3084 = vpop.permute.xlu0 %3083
        %3087 = vrot.lane.b32.xlu0 %v3013, 16
        %v3088 = vpop.permute.xlu0 %3087
        %3091 = vrot.lane.b32.xlu0 %v3080, 24
        %v3092 = vpop.permute.xlu0 %3091
        %v3094 = vsel %vm1296, %v2879, %v3084
        %v3095 = vsel %vm1578, %v3094, %v3088
        %v3096 = vsel %vm1580, %v3095, %v3092
        %v3098 = vperm.slane %v2747, 0
        %v3101 = vsel %vm1203, %v3096, 0
        %3103 = vmatpush.msra.mxu0 0.0
        %3104 = vmatpush.msra.mxu0 0.0
        %3105 = vmatpush.msra.mxu0 0.0
        %3106 = vmatpush.msra.mxu0 0.0
        %3107 = vmatpush.msra.mxu0 0.0
        %3108 = vmatpush.msra.mxu0 0.0
        %3109 = vmatpush.msra.mxu0 0.0
        %3110 = vmatpush.msra.mxu0 0.0
        %3111 = vmatpush.msra.mxu0 0.0
        %3112 = vmatpush.msra.mxu0 0.0
        %3113 = vmatpush.msra.mxu0 0.0
        %3114 = vmatpush.msra.mxu0 0.0
        %3115 = vmatpush.msra.mxu0 %v2746
        %3116 = vmatpush.msra.mxu0 %v2745
        %3117 = vmatpush.msra.mxu0 %v2744
        %3118 = vmatpush.msra.mxu0 %v2743
        %3119 = vmatmul.f32.gmra.mxu0 %v3101
        %v3120 = vpop.f32.mrf.mxu0
        %v3121 = vadd.f32 %v3098, %v3120
        %3122 = vdwg.mxu0
        %v3123 = vadd.f32 %v2689, %v3121
        %v3124 = vld [vmem:[%s61] sm:$0x1]
        %v3125 = vld [vmem:[%s63] sm:$0x1]
        %v3126 = vsel %vm1203, %v3123, 0.0
        %3127 = vadd.xlane.f32.xlu0 %v3126
        %v3128 = vpop.xlane.xlu0 %3127
        %v3129 = vmul.f32 %v3128, %v1213
        %v3130 = vsub.f32 %v3123, %v3129
        %v3131 = vmul.f32 %v3130, %v3130
        %v3132 = vsel %vm1203, %v3131, 0.0
        %3133 = vadd.xlane.f32.xlu0 %v3132
        %v3134 = vpop.xlane.xlu0 %3133
        %v3135 = vmul.f32 %v3134, 0.032258064
        %v3136 = vrsqrt.pop %v3135
        %v3137 = vmul.f32 %v3136, %v3135
        %v3138 = vmul.f32 %v3137, %v3136
        %v3139 = vmul.f32 0.5, %v3138
        %v3140 = vsub.f32 1.5, %v3139
        %v3141 = vmul.f32 %v3136, %v3140
        %v3142 = vmul.f32 %v3135, %v3141
        %vm3143 = vcmp.eq.f32.partialorder %v3135, inf
        %v3144 = vsel %vm3143, %v3135, %v3142
        %vm3145 = vcmp.eq.f32.partialorder %v3135, 0.0
        %v3146 = vand.u32 %v3135, 2147483648
        %v3147 = vsel %vm3145, %v3146, %v3144
        %v3149 = vperm.slane %v3124, 0
        %v3151 = vmul.f32 %v3149, %v3130
        %v3152 = vadd.f32 %v3147, 1e-06
        %v3153 = vrcp.pop %v3152
        %v3154 = vmul.f32 %v3152, %v3153
        %v3155 = vsub.f32 1.0, %v3154
        %v3156 = vmul.f32 %v3153, %v3155
        %v3157 = vadd.f32 %v3153, %v3156
        %vm3158 = vweird.f32 %v3152
        %vm3159 = vweird.f32 %v3153
        %vm3160 = vmor %vm3158, %vm3159
        %v3161 = vsel %vm3160, %v3153, %v3157
        %v3162 = vand.u32 2147483647, %v3152
        %vm3163 = vcmp.eq.f32.partialorder %v3162, 8.507059e+37
        %v3164 = vand.u32 %v3152, 2147483648
        %v3165 = vor.u32 1.1754944e-38, %v3164
        %v3166 = vsel %vm3163, %v3165, %v3161
        %v3167 = vmul.f32 %v3151, %v3166
        %v3169 = vperm.slane %v3125, 0
        %v3171 = vadd.f32 %v3167, %v3169
        %v3172 = vld [vmem:[%s65] sm:$0xff]
        %v3173 = vld [vmem:[%s65 + $0x8] sm:$0xff]
        %v3174 = vld [vmem:[%s65 + $0x10] sm:$0xff]
        %v3175 = vld [vmem:[%s65 + $0x18] sm:$0xff]
        %v3176 = vld [vmem:[%s67] sm:$0x1]
        %v3177 = vld [vmem:[%s69] sm:$0xff]
        %v3178 = vld [vmem:[%s69 + $0x8] sm:$0xff]
        %v3179 = vld [vmem:[%s69 + $0x10] sm:$0xff]
        %v3180 = vld [vmem:[%s69 + $0x18] sm:$0xff]
        %v3181 = vld [vmem:[%s69 + $0x20] sm:$0xff]
        %v3182 = vld [vmem:[%s69 + $0x28] sm:$0xff]
        %v3183 = vld [vmem:[%s69 + $0x30] sm:$0xff]
        %v3184 = vld [vmem:[%s69 + $0x38] sm:$0xff]
        %v3185 = vld [vmem:[%s71] sm:$0x1]
        %v3187 = vperm.slane %v3176, 0
        %v3190 = vsel %vm1203, %v3171, 0
        %3192 = vmatpush.msra.mxu0 0.0
        %3193 = vmatpush.msra.mxu0 0.0
        %3194 = vmatpush.msra.mxu0 0.0
        %3195 = vmatpush.msra.mxu0 0.0
        %3196 = vmatpush.msra.mxu0 0.0
        %3197 = vmatpush.msra.mxu0 0.0
        %3198 = vmatpush.msra.mxu0 0.0
        %3199 = vmatpush.msra.mxu0 0.0
        %3200 = vmatpush.msra.mxu0 0.0
        %3201 = vmatpush.msra.mxu0 0.0
        %3202 = vmatpush.msra.mxu0 0.0
        %3203 = vmatpush.msra.mxu0 0.0
        %3204 = vmatpush.msra.mxu0 %v3175
        %3205 = vmatpush.msra.mxu0 %v3174
        %3206 = vmatpush.msra.mxu0 %v3173
        %3207 = vmatpush.msra.mxu0 %v3172
        %3208 = vmatmul.f32.gmra.mxu0 %v3190
        %v3209 = vpop.f32.mrf.mxu0
        %v3210 = vadd.f32 %v3187, %v3209
        %3211 = vdwg.mxu0
        %v3212 = vmax.f32 %v3210, 0.0
        %v3214 = vperm.slane %v3185, 0
        %v3217 = vsel %vm1701, %v3212, 0
        %3219 = vmatpush.msra.mxu0 0.0
        %3220 = vmatpush.msra.mxu0 0.0
        %3221 = vmatpush.msra.mxu0 0.0
        %3222 = vmatpush.msra.mxu0 0.0
        %3223 = vmatpush.msra.mxu0 0.0
        %3224 = vmatpush.msra.mxu0 0.0
        %3225 = vmatpush.msra.mxu0 0.0
        %3226 = vmatpush.msra.mxu0 0.0
        %3227 = vmatpush.msra.mxu0 %v3184
        %3228 = vmatpush.msra.mxu0 %v3183
        %3229 = vmatpush.msra.mxu0 %v3182
        %3230 = vmatpush.msra.mxu0 %v3181
        %3231 = vmatpush.msra.mxu0 %v3180
        %3232 = vmatpush.msra.mxu0 %v3179
        %3233 = vmatpush.msra.mxu0 %v3178
        %3234 = vmatpush.msra.mxu0 %v3177
        %3235 = vmatmul.f32.gmra.mxu0 %v3217
        %v3236 = vpop.f32.mrf.mxu0
        %v3237 = vadd.f32 %v3214, %v3236
        %3238 = vdwg.mxu0
        %v3239 = vadd.f32 %v3123, %v3237
        %s3240 = scalar_lea.vmem %s37, 1
        %v3241 = vld [vmem:[%s3240] sm:$0x1]
        %s3242 = scalar_lea.vmem %s39, 1
        %v3243 = vld [vmem:[%s3242] sm:$0x1]
        %v3244 = vsel %vm1203, %v3239, 0.0
        %3245 = vadd.xlane.f32.xlu0 %v3244
        %v3246 = vpop.xlane.xlu0 %3245
        %v3247 = vmul.f32 %v3246, %v1213
        %v3248 = vsub.f32 %v3239, %v3247
        %v3249 = vmul.f32 %v3248, %v3248
        %v3250 = vsel %vm1203, %v3249, 0.0
        %3251 = vadd.xlane.f32.xlu0 %v3250
        %v3252 = vpop.xlane.xlu0 %3251
        %v3253 = vmul.f32 %v3252, 0.032258064
        %v3254 = vrsqrt.pop %v3253
        %v3255 = vmul.f32 %v3254, %v3253
        %v3256 = vmul.f32 %v3255, %v3254
        %v3257 = vmul.f32 0.5, %v3256
        %v3258 = vsub.f32 1.5, %v3257
        %v3259 = vmul.f32 %v3254, %v3258
        %v3260 = vmul.f32 %v3253, %v3259
        %vm3261 = vcmp.eq.f32.partialorder %v3253, inf
        %v3262 = vsel %vm3261, %v3253, %v3260
        %vm3263 = vcmp.eq.f32.partialorder %v3253, 0.0
        %v3264 = vand.u32 %v3253, 2147483648
        %v3265 = vsel %vm3263, %v3264, %v3262
        %v3267 = vperm.slane %v3241, 0
        %v3269 = vmul.f32 %v3267, %v3248
        %v3270 = vadd.f32 %v3265, 1e-06
        %v3271 = vrcp.pop %v3270
        %v3272 = vmul.f32 %v3270, %v3271
        %v3273 = vsub.f32 1.0, %v3272
        %v3274 = vmul.f32 %v3271, %v3273
        %v3275 = vadd.f32 %v3271, %v3274
        %vm3276 = vweird.f32 %v3270
        %vm3277 = vweird.f32 %v3271
        %vm3278 = vmor %vm3276, %vm3277
        %v3279 = vsel %vm3278, %v3271, %v3275
        %v3280 = vand.u32 2147483647, %v3270
        %vm3281 = vcmp.eq.f32.partialorder %v3280, 8.507059e+37
        %v3282 = vand.u32 %v3270, 2147483648
        %v3283 = vor.u32 1.1754944e-38, %v3282
        %v3284 = vsel %vm3281, %v3283, %v3279
        %v3285 = vmul.f32 %v3269, %v3284
        %v3287 = vperm.slane %v3243, 0
        %v3289 = vadd.f32 %v3285, %v3287
        %s3290 = scalar_lea.vmem %s41, 32
        %v3291 = vld [vmem:[%s3290] sm:$0xff]
        %v3292 = vld [vmem:[%s3290 + $0x8] sm:$0xff]
        %v3293 = vld [vmem:[%s3290 + $0x10] sm:$0xff]
        %v3294 = vld [vmem:[%s3290 + $0x18] sm:$0xff]
        %s3295 = scalar_lea.vmem %s43, 1
        %v3296 = vld [vmem:[%s3295] sm:$0x1]
        %s3297 = scalar_lea.vmem %s45, 32
        %v3298 = vld [vmem:[%s3297] sm:$0xff]
        %v3299 = vld [vmem:[%s3297 + $0x8] sm:$0xff]
        %v3300 = vld [vmem:[%s3297 + $0x10] sm:$0xff]
        %v3301 = vld [vmem:[%s3297 + $0x18] sm:$0xff]
        %s3302 = scalar_lea.vmem %s47, 1
        %v3303 = vld [vmem:[%s3302] sm:$0x1]
        %v3305 = vperm.slane %v3296, 0
        %v3308 = vsel %vm1203, %v3289, 0
        %3310 = vmatpush.msra.mxu0 0.0
        %3311 = vmatpush.msra.mxu0 0.0
        %3312 = vmatpush.msra.mxu0 0.0
        %3313 = vmatpush.msra.mxu0 0.0
        %3314 = vmatpush.msra.mxu0 0.0
        %3315 = vmatpush.msra.mxu0 0.0
        %3316 = vmatpush.msra.mxu0 0.0
        %3317 = vmatpush.msra.mxu0 0.0
        %3318 = vmatpush.msra.mxu0 0.0
        %3319 = vmatpush.msra.mxu0 0.0
        %3320 = vmatpush.msra.mxu0 0.0
        %3321 = vmatpush.msra.mxu0 0.0
        %3322 = vmatpush.msra.mxu0 %v3294
        %3323 = vmatpush.msra.mxu0 %v3293
        %3324 = vmatpush.msra.mxu0 %v3292
        %3325 = vmatpush.msra.mxu0 %v3291
        %3326 = vmatmul.f32.gmra.mxu0 %v3308
        %v3327 = vpop.f32.mrf.mxu0
        %v3328 = vadd.f32 %v3305, %v3327
        %3329 = vdwg.mxu0
        %3331 = vrot.lane.b32.xlu0 %v3328, 96
        %v3332 = vpop.permute.xlu0 %3331
        %v3333 = vsel %vm1296, %v3328, 0
        %v3335 = vsel %vm1296, %v3332, 0
        %3337 = vmatpush.xpose.msra.mxu0 0.0
        %3338 = vmatpush.xpose.msra.mxu0 0.0
        %3339 = vmatpush.xpose.msra.mxu0 0.0
        %3340 = vmatpush.xpose.msra.mxu0 0.0
        %3341 = vmatpush.xpose.msra.mxu0 0.0
        %3342 = vmatpush.xpose.msra.mxu0 0.0
        %3343 = vmatpush.xpose.msra.mxu0 0.0
        %3344 = vmatpush.xpose.msra.mxu0 0.0
        %3345 = vmatpush.xpose.msra.mxu0 0.0
        %3346 = vmatpush.xpose.msra.mxu0 0.0
        %3347 = vmatpush.xpose.msra.mxu0 0.0
        %3348 = vmatpush.xpose.msra.mxu0 0.0
        %3349 = vmatpush.xpose.msra.mxu0 0.0
        %3350 = vmatpush.xpose.msra.mxu0 0.0
        %3351 = vmatpush.xpose.msra.mxu0 0.0
        %3352 = vmatpush.xpose.msra.mxu0 %v3335
        %3353 = vmatmul.f32.gmra.mxu0 %v3333
        %v3354 = vpop.f32.mrf.mxu0
        %v3355 = vadd.f32 0.0, %v3354
        %3356 = vdwg.mxu0
        %v3357 = vmul.f32 %v3355, 0.35355338
        %v3358 = vsel %vm2408, -1e+09, %v3357
        %v3359 = vsel %vm1296, %v3358, -inf
        %3360 = vmax.xlane.f32.xlu0 %v3359
        %v3361 = vpop.xlane.xlu0 %3360
        %v3362 = vsub.f32 %v3358, %v3361
        %v3363 = vmul.f32 %v3362, 1.442695
        %v3364 = vpow.pop %v3363
        %v3365 = vsel %vm1296, %v3364, 0.0
        %3366 = vadd.xlane.f32.xlu0 %v3365
        %v3367 = vpop.xlane.xlu0 %3366
        %v3368 = vrcp.pop %v3367
        %v3369 = vmul.f32 %v3364, %v3368
        %3370 = vrot.lane.b32.xlu0 %v3328, 64
        %v3371 = vpop.permute.xlu0 %3370
        %v3374 = vsel %vm1296, %v3369, 0
        %3376 = vmatpush.msra.mxu0 0.0
        %3377 = vmatpush.msra.mxu0 0.0
        %3378 = vmatpush.msra.mxu0 0.0
        %3379 = vmatpush.msra.mxu0 0.0
        %3380 = vmatpush.msra.mxu0 0.0
        %3381 = vmatpush.msra.mxu0 0.0
        %3382 = vmatpush.msra.mxu0 0.0
        %3383 = vmatpush.msra.mxu0 0.0
        %3384 = vmatpush.msra.mxu0 0.0
        %3385 = vmatpush.msra.mxu0 0.0
        %3386 = vmatpush.msra.mxu0 0.0
        %3387 = vmatpush.msra.mxu0 0.0
        %3388 = vmatpush.msra.mxu0 0.0
        %3389 = vmatpush.msra.mxu0 0.0
        %3390 = vmatpush.msra.mxu0 0.0
        %3391 = vmatpush.msra.mxu0 %v3371
        %3392 = vmatmul.f32.gmra.mxu0 %v3374
        %v3393 = vpop.f32.mrf.mxu0
        %v3394 = vadd.f32 0.0, %v3393
        %3395 = vdwg.mxu0
        %3396 = vrot.lane.b32.xlu0 %v3328, 120
        %v3397 = vpop.permute.xlu0 %3396
        %3398 = vrot.lane.b32.xlu0 %v3328, 88
        %v3399 = vpop.permute.xlu0 %3398
        %v3400 = vsel %vm1296, %v3397, 0
        %v3402 = vsel %vm1296, %v3399, 0
        %3404 = vmatpush.xpose.msra.mxu0 0.0
        %3405 = vmatpush.xpose.msra.mxu0 0.0
        %3406 = vmatpush.xpose.msra.mxu0 0.0
        %3407 = vmatpush.xpose.msra.mxu0 0.0
        %3408 = vmatpush.xpose.msra.mxu0 0.0
        %3409 = vmatpush.xpose.msra.mxu0 0.0
        %3410 = vmatpush.xpose.msra.mxu0 0.0
        %3411 = vmatpush.xpose.msra.mxu0 0.0
        %3412 = vmatpush.xpose.msra.mxu0 0.0
        %3413 = vmatpush.xpose.msra.mxu0 0.0
        %3414 = vmatpush.xpose.msra.mxu0 0.0
        %3415 = vmatpush.xpose.msra.mxu0 0.0
        %3416 = vmatpush.xpose.msra.mxu0 0.0
        %3417 = vmatpush.xpose.msra.mxu0 0.0
        %3418 = vmatpush.xpose.msra.mxu0 0.0
        %3419 = vmatpush.xpose.msra.mxu0 %v3402
        %3420 = vmatmul.f32.gmra.mxu0 %v3400
        %v3421 = vpop.f32.mrf.mxu0
        %v3422 = vadd.f32 0.0, %v3421
        %3423 = vdwg.mxu0
        %v3424 = vmul.f32 %v3422, 0.35355338
        %v3425 = vsel %vm2408, -1e+09, %v3424
        %v3426 = vsel %vm1296, %v3425, -inf
        %3427 = vmax.xlane.f32.xlu0 %v3426
        %v3428 = vpop.xlane.xlu0 %3427
        %v3429 = vsub.f32 %v3425, %v3428
        %v3430 = vmul.f32 %v3429, 1.442695
        %v3431 = vpow.pop %v3430
        %v3432 = vsel %vm1296, %v3431, 0.0
        %3433 = vadd.xlane.f32.xlu0 %v3432
        %v3434 = vpop.xlane.xlu0 %3433
        %v3435 = vrcp.pop %v3434
        %v3436 = vmul.f32 %v3431, %v3435
        %3437 = vrot.lane.b32.xlu0 %v3328, 56
        %v3438 = vpop.permute.xlu0 %3437
        %v3441 = vsel %vm1296, %v3436, 0
        %3443 = vmatpush.msra.mxu0 0.0
        %3444 = vmatpush.msra.mxu0 0.0
        %3445 = vmatpush.msra.mxu0 0.0
        %3446 = vmatpush.msra.mxu0 0.0
        %3447 = vmatpush.msra.mxu0 0.0
        %3448 = vmatpush.msra.mxu0 0.0
        %3449 = vmatpush.msra.mxu0 0.0
        %3450 = vmatpush.msra.mxu0 0.0
        %3451 = vmatpush.msra.mxu0 0.0
        %3452 = vmatpush.msra.mxu0 0.0
        %3453 = vmatpush.msra.mxu0 0.0
        %3454 = vmatpush.msra.mxu0 0.0
        %3455 = vmatpush.msra.mxu0 0.0
        %3456 = vmatpush.msra.mxu0 0.0
        %3457 = vmatpush.msra.mxu0 0.0
        %3458 = vmatpush.msra.mxu0 %v3438
        %3459 = vmatmul.f32.gmra.mxu0 %v3441
        %v3460 = vpop.f32.mrf.mxu0
        %v3461 = vadd.f32 0.0, %v3460
        %3462 = vdwg.mxu0
        %3463 = vrot.lane.b32.xlu0 %v3328, 112
        %v3464 = vpop.permute.xlu0 %3463
        %3465 = vrot.lane.b32.xlu0 %v3328, 80
        %v3466 = vpop.permute.xlu0 %3465
        %v3467 = vsel %vm1296, %v3464, 0
        %v3469 = vsel %vm1296, %v3466, 0
        %3471 = vmatpush.xpose.msra.mxu0 0.0
        %3472 = vmatpush.xpose.msra.mxu0 0.0
        %3473 = vmatpush.xpose.msra.mxu0 0.0
        %3474 = vmatpush.xpose.msra.mxu0 0.0
        %3475 = vmatpush.xpose.msra.mxu0 0.0
        %3476 = vmatpush.xpose.msra.mxu0 0.0
        %3477 = vmatpush.xpose.msra.mxu0 0.0
        %3478 = vmatpush.xpose.msra.mxu0 0.0
        %3479 = vmatpush.xpose.msra.mxu0 0.0
        %3480 = vmatpush.xpose.msra.mxu0 0.0
        %3481 = vmatpush.xpose.msra.mxu0 0.0
        %3482 = vmatpush.xpose.msra.mxu0 0.0
        %3483 = vmatpush.xpose.msra.mxu0 0.0
        %3484 = vmatpush.xpose.msra.mxu0 0.0
        %3485 = vmatpush.xpose.msra.mxu0 0.0
        %3486 = vmatpush.xpose.msra.mxu0 %v3469
        %3487 = vmatmul.f32.gmra.mxu0 %v3467
        %v3488 = vpop.f32.mrf.mxu0
        %v3489 = vadd.f32 0.0, %v3488
        %3490 = vdwg.mxu0
        %v3491 = vmul.f32 %v3489, 0.35355338
        %v3492 = vsel %vm2408, -1e+09, %v3491
        %v3493 = vsel %vm1296, %v3492, -inf
        %3494 = vmax.xlane.f32.xlu0 %v3493
        %v3495 = vpop.xlane.xlu0 %3494
        %v3496 = vsub.f32 %v3492, %v3495
        %v3497 = vmul.f32 %v3496, 1.442695
        %v3498 = vpow.pop %v3497
        %v3499 = vsel %vm1296, %v3498, 0.0
        %3500 = vadd.xlane.f32.xlu0 %v3499
        %v3501 = vpop.xlane.xlu0 %3500
        %v3502 = vrcp.pop %v3501
        %v3503 = vmul.f32 %v3498, %v3502
        %3504 = vrot.lane.b32.xlu0 %v3328, 48
        %v3505 = vpop.permute.xlu0 %3504
        %v3508 = vsel %vm1296, %v3503, 0
        %3510 = vmatpush.msra.mxu0 0.0
        %3511 = vmatpush.msra.mxu0 0.0
        %3512 = vmatpush.msra.mxu0 0.0
        %3513 = vmatpush.msra.mxu0 0.0
        %3514 = vmatpush.msra.mxu0 0.0
        %3515 = vmatpush.msra.mxu0 0.0
        %3516 = vmatpush.msra.mxu0 0.0
        %3517 = vmatpush.msra.mxu0 0.0
        %3518 = vmatpush.msra.mxu0 0.0
        %3519 = vmatpush.msra.mxu0 0.0
        %3520 = vmatpush.msra.mxu0 0.0
        %3521 = vmatpush.msra.mxu0 0.0
        %3522 = vmatpush.msra.mxu0 0.0
        %3523 = vmatpush.msra.mxu0 0.0
        %3524 = vmatpush.msra.mxu0 0.0
        %3525 = vmatpush.msra.mxu0 %v3505
        %3526 = vmatmul.f32.gmra.mxu0 %v3508
        %v3527 = vpop.f32.mrf.mxu0
        %v3528 = vadd.f32 0.0, %v3527
        %3529 = vdwg.mxu0
        %3530 = vrot.lane.b32.xlu0 %v3328, 104
        %v3531 = vpop.permute.xlu0 %3530
        %3532 = vrot.lane.b32.xlu0 %v3328, 72
        %v3533 = vpop.permute.xlu0 %3532
        %v3534 = vsel %vm1296, %v3531, 0
        %v3536 = vsel %vm1296, %v3533, 0
        %3538 = vmatpush.xpose.msra.mxu0 0.0
        %3539 = vmatpush.xpose.msra.mxu0 0.0
        %3540 = vmatpush.xpose.msra.mxu0 0.0
        %3541 = vmatpush.xpose.msra.mxu0 0.0
        %3542 = vmatpush.xpose.msra.mxu0 0.0
        %3543 = vmatpush.xpose.msra.mxu0 0.0
        %3544 = vmatpush.xpose.msra.mxu0 0.0
        %3545 = vmatpush.xpose.msra.mxu0 0.0
        %3546 = vmatpush.xpose.msra.mxu0 0.0
        %3547 = vmatpush.xpose.msra.mxu0 0.0
        %3548 = vmatpush.xpose.msra.mxu0 0.0
        %3549 = vmatpush.xpose.msra.mxu0 0.0
        %3550 = vmatpush.xpose.msra.mxu0 0.0
        %3551 = vmatpush.xpose.msra.mxu0 0.0
        %3552 = vmatpush.xpose.msra.mxu0 0.0
        %3553 = vmatpush.xpose.msra.mxu0 %v3536
        %3554 = vmatmul.f32.gmra.mxu0 %v3534
        %v3555 = vpop.f32.mrf.mxu0
        %v3556 = vadd.f32 0.0, %v3555
        %3557 = vdwg.mxu0
        %v3558 = vmul.f32 %v3556, 0.35355338
        %v3559 = vsel %vm2408, -1e+09, %v3558
        %v3560 = vsel %vm1296, %v3559, -inf
        %3561 = vmax.xlane.f32.xlu0 %v3560
        %v3562 = vpop.xlane.xlu0 %3561
        %v3563 = vsub.f32 %v3559, %v3562
        %v3564 = vmul.f32 %v3563, 1.442695
        %v3565 = vpow.pop %v3564
        %v3566 = vsel %vm1296, %v3565, 0.0
        %3567 = vadd.xlane.f32.xlu0 %v3566
        %v3568 = vpop.xlane.xlu0 %3567
        %v3569 = vrcp.pop %v3568
        %v3570 = vmul.f32 %v3565, %v3569
        %3571 = vrot.lane.b32.xlu0 %v3328, 40
        %v3572 = vpop.permute.xlu0 %3571
        %v3575 = vsel %vm1296, %v3570, 0
        %3577 = vmatpush.msra.mxu0 0.0
        %3578 = vmatpush.msra.mxu0 0.0
        %3579 = vmatpush.msra.mxu0 0.0
        %3580 = vmatpush.msra.mxu0 0.0
        %3581 = vmatpush.msra.mxu0 0.0
        %3582 = vmatpush.msra.mxu0 0.0
        %3583 = vmatpush.msra.mxu0 0.0
        %3584 = vmatpush.msra.mxu0 0.0
        %3585 = vmatpush.msra.mxu0 0.0
        %3586 = vmatpush.msra.mxu0 0.0
        %3587 = vmatpush.msra.mxu0 0.0
        %3588 = vmatpush.msra.mxu0 0.0
        %3589 = vmatpush.msra.mxu0 0.0
        %3590 = vmatpush.msra.mxu0 0.0
        %3591 = vmatpush.msra.mxu0 0.0
        %3592 = vmatpush.msra.mxu0 %v3572
        %3593 = vmatmul.f32.gmra.mxu0 %v3575
        %v3594 = vpop.f32.mrf.mxu0
        %v3595 = vadd.f32 0.0, %v3594
        %3596 = vdwg.mxu0
        %3598 = vrot.lane.b32.xlu0 %v3461, 8
        %v3599 = vpop.permute.xlu0 %3598
        %3602 = vrot.lane.b32.xlu0 %v3528, 16
        %v3603 = vpop.permute.xlu0 %3602
        %3606 = vrot.lane.b32.xlu0 %v3595, 24
        %v3607 = vpop.permute.xlu0 %3606
        %v3609 = vsel %vm1296, %v3394, %v3599
        %v3610 = vsel %vm1578, %v3609, %v3603
        %v3611 = vsel %vm1580, %v3610, %v3607
        %v3613 = vperm.slane %v3303, 0
        %v3616 = vsel %vm1203, %v3611, 0
        %3618 = vmatpush.msra.mxu0 0.0
        %3619 = vmatpush.msra.mxu0 0.0
        %3620 = vmatpush.msra.mxu0 0.0
        %3621 = vmatpush.msra.mxu0 0.0
        %3622 = vmatpush.msra.mxu0 0.0
        %3623 = vmatpush.msra.mxu0 0.0
        %3624 = vmatpush.msra.mxu0 0.0
        %3625 = vmatpush.msra.mxu0 0.0
        %3626 = vmatpush.msra.mxu0 0.0
        %3627 = vmatpush.msra.mxu0 0.0
        %3628 = vmatpush.msra.mxu0 0.0
        %3629 = vmatpush.msra.mxu0 0.0
        %3630 = vmatpush.msra.mxu0 %v3301
        %3631 = vmatpush.msra.mxu0 %v3300
        %3632 = vmatpush.msra.mxu0 %v3299
        %3633 = vmatpush.msra.mxu0 %v3298
        %3634 = vmatmul.f32.gmra.mxu0 %v3616
        %v3635 = vpop.f32.mrf.mxu0
        %v3636 = vadd.f32 %v3613, %v3635
        %3637 = vdwg.mxu0
        %v3638 = vadd.f32 %v3239, %v3636
        %s3639 = scalar_lea.vmem %s49, 1
        %v3640 = vld [vmem:[%s3639] sm:$0x1]
        %s3641 = scalar_lea.vmem %s51, 1
        %v3642 = vld [vmem:[%s3641] sm:$0x1]
        %v3643 = vsel %vm1203, %v3638, 0.0
        %3644 = vadd.xlane.f32.xlu0 %v3643
        %v3645 = vpop.xlane.xlu0 %3644
        %v3646 = vmul.f32 %v3645, %v1213
        %v3647 = vsub.f32 %v3638, %v3646
        %v3648 = vmul.f32 %v3647, %v3647
        %v3649 = vsel %vm1203, %v3648, 0.0
        %3650 = vadd.xlane.f32.xlu0 %v3649
        %v3651 = vpop.xlane.xlu0 %3650
        %v3652 = vmul.f32 %v3651, 0.032258064
        %v3653 = vrsqrt.pop %v3652
        %v3654 = vmul.f32 %v3653, %v3652
        %v3655 = vmul.f32 %v3654, %v3653
        %v3656 = vmul.f32 0.5, %v3655
        %v3657 = vsub.f32 1.5, %v3656
        %v3658 = vmul.f32 %v3653, %v3657
        %v3659 = vmul.f32 %v3652, %v3658
        %vm3660 = vcmp.eq.f32.partialorder %v3652, inf
        %v3661 = vsel %vm3660, %v3652, %v3659
        %vm3662 = vcmp.eq.f32.partialorder %v3652, 0.0
        %v3663 = vand.u32 %v3652, 2147483648
        %v3664 = vsel %vm3662, %v3663, %v3661
        %v3666 = vperm.slane %v3640, 0
        %v3668 = vmul.f32 %v3666, %v3647
        %v3669 = vadd.f32 %v3664, 1e-06
        %v3670 = vrcp.pop %v3669
        %v3671 = vmul.f32 %v3669, %v3670
        %v3672 = vsub.f32 1.0, %v3671
        %v3673 = vmul.f32 %v3670, %v3672
        %v3674 = vadd.f32 %v3670, %v3673
        %vm3675 = vweird.f32 %v3669
        %vm3676 = vweird.f32 %v3670
        %vm3677 = vmor %vm3675, %vm3676
        %v3678 = vsel %vm3677, %v3670, %v3674
        %v3679 = vand.u32 2147483647, %v3669
        %vm3680 = vcmp.eq.f32.partialorder %v3679, 8.507059e+37
        %v3681 = vand.u32 %v3669, 2147483648
        %v3682 = vor.u32 1.1754944e-38, %v3681
        %v3683 = vsel %vm3680, %v3682, %v3678
        %v3684 = vmul.f32 %v3668, %v3683
        %v3686 = vperm.slane %v3642, 0
        %v3688 = vadd.f32 %v3684, %v3686
        %s3689 = scalar_lea.vmem %s53, 32
        %v3690 = vld [vmem:[%s3689] sm:$0xff]
        %v3691 = vld [vmem:[%s3689 + $0x8] sm:$0xff]
        %v3692 = vld [vmem:[%s3689 + $0x10] sm:$0xff]
        %v3693 = vld [vmem:[%s3689 + $0x18] sm:$0xff]
        %s3694 = scalar_lea.vmem %s55, 1
        %v3695 = vld [vmem:[%s3694] sm:$0x1]
        %s3696 = scalar_lea.vmem %s57, 32
        %v3697 = vld [vmem:[%s3696] sm:$0xff]
        %v3698 = vld [vmem:[%s3696 + $0x8] sm:$0xff]
        %v3699 = vld [vmem:[%s3696 + $0x10] sm:$0xff]
        %v3700 = vld [vmem:[%s3696 + $0x18] sm:$0xff]
        %s3701 = scalar_lea.vmem %s59, 1
        %v3702 = vld [vmem:[%s3701] sm:$0x1]
        %v3704 = vperm.slane %v3695, 0
        %v3707 = vsel %vm1203, %v3688, 0
        %3709 = vmatpush.msra.mxu0 0.0
        %3710 = vmatpush.msra.mxu0 0.0
        %3711 = vmatpush.msra.mxu0 0.0
        %3712 = vmatpush.msra.mxu0 0.0
        %3713 = vmatpush.msra.mxu0 0.0
        %3714 = vmatpush.msra.mxu0 0.0
        %3715 = vmatpush.msra.mxu0 0.0
        %3716 = vmatpush.msra.mxu0 0.0
        %3717 = vmatpush.msra.mxu0 0.0
        %3718 = vmatpush.msra.mxu0 0.0
        %3719 = vmatpush.msra.mxu0 0.0
        %3720 = vmatpush.msra.mxu0 0.0
        %3721 = vmatpush.msra.mxu0 %v3693
        %3722 = vmatpush.msra.mxu0 %v3692
        %3723 = vmatpush.msra.mxu0 %v3691
        %3724 = vmatpush.msra.mxu0 %v3690
        %3725 = vmatmul.f32.gmra.mxu0 %v3707
        %v3726 = vpop.f32.mrf.mxu0
        %v3727 = vadd.f32 %v3704, %v3726
        %3728 = vdwg.mxu0
        %3733 = vrot.lane.b32.xlu0 %v3690, 96
        %v3734 = vpop.permute.xlu0 %3733
        %3735 = vrot.lane.b32.xlu0 %v3691, 96
        %v3736 = vpop.permute.xlu0 %3735
        %3737 = vrot.lane.b32.xlu0 %v3692, 96
        %v3738 = vpop.permute.xlu0 %3737
        %3739 = vrot.lane.b32.xlu0 %v3693, 96
        %v3740 = vpop.permute.xlu0 %3739
        %3745 = vrot.lane.b32.xlu0 %v3704, 96
        %v3746 = vpop.permute.xlu0 %3745
        %3748 = vmatpush.msra.mxu0 0.0
        %3749 = vmatpush.msra.mxu0 0.0
        %3750 = vmatpush.msra.mxu0 0.0
        %3751 = vmatpush.msra.mxu0 0.0
        %3752 = vmatpush.msra.mxu0 0.0
        %3753 = vmatpush.msra.mxu0 0.0
        %3754 = vmatpush.msra.mxu0 0.0
        %3755 = vmatpush.msra.mxu0 0.0
        %3756 = vmatpush.msra.mxu0 0.0
        %3757 = vmatpush.msra.mxu0 0.0
        %3758 = vmatpush.msra.mxu0 0.0
        %3759 = vmatpush.msra.mxu0 0.0
        %3760 = vmatpush.msra.mxu0 %v3740
        %3761 = vmatpush.msra.mxu0 %v3738
        %3762 = vmatpush.msra.mxu0 %v3736
        %3763 = vmatpush.msra.mxu0 %v3734
        %3764 = vmatmul.f32.gmra.mxu0 %v2794
        %v3765 = vpop.f32.mrf.mxu0
        %v3766 = vadd.f32 %v3746, %v3765
        %3767 = vdwg.mxu0
        %v3769 = vsel %vm1296, %v3727, 0
        %v3772 = vsel %vm1296, %v3766, 0
        %3774 = vmatpush.xpose.msra.mxu0 0.0
        %3775 = vmatpush.xpose.msra.mxu0 0.0
        %3776 = vmatpush.xpose.msra.mxu0 0.0
        %3777 = vmatpush.xpose.msra.mxu0 0.0
        %3778 = vmatpush.xpose.msra.mxu0 0.0
        %3779 = vmatpush.xpose.msra.mxu0 0.0
        %3780 = vmatpush.xpose.msra.mxu0 0.0
        %3781 = vmatpush.xpose.msra.mxu0 0.0
        %3782 = vmatpush.xpose.msra.mxu0 0.0
        %3783 = vmatpush.xpose.msra.mxu0 0.0
        %3784 = vmatpush.xpose.msra.mxu0 0.0
        %3785 = vmatpush.xpose.msra.mxu0 0.0
        %3786 = vmatpush.xpose.msra.mxu0 0.0
        %3787 = vmatpush.xpose.msra.mxu0 0.0
        %3788 = vmatpush.xpose.msra.mxu0 0.0
        %3789 = vmatpush.xpose.msra.mxu0 %v3772
        %3790 = vmatmul.f32.gmra.mxu0 %v3769
        %v3791 = vpop.f32.mrf.mxu0
        %v3792 = vadd.f32 0.0, %v3791
        %3793 = vdwg.mxu0
        %v3794 = vmul.f32 %v3792, 0.35355338
        %v3795 = vsel %vm1325, -1e+09, %v3794
        %v3796 = vsel %vm1296, %v3795, -inf
        %3797 = vmax.xlane.f32.xlu0 %v3796
        %v3798 = vpop.xlane.xlu0 %3797
        %v3799 = vsub.f32 %v3795, %v3798
        %v3800 = vmul.f32 %v3799, 1.442695
        %v3801 = vpow.pop %v3800
        %v3802 = vsel %vm1296, %v3801, 0.0
        %3803 = vadd.xlane.f32.xlu0 %v3802
        %v3804 = vpop.xlane.xlu0 %3803
        %v3805 = vrcp.pop %v3804
        %v3806 = vmul.f32 %v3801, %v3805
        %3807 = vrot.lane.b32.xlu0 %v3766, 96
        %v3808 = vpop.permute.xlu0 %3807
        %v3811 = vsel %vm1296, %v3806, 0
        %3813 = vmatpush.msra.mxu0 0.0
        %3814 = vmatpush.msra.mxu0 0.0
        %3815 = vmatpush.msra.mxu0 0.0
        %3816 = vmatpush.msra.mxu0 0.0
        %3817 = vmatpush.msra.mxu0 0.0
        %3818 = vmatpush.msra.mxu0 0.0
        %3819 = vmatpush.msra.mxu0 0.0
        %3820 = vmatpush.msra.mxu0 0.0
        %3821 = vmatpush.msra.mxu0 0.0
        %3822 = vmatpush.msra.mxu0 0.0
        %3823 = vmatpush.msra.mxu0 0.0
        %3824 = vmatpush.msra.mxu0 0.0
        %3825 = vmatpush.msra.mxu0 0.0
        %3826 = vmatpush.msra.mxu0 0.0
        %3827 = vmatpush.msra.mxu0 0.0
        %3828 = vmatpush.msra.mxu0 %v3808
        %3829 = vmatmul.f32.gmra.mxu0 %v3811
        %v3830 = vpop.f32.mrf.mxu0
        %v3831 = vadd.f32 0.0, %v3830
        %3832 = vdwg.mxu0
        %3833 = vrot.lane.b32.xlu0 %v3727, 120
        %v3834 = vpop.permute.xlu0 %3833
        %3835 = vrot.lane.b32.xlu0 %v3766, 120
        %v3836 = vpop.permute.xlu0 %3835
        %v3837 = vsel %vm1296, %v3834, 0
        %v3839 = vsel %vm1296, %v3836, 0
        %3841 = vmatpush.xpose.msra.mxu0 0.0
        %3842 = vmatpush.xpose.msra.mxu0 0.0
        %3843 = vmatpush.xpose.msra.mxu0 0.0
        %3844 = vmatpush.xpose.msra.mxu0 0.0
        %3845 = vmatpush.xpose.msra.mxu0 0.0
        %3846 = vmatpush.xpose.msra.mxu0 0.0
        %3847 = vmatpush.xpose.msra.mxu0 0.0
        %3848 = vmatpush.xpose.msra.mxu0 0.0
        %3849 = vmatpush.xpose.msra.mxu0 0.0
        %3850 = vmatpush.xpose.msra.mxu0 0.0
        %3851 = vmatpush.xpose.msra.mxu0 0.0
        %3852 = vmatpush.xpose.msra.mxu0 0.0
        %3853 = vmatpush.xpose.msra.mxu0 0.0
        %3854 = vmatpush.xpose.msra.mxu0 0.0
        %3855 = vmatpush.xpose.msra.mxu0 0.0
        %3856 = vmatpush.xpose.msra.mxu0 %v3839
        %3857 = vmatmul.f32.gmra.mxu0 %v3837
        %v3858 = vpop.f32.mrf.mxu0
        %v3859 = vadd.f32 0.0, %v3858
        %3860 = vdwg.mxu0
        %v3861 = vmul.f32 %v3859, 0.35355338
        %v3862 = vsel %vm1325, -1e+09, %v3861
        %v3863 = vsel %vm1296, %v3862, -inf
        %3864 = vmax.xlane.f32.xlu0 %v3863
        %v3865 = vpop.xlane.xlu0 %3864
        %v3866 = vsub.f32 %v3862, %v3865
        %v3867 = vmul.f32 %v3866, 1.442695
        %v3868 = vpow.pop %v3867
        %v3869 = vsel %vm1296, %v3868, 0.0
        %3870 = vadd.xlane.f32.xlu0 %v3869
        %v3871 = vpop.xlane.xlu0 %3870
        %v3872 = vrcp.pop %v3871
        %v3873 = vmul.f32 %v3868, %v3872
        %3874 = vrot.lane.b32.xlu0 %v3766, 88
        %v3875 = vpop.permute.xlu0 %3874
        %v3878 = vsel %vm1296, %v3873, 0
        %3880 = vmatpush.msra.mxu0 0.0
        %3881 = vmatpush.msra.mxu0 0.0
        %3882 = vmatpush.msra.mxu0 0.0
        %3883 = vmatpush.msra.mxu0 0.0
        %3884 = vmatpush.msra.mxu0 0.0
        %3885 = vmatpush.msra.mxu0 0.0
        %3886 = vmatpush.msra.mxu0 0.0
        %3887 = vmatpush.msra.mxu0 0.0
        %3888 = vmatpush.msra.mxu0 0.0
        %3889 = vmatpush.msra.mxu0 0.0
        %3890 = vmatpush.msra.mxu0 0.0
        %3891 = vmatpush.msra.mxu0 0.0
        %3892 = vmatpush.msra.mxu0 0.0
        %3893 = vmatpush.msra.mxu0 0.0
        %3894 = vmatpush.msra.mxu0 0.0
        %3895 = vmatpush.msra.mxu0 %v3875
        %3896 = vmatmul.f32.gmra.mxu0 %v3878
        %v3897 = vpop.f32.mrf.mxu0
        %v3898 = vadd.f32 0.0, %v3897
        %3899 = vdwg.mxu0
        %3900 = vrot.lane.b32.xlu0 %v3727, 112
        %v3901 = vpop.permute.xlu0 %3900
        %3902 = vrot.lane.b32.xlu0 %v3766, 112
        %v3903 = vpop.permute.xlu0 %3902
        %v3904 = vsel %vm1296, %v3901, 0
        %v3906 = vsel %vm1296, %v3903, 0
        %3908 = vmatpush.xpose.msra.mxu0 0.0
        %3909 = vmatpush.xpose.msra.mxu0 0.0
        %3910 = vmatpush.xpose.msra.mxu0 0.0
        %3911 = vmatpush.xpose.msra.mxu0 0.0
        %3912 = vmatpush.xpose.msra.mxu0 0.0
        %3913 = vmatpush.xpose.msra.mxu0 0.0
        %3914 = vmatpush.xpose.msra.mxu0 0.0
        %3915 = vmatpush.xpose.msra.mxu0 0.0
        %3916 = vmatpush.xpose.msra.mxu0 0.0
        %3917 = vmatpush.xpose.msra.mxu0 0.0
        %3918 = vmatpush.xpose.msra.mxu0 0.0
        %3919 = vmatpush.xpose.msra.mxu0 0.0
        %3920 = vmatpush.xpose.msra.mxu0 0.0
        %3921 = vmatpush.xpose.msra.mxu0 0.0
        %3922 = vmatpush.xpose.msra.mxu0 0.0
        %3923 = vmatpush.xpose.msra.mxu0 %v3906
        %3924 = vmatmul.f32.gmra.mxu0 %v3904
        %v3925 = vpop.f32.mrf.mxu0
        %v3926 = vadd.f32 0.0, %v3925
        %3927 = vdwg.mxu0
        %v3928 = vmul.f32 %v3926, 0.35355338
        %v3929 = vsel %vm1325, -1e+09, %v3928
        %v3930 = vsel %vm1296, %v3929, -inf
        %3931 = vmax.xlane.f32.xlu0 %v3930
        %v3932 = vpop.xlane.xlu0 %3931
        %v3933 = vsub.f32 %v3929, %v3932
        %v3934 = vmul.f32 %v3933, 1.442695
        %v3935 = vpow.pop %v3934
        %v3936 = vsel %vm1296, %v3935, 0.0
        %3937 = vadd.xlane.f32.xlu0 %v3936
        %v3938 = vpop.xlane.xlu0 %3937
        %v3939 = vrcp.pop %v3938
        %v3940 = vmul.f32 %v3935, %v3939
        %3941 = vrot.lane.b32.xlu0 %v3766, 80
        %v3942 = vpop.permute.xlu0 %3941
        %v3945 = vsel %vm1296, %v3940, 0
        %3947 = vmatpush.msra.mxu0 0.0
        %3948 = vmatpush.msra.mxu0 0.0
        %3949 = vmatpush.msra.mxu0 0.0
        %3950 = vmatpush.msra.mxu0 0.0
        %3951 = vmatpush.msra.mxu0 0.0
        %3952 = vmatpush.msra.mxu0 0.0
        %3953 = vmatpush.msra.mxu0 0.0
        %3954 = vmatpush.msra.mxu0 0.0
        %3955 = vmatpush.msra.mxu0 0.0
        %3956 = vmatpush.msra.mxu0 0.0
        %3957 = vmatpush.msra.mxu0 0.0
        %3958 = vmatpush.msra.mxu0 0.0
        %3959 = vmatpush.msra.mxu0 0.0
        %3960 = vmatpush.msra.mxu0 0.0
        %3961 = vmatpush.msra.mxu0 0.0
        %3962 = vmatpush.msra.mxu0 %v3942
        %3963 = vmatmul.f32.gmra.mxu0 %v3945
        %v3964 = vpop.f32.mrf.mxu0
        %v3965 = vadd.f32 0.0, %v3964
        %3966 = vdwg.mxu0
        %3967 = vrot.lane.b32.xlu0 %v3727, 104
        %v3968 = vpop.permute.xlu0 %3967
        %3969 = vrot.lane.b32.xlu0 %v3766, 104
        %v3970 = vpop.permute.xlu0 %3969
        %v3971 = vsel %vm1296, %v3968, 0
        %v3973 = vsel %vm1296, %v3970, 0
        %3975 = vmatpush.xpose.msra.mxu0 0.0
        %3976 = vmatpush.xpose.msra.mxu0 0.0
        %3977 = vmatpush.xpose.msra.mxu0 0.0
        %3978 = vmatpush.xpose.msra.mxu0 0.0
        %3979 = vmatpush.xpose.msra.mxu0 0.0
        %3980 = vmatpush.xpose.msra.mxu0 0.0
        %3981 = vmatpush.xpose.msra.mxu0 0.0
        %3982 = vmatpush.xpose.msra.mxu0 0.0
        %3983 = vmatpush.xpose.msra.mxu0 0.0
        %3984 = vmatpush.xpose.msra.mxu0 0.0
        %3985 = vmatpush.xpose.msra.mxu0 0.0
        %3986 = vmatpush.xpose.msra.mxu0 0.0
        %3987 = vmatpush.xpose.msra.mxu0 0.0
        %3988 = vmatpush.xpose.msra.mxu0 0.0
        %3989 = vmatpush.xpose.msra.mxu0 0.0
        %3990 = vmatpush.xpose.msra.mxu0 %v3973
        %3991 = vmatmul.f32.gmra.mxu0 %v3971
        %v3992 = vpop.f32.mrf.mxu0
        %v3993 = vadd.f32 0.0, %v3992
        %3994 = vdwg.mxu0
        %v3995 = vmul.f32 %v3993, 0.35355338
        %v3996 = vsel %vm1325, -1e+09, %v3995
        %v3997 = vsel %vm1296, %v3996, -inf
        %3998 = vmax.xlane.f32.xlu0 %v3997
        %v3999 = vpop.xlane.xlu0 %3998
        %v4000 = vsub.f32 %v3996, %v3999
        %v4001 = vmul.f32 %v4000, 1.442695
        %v4002 = vpow.pop %v4001
        %v4003 = vsel %vm1296, %v4002, 0.0
        %4004 = vadd.xlane.f32.xlu0 %v4003
        %v4005 = vpop.xlane.xlu0 %4004
        %v4006 = vrcp.pop %v4005
        %v4007 = vmul.f32 %v4002, %v4006
        %4008 = vrot.lane.b32.xlu0 %v3766, 72
        %v4009 = vpop.permute.xlu0 %4008
        %v4012 = vsel %vm1296, %v4007, 0
        %4014 = vmatpush.msra.mxu0 0.0
        %4015 = vmatpush.msra.mxu0 0.0
        %4016 = vmatpush.msra.mxu0 0.0
        %4017 = vmatpush.msra.mxu0 0.0
        %4018 = vmatpush.msra.mxu0 0.0
        %4019 = vmatpush.msra.mxu0 0.0
        %4020 = vmatpush.msra.mxu0 0.0
        %4021 = vmatpush.msra.mxu0 0.0
        %4022 = vmatpush.msra.mxu0 0.0
        %4023 = vmatpush.msra.mxu0 0.0
        %4024 = vmatpush.msra.mxu0 0.0
        %4025 = vmatpush.msra.mxu0 0.0
        %4026 = vmatpush.msra.mxu0 0.0
        %4027 = vmatpush.msra.mxu0 0.0
        %4028 = vmatpush.msra.mxu0 0.0
        %4029 = vmatpush.msra.mxu0 %v4009
        %4030 = vmatmul.f32.gmra.mxu0 %v4012
        %v4031 = vpop.f32.mrf.mxu0
        %v4032 = vadd.f32 0.0, %v4031
        %4033 = vdwg.mxu0
        %4035 = vrot.lane.b32.xlu0 %v3898, 8
        %v4036 = vpop.permute.xlu0 %4035
        %4039 = vrot.lane.b32.xlu0 %v3965, 16
        %v4040 = vpop.permute.xlu0 %4039
        %4043 = vrot.lane.b32.xlu0 %v4032, 24
        %v4044 = vpop.permute.xlu0 %4043
        %v4046 = vsel %vm1296, %v3831, %v4036
        %v4047 = vsel %vm1578, %v4046, %v4040
        %v4048 = vsel %vm1580, %v4047, %v4044
        %v4050 = vperm.slane %v3702, 0
        %v4053 = vsel %vm1203, %v4048, 0
        %4055 = vmatpush.msra.mxu0 0.0
        %4056 = vmatpush.msra.mxu0 0.0
        %4057 = vmatpush.msra.mxu0 0.0
        %4058 = vmatpush.msra.mxu0 0.0
        %4059 = vmatpush.msra.mxu0 0.0
        %4060 = vmatpush.msra.mxu0 0.0
        %4061 = vmatpush.msra.mxu0 0.0
        %4062 = vmatpush.msra.mxu0 0.0
        %4063 = vmatpush.msra.mxu0 0.0
        %4064 = vmatpush.msra.mxu0 0.0
        %4065 = vmatpush.msra.mxu0 0.0
        %4066 = vmatpush.msra.mxu0 0.0
        %4067 = vmatpush.msra.mxu0 %v3700
        %4068 = vmatpush.msra.mxu0 %v3699
        %4069 = vmatpush.msra.mxu0 %v3698
        %4070 = vmatpush.msra.mxu0 %v3697
        %4071 = vmatmul.f32.gmra.mxu0 %v4053
        %v4072 = vpop.f32.mrf.mxu0
        %v4073 = vadd.f32 %v4050, %v4072
        %4074 = vdwg.mxu0
        %v4075 = vadd.f32 %v3638, %v4073
        %s4076 = scalar_lea.vmem %s61, 1
        %v4077 = vld [vmem:[%s4076] sm:$0x1]
        %s4078 = scalar_lea.vmem %s63, 1
        %v4079 = vld [vmem:[%s4078] sm:$0x1]
        %v4080 = vsel %vm1203, %v4075, 0.0
        %4081 = vadd.xlane.f32.xlu0 %v4080
        %v4082 = vpop.xlane.xlu0 %4081
        %v4083 = vmul.f32 %v4082, %v1213
        %v4084 = vsub.f32 %v4075, %v4083
        %v4085 = vmul.f32 %v4084, %v4084
        %v4086 = vsel %vm1203, %v4085, 0.0
        %4087 = vadd.xlane.f32.xlu0 %v4086
        %v4088 = vpop.xlane.xlu0 %4087
        %v4089 = vmul.f32 %v4088, 0.032258064
        %v4090 = vrsqrt.pop %v4089
        %v4091 = vmul.f32 %v4090, %v4089
        %v4092 = vmul.f32 %v4091, %v4090
        %v4093 = vmul.f32 0.5, %v4092
        %v4094 = vsub.f32 1.5, %v4093
        %v4095 = vmul.f32 %v4090, %v4094
        %v4096 = vmul.f32 %v4089, %v4095
        %vm4097 = vcmp.eq.f32.partialorder %v4089, inf
        %v4098 = vsel %vm4097, %v4089, %v4096
        %vm4099 = vcmp.eq.f32.partialorder %v4089, 0.0
        %v4100 = vand.u32 %v4089, 2147483648
        %v4101 = vsel %vm4099, %v4100, %v4098
        %v4103 = vperm.slane %v4077, 0
        %v4105 = vmul.f32 %v4103, %v4084
        %v4106 = vadd.f32 %v4101, 1e-06
        %v4107 = vrcp.pop %v4106
        %v4108 = vmul.f32 %v4106, %v4107
        %v4109 = vsub.f32 1.0, %v4108
        %v4110 = vmul.f32 %v4107, %v4109
        %v4111 = vadd.f32 %v4107, %v4110
        %vm4112 = vweird.f32 %v4106
        %vm4113 = vweird.f32 %v4107
        %vm4114 = vmor %vm4112, %vm4113
        %v4115 = vsel %vm4114, %v4107, %v4111
        %v4116 = vand.u32 2147483647, %v4106
        %vm4117 = vcmp.eq.f32.partialorder %v4116, 8.507059e+37
        %v4118 = vand.u32 %v4106, 2147483648
        %v4119 = vor.u32 1.1754944e-38, %v4118
        %v4120 = vsel %vm4117, %v4119, %v4115
        %v4121 = vmul.f32 %v4105, %v4120
        %v4123 = vperm.slane %v4079, 0
        %v4125 = vadd.f32 %v4121, %v4123
        %s4126 = scalar_lea.vmem %s65, 32
        %v4127 = vld [vmem:[%s4126] sm:$0xff]
        %v4128 = vld [vmem:[%s4126 + $0x8] sm:$0xff]
        %v4129 = vld [vmem:[%s4126 + $0x10] sm:$0xff]
        %v4130 = vld [vmem:[%s4126 + $0x18] sm:$0xff]
        %s4131 = scalar_lea.vmem %s67, 1
        %v4132 = vld [vmem:[%s4131] sm:$0x1]
        %s4133 = scalar_lea.vmem %s69, 64
        %v4134 = vld [vmem:[%s4133] sm:$0xff]
        %v4135 = vld [vmem:[%s4133 + $0x8] sm:$0xff]
        %v4136 = vld [vmem:[%s4133 + $0x10] sm:$0xff]
        %v4137 = vld [vmem:[%s4133 + $0x18] sm:$0xff]
        %v4138 = vld [vmem:[%s4133 + $0x20] sm:$0xff]
        %v4139 = vld [vmem:[%s4133 + $0x28] sm:$0xff]
        %v4140 = vld [vmem:[%s4133 + $0x30] sm:$0xff]
        %v4141 = vld [vmem:[%s4133 + $0x38] sm:$0xff]
        %s4142 = scalar_lea.vmem %s71, 1
        %v4143 = vld [vmem:[%s4142] sm:$0x1]
        %v4145 = vperm.slane %v4132, 0
        %v4148 = vsel %vm1203, %v4125, 0
        %4150 = vmatpush.msra.mxu0 0.0
        %4151 = vmatpush.msra.mxu0 0.0
        %4152 = vmatpush.msra.mxu0 0.0
        %4153 = vmatpush.msra.mxu0 0.0
        %4154 = vmatpush.msra.mxu0 0.0
        %4155 = vmatpush.msra.mxu0 0.0
        %4156 = vmatpush.msra.mxu0 0.0
        %4157 = vmatpush.msra.mxu0 0.0
        %4158 = vmatpush.msra.mxu0 0.0
        %4159 = vmatpush.msra.mxu0 0.0
        %4160 = vmatpush.msra.mxu0 0.0
        %4161 = vmatpush.msra.mxu0 0.0
        %4162 = vmatpush.msra.mxu0 %v4130
        %4163 = vmatpush.msra.mxu0 %v4129
        %4164 = vmatpush.msra.mxu0 %v4128
        %4165 = vmatpush.msra.mxu0 %v4127
        %4166 = vmatmul.f32.gmra.mxu0 %v4148
        %v4167 = vpop.f32.mrf.mxu0
        %v4168 = vadd.f32 %v4145, %v4167
        %4169 = vdwg.mxu0
        %v4170 = vmax.f32 %v4168, 0.0
        %v4172 = vperm.slane %v4143, 0
        %v4175 = vsel %vm1701, %v4170, 0
        %4177 = vmatpush.msra.mxu0 0.0
        %4178 = vmatpush.msra.mxu0 0.0
        %4179 = vmatpush.msra.mxu0 0.0
        %4180 = vmatpush.msra.mxu0 0.0
        %4181 = vmatpush.msra.mxu0 0.0
        %4182 = vmatpush.msra.mxu0 0.0
        %4183 = vmatpush.msra.mxu0 0.0
        %4184 = vmatpush.msra.mxu0 0.0
        %4185 = vmatpush.msra.mxu0 %v4141
        %4186 = vmatpush.msra.mxu0 %v4140
        %4187 = vmatpush.msra.mxu0 %v4139
        %4188 = vmatpush.msra.mxu0 %v4138
        %4189 = vmatpush.msra.mxu0 %v4137
        %4190 = vmatpush.msra.mxu0 %v4136
        %4191 = vmatpush.msra.mxu0 %v4135
        %4192 = vmatpush.msra.mxu0 %v4134
        %4193 = vmatmul.f32.gmra.mxu0 %v4175
        %v4194 = vpop.f32.mrf.mxu0
        %v4195 = vadd.f32 %v4172, %v4194
        %4196 = vdwg.mxu0
        %v4197 = vadd.f32 %v4075, %v4195
        %v4198 = vld [vmem:[%s73] sm:$0x1]
        %v4199 = vld [vmem:[%s75] sm:$0x1]
        %v4200 = vsel %vm1203, %v4197, 0.0
        %4201 = vadd.xlane.f32.xlu0 %v4200
        %v4202 = vpop.xlane.xlu0 %4201
        %v4203 = vmul.f32 %v4202, %v1213
        %v4204 = vsub.f32 %v4197, %v4203
        %v4205 = vmul.f32 %v4204, %v4204
        %v4206 = vsel %vm1203, %v4205, 0.0
        %4207 = vadd.xlane.f32.xlu0 %v4206
        %v4208 = vpop.xlane.xlu0 %4207
        %v4209 = vmul.f32 %v4208, 0.032258064
        %v4210 = vrsqrt.pop %v4209
        %v4211 = vmul.f32 %v4210, %v4209
        %v4212 = vmul.f32 %v4211, %v4210
        %v4213 = vmul.f32 0.5, %v4212
        %v4214 = vsub.f32 1.5, %v4213
        %v4215 = vmul.f32 %v4210, %v4214
        %v4216 = vmul.f32 %v4209, %v4215
        %vm4217 = vcmp.eq.f32.partialorder %v4209, inf
        %v4218 = vsel %vm4217, %v4209, %v4216
        %vm4219 = vcmp.eq.f32.partialorder %v4209, 0.0
        %v4220 = vand.u32 %v4209, 2147483648
        %v4221 = vsel %vm4219, %v4220, %v4218
        %v4223 = vperm.slane %v4198, 0
        %v4225 = vmul.f32 %v4223, %v4204
        %v4226 = vadd.f32 %v4221, 1e-06
        %v4227 = vrcp.pop %v4226
        %v4228 = vmul.f32 %v4226, %v4227
        %v4229 = vsub.f32 1.0, %v4228
        %v4230 = vmul.f32 %v4227, %v4229
        %v4231 = vadd.f32 %v4227, %v4230
        %vm4232 = vweird.f32 %v4226
        %vm4233 = vweird.f32 %v4227
        %vm4234 = vmor %vm4232, %vm4233
        %v4235 = vsel %vm4234, %v4227, %v4231
        %v4236 = vand.u32 2147483647, %v4226
        %vm4237 = vcmp.eq.f32.partialorder %v4236, 8.507059e+37
        %v4238 = vand.u32 %v4226, 2147483648
        %v4239 = vor.u32 1.1754944e-38, %v4238
        %v4240 = vsel %vm4237, %v4239, %v4235
        %v4241 = vmul.f32 %v4225, %v4240
        %v4243 = vperm.slane %v4199, 0
        %v4245 = vadd.f32 %v4241, %v4243
        %4246 = vst.msk [vmem:[%s1182] sm:$0xff] %vm1203, %v4245
        %s4247 = sand.u32 %s917, 1
        %s4248 = scalar_lea.sflag [#allocation3], %s4247
        %s4249 = sand.u32 %s917, 1
        %s4250 = smul.addr %s4249, 8
        %s4251 = scalar_lea.vmem [#allocation2], %s4250
        // Predicated region
        $region173: #{encoder_decoder_forward.1} parent=171 // pred_check
          %p4252 = pneg %p927
        $region174: #{encoder_decoder_forward.1} parent=171 // pred_check_branch
          %4254 = sbr.rel (%p4252) target = $region176
        $region175: #{encoder_decoder_forward.1} parent=171 // pred_region
          %4256 = vsyncadd %s4248, 0
          %s4257 = smul.addr %s91, 8
          %s4258 = scalar_lea.hbm %s77, %s4257
          %s4260 = sshll.u32 %s4251, 4
          %s4261 = int_to_ptr.vmem [resolvable:$true] %s4260
          %s4262 = sshll.u32 %s4258, 4
          %s4263 = int_to_ptr.hbm [resolvable:$true] %s4262
          %4265 = dma.vmem_to_hbm [thread:$0]  %s4261, 128, %s4263, %s4248
        $region176: #{encoder_decoder_forward.1} parent=171 // pred_fallthru
          _
      $region172: #{encoder_decoder_forward.1} parent=5 // pred_fallthru
        _
      %p4266 = scmp.le.s32.totalorder 2, %s86
      // Predicated region
      $region177: #{encoder_decoder_forward.1} parent=5 // pred_check
        %p4267 = pneg %p4266
      $region178: #{encoder_decoder_forward.1} parent=5 // pred_check_branch
        %4269 = sbr.rel (%p4267) target = $region180
      $region179: #{encoder_decoder_forward.1} parent=5 // pred_region
        %s4270 = ssub.s32 %s86, 2
        // Predicated region
        $region181: #{encoder_decoder_forward.1} parent=179 // pred_check
          %p4271 = pneg %p933
        $region182: #{encoder_decoder_forward.1} parent=179 // pred_check_branch
          %4273 = sbr.rel (%p4271) target = $region184
        $region183: #{encoder_decoder_forward.1} parent=179 // pred_region
          %s4274 = sand.u32 %s918, 1
          %s4275 = scalar_lea.sflag [#allocation3], %s4274
          %s4276 = sand.u32 %s918, 1
          %s4277 = smul.addr %s4276, 8
          %s4278 = scalar_lea.vmem [#allocation2], %s4277
          %4280 = dma.done %s4275, 128
        $region184: #{encoder_decoder_forward.1} parent=179 // pred_fallthru
          _
      $region180: #{encoder_decoder_forward.1} parent=5 // pred_fallthru
        _
    $region6: #{encoder_decoder_forward.1} parent=1 // loop_footer
      %s90 = sadd.s32 1, %s86
    $region7: #{encoder_decoder_forward.1} parent=1 // loop_footer_branch
      %85 = sbr.rel target = $region3
    $region8: #{encoder_decoder_forward.1} parent=1 // loop_exit
      _
    %4281 = vsyncpa [#allocation3], 1
    %s4282 = scalar_lea.sflag [#allocation3], 1
    %4283 = vsyncpa %s4282, 1

</llo_original>
